<compile_context>
chip_gen: v7x
topology: tpu7x:2x2x1
jax: 0.10.0
libtpu: 0.0.40
codegen_flags: <defaults>
</compile_context>

<pallas_src>
import functools

import numpy as np
import jax
import jax.numpy as jnp
from jax import lax
from jax.experimental import pallas as pl
from jax.experimental.pallas import tpu as pltpu

BN_EPS = 1e-5


# ----------------------------------------------------------------------------
# Fused ShakeBlock kernel: one grid step == one tile of B images.
# ----------------------------------------------------------------------------
def _shake_block_kernel(*refs, stride, B, Ho, Wo, has_shortcut):
    if has_shortcut:
        (x_ref, w1_ref, b1_ref, w2_ref, b2_ref, wsc_ref, bsc_ref,
         o_ref, y1p_ref) = refs
    else:
        (x_ref, w1_ref, b1_ref, w2_ref, b2_ref, o_ref, y1p_ref) = refs

    s = stride
    cin = x_ref.shape[-1]
    c2 = w1_ref.shape[-1]          # 2 * out_ch  (branch1 | branch2)
    cout = w2_ref.shape[-1]        # out_ch
    m = B * Ho * Wo

    xr = x_ref[...]                                   # (nphase*B, Hq, Wq, cin) f32
    xa = jnp.maximum(xr, 0.0).astype(jnp.bfloat16)    # ReLU (f32 math) + bf16, ONCE

    # ---- conv1 of both branches: 9 taps folded into the contraction dim K=9*cin ----
    taps = []
    for ky in range(3):
        for kx in range(3):
            ph = (ky % s) * s + (kx % s)      # spatial phase holding this tap
            dy, dx = ky // s, kx // s         # contiguous offset inside the phase
            taps.append(xa[ph * B:(ph + 1) * B, dy:dy + Ho, dx:dx + Wo, :])
    col1 = jnp.concatenate(taps, axis=-1).reshape(m, 9 * cin)        # (m, 9*cin) bf16
    y1 = jnp.dot(col1, w1_ref[...], preferred_element_type=jnp.float32) + b1_ref[...]
    y1 = jnp.maximum(y1, 0.0).astype(jnp.bfloat16)    # BN1 bias (folded scale) + ReLU

    # ---- stage y1 zero-padded in a bf16 VMEM scratch (never touches HBM) -----------
    # only the 1-wide halo is zeroed; the interior is fully overwritten each step.
    zrow = jnp.zeros((B, 1, Wo + 2, c2), jnp.bfloat16)
    zcol = jnp.zeros((B, Ho, 1, c2), jnp.bfloat16)
    y1p_ref[:, 0:1, :, :] = zrow
    y1p_ref[:, Ho + 1:Ho + 2, :, :] = zrow
    y1p_ref[:, 1:Ho + 1, 0:1, :] = zcol
    y1p_ref[:, 1:Ho + 1, Wo + 1:Wo + 2, :] = zcol
    y1p_ref[:, 1:Ho + 1, 1:Wo + 1, :] = y1.reshape(B, Ho, Wo, c2)

    # ---- conv2 of both branches (alpha=0.5 * BN2 folded): one matmul, K = 9*c2 -----
    taps2 = []
    for ky in range(3):
        for kx in range(3):
            taps2.append(y1p_ref[:, ky:ky + Ho, kx:kx + Wo, :])
    col2 = jnp.concatenate(taps2, axis=-1).reshape(m, 9 * c2)        # (m, 9*c2) bf16
    out = jnp.dot(col2, w2_ref[...], preferred_element_type=jnp.float32) + b2_ref[...]

    # ---- residual path fused into the epilogue --------------------------------------
    if has_shortcut:
        # Shortcut's h1 / h2 are exactly the (ky=1,kx=1) and (ky=2,kx=2) tap slabs.
        col_sc = jnp.concatenate([taps[4], taps[8]], axis=-1).reshape(m, 2 * cin)
        out = out + (jnp.dot(col_sc, wsc_ref[...],
                             preferred_element_type=jnp.float32) + bsc_ref[...])
    else:
        out = out + xr[:, 1:1 + Ho, 1:1 + Wo, :].reshape(m, cin)     # identity: raw x
    o_ref[...] = out.reshape(B, Ho * Wo, cout).astype(o_ref.dtype)   # lane-dense store


# ----------------------------------------------------------------------------
# Wrapper glue (layout prep + weight folding) in plain JAX
# ----------------------------------------------------------------------------
def _phase_split_pad(x, stride):
    """[N,H,W,C] -> ([N, nphase, Hq, Wq, C], Hq, Wq).

    Zero-pad by 1 and split into stride x stride spatial phases so every 3x3 conv tap
    inside the kernel is a contiguous (unit-stride) slice, even for stride-2 convs.
    Single rearrangement pass (1x HBM traffic) instead of a 9x im2col materialization.
    """
    N, H, W, C = x.shape
    xp = jnp.pad(x, ((0, 0), (1, 1), (1, 1), (0, 0)))
    Hp, Wp = H + 2, W + 2
    if stride == 1:
        return xp.reshape(N, 1, Hp, Wp, C), Hp, Wp
    assert stride == 2, "only stride 1 / 2 supported"
    Hq, Wq = (Hp + 1) // 2, (Wp + 1) // 2
    xp = jnp.pad(xp, ((0, 0), (0, 2 * Hq - Hp), (0, 2 * Wq - Wp), (0, 0)))
    xq = xp.reshape(N, Hq, 2, Wq, 2, C).transpose(0, 2, 4, 1, 3, 5)
    return xq.reshape(N, 4, Hq, Wq, C), Hq, Wq


def _prepare_weights(params, in_ch, out_ch):
    """Concat branch weights, fold BN scales and alpha=0.5, reshape to 2-D matmul
    operands matching the in-kernel tap-concat order, cast matmul weights to bf16."""
    br1, br2 = params["branch1"], params["branch2"]
    C = out_ch
    # conv1: both branches share the input -> concat along Cout; fold BN1 scale.
    w1c = jnp.concatenate([br1["w1"] * br1["s1"], br2["w1"] * br2["s1"]], axis=-1)
    w1c = w1c.reshape(9 * in_ch, 2 * C)                 # rows ordered (ky, kx, cin)
    b1c = jnp.concatenate([br1["b1"], br2["b1"]]).reshape(1, 2 * C)
    # conv2: fold alpha * BN2 scale into the weights, concat along Cin -> one conv.
    w2a = br1["w2"] * (0.5 * br1["s2"])
    w2b = br2["w2"] * (0.5 * br2["s2"])
    w2c = jnp.concatenate([w2a, w2b], axis=2).reshape(9 * 2 * C, C)
    b2c = (0.5 * (br1["b2"] + br2["b2"])).reshape(1, C)
    out = dict(w1=w1c.astype(jnp.bfloat16), b1=b1c,
               w2=w2c.astype(jnp.bfloat16), b2=b2c)
    if in_ch != out_ch:
        sc = params["shortcut"]
        Ch = C // 2
        wc1 = sc["wc1"] * sc["sc"][:Ch]                 # fold BN scale of each half
        wc2 = sc["wc2"] * sc["sc"][Ch:]
        top = jnp.concatenate([wc1, jnp.zeros((in_ch, C - Ch), jnp.float32)], axis=1)
        bot = jnp.concatenate([jnp.zeros((in_ch, Ch), jnp.float32), wc2], axis=1)
        out["wsc"] = jnp.concatenate([top, bot], axis=0).astype(jnp.bfloat16)  # (2*cin, C)
        out["bsc"] = sc["bc"].reshape(1, C)
    return out


def _pick_batch_tile(N, Ho, Wo, Hq, Wq, nphase, cin, c2, cout):
    """Images per grid step: target ~512 MXU rows, capped by a conservative VMEM
    budget that also fits v7x's 64 MiB VMEM with headroom."""
    B = max(1, 512 // (Ho * Wo))
    B = min(B, N)
    per_img = (2 * nphase * Hq * Wq * cin * 4         # double-buffered input block
               + 2 * Ho * Wo * cout * 4               # double-buffered output block
               + (Ho + 2) * (Wo + 2) * c2 * 2         # bf16 y1 scratch
               + Ho * Wo * 9 * (cin + c2) * 2         # bf16 col slabs
               + 2 * Ho * Wo * max(c2, cout) * 4)     # f32 accumulators / temporaries
    budget = 20 << 20
    while B > 1 and B * per_img > budget:
        B -= 1
    return B


def shake_block_forward(x_nchw, params, *, in_ch, out_ch, stride, batch_tile=None):
    x = jnp.transpose(x_nchw, (0, 2, 3, 1)).astype(jnp.float32)      # NCHW -> NHWC
    N, H, W, _ = x.shape
    Ho = (H - 1) // stride + 1
    Wo = (W - 1) // stride + 1
    has_shortcut = in_ch != out_ch
    if not has_shortcut:
        assert stride == 1, "identity shortcut requires stride == 1"

    c2 = 2 * out_ch
    nphase = stride * stride
    xq, Hq, Wq = _phase_split_pad(x, stride)          # (N, nphase, Hq, Wq, cin)

    B = batch_tile or _pick_batch_tile(N, Ho, Wo, Hq, Wq, nphase, in_ch, c2, out_ch)
    n_pad = (-N) % B
    if n_pad:
        xq = jnp.pad(xq, ((0, n_pad), (0, 0), (0, 0), (0, 0), (0, 0)))
    Np = N + n_pad
    Nt = Np // B
    # per grid block layout: [phase, image-in-tile, Hq, Wq, cin]  (phase-major)
    xq = xq.reshape(Nt, B, nphase, Hq, Wq, in_ch).transpose(0, 2, 1, 3, 4, 5)
    xq = xq.reshape(Nt * nphase * B, Hq, Wq, in_ch)

    w = _prepare_weights(params, in_ch, out_ch)

    kernel = functools.partial(_shake_block_kernel, stride=stride, B=B, Ho=Ho, Wo=Wo,
                               has_shortcut=has_shortcut)
    in_specs = [
        pl.BlockSpec((nphase * B, Hq, Wq, in_ch), lambda n: (n, 0, 0, 0)),
        pl.BlockSpec((9 * in_ch, c2), lambda n: (0, 0)),   # weights stay resident
        pl.BlockSpec((1, c2), lambda n: (0, 0)),
        pl.BlockSpec((9 * c2, out_ch), lambda n: (0, 0)),
        pl.BlockSpec((1, out_ch), lambda n: (0, 0)),
    ]
    args = [xq, w["w1"], w["b1"], w["w2"], w["b2"]]
    if has_shortcut:
        in_specs += [pl.BlockSpec((2 * in_ch, out_ch), lambda n: (0, 0)),
                     pl.BlockSpec((1, out_ch), lambda n: (0, 0))]
        args += [w["wsc"], w["bsc"]]

    flops = 2 * Np * Ho * Wo * (9 * in_ch * c2 + 9 * c2 * out_ch
                                + (2 * in_ch * out_ch if has_shortcut else 0))
    bytes_accessed = int(xq.size) * xq.dtype.itemsize \
        + Np * Ho * Wo * out_ch * 4 \
        + sum(int(np.prod(v.shape)) * v.dtype.itemsize for v in args[1:])

    out = pl.pallas_call(
        kernel,
        out_shape=jax.ShapeDtypeStruct((Np, Ho * Wo, out_ch), jnp.float32),
        grid=(Nt,),
        in_specs=in_specs,
        out_specs=pl.BlockSpec((B, Ho * Wo, out_ch), lambda n: (n, 0, 0)),
        scratch_shapes=[pltpu.VMEM((B, Ho + 2, Wo + 2, c2), jnp.bfloat16)],
        compiler_params=pltpu.CompilerParams(
            dimension_semantics=("parallel",),
            vmem_limit_bytes=48 * 1024 * 1024),        # within v7x's 64 MiB physical
        cost_estimate=pl.CostEstimate(flops=int(flops), transcendentals=0,
                                      bytes_accessed=int(bytes_accessed)),
    )(*args)
    out = out.reshape(Np, Ho, Wo, out_ch)[:N]
    return jnp.transpose(out, (0, 3, 1, 2))                          # NHWC -> NCHW


# ----------------------------------------------------------------------------
# Deterministic parameter init (BN folded to per-channel scale/bias)
# ----------------------------------------------------------------------------
def _fold_bn(gamma, beta, mean, var):
    scale = gamma / jnp.sqrt(var + BN_EPS)
    return scale, beta - mean * scale


def init_params(key, in_ch, out_ch):
    ks = jax.random.split(key, 5)

    def conv(k, kh, kw, cin, cout):
        w = 0.1 * jax.random.normal(k, (kh, kw, cin, cout), jnp.float32)
        return w.astype(jnp.bfloat16).astype(jnp.float32)   # bf16-representable params

    def bn(k, c):
        k1, k2, k3, k4 = jax.random.split(k, 4)
        gamma = 1.0 + 0.1 * jax.random.normal(k1, (c,), jnp.float32)
        beta = 0.1 * jax.random.normal(k2, (c,), jnp.float32)
        mean = 0.1 * jax.random.normal(k3, (c,), jnp.float32)
        var = jax.random.uniform(k4, (c,), jnp.float32, minval=0.5, maxval=1.5)
        return _fold_bn(gamma, beta, mean, var)

    def branch(k):
        k1, k2, k3, k4 = jax.random.split(k, 4)
        s1, b1 = bn(k2, out_ch)
        s2, b2 = bn(k4, out_ch)
        return dict(w1=conv(k1, 3, 3, in_ch, out_ch), s1=s1, b1=b1,
                    w2=conv(k3, 3, 3, out_ch, out_ch), s2=s2, b2=b2)

    params = dict(branch1=branch(ks[0]), branch2=branch(ks[1]))
    if in_ch != out_ch:
        sc, bc = bn(ks[4], out_ch)
        params["shortcut"] = dict(
            wc1=conv(ks[2], 1, 1, in_ch, out_ch // 2).reshape(in_ch, out_ch // 2),
            wc2=conv(ks[3], 1, 1, in_ch, out_ch // 2).reshape(in_ch, out_ch // 2),
            sc=sc, bc=bc)
    return params


# ----------------------------------------------------------------------------
# Pure-JAX f32 reference (for correctness check)
# ----------------------------------------------------------------------------
def _conv3x3_ref(x, w, stride):
    return lax.conv_general_dilated(x, w, (stride, stride), ((1, 1), (1, 1)),
                                    dimension_numbers=("NHWC", "HWIO", "NHWC"),
                                    precision=lax.Precision.HIGHEST)


def _branch_ref(x, p, stride):
    h = jnp.maximum(x, 0.0)
    h = _conv3x3_ref(h, p["w1"], stride) * p["s1"] + p["b1"]
    h = jnp.maximum(h, 0.0)
    return _conv3x3_ref(h, p["w2"], 1) * p["s2"] + p["b2"]


def _shortcut_ref(x, p, stride):
    h = jnp.maximum(x, 0.0)
    h1 = h[:, ::stride, ::stride, :]
    y1 = jnp.einsum("nhwc,cd->nhwd", h1, p["wc1"], precision=lax.Precision.HIGHEST)
    hs = jnp.pad(h[:, 1:, 1:, :], ((0, 0), (0, 1), (0, 1), (0, 0)))
    h2 = hs[:, ::stride, ::stride, :]
    y2 = jnp.einsum("nhwc,cd->nhwd", h2, p["wc2"], precision=lax.Precision.HIGHEST)
    return jnp.concatenate([y1, y2], axis=-1) * p["sc"] + p["bc"]


def shake_block_ref(x_nchw, params, *, in_ch, out_ch, stride):
    x = jnp.transpose(x_nchw, (0, 2, 3, 1)).astype(jnp.float32)
    h1 = _branch_ref(x, params["branch1"], stride)
    h2 = _branch_ref(x, params["branch2"], stride)
    h0 = x if in_ch == out_ch else _shortcut_ref(x, params["shortcut"], stride)
    out = 0.5 * h1 + 0.5 * h2 + h0
    return jnp.transpose(out, (0, 3, 1, 2))


# ----------------------------------------------------------------------------
if __name__ == "__main__":
    key = jax.random.PRNGKey(0)
    kx, kp1, kp2 = jax.random.split(key, 3)
    x = jax.random.normal(kx, (2, 4, 16, 16), jnp.float32)     # NCHW, like the module
    x = x.astype(jnp.bfloat16).astype(jnp.float32)             # bf16-representable input

    # Case 1: in_ch == out_ch, stride 1 -> identity shortcut
    p_eq = init_params(kp1, 4, 4)
    out_eq = shake_block_forward(x, p_eq, in_ch=4, out_ch=4, stride=1)
    jax.block_until_ready(out_eq)
    ref_eq = shake_block_ref(x, p_eq, in_ch=4, out_ch=4, stride=1)
    np.testing.assert_allclose(np.asarray(out_eq), np.asarray(ref_eq),
                               rtol=1e-2, atol=1e-2)
    assert out_eq.shape == (2, 4, 16, 16)

    # Case 2: channel expansion + stride 2 -> Shortcut path exercised
    p_ex = init_params(kp2, 4, 8)
    out_ex = shake_block_forward(x, p_ex, in_ch=4, out_ch=8, stride=2)
    jax.block_until_ready(out_ex)
    ref_ex = shake_block_ref(x, p_ex, in_ch=4, out_ch=8, stride=2)
    np.testing.assert_allclose(np.asarray(out_ex), np.asarray(ref_ex),
                               rtol=1e-2, atol=1e-2)
    assert out_ex.shape == (2, 8, 8, 8)

    print("KERNEL_OK")
</pallas_src>

<mosaic_0001>
module attributes {stable_mosaic.version = 11 : i64} {
  func.func @_shake_block_kernel(%arg0: i32, %arg1: memref<2x18x18x4xf32, #tpu.memory_space<vmem>>, %arg2: memref<36x8xbf16, #tpu.memory_space<vmem>>, %arg3: memref<1x8xf32, #tpu.memory_space<vmem>>, %arg4: memref<72x4xbf16, #tpu.memory_space<vmem>>, %arg5: memref<1x4xf32, #tpu.memory_space<vmem>>, %arg6: memref<2x256x4xf32, #tpu.memory_space<vmem>>, %arg7: memref<2x18x18x8xbf16, #tpu.memory_space<vmem>>) attributes {dimension_semantics = [#tpu.dimension_semantics<parallel>], iteration_bounds = array<i64: 1>, scalar_prefetch = 0 : i64, scratch_operands = 1 : i64, tpu.core_type = #tpu.core_type<tc>, window_params = [{transform_indices = @transform_0, window_bounds = array<i64: 2, 18, 18, 4>}, {pipeline_mode = #tpu.pipeline_mode<synchronous>, transform_indices = @transform_1, window_bounds = array<i64: 36, 8>}, {pipeline_mode = #tpu.pipeline_mode<synchronous>, transform_indices = @transform_2, window_bounds = array<i64: 1, 8>}, {pipeline_mode = #tpu.pipeline_mode<synchronous>, transform_indices = @transform_3, window_bounds = array<i64: 72, 4>}, {pipeline_mode = #tpu.pipeline_mode<synchronous>, transform_indices = @transform_4, window_bounds = array<i64: 1, 4>}, {transform_indices = @transform_5, window_bounds = array<i64: 2, 256, 4>}]} {
    %c0 = arith.constant 0 : index
    %c0_0 = arith.constant 0 : index
    %c0_1 = arith.constant 0 : index
    %c0_2 = arith.constant 0 : index
    %0 = vector.load %arg1[%c0, %c0_0, %c0_1, %c0_2] : memref<2x18x18x4xf32, #tpu.memory_space<vmem>>, vector<2x18x18x4xf32>
    %cst = arith.constant 0.000000e+00 : f32
    %1 = vector.broadcast %cst : f32 to vector<2x18x18x4xf32>
    %2 = arith.maximumf %0, %1 : vector<2x18x18x4xf32>
    %3 = arith.truncf %2 : vector<2x18x18x4xf32> to vector<2x18x18x4xbf16>
    %4 = vector.extract_strided_slice %3 {offsets = [0, 0, 0, 0], sizes = [2, 16, 16, 4], strides = [1, 1, 1, 1]} : vector<2x18x18x4xbf16> to vector<2x16x16x4xbf16>
    %5 = vector.extract_strided_slice %3 {offsets = [0, 0, 1, 0], sizes = [2, 16, 16, 4], strides = [1, 1, 1, 1]} : vector<2x18x18x4xbf16> to vector<2x16x16x4xbf16>
    %6 = vector.extract_strided_slice %3 {offsets = [0, 0, 2, 0], sizes = [2, 16, 16, 4], strides = [1, 1, 1, 1]} : vector<2x18x18x4xbf16> to vector<2x16x16x4xbf16>
    %7 = vector.extract_strided_slice %3 {offsets = [0, 1, 0, 0], sizes = [2, 16, 16, 4], strides = [1, 1, 1, 1]} : vector<2x18x18x4xbf16> to vector<2x16x16x4xbf16>
    %8 = vector.extract_strided_slice %3 {offsets = [0, 1, 1, 0], sizes = [2, 16, 16, 4], strides = [1, 1, 1, 1]} : vector<2x18x18x4xbf16> to vector<2x16x16x4xbf16>
    %9 = vector.extract_strided_slice %3 {offsets = [0, 1, 2, 0], sizes = [2, 16, 16, 4], strides = [1, 1, 1, 1]} : vector<2x18x18x4xbf16> to vector<2x16x16x4xbf16>
    %10 = vector.extract_strided_slice %3 {offsets = [0, 2, 0, 0], sizes = [2, 16, 16, 4], strides = [1, 1, 1, 1]} : vector<2x18x18x4xbf16> to vector<2x16x16x4xbf16>
    %11 = vector.extract_strided_slice %3 {offsets = [0, 2, 1, 0], sizes = [2, 16, 16, 4], strides = [1, 1, 1, 1]} : vector<2x18x18x4xbf16> to vector<2x16x16x4xbf16>
    %12 = vector.extract_strided_slice %3 {offsets = [0, 2, 2, 0], sizes = [2, 16, 16, 4], strides = [1, 1, 1, 1]} : vector<2x18x18x4xbf16> to vector<2x16x16x4xbf16>
    %13 = tpu.concatenate %4, %5, %6, %7, %8, %9, %10, %11, %12 in 3 : vector<2x16x16x4xbf16>, vector<2x16x16x4xbf16>, vector<2x16x16x4xbf16>, vector<2x16x16x4xbf16>, vector<2x16x16x4xbf16>, vector<2x16x16x4xbf16>, vector<2x16x16x4xbf16>, vector<2x16x16x4xbf16>, vector<2x16x16x4xbf16> -> vector<2x16x16x36xbf16>
    %14 = vector.shape_cast %13 : vector<2x16x16x36xbf16> to vector<512x36xbf16>
    %c0_3 = arith.constant 0 : index
    %c0_4 = arith.constant 0 : index
    %15 = vector.load %arg2[%c0_3, %c0_4] : memref<36x8xbf16, #tpu.memory_space<vmem>>, vector<36x8xbf16>
    %cst_5 = arith.constant dense<0.000000e+00> : vector<512x8xf32>
    %16 = tpu.matmul %14, %15, %cst_5 {dimension_numbers = #tpu.dot_dimension_numbers<[1], [0], [0], [1], [0, 0, 1, 1], [], []>} : vector<512x36xbf16>, vector<36x8xbf16>, vector<512x8xf32> -> vector<512x8xf32>
    %c0_6 = arith.constant 0 : index
    %c0_7 = arith.constant 0 : index
    %17 = vector.load %arg3[%c0_6, %c0_7] : memref<1x8xf32, #tpu.memory_space<vmem>>, vector<1x8xf32>
    %18 = vector.broadcast %17 : vector<1x8xf32> to vector<512x8xf32>
    %19 = arith.addf %16, %18 : vector<512x8xf32>
    %cst_8 = arith.constant 0.000000e+00 : f32
    %20 = vector.broadcast %cst_8 : f32 to vector<512x8xf32>
    %21 = arith.maximumf %19, %20 : vector<512x8xf32>
    %22 = arith.truncf %21 : vector<512x8xf32> to vector<512x8xbf16>
    %cst_9 = arith.constant 0.000000e+00 : bf16
    %23 = vector.broadcast %cst_9 : bf16 to vector<2x1x18x8xbf16>
    %cst_10 = arith.constant 0.000000e+00 : bf16
    %24 = vector.broadcast %cst_10 : bf16 to vector<2x16x1x8xbf16>
    %c0_11 = arith.constant 0 : index
    %c0_12 = arith.constant 0 : index
    %c0_13 = arith.constant 0 : index
    %c0_14 = arith.constant 0 : index
    %25 = vector.load %arg7[%c0_11, %c0_12, %c0_13, %c0_14] : memref<2x18x18x8xbf16, #tpu.memory_space<vmem>>, vector<2x1x18x8xbf16>
    tpu.vector_store %arg7[%c0_11, %c0_12, %c0_13, %c0_14], %23 {strides = array<i32>} : memref<2x18x18x8xbf16, #tpu.memory_space<vmem>>, vector<2x1x18x8xbf16>,
    %c0_15 = arith.constant 0 : index
    %c17 = arith.constant 17 : index
    %c0_16 = arith.constant 0 : index
    %c0_17 = arith.constant 0 : index
    %26 = vector.load %arg7[%c0_15, %c17, %c0_16, %c0_17] : memref<2x18x18x8xbf16, #tpu.memory_space<vmem>>, vector<2x1x18x8xbf16>
    tpu.vector_store %arg7[%c0_15, %c17, %c0_16, %c0_17], %23 {strides = array<i32>} : memref<2x18x18x8xbf16, #tpu.memory_space<vmem>>, vector<2x1x18x8xbf16>,
    %c0_18 = arith.constant 0 : index
    %c1 = arith.constant 1 : index
    %c0_19 = arith.constant 0 : index
    %c0_20 = arith.constant 0 : index
    %27 = vector.load %arg7[%c0_18, %c1, %c0_19, %c0_20] : memref<2x18x18x8xbf16, #tpu.memory_space<vmem>>, vector<2x16x1x8xbf16>
    tpu.vector_store %arg7[%c0_18, %c1, %c0_19, %c0_20], %24 {strides = array<i32>} : memref<2x18x18x8xbf16, #tpu.memory_space<vmem>>, vector<2x16x1x8xbf16>,
    %c0_21 = arith.constant 0 : index
    %c1_22 = arith.constant 1 : index
    %c17_23 = arith.constant 17 : index
    %c0_24 = arith.constant 0 : index
    %28 = vector.load %arg7[%c0_21, %c1_22, %c17_23, %c0_24] : memref<2x18x18x8xbf16, #tpu.memory_space<vmem>>, vector<2x16x1x8xbf16>
    tpu.vector_store %arg7[%c0_21, %c1_22, %c17_23, %c0_24], %24 {strides = array<i32>} : memref<2x18x18x8xbf16, #tpu.memory_space<vmem>>, vector<2x16x1x8xbf16>,
    %29 = vector.shape_cast %22 : vector<512x8xbf16> to vector<2x16x16x8xbf16>
    %c0_25 = arith.constant 0 : index
    %c1_26 = arith.constant 1 : index
    %c1_27 = arith.constant 1 : index
    %c0_28 = arith.constant 0 : index
    %30 = vector.load %arg7[%c0_25, %c1_26, %c1_27, %c0_28] : memref<2x18x18x8xbf16, #tpu.memory_space<vmem>>, vector<2x16x16x8xbf16>
    tpu.vector_store %arg7[%c0_25, %c1_26, %c1_27, %c0_28], %29 {strides = array<i32>} : memref<2x18x18x8xbf16, #tpu.memory_space<vmem>>, vector<2x16x16x8xbf16>,
    %c0_29 = arith.constant 0 : index
    %c0_30 = arith.constant 0 : index
    %c0_31 = arith.constant 0 : index
    %c0_32 = arith.constant 0 : index
    %31 = vector.load %arg7[%c0_29, %c0_30, %c0_31, %c0_32] : memref<2x18x18x8xbf16, #tpu.memory_space<vmem>>, vector<2x16x16x8xbf16>
    %c0_33 = arith.constant 0 : index
    %c0_34 = arith.constant 0 : index
    %c1_35 = arith.constant 1 : index
    %c0_36 = arith.constant 0 : index
    %32 = vector.load %arg7[%c0_33, %c0_34, %c1_35, %c0_36] : memref<2x18x18x8xbf16, #tpu.memory_space<vmem>>, vector<2x16x16x8xbf16>
    %c0_37 = arith.constant 0 : index
    %c0_38 = arith.constant 0 : index
    %c2 = arith.constant 2 : index
    %c0_39 = arith.constant 0 : index
    %33 = vector.load %arg7[%c0_37, %c0_38, %c2, %c0_39] : memref<2x18x18x8xbf16, #tpu.memory_space<vmem>>, vector<2x16x16x8xbf16>
    %c0_40 = arith.constant 0 : index
    %c1_41 = arith.constant 1 : index
    %c0_42 = arith.constant 0 : index
    %c0_43 = arith.constant 0 : index
    %34 = vector.load %arg7[%c0_40, %c1_41, %c0_42, %c0_43] : memref<2x18x18x8xbf16, #tpu.memory_space<vmem>>, vector<2x16x16x8xbf16>
    %c0_44 = arith.constant 0 : index
    %c1_45 = arith.constant 1 : index
    %c1_46 = arith.constant 1 : index
    %c0_47 = arith.constant 0 : index
    %35 = vector.load %arg7[%c0_44, %c1_45, %c1_46, %c0_47] : memref<2x18x18x8xbf16, #tpu.memory_space<vmem>>, vector<2x16x16x8xbf16>
    %c0_48 = arith.constant 0 : index
    %c1_49 = arith.constant 1 : index
    %c2_50 = arith.constant 2 : index
    %c0_51 = arith.constant 0 : index
    %36 = vector.load %arg7[%c0_48, %c1_49, %c2_50, %c0_51] : memref<2x18x18x8xbf16, #tpu.memory_space<vmem>>, vector<2x16x16x8xbf16>
    %c0_52 = arith.constant 0 : index
    %c2_53 = arith.constant 2 : index
    %c0_54 = arith.constant 0 : index
    %c0_55 = arith.constant 0 : index
    %37 = vector.load %arg7[%c0_52, %c2_53, %c0_54, %c0_55] : memref<2x18x18x8xbf16, #tpu.memory_space<vmem>>, vector<2x16x16x8xbf16>
    %c0_56 = arith.constant 0 : index
    %c2_57 = arith.constant 2 : index
    %c1_58 = arith.constant 1 : index
    %c0_59 = arith.constant 0 : index
    %38 = vector.load %arg7[%c0_56, %c2_57, %c1_58, %c0_59] : memref<2x18x18x8xbf16, #tpu.memory_space<vmem>>, vector<2x16x16x8xbf16>
    %c0_60 = arith.constant 0 : index
    %c2_61 = arith.constant 2 : index
    %c2_62 = arith.constant 2 : index
    %c0_63 = arith.constant 0 : index
    %39 = vector.load %arg7[%c0_60, %c2_61, %c2_62, %c0_63] : memref<2x18x18x8xbf16, #tpu.memory_space<vmem>>, vector<2x16x16x8xbf16>
    %40 = tpu.concatenate %31, %32, %33, %34, %35, %36, %37, %38, %39 in 3 : vector<2x16x16x8xbf16>, vector<2x16x16x8xbf16>, vector<2x16x16x8xbf16>, vector<2x16x16x8xbf16>, vector<2x16x16x8xbf16>, vector<2x16x16x8xbf16>, vector<2x16x16x8xbf16>, vector<2x16x16x8xbf16>, vector<2x16x16x8xbf16> -> vector<2x16x16x72xbf16>
    %41 = vector.shape_cast %40 : vector<2x16x16x72xbf16> to vector<512x72xbf16>
    %c0_64 = arith.constant 0 : index
    %c0_65 = arith.constant 0 : index
    %42 = vector.load %arg4[%c0_64, %c0_65] : memref<72x4xbf16, #tpu.memory_space<vmem>>, vector<72x4xbf16>
    %cst_66 = arith.constant dense<0.000000e+00> : vector<512x4xf32>
    %43 = tpu.matmul %41, %42, %cst_66 {dimension_numbers = #tpu.dot_dimension_numbers<[1], [0], [0], [1], [0, 0, 1, 1], [], []>} : vector<512x72xbf16>, vector<72x4xbf16>, vector<512x4xf32> -> vector<512x4xf32>
    %c0_67 = arith.constant 0 : index
    %c0_68 = arith.constant 0 : index
    %44 = vector.load %arg5[%c0_67, %c0_68] : memref<1x4xf32, #tpu.memory_space<vmem>>, vector<1x4xf32>
    %45 = vector.broadcast %44 : vector<1x4xf32> to vector<512x4xf32>
    %46 = arith.addf %43, %45 : vector<512x4xf32>
    %47 = vector.extract_strided_slice %0 {offsets = [0, 1, 1, 0], sizes = [2, 16, 16, 4], strides = [1, 1, 1, 1]} : vector<2x18x18x4xf32> to vector<2x16x16x4xf32>
    %48 = vector.shape_cast %47 : vector<2x16x16x4xf32> to vector<512x4xf32>
    %49 = arith.addf %46, %48 : vector<512x4xf32>
    %50 = vector.shape_cast %49 : vector<512x4xf32> to vector<2x256x4xf32>
    %c0_69 = arith.constant 0 : index
    %c0_70 = arith.constant 0 : index
    %c0_71 = arith.constant 0 : index
    %51 = vector.load %arg6[%c0_69, %c0_70, %c0_71] : memref<2x256x4xf32, #tpu.memory_space<vmem>>, vector<2x256x4xf32>
    tpu.vector_store %arg6[%c0_69, %c0_70, %c0_71], %50 {strides = array<i32>} : memref<2x256x4xf32, #tpu.memory_space<vmem>>, vector<2x256x4xf32>,
    return
  }
  func.func @transform_0(%arg0: i32) -> (i32, i32, i32, i32) {
    %c0_i32 = arith.constant 0 : i32
    %c0_i32_0 = arith.constant 0 : i32
    %c0_i32_1 = arith.constant 0 : i32
    %c0_i32_2 = arith.constant 0 : i32
    return %arg0, %c0_i32, %c0_i32_0, %c0_i32_1 : i32, i32, i32, i32
  }
  func.func @transform_1(%arg0: i32) -> (i32, i32) {
    %c0_i32 = arith.constant 0 : i32
    %c0_i32_0 = arith.constant 0 : i32
    %c0_i32_1 = arith.constant 0 : i32
    return %c0_i32, %c0_i32_0 : i32, i32
  }
  func.func @transform_2(%arg0: i32) -> (i32, i32) {
    %c0_i32 = arith.constant 0 : i32
    %c0_i32_0 = arith.constant 0 : i32
    %c0_i32_1 = arith.constant 0 : i32
    return %c0_i32, %c0_i32_0 : i32, i32
  }
  func.func @transform_3(%arg0: i32) -> (i32, i32) {
    %c0_i32 = arith.constant 0 : i32
    %c0_i32_0 = arith.constant 0 : i32
    %c0_i32_1 = arith.constant 0 : i32
    return %c0_i32, %c0_i32_0 : i32, i32
  }
  func.func @transform_4(%arg0: i32) -> (i32, i32) {
    %c0_i32 = arith.constant 0 : i32
    %c0_i32_0 = arith.constant 0 : i32
    %c0_i32_1 = arith.constant 0 : i32
    return %c0_i32, %c0_i32_0 : i32, i32
  }
  func.func @transform_5(%arg0: i32) -> (i32, i32, i32) {
    %c0_i32 = arith.constant 0 : i32
    %c0_i32_0 = arith.constant 0 : i32
    %c0_i32_1 = arith.constant 0 : i32
    return %arg0, %c0_i32, %c0_i32_0 : i32, i32, i32
  }
}

</mosaic_0001>

<llo_original>
// kernel: tpu_custom_call.1
$region0: #{tpu_custom_call.1}
  #allocation0 [shape = 'u32[]', space=smem, size = 0x4, offset = 0x4, fixed_abs, tag = 'smem constant byte address 0x4 - core index']
  #allocation1 [shape = 'u32[144,128]{1,0:T(1,128)}', space=vmem, size = 0x12000, scoped, tag = 'internal scratch']
  #allocation2 [shape = 'bf16[2,18,18,8]{3,2,1,0:T(8,128)(2,1)}', space=vmem, size = 0x36000, scoped, tag = 'scratch operand']
  %s0 = inlined_call_operand.vmem [shape: f32[2,18,18,4], index: 0, kind: input, shape index: {}]
  %s1 = inlined_call_operand.vmem [shape: bf16[36,8], index: 1, kind: input, shape index: {}]
  %s2 = inlined_call_operand.vmem [shape: f32[1,8], index: 2, kind: input, shape index: {}]
  %s3 = inlined_call_operand.vmem [shape: bf16[72,4], index: 3, kind: input, shape index: {}]
  %s4 = inlined_call_operand.vmem [shape: f32[1,4], index: 4, kind: input, shape index: {}]
  %s5 = inlined_call_operand.vmem [shape: f32[2,256,4], index: 5, kind: output, shape index: {}]
  %s6 = sld [smem:[#allocation0]]
  $region30: #{tpu_custom_call.1} parent=0
    _
  %s8 = ssub.s32 1, %s6
  %s9 = scalar_select 0, %s8, %s6
  // Predicated region
  $region2: #{tpu_custom_call.1} parent=0 // pred_check
    _
  $region3: #{tpu_custom_call.1} parent=0 // pred_check_branch
    %11 = sbr.rel (0) target = $region5
  $region4: #{tpu_custom_call.1} parent=0 // pred_region
    _
  $region5: #{tpu_custom_call.1} parent=0 // pred_fallthru
    _
  // Predicated region
  $region6: #{tpu_custom_call.1} parent=0 // pred_check
    _
  $region7: #{tpu_custom_call.1} parent=0 // pred_check_branch
    %13 = sbr.rel (0) target = $region9
  $region8: #{tpu_custom_call.1} parent=0 // pred_region
    _
  $region9: #{tpu_custom_call.1} parent=0 // pred_fallthru
    _
  // Predicated region
  $region10: #{tpu_custom_call.1} parent=0 // pred_check
    _
  $region11: #{tpu_custom_call.1} parent=0 // pred_check_branch
    %15 = sbr.rel (0) target = $region13
  $region12: #{tpu_custom_call.1} parent=0 // pred_region
    _
  $region13: #{tpu_custom_call.1} parent=0 // pred_fallthru
    _
  // Predicated region
  $region14: #{tpu_custom_call.1} parent=0 // pred_check
    _
  $region15: #{tpu_custom_call.1} parent=0 // pred_check_branch
    %17 = sbr.rel (0) target = $region17
  $region16: #{tpu_custom_call.1} parent=0 // pred_region
    _
  $region17: #{tpu_custom_call.1} parent=0 // pred_fallthru
    _
  // Predicated region
  $region18: #{tpu_custom_call.1} parent=0 // pred_check
    _
  $region19: #{tpu_custom_call.1} parent=0 // pred_check_branch
    %19 = sbr.rel (0) target = $region21
  $region20: #{tpu_custom_call.1} parent=0 // pred_region
    _
  $region21: #{tpu_custom_call.1} parent=0 // pred_fallthru
    _
  %v21 = vld [vmem:[%s0] sm:$0xff]
  %v22 = vld [vmem:[%s0 + $0x8] sm:$0xff]
  %v23 = vld [vmem:[%s0 + $0x10] sm:$0x3]
  %v24 = vld [vmem:[%s0 + $0x18] sm:$0xff]
  %v25 = vld [vmem:[%s0 + $0x20] sm:$0xff]
  %v26 = vld [vmem:[%s0 + $0x28] sm:$0x3]
  %v27 = vld [vmem:[%s0 + $0x30] sm:$0xff]
  %v28 = vld [vmem:[%s0 + $0x38] sm:$0xff]
  %v29 = vld [vmem:[%s0 + $0x40] sm:$0x3]
  %v30 = vld [vmem:[%s0 + $0x48] sm:$0xff]
  %v31 = vld [vmem:[%s0 + $0x50] sm:$0xff]
  %v32 = vld [vmem:[%s0 + $0x58] sm:$0x3]
  %v33 = vld [vmem:[%s0 + $0x60] sm:$0xff]
  %v34 = vld [vmem:[%s0 + $0x68] sm:$0xff]
  %v35 = vld [vmem:[%s0 + $0x70] sm:$0x3]
  %v36 = vld [vmem:[%s0 + $0x78] sm:$0xff]
  %v37 = vld [vmem:[%s0 + $0x80] sm:$0xff]
  %v38 = vld [vmem:[%s0 + $0x88] sm:$0x3]
  %v39 = vld [vmem:[%s0 + $0x90] sm:$0xff]
  %v40 = vld [vmem:[%s0 + $0x98] sm:$0xff]
  %v41 = vld [vmem:[%s0 + $0xa0] sm:$0x3]
  %v42 = vld [vmem:[%s0 + $0xa8] sm:$0xff]
  %v43 = vld [vmem:[%s0 + $0xb0] sm:$0xff]
  %v44 = vld [vmem:[%s0 + $0xb8] sm:$0x3]
  %v45 = vld [vmem:[%s0 + $0xc0] sm:$0xff]
  %v46 = vld [vmem:[%s0 + $0xc8] sm:$0xff]
  %v47 = vld [vmem:[%s0 + $0xd0] sm:$0x3]
  %v48 = vld [vmem:[%s0 + $0xd8] sm:$0xff]
  %v49 = vld [vmem:[%s0 + $0xe0] sm:$0xff]
  %v50 = vld [vmem:[%s0 + $0xe8] sm:$0x3]
  %v51 = vld [vmem:[%s0 + $0xf0] sm:$0xff]
  %v52 = vld [vmem:[%s0 + $0xf8] sm:$0xff]
  %v53 = vld [vmem:[%s0 + $0x100] sm:$0x3]
  %v54 = vld [vmem:[%s0 + $0x108] sm:$0xff]
  %v55 = vld [vmem:[%s0 + $0x110] sm:$0xff]
  %v56 = vld [vmem:[%s0 + $0x118] sm:$0x3]
  %v57 = vld [vmem:[%s0 + $0x120] sm:$0xff]
  %v58 = vld [vmem:[%s0 + $0x128] sm:$0xff]
  %v59 = vld [vmem:[%s0 + $0x130] sm:$0x3]
  %v60 = vld [vmem:[%s0 + $0x138] sm:$0xff]
  %v61 = vld [vmem:[%s0 + $0x140] sm:$0xff]
  %v62 = vld [vmem:[%s0 + $0x148] sm:$0x3]
  %v63 = vld [vmem:[%s0 + $0x150] sm:$0xff]
  %v64 = vld [vmem:[%s0 + $0x158] sm:$0xff]
  %v65 = vld [vmem:[%s0 + $0x160] sm:$0x3]
  %v66 = vld [vmem:[%s0 + $0x168] sm:$0xff]
  %v67 = vld [vmem:[%s0 + $0x170] sm:$0xff]
  %v68 = vld [vmem:[%s0 + $0x178] sm:$0x3]
  %v69 = vld [vmem:[%s0 + $0x180] sm:$0xff]
  %v70 = vld [vmem:[%s0 + $0x188] sm:$0xff]
  %v71 = vld [vmem:[%s0 + $0x190] sm:$0x3]
  %v72 = vld [vmem:[%s0 + $0x198] sm:$0xff]
  %v73 = vld [vmem:[%s0 + $0x1a0] sm:$0xff]
  %v74 = vld [vmem:[%s0 + $0x1a8] sm:$0x3]
  %v75 = vld [vmem:[%s0 + $0x1b0] sm:$0xff]
  %v76 = vld [vmem:[%s0 + $0x1b8] sm:$0xff]
  %v77 = vld [vmem:[%s0 + $0x1c0] sm:$0x3]
  %v78 = vld [vmem:[%s0 + $0x1c8] sm:$0xff]
  %v79 = vld [vmem:[%s0 + $0x1d0] sm:$0xff]
  %v80 = vld [vmem:[%s0 + $0x1d8] sm:$0x3]
  %v81 = vld [vmem:[%s0 + $0x1e0] sm:$0xff]
  %v82 = vld [vmem:[%s0 + $0x1e8] sm:$0xff]
  %v83 = vld [vmem:[%s0 + $0x1f0] sm:$0x3]
  %v84 = vld [vmem:[%s0 + $0x1f8] sm:$0xff]
  %v85 = vld [vmem:[%s0 + $0x200] sm:$0xff]
  %v86 = vld [vmem:[%s0 + $0x208] sm:$0x3]
  %v87 = vld [vmem:[%s0 + $0x210] sm:$0xff]
  %v88 = vld [vmem:[%s0 + $0x218] sm:$0xff]
  %v89 = vld [vmem:[%s0 + $0x220] sm:$0x3]
  %v90 = vld [vmem:[%s0 + $0x228] sm:$0xff]
  %v91 = vld [vmem:[%s0 + $0x230] sm:$0xff]
  %v92 = vld [vmem:[%s0 + $0x238] sm:$0x3]
  %v93 = vld [vmem:[%s0 + $0x240] sm:$0xff]
  %v94 = vld [vmem:[%s0 + $0x248] sm:$0xff]
  %v95 = vld [vmem:[%s0 + $0x250] sm:$0x3]
  %v96 = vld [vmem:[%s0 + $0x258] sm:$0xff]
  %v97 = vld [vmem:[%s0 + $0x260] sm:$0xff]
  %v98 = vld [vmem:[%s0 + $0x268] sm:$0x3]
  %v99 = vld [vmem:[%s0 + $0x270] sm:$0xff]
  %v100 = vld [vmem:[%s0 + $0x278] sm:$0xff]
  %v101 = vld [vmem:[%s0 + $0x280] sm:$0x3]
  %v102 = vld [vmem:[%s0 + $0x288] sm:$0xff]
  %v103 = vld [vmem:[%s0 + $0x290] sm:$0xff]
  %v104 = vld [vmem:[%s0 + $0x298] sm:$0x3]
  %v105 = vld [vmem:[%s0 + $0x2a0] sm:$0xff]
  %v106 = vld [vmem:[%s0 + $0x2a8] sm:$0xff]
  %v107 = vld [vmem:[%s0 + $0x2b0] sm:$0x3]
  %v108 = vld [vmem:[%s0 + $0x2b8] sm:$0xff]
  %v109 = vld [vmem:[%s0 + $0x2c0] sm:$0xff]
  %v110 = vld [vmem:[%s0 + $0x2c8] sm:$0x3]
  %v111 = vld [vmem:[%s0 + $0x2d0] sm:$0xff]
  %v112 = vld [vmem:[%s0 + $0x2d8] sm:$0xff]
  %v113 = vld [vmem:[%s0 + $0x2e0] sm:$0x3]
  %v114 = vld [vmem:[%s0 + $0x2e8] sm:$0xff]
  %v115 = vld [vmem:[%s0 + $0x2f0] sm:$0xff]
  %v116 = vld [vmem:[%s0 + $0x2f8] sm:$0x3]
  %v117 = vld [vmem:[%s0 + $0x300] sm:$0xff]
  %v118 = vld [vmem:[%s0 + $0x308] sm:$0xff]
  %v119 = vld [vmem:[%s0 + $0x310] sm:$0x3]
  %v120 = vld [vmem:[%s0 + $0x318] sm:$0xff]
  %v121 = vld [vmem:[%s0 + $0x320] sm:$0xff]
  %v122 = vld [vmem:[%s0 + $0x328] sm:$0x3]
  %v123 = vld [vmem:[%s0 + $0x330] sm:$0xff]
  %v124 = vld [vmem:[%s0 + $0x338] sm:$0xff]
  %v125 = vld [vmem:[%s0 + $0x340] sm:$0x3]
  %v126 = vld [vmem:[%s0 + $0x348] sm:$0xff]
  %v127 = vld [vmem:[%s0 + $0x350] sm:$0xff]
  %v128 = vld [vmem:[%s0 + $0x358] sm:$0x3]
  %v129 = vmax.f32 %v21, 0.0
  %v130 = vmax.f32 %v22, 0.0
  %v131 = vmax.f32 %v23, 0.0
  %v132 = vmax.f32 %v24, 0.0
  %v133 = vmax.f32 %v25, 0.0
  %v134 = vmax.f32 %v26, 0.0
  %v135 = vmax.f32 %v27, 0.0
  %v136 = vmax.f32 %v28, 0.0
  %v137 = vmax.f32 %v29, 0.0
  %v138 = vmax.f32 %v30, 0.0
  %v139 = vmax.f32 %v31, 0.0
  %v140 = vmax.f32 %v32, 0.0
  %v141 = vmax.f32 %v33, 0.0
  %v142 = vmax.f32 %v34, 0.0
  %v143 = vmax.f32 %v35, 0.0
  %v144 = vmax.f32 %v36, 0.0
  %v145 = vmax.f32 %v37, 0.0
  %v146 = vmax.f32 %v38, 0.0
  %v147 = vmax.f32 %v39, 0.0
  %v148 = vmax.f32 %v40, 0.0
  %v149 = vmax.f32 %v41, 0.0
  %v150 = vmax.f32 %v42, 0.0
  %v151 = vmax.f32 %v43, 0.0
  %v152 = vmax.f32 %v44, 0.0
  %v153 = vmax.f32 %v45, 0.0
  %v154 = vmax.f32 %v46, 0.0
  %v155 = vmax.f32 %v47, 0.0
  %v156 = vmax.f32 %v48, 0.0
  %v157 = vmax.f32 %v49, 0.0
  %v158 = vmax.f32 %v50, 0.0
  %v159 = vmax.f32 %v51, 0.0
  %v160 = vmax.f32 %v52, 0.0
  %v161 = vmax.f32 %v53, 0.0
  %v162 = vmax.f32 %v54, 0.0
  %v163 = vmax.f32 %v55, 0.0
  %v164 = vmax.f32 %v56, 0.0
  %v165 = vmax.f32 %v57, 0.0
  %v166 = vmax.f32 %v58, 0.0
  %v167 = vmax.f32 %v59, 0.0
  %v168 = vmax.f32 %v60, 0.0
  %v169 = vmax.f32 %v61, 0.0
  %v170 = vmax.f32 %v62, 0.0
  %v171 = vmax.f32 %v63, 0.0
  %v172 = vmax.f32 %v64, 0.0
  %v173 = vmax.f32 %v65, 0.0
  %v174 = vmax.f32 %v66, 0.0
  %v175 = vmax.f32 %v67, 0.0
  %v176 = vmax.f32 %v68, 0.0
  %v177 = vmax.f32 %v69, 0.0
  %v178 = vmax.f32 %v70, 0.0
  %v179 = vmax.f32 %v71, 0.0
  %v180 = vmax.f32 %v72, 0.0
  %v181 = vmax.f32 %v73, 0.0
  %v182 = vmax.f32 %v74, 0.0
  %v183 = vmax.f32 %v75, 0.0
  %v184 = vmax.f32 %v76, 0.0
  %v185 = vmax.f32 %v77, 0.0
  %v186 = vmax.f32 %v78, 0.0
  %v187 = vmax.f32 %v79, 0.0
  %v188 = vmax.f32 %v80, 0.0
  %v189 = vmax.f32 %v81, 0.0
  %v190 = vmax.f32 %v82, 0.0
  %v191 = vmax.f32 %v83, 0.0
  %v192 = vmax.f32 %v84, 0.0
  %v193 = vmax.f32 %v85, 0.0
  %v194 = vmax.f32 %v86, 0.0
  %v195 = vmax.f32 %v87, 0.0
  %v196 = vmax.f32 %v88, 0.0
  %v197 = vmax.f32 %v89, 0.0
  %v198 = vmax.f32 %v90, 0.0
  %v199 = vmax.f32 %v91, 0.0
  %v200 = vmax.f32 %v92, 0.0
  %v201 = vmax.f32 %v93, 0.0
  %v202 = vmax.f32 %v94, 0.0
  %v203 = vmax.f32 %v95, 0.0
  %v204 = vmax.f32 %v96, 0.0
  %v205 = vmax.f32 %v97, 0.0
  %v206 = vmax.f32 %v98, 0.0
  %v207 = vmax.f32 %v99, 0.0
  %v208 = vmax.f32 %v100, 0.0
  %v209 = vmax.f32 %v101, 0.0
  %v210 = vmax.f32 %v102, 0.0
  %v211 = vmax.f32 %v103, 0.0
  %v212 = vmax.f32 %v104, 0.0
  %v213 = vmax.f32 %v105, 0.0
  %v214 = vmax.f32 %v106, 0.0
  %v215 = vmax.f32 %v107, 0.0
  %v216 = vmax.f32 %v108, 0.0
  %v217 = vmax.f32 %v109, 0.0
  %v218 = vmax.f32 %v110, 0.0
  %v219 = vmax.f32 %v111, 0.0
  %v220 = vmax.f32 %v112, 0.0
  %v221 = vmax.f32 %v113, 0.0
  %v222 = vmax.f32 %v114, 0.0
  %v223 = vmax.f32 %v115, 0.0
  %v224 = vmax.f32 %v116, 0.0
  %v225 = vmax.f32 %v117, 0.0
  %v226 = vmax.f32 %v118, 0.0
  %v227 = vmax.f32 %v119, 0.0
  %v228 = vmax.f32 %v120, 0.0
  %v229 = vmax.f32 %v121, 0.0
  %v230 = vmax.f32 %v122, 0.0
  %v231 = vmax.f32 %v123, 0.0
  %v232 = vmax.f32 %v124, 0.0
  %v233 = vmax.f32 %v125, 0.0
  %v234 = vmax.f32 %v126, 0.0
  %v235 = vmax.f32 %v127, 0.0
  %v236 = vmax.f32 %v128, 0.0
  %v237 = vpack.c.bf16 %v130, %v129
  %v238 = vpack.c.bf16 %v131, %v131
  %v239 = vpack.c.bf16 %v133, %v132
  %v240 = vpack.c.bf16 %v134, %v134
  %v241 = vpack.c.bf16 %v136, %v135
  %v242 = vpack.c.bf16 %v137, %v137
  %v243 = vpack.c.bf16 %v139, %v138
  %v244 = vpack.c.bf16 %v140, %v140
  %v245 = vpack.c.bf16 %v142, %v141
  %v246 = vpack.c.bf16 %v143, %v143
  %v247 = vpack.c.bf16 %v145, %v144
  %v248 = vpack.c.bf16 %v146, %v146
  %v249 = vpack.c.bf16 %v148, %v147
  %v250 = vpack.c.bf16 %v149, %v149
  %v251 = vpack.c.bf16 %v151, %v150
  %v252 = vpack.c.bf16 %v152, %v152
  %v253 = vpack.c.bf16 %v154, %v153
  %v254 = vpack.c.bf16 %v155, %v155
  %v255 = vpack.c.bf16 %v157, %v156
  %v256 = vpack.c.bf16 %v158, %v158
  %v257 = vpack.c.bf16 %v160, %v159
  %v258 = vpack.c.bf16 %v161, %v161
  %v259 = vpack.c.bf16 %v163, %v162
  %v260 = vpack.c.bf16 %v164, %v164
  %v261 = vpack.c.bf16 %v166, %v165
  %v262 = vpack.c.bf16 %v167, %v167
  %v263 = vpack.c.bf16 %v169, %v168
  %v264 = vpack.c.bf16 %v170, %v170
  %v265 = vpack.c.bf16 %v172, %v171
  %v266 = vpack.c.bf16 %v173, %v173
  %v267 = vpack.c.bf16 %v175, %v174
  %v268 = vpack.c.bf16 %v176, %v176
  %v269 = vpack.c.bf16 %v178, %v177
  %v270 = vpack.c.bf16 %v179, %v179
  %v271 = vpack.c.bf16 %v181, %v180
  %v272 = vpack.c.bf16 %v182, %v182
  %v273 = vpack.c.bf16 %v184, %v183
  %v274 = vpack.c.bf16 %v185, %v185
  %v275 = vpack.c.bf16 %v187, %v186
  %v276 = vpack.c.bf16 %v188, %v188
  %v277 = vpack.c.bf16 %v190, %v189
  %v278 = vpack.c.bf16 %v191, %v191
  %v279 = vpack.c.bf16 %v193, %v192
  %v280 = vpack.c.bf16 %v194, %v194
  %v281 = vpack.c.bf16 %v196, %v195
  %v282 = vpack.c.bf16 %v197, %v197
  %v283 = vpack.c.bf16 %v199, %v198
  %v284 = vpack.c.bf16 %v200, %v200
  %v285 = vpack.c.bf16 %v202, %v201
  %v286 = vpack.c.bf16 %v203, %v203
  %v287 = vpack.c.bf16 %v205, %v204
  %v288 = vpack.c.bf16 %v206, %v206
  %v289 = vpack.c.bf16 %v208, %v207
  %v290 = vpack.c.bf16 %v209, %v209
  %v291 = vpack.c.bf16 %v211, %v210
  %v292 = vpack.c.bf16 %v212, %v212
  %v293 = vpack.c.bf16 %v214, %v213
  %v294 = vpack.c.bf16 %v215, %v215
  %v295 = vpack.c.bf16 %v217, %v216
  %v296 = vpack.c.bf16 %v218, %v218
  %v297 = vpack.c.bf16 %v220, %v219
  %v298 = vpack.c.bf16 %v221, %v221
  %v299 = vpack.c.bf16 %v223, %v222
  %v300 = vpack.c.bf16 %v224, %v224
  %v301 = vpack.c.bf16 %v226, %v225
  %v302 = vpack.c.bf16 %v227, %v227
  %v303 = vpack.c.bf16 %v229, %v228
  %v304 = vpack.c.bf16 %v230, %v230
  %v305 = vpack.c.bf16 %v232, %v231
  %v306 = vpack.c.bf16 %v233, %v233
  %v307 = vpack.c.bf16 %v235, %v234
  %v308 = vpack.c.bf16 %v236, %v236
  %vm309 = vsmask.f32 7424
  %v311 = vshrl.u32 %v237, 16
  %v313 = vshll.u32 %v237, 16
  %v315 = vrot.slane %v313, 1
  %v316 = vor.u32 %v311, %v315
  %v318 = vshll.u32 %v238, 16
  %v320 = vrot.slane %v318, 1
  %v321 = vsel %vm309, %v316, %v320
  %v323 = vshrl.u32 %v239, 16
  %v325 = vshll.u32 %v239, 16
  %v327 = vrot.slane %v325, 1
  %v328 = vor.u32 %v323, %v327
  %v330 = vshll.u32 %v240, 16
  %v332 = vrot.slane %v330, 1
  %v333 = vsel %vm309, %v328, %v332
  %v335 = vshrl.u32 %v241, 16
  %v337 = vshll.u32 %v241, 16
  %v339 = vrot.slane %v337, 1
  %v340 = vor.u32 %v335, %v339
  %v342 = vshll.u32 %v242, 16
  %v344 = vrot.slane %v342, 1
  %v345 = vsel %vm309, %v340, %v344
  %v347 = vshrl.u32 %v243, 16
  %v349 = vshll.u32 %v243, 16
  %v351 = vrot.slane %v349, 1
  %v352 = vor.u32 %v347, %v351
  %v354 = vshll.u32 %v244, 16
  %v356 = vrot.slane %v354, 1
  %v357 = vsel %vm309, %v352, %v356
  %v359 = vshrl.u32 %v245, 16
  %v361 = vshll.u32 %v245, 16
  %v363 = vrot.slane %v361, 1
  %v364 = vor.u32 %v359, %v363
  %v366 = vshll.u32 %v246, 16
  %v368 = vrot.slane %v366, 1
  %v369 = vsel %vm309, %v364, %v368
  %v371 = vshrl.u32 %v247, 16
  %v373 = vshll.u32 %v247, 16
  %v375 = vrot.slane %v373, 1
  %v376 = vor.u32 %v371, %v375
  %v378 = vshll.u32 %v248, 16
  %v380 = vrot.slane %v378, 1
  %v381 = vsel %vm309, %v376, %v380
  %v383 = vshrl.u32 %v249, 16
  %v385 = vshll.u32 %v249, 16
  %v387 = vrot.slane %v385, 1
  %v388 = vor.u32 %v383, %v387
  %v390 = vshll.u32 %v250, 16
  %v392 = vrot.slane %v390, 1
  %v393 = vsel %vm309, %v388, %v392
  %v395 = vshrl.u32 %v251, 16
  %v397 = vshll.u32 %v251, 16
  %v399 = vrot.slane %v397, 1
  %v400 = vor.u32 %v395, %v399
  %v402 = vshll.u32 %v252, 16
  %v404 = vrot.slane %v402, 1
  %v405 = vsel %vm309, %v400, %v404
  %v407 = vshrl.u32 %v253, 16
  %v409 = vshll.u32 %v253, 16
  %v411 = vrot.slane %v409, 1
  %v412 = vor.u32 %v407, %v411
  %v414 = vshll.u32 %v254, 16
  %v416 = vrot.slane %v414, 1
  %v417 = vsel %vm309, %v412, %v416
  %v419 = vshrl.u32 %v255, 16
  %v421 = vshll.u32 %v255, 16
  %v423 = vrot.slane %v421, 1
  %v424 = vor.u32 %v419, %v423
  %v426 = vshll.u32 %v256, 16
  %v428 = vrot.slane %v426, 1
  %v429 = vsel %vm309, %v424, %v428
  %v431 = vshrl.u32 %v257, 16
  %v433 = vshll.u32 %v257, 16
  %v435 = vrot.slane %v433, 1
  %v436 = vor.u32 %v431, %v435
  %v438 = vshll.u32 %v258, 16
  %v440 = vrot.slane %v438, 1
  %v441 = vsel %vm309, %v436, %v440
  %v443 = vshrl.u32 %v259, 16
  %v445 = vshll.u32 %v259, 16
  %v447 = vrot.slane %v445, 1
  %v448 = vor.u32 %v443, %v447
  %v450 = vshll.u32 %v260, 16
  %v452 = vrot.slane %v450, 1
  %v453 = vsel %vm309, %v448, %v452
  %v455 = vshrl.u32 %v261, 16
  %v457 = vshll.u32 %v261, 16
  %v459 = vrot.slane %v457, 1
  %v460 = vor.u32 %v455, %v459
  %v462 = vshll.u32 %v262, 16
  %v464 = vrot.slane %v462, 1
  %v465 = vsel %vm309, %v460, %v464
  %v467 = vshrl.u32 %v263, 16
  %v469 = vshll.u32 %v263, 16
  %v471 = vrot.slane %v469, 1
  %v472 = vor.u32 %v467, %v471
  %v474 = vshll.u32 %v264, 16
  %v476 = vrot.slane %v474, 1
  %v477 = vsel %vm309, %v472, %v476
  %v479 = vshrl.u32 %v265, 16
  %v481 = vshll.u32 %v265, 16
  %v483 = vrot.slane %v481, 1
  %v484 = vor.u32 %v479, %v483
  %v486 = vshll.u32 %v266, 16
  %v488 = vrot.slane %v486, 1
  %v489 = vsel %vm309, %v484, %v488
  %v491 = vshrl.u32 %v267, 16
  %v493 = vshll.u32 %v267, 16
  %v495 = vrot.slane %v493, 1
  %v496 = vor.u32 %v491, %v495
  %v498 = vshll.u32 %v268, 16
  %v500 = vrot.slane %v498, 1
  %v501 = vsel %vm309, %v496, %v500
  %v503 = vshrl.u32 %v273, 16
  %v505 = vshll.u32 %v273, 16
  %v507 = vrot.slane %v505, 1
  %v508 = vor.u32 %v503, %v507
  %v510 = vshll.u32 %v274, 16
  %v512 = vrot.slane %v510, 1
  %v513 = vsel %vm309, %v508, %v512
  %v515 = vshrl.u32 %v275, 16
  %v517 = vshll.u32 %v275, 16
  %v519 = vrot.slane %v517, 1
  %v520 = vor.u32 %v515, %v519
  %v522 = vshll.u32 %v276, 16
  %v524 = vrot.slane %v522, 1
  %v525 = vsel %vm309, %v520, %v524
  %v527 = vshrl.u32 %v277, 16
  %v529 = vshll.u32 %v277, 16
  %v531 = vrot.slane %v529, 1
  %v532 = vor.u32 %v527, %v531
  %v534 = vshll.u32 %v278, 16
  %v536 = vrot.slane %v534, 1
  %v537 = vsel %vm309, %v532, %v536
  %v539 = vshrl.u32 %v279, 16
  %v541 = vshll.u32 %v279, 16
  %v543 = vrot.slane %v541, 1
  %v544 = vor.u32 %v539, %v543
  %v546 = vshll.u32 %v280, 16
  %v548 = vrot.slane %v546, 1
  %v549 = vsel %vm309, %v544, %v548
  %v551 = vshrl.u32 %v281, 16
  %v553 = vshll.u32 %v281, 16
  %v555 = vrot.slane %v553, 1
  %v556 = vor.u32 %v551, %v555
  %v558 = vshll.u32 %v282, 16
  %v560 = vrot.slane %v558, 1
  %v561 = vsel %vm309, %v556, %v560
  %v563 = vshrl.u32 %v283, 16
  %v565 = vshll.u32 %v283, 16
  %v567 = vrot.slane %v565, 1
  %v568 = vor.u32 %v563, %v567
  %v570 = vshll.u32 %v284, 16
  %v572 = vrot.slane %v570, 1
  %v573 = vsel %vm309, %v568, %v572
  %v575 = vshrl.u32 %v285, 16
  %v577 = vshll.u32 %v285, 16
  %v579 = vrot.slane %v577, 1
  %v580 = vor.u32 %v575, %v579
  %v582 = vshll.u32 %v286, 16
  %v584 = vrot.slane %v582, 1
  %v585 = vsel %vm309, %v580, %v584
  %v587 = vshrl.u32 %v287, 16
  %v589 = vshll.u32 %v287, 16
  %v591 = vrot.slane %v589, 1
  %v592 = vor.u32 %v587, %v591
  %v594 = vshll.u32 %v288, 16
  %v596 = vrot.slane %v594, 1
  %v597 = vsel %vm309, %v592, %v596
  %v599 = vshrl.u32 %v289, 16
  %v601 = vshll.u32 %v289, 16
  %v603 = vrot.slane %v601, 1
  %v604 = vor.u32 %v599, %v603
  %v606 = vshll.u32 %v290, 16
  %v608 = vrot.slane %v606, 1
  %v609 = vsel %vm309, %v604, %v608
  %v611 = vshrl.u32 %v291, 16
  %v613 = vshll.u32 %v291, 16
  %v615 = vrot.slane %v613, 1
  %v616 = vor.u32 %v611, %v615
  %v618 = vshll.u32 %v292, 16
  %v620 = vrot.slane %v618, 1
  %v621 = vsel %vm309, %v616, %v620
  %v623 = vshrl.u32 %v293, 16
  %v625 = vshll.u32 %v293, 16
  %v627 = vrot.slane %v625, 1
  %v628 = vor.u32 %v623, %v627
  %v630 = vshll.u32 %v294, 16
  %v632 = vrot.slane %v630, 1
  %v633 = vsel %vm309, %v628, %v632
  %v635 = vshrl.u32 %v295, 16
  %v637 = vshll.u32 %v295, 16
  %v639 = vrot.slane %v637, 1
  %v640 = vor.u32 %v635, %v639
  %v642 = vshll.u32 %v296, 16
  %v644 = vrot.slane %v642, 1
  %v645 = vsel %vm309, %v640, %v644
  %v647 = vshrl.u32 %v297, 16
  %v649 = vshll.u32 %v297, 16
  %v651 = vrot.slane %v649, 1
  %v652 = vor.u32 %v647, %v651
  %v654 = vshll.u32 %v298, 16
  %v656 = vrot.slane %v654, 1
  %v657 = vsel %vm309, %v652, %v656
  %v659 = vshrl.u32 %v299, 16
  %v661 = vshll.u32 %v299, 16
  %v663 = vrot.slane %v661, 1
  %v664 = vor.u32 %v659, %v663
  %v666 = vshll.u32 %v300, 16
  %v668 = vrot.slane %v666, 1
  %v669 = vsel %vm309, %v664, %v668
  %v671 = vshrl.u32 %v301, 16
  %v673 = vshll.u32 %v301, 16
  %v675 = vrot.slane %v673, 1
  %v676 = vor.u32 %v671, %v675
  %v678 = vshll.u32 %v302, 16
  %v680 = vrot.slane %v678, 1
  %v681 = vsel %vm309, %v676, %v680
  %v683 = vshrl.u32 %v303, 16
  %v685 = vshll.u32 %v303, 16
  %v687 = vrot.slane %v685, 1
  %v688 = vor.u32 %v683, %v687
  %v690 = vshll.u32 %v304, 16
  %v692 = vrot.slane %v690, 1
  %v693 = vsel %vm309, %v688, %v692
  %694 = vrot.lane.b32.xlu0 %v321, 4
  %v695 = vpop.permute.xlu0 %694
  %696 = vrot.lane.b32.xlu0 %v333, 4
  %v697 = vpop.permute.xlu0 %696
  %698 = vrot.lane.b32.xlu0 %v345, 4
  %v699 = vpop.permute.xlu0 %698
  %700 = vrot.lane.b32.xlu0 %v357, 4
  %v701 = vpop.permute.xlu0 %700
  %702 = vrot.lane.b32.xlu0 %v369, 4
  %v703 = vpop.permute.xlu0 %702
  %704 = vrot.lane.b32.xlu0 %v381, 4
  %v705 = vpop.permute.xlu0 %704
  %706 = vrot.lane.b32.xlu0 %v393, 4
  %v707 = vpop.permute.xlu0 %706
  %708 = vrot.lane.b32.xlu0 %v405, 4
  %v709 = vpop.permute.xlu0 %708
  %710 = vrot.lane.b32.xlu0 %v417, 4
  %v711 = vpop.permute.xlu0 %710
  %712 = vrot.lane.b32.xlu0 %v429, 4
  %v713 = vpop.permute.xlu0 %712
  %714 = vrot.lane.b32.xlu0 %v441, 4
  %v715 = vpop.permute.xlu0 %714
  %716 = vrot.lane.b32.xlu0 %v453, 4
  %v717 = vpop.permute.xlu0 %716
  %718 = vrot.lane.b32.xlu0 %v465, 4
  %v719 = vpop.permute.xlu0 %718
  %720 = vrot.lane.b32.xlu0 %v477, 4
  %v721 = vpop.permute.xlu0 %720
  %722 = vrot.lane.b32.xlu0 %v489, 4
  %v723 = vpop.permute.xlu0 %722
  %724 = vrot.lane.b32.xlu0 %v501, 4
  %v725 = vpop.permute.xlu0 %724
  %726 = vrot.lane.b32.xlu0 %v513, 4
  %v727 = vpop.permute.xlu0 %726
  %728 = vrot.lane.b32.xlu0 %v525, 4
  %v729 = vpop.permute.xlu0 %728
  %730 = vrot.lane.b32.xlu0 %v537, 4
  %v731 = vpop.permute.xlu0 %730
  %732 = vrot.lane.b32.xlu0 %v549, 4
  %v733 = vpop.permute.xlu0 %732
  %734 = vrot.lane.b32.xlu0 %v561, 4
  %v735 = vpop.permute.xlu0 %734
  %736 = vrot.lane.b32.xlu0 %v573, 4
  %v737 = vpop.permute.xlu0 %736
  %738 = vrot.lane.b32.xlu0 %v585, 4
  %v739 = vpop.permute.xlu0 %738
  %740 = vrot.lane.b32.xlu0 %v597, 4
  %v741 = vpop.permute.xlu0 %740
  %742 = vrot.lane.b32.xlu0 %v609, 4
  %v743 = vpop.permute.xlu0 %742
  %744 = vrot.lane.b32.xlu0 %v621, 4
  %v745 = vpop.permute.xlu0 %744
  %746 = vrot.lane.b32.xlu0 %v633, 4
  %v747 = vpop.permute.xlu0 %746
  %748 = vrot.lane.b32.xlu0 %v645, 4
  %v749 = vpop.permute.xlu0 %748
  %750 = vrot.lane.b32.xlu0 %v657, 4
  %v751 = vpop.permute.xlu0 %750
  %752 = vrot.lane.b32.xlu0 %v669, 4
  %v753 = vpop.permute.xlu0 %752
  %754 = vrot.lane.b32.xlu0 %v681, 4
  %v755 = vpop.permute.xlu0 %754
  %756 = vrot.lane.b32.xlu0 %v693, 4
  %v757 = vpop.permute.xlu0 %756
  %vm822 = vcmask 1046528
  %v823 = vrot.slane %v237, 1
  %v824 = vrot.slane %v238, 1
  %v825 = vsel %vm822, %v823, %v824
  %v826 = vrot.slane %v239, 1
  %v827 = vrot.slane %v240, 1
  %v828 = vsel %vm822, %v826, %v827
  %v829 = vrot.slane %v241, 1
  %v830 = vrot.slane %v242, 1
  %v831 = vsel %vm822, %v829, %v830
  %v832 = vrot.slane %v243, 1
  %v833 = vrot.slane %v244, 1
  %v834 = vsel %vm822, %v832, %v833
  %v835 = vrot.slane %v245, 1
  %v836 = vrot.slane %v246, 1
  %v837 = vsel %vm822, %v835, %v836
  %v838 = vrot.slane %v247, 1
  %v839 = vrot.slane %v248, 1
  %v840 = vsel %vm822, %v838, %v839
  %v841 = vrot.slane %v249, 1
  %v842 = vrot.slane %v250, 1
  %v843 = vsel %vm822, %v841, %v842
  %v844 = vrot.slane %v251, 1
  %v845 = vrot.slane %v252, 1
  %v846 = vsel %vm822, %v844, %v845
  %v847 = vrot.slane %v253, 1
  %v848 = vrot.slane %v254, 1
  %v849 = vsel %vm822, %v847, %v848
  %v850 = vrot.slane %v255, 1
  %v851 = vrot.slane %v256, 1
  %v852 = vsel %vm822, %v850, %v851
  %v853 = vrot.slane %v257, 1
  %v854 = vrot.slane %v258, 1
  %v855 = vsel %vm822, %v853, %v854
  %v856 = vrot.slane %v259, 1
  %v857 = vrot.slane %v260, 1
  %v858 = vsel %vm822, %v856, %v857
  %v859 = vrot.slane %v261, 1
  %v860 = vrot.slane %v262, 1
  %v861 = vsel %vm822, %v859, %v860
  %v862 = vrot.slane %v263, 1
  %v863 = vrot.slane %v264, 1
  %v864 = vsel %vm822, %v862, %v863
  %v865 = vrot.slane %v265, 1
  %v866 = vrot.slane %v266, 1
  %v867 = vsel %vm822, %v865, %v866
  %v868 = vrot.slane %v267, 1
  %v869 = vrot.slane %v268, 1
  %v870 = vsel %vm822, %v868, %v869
  %v871 = vrot.slane %v273, 1
  %v872 = vrot.slane %v274, 1
  %v873 = vsel %vm822, %v871, %v872
  %v874 = vrot.slane %v275, 1
  %v875 = vrot.slane %v276, 1
  %v876 = vsel %vm822, %v874, %v875
  %v877 = vrot.slane %v277, 1
  %v878 = vrot.slane %v278, 1
  %v879 = vsel %vm822, %v877, %v878
  %v880 = vrot.slane %v279, 1
  %v881 = vrot.slane %v280, 1
  %v882 = vsel %vm822, %v880, %v881
  %v883 = vrot.slane %v281, 1
  %v884 = vrot.slane %v282, 1
  %v885 = vsel %vm822, %v883, %v884
  %v886 = vrot.slane %v283, 1
  %v887 = vrot.slane %v284, 1
  %v888 = vsel %vm822, %v886, %v887
  %v889 = vrot.slane %v285, 1
  %v890 = vrot.slane %v286, 1
  %v891 = vsel %vm822, %v889, %v890
  %v892 = vrot.slane %v287, 1
  %v893 = vrot.slane %v288, 1
  %v894 = vsel %vm822, %v892, %v893
  %v895 = vrot.slane %v289, 1
  %v896 = vrot.slane %v290, 1
  %v897 = vsel %vm822, %v895, %v896
  %v898 = vrot.slane %v291, 1
  %v899 = vrot.slane %v292, 1
  %v900 = vsel %vm822, %v898, %v899
  %v901 = vrot.slane %v293, 1
  %v902 = vrot.slane %v294, 1
  %v903 = vsel %vm822, %v901, %v902
  %v904 = vrot.slane %v295, 1
  %v905 = vrot.slane %v296, 1
  %v906 = vsel %vm822, %v904, %v905
  %v907 = vrot.slane %v297, 1
  %v908 = vrot.slane %v298, 1
  %v909 = vsel %vm822, %v907, %v908
  %v910 = vrot.slane %v299, 1
  %v911 = vrot.slane %v300, 1
  %v912 = vsel %vm822, %v910, %v911
  %v913 = vrot.slane %v301, 1
  %v914 = vrot.slane %v302, 1
  %v915 = vsel %vm822, %v913, %v914
  %v916 = vrot.slane %v303, 1
  %v917 = vrot.slane %v304, 1
  %v918 = vsel %vm822, %v916, %v917
  %919 = vrot.lane.b32.xlu0 %v825, 8
  %v920 = vpop.permute.xlu0 %919
  %921 = vrot.lane.b32.xlu0 %v828, 8
  %v922 = vpop.permute.xlu0 %921
  %923 = vrot.lane.b32.xlu0 %v831, 8
  %v924 = vpop.permute.xlu0 %923
  %925 = vrot.lane.b32.xlu0 %v834, 8
  %v926 = vpop.permute.xlu0 %925
  %927 = vrot.lane.b32.xlu0 %v837, 8
  %v928 = vpop.permute.xlu0 %927
  %929 = vrot.lane.b32.xlu0 %v840, 8
  %v930 = vpop.permute.xlu0 %929
  %931 = vrot.lane.b32.xlu0 %v843, 8
  %v932 = vpop.permute.xlu0 %931
  %933 = vrot.lane.b32.xlu0 %v846, 8
  %v934 = vpop.permute.xlu0 %933
  %935 = vrot.lane.b32.xlu0 %v849, 8
  %v936 = vpop.permute.xlu0 %935
  %937 = vrot.lane.b32.xlu0 %v852, 8
  %v938 = vpop.permute.xlu0 %937
  %939 = vrot.lane.b32.xlu0 %v855, 8
  %v940 = vpop.permute.xlu0 %939
  %941 = vrot.lane.b32.xlu0 %v858, 8
  %v942 = vpop.permute.xlu0 %941
  %943 = vrot.lane.b32.xlu0 %v861, 8
  %v944 = vpop.permute.xlu0 %943
  %945 = vrot.lane.b32.xlu0 %v864, 8
  %v946 = vpop.permute.xlu0 %945
  %947 = vrot.lane.b32.xlu0 %v867, 8
  %v948 = vpop.permute.xlu0 %947
  %949 = vrot.lane.b32.xlu0 %v870, 8
  %v950 = vpop.permute.xlu0 %949
  %951 = vrot.lane.b32.xlu0 %v873, 8
  %v952 = vpop.permute.xlu0 %951
  %953 = vrot.lane.b32.xlu0 %v876, 8
  %v954 = vpop.permute.xlu0 %953
  %955 = vrot.lane.b32.xlu0 %v879, 8
  %v956 = vpop.permute.xlu0 %955
  %957 = vrot.lane.b32.xlu0 %v882, 8
  %v958 = vpop.permute.xlu0 %957
  %959 = vrot.lane.b32.xlu0 %v885, 8
  %v960 = vpop.permute.xlu0 %959
  %961 = vrot.lane.b32.xlu0 %v888, 8
  %v962 = vpop.permute.xlu0 %961
  %963 = vrot.lane.b32.xlu0 %v891, 8
  %v964 = vpop.permute.xlu0 %963
  %965 = vrot.lane.b32.xlu0 %v894, 8
  %v966 = vpop.permute.xlu0 %965
  %967 = vrot.lane.b32.xlu0 %v897, 8
  %v968 = vpop.permute.xlu0 %967
  %969 = vrot.lane.b32.xlu0 %v900, 8
  %v970 = vpop.permute.xlu0 %969
  %971 = vrot.lane.b32.xlu0 %v903, 8
  %v972 = vpop.permute.xlu0 %971
  %973 = vrot.lane.b32.xlu0 %v906, 8
  %v974 = vpop.permute.xlu0 %973
  %975 = vrot.lane.b32.xlu0 %v909, 8
  %v976 = vpop.permute.xlu0 %975
  %977 = vrot.lane.b32.xlu0 %v912, 8
  %v978 = vpop.permute.xlu0 %977
  %979 = vrot.lane.b32.xlu0 %v915, 8
  %v980 = vpop.permute.xlu0 %979
  %981 = vrot.lane.b32.xlu0 %v918, 8
  %v982 = vpop.permute.xlu0 %981
  %985 = vrot.lane.b32.xlu0 %v239, 12
  %v986 = vpop.permute.xlu0 %985
  %987 = vrot.lane.b32.xlu0 %v241, 12
  %v988 = vpop.permute.xlu0 %987
  %989 = vrot.lane.b32.xlu0 %v243, 12
  %v990 = vpop.permute.xlu0 %989
  %991 = vrot.lane.b32.xlu0 %v245, 12
  %v992 = vpop.permute.xlu0 %991
  %993 = vrot.lane.b32.xlu0 %v247, 12
  %v994 = vpop.permute.xlu0 %993
  %995 = vrot.lane.b32.xlu0 %v249, 12
  %v996 = vpop.permute.xlu0 %995
  %997 = vrot.lane.b32.xlu0 %v251, 12
  %v998 = vpop.permute.xlu0 %997
  %999 = vrot.lane.b32.xlu0 %v253, 12
  %v1000 = vpop.permute.xlu0 %999
  %1001 = vrot.lane.b32.xlu0 %v255, 12
  %v1002 = vpop.permute.xlu0 %1001
  %1003 = vrot.lane.b32.xlu0 %v257, 12
  %v1004 = vpop.permute.xlu0 %1003
  %1005 = vrot.lane.b32.xlu0 %v259, 12
  %v1006 = vpop.permute.xlu0 %1005
  %1007 = vrot.lane.b32.xlu0 %v261, 12
  %v1008 = vpop.permute.xlu0 %1007
  %1009 = vrot.lane.b32.xlu0 %v263, 12
  %v1010 = vpop.permute.xlu0 %1009
  %1011 = vrot.lane.b32.xlu0 %v265, 12
  %v1012 = vpop.permute.xlu0 %1011
  %1013 = vrot.lane.b32.xlu0 %v267, 12
  %v1014 = vpop.permute.xlu0 %1013
  %1015 = vrot.lane.b32.xlu0 %v269, 12
  %v1016 = vpop.permute.xlu0 %1015
  %1017 = vrot.lane.b32.xlu0 %v275, 12
  %v1018 = vpop.permute.xlu0 %1017
  %1019 = vrot.lane.b32.xlu0 %v277, 12
  %v1020 = vpop.permute.xlu0 %1019
  %1021 = vrot.lane.b32.xlu0 %v279, 12
  %v1022 = vpop.permute.xlu0 %1021
  %1023 = vrot.lane.b32.xlu0 %v281, 12
  %v1024 = vpop.permute.xlu0 %1023
  %1025 = vrot.lane.b32.xlu0 %v283, 12
  %v1026 = vpop.permute.xlu0 %1025
  %1027 = vrot.lane.b32.xlu0 %v285, 12
  %v1028 = vpop.permute.xlu0 %1027
  %1029 = vrot.lane.b32.xlu0 %v287, 12
  %v1030 = vpop.permute.xlu0 %1029
  %1031 = vrot.lane.b32.xlu0 %v289, 12
  %v1032 = vpop.permute.xlu0 %1031
  %1033 = vrot.lane.b32.xlu0 %v291, 12
  %v1034 = vpop.permute.xlu0 %1033
  %1035 = vrot.lane.b32.xlu0 %v293, 12
  %v1036 = vpop.permute.xlu0 %1035
  %1037 = vrot.lane.b32.xlu0 %v295, 12
  %v1038 = vpop.permute.xlu0 %1037
  %1039 = vrot.lane.b32.xlu0 %v297, 12
  %v1040 = vpop.permute.xlu0 %1039
  %1041 = vrot.lane.b32.xlu0 %v299, 12
  %v1042 = vpop.permute.xlu0 %1041
  %1043 = vrot.lane.b32.xlu0 %v301, 12
  %v1044 = vpop.permute.xlu0 %1043
  %1045 = vrot.lane.b32.xlu0 %v303, 12
  %v1046 = vpop.permute.xlu0 %1045
  %1047 = vrot.lane.b32.xlu0 %v305, 12
  %v1048 = vpop.permute.xlu0 %1047
  %v1050 = vshrl.u32 %v269, 16
  %v1052 = vshll.u32 %v269, 16
  %v1054 = vrot.slane %v1052, 1
  %v1055 = vor.u32 %v1050, %v1054
  %v1057 = vshll.u32 %v270, 16
  %v1059 = vrot.slane %v1057, 1
  %v1060 = vsel %vm309, %v1055, %v1059
  %v1062 = vshrl.u32 %v305, 16
  %v1064 = vshll.u32 %v305, 16
  %v1066 = vrot.slane %v1064, 1
  %v1067 = vor.u32 %v1062, %v1066
  %v1069 = vshll.u32 %v306, 16
  %v1071 = vrot.slane %v1069, 1
  %v1072 = vsel %vm309, %v1067, %v1071
  %1073 = vrot.lane.b32.xlu0 %v333, 16
  %v1074 = vpop.permute.xlu0 %1073
  %1075 = vrot.lane.b32.xlu0 %v345, 16
  %v1076 = vpop.permute.xlu0 %1075
  %1077 = vrot.lane.b32.xlu0 %v357, 16
  %v1078 = vpop.permute.xlu0 %1077
  %1079 = vrot.lane.b32.xlu0 %v369, 16
  %v1080 = vpop.permute.xlu0 %1079
  %1081 = vrot.lane.b32.xlu0 %v381, 16
  %v1082 = vpop.permute.xlu0 %1081
  %1083 = vrot.lane.b32.xlu0 %v393, 16
  %v1084 = vpop.permute.xlu0 %1083
  %1085 = vrot.lane.b32.xlu0 %v405, 16
  %v1086 = vpop.permute.xlu0 %1085
  %1087 = vrot.lane.b32.xlu0 %v417, 16
  %v1088 = vpop.permute.xlu0 %1087
  %1089 = vrot.lane.b32.xlu0 %v429, 16
  %v1090 = vpop.permute.xlu0 %1089
  %1091 = vrot.lane.b32.xlu0 %v441, 16
  %v1092 = vpop.permute.xlu0 %1091
  %1093 = vrot.lane.b32.xlu0 %v453, 16
  %v1094 = vpop.permute.xlu0 %1093
  %1095 = vrot.lane.b32.xlu0 %v465, 16
  %v1096 = vpop.permute.xlu0 %1095
  %1097 = vrot.lane.b32.xlu0 %v477, 16
  %v1098 = vpop.permute.xlu0 %1097
  %1099 = vrot.lane.b32.xlu0 %v489, 16
  %v1100 = vpop.permute.xlu0 %1099
  %1101 = vrot.lane.b32.xlu0 %v501, 16
  %v1102 = vpop.permute.xlu0 %1101
  %1103 = vrot.lane.b32.xlu0 %v1060, 16
  %v1104 = vpop.permute.xlu0 %1103
  %1105 = vrot.lane.b32.xlu0 %v525, 16
  %v1106 = vpop.permute.xlu0 %1105
  %1107 = vrot.lane.b32.xlu0 %v537, 16
  %v1108 = vpop.permute.xlu0 %1107
  %1109 = vrot.lane.b32.xlu0 %v549, 16
  %v1110 = vpop.permute.xlu0 %1109
  %1111 = vrot.lane.b32.xlu0 %v561, 16
  %v1112 = vpop.permute.xlu0 %1111
  %1113 = vrot.lane.b32.xlu0 %v573, 16
  %v1114 = vpop.permute.xlu0 %1113
  %1115 = vrot.lane.b32.xlu0 %v585, 16
  %v1116 = vpop.permute.xlu0 %1115
  %1117 = vrot.lane.b32.xlu0 %v597, 16
  %v1118 = vpop.permute.xlu0 %1117
  %1119 = vrot.lane.b32.xlu0 %v609, 16
  %v1120 = vpop.permute.xlu0 %1119
  %1121 = vrot.lane.b32.xlu0 %v621, 16
  %v1122 = vpop.permute.xlu0 %1121
  %1123 = vrot.lane.b32.xlu0 %v633, 16
  %v1124 = vpop.permute.xlu0 %1123
  %1125 = vrot.lane.b32.xlu0 %v645, 16
  %v1126 = vpop.permute.xlu0 %1125
  %1127 = vrot.lane.b32.xlu0 %v657, 16
  %v1128 = vpop.permute.xlu0 %1127
  %1129 = vrot.lane.b32.xlu0 %v669, 16
  %v1130 = vpop.permute.xlu0 %1129
  %1131 = vrot.lane.b32.xlu0 %v681, 16
  %v1132 = vpop.permute.xlu0 %1131
  %1133 = vrot.lane.b32.xlu0 %v693, 16
  %v1134 = vpop.permute.xlu0 %1133
  %1135 = vrot.lane.b32.xlu0 %v1072, 16
  %v1136 = vpop.permute.xlu0 %1135
  %v1139 = vrot.slane %v269, 1
  %v1140 = vrot.slane %v270, 1
  %v1141 = vsel %vm822, %v1139, %v1140
  %v1142 = vrot.slane %v305, 1
  %v1143 = vrot.slane %v306, 1
  %v1144 = vsel %vm822, %v1142, %v1143
  %1145 = vrot.lane.b32.xlu0 %v828, 20
  %v1146 = vpop.permute.xlu0 %1145
  %1147 = vrot.lane.b32.xlu0 %v831, 20
  %v1148 = vpop.permute.xlu0 %1147
  %1149 = vrot.lane.b32.xlu0 %v834, 20
  %v1150 = vpop.permute.xlu0 %1149
  %1151 = vrot.lane.b32.xlu0 %v837, 20
  %v1152 = vpop.permute.xlu0 %1151
  %1153 = vrot.lane.b32.xlu0 %v840, 20
  %v1154 = vpop.permute.xlu0 %1153
  %1155 = vrot.lane.b32.xlu0 %v843, 20
  %v1156 = vpop.permute.xlu0 %1155
  %1157 = vrot.lane.b32.xlu0 %v846, 20
  %v1158 = vpop.permute.xlu0 %1157
  %1159 = vrot.lane.b32.xlu0 %v849, 20
  %v1160 = vpop.permute.xlu0 %1159
  %1161 = vrot.lane.b32.xlu0 %v852, 20
  %v1162 = vpop.permute.xlu0 %1161
  %1163 = vrot.lane.b32.xlu0 %v855, 20
  %v1164 = vpop.permute.xlu0 %1163
  %1165 = vrot.lane.b32.xlu0 %v858, 20
  %v1166 = vpop.permute.xlu0 %1165
  %1167 = vrot.lane.b32.xlu0 %v861, 20
  %v1168 = vpop.permute.xlu0 %1167
  %1169 = vrot.lane.b32.xlu0 %v864, 20
  %v1170 = vpop.permute.xlu0 %1169
  %1171 = vrot.lane.b32.xlu0 %v867, 20
  %v1172 = vpop.permute.xlu0 %1171
  %1173 = vrot.lane.b32.xlu0 %v870, 20
  %v1174 = vpop.permute.xlu0 %1173
  %1175 = vrot.lane.b32.xlu0 %v1141, 20
  %v1176 = vpop.permute.xlu0 %1175
  %1177 = vrot.lane.b32.xlu0 %v876, 20
  %v1178 = vpop.permute.xlu0 %1177
  %1179 = vrot.lane.b32.xlu0 %v879, 20
  %v1180 = vpop.permute.xlu0 %1179
  %1181 = vrot.lane.b32.xlu0 %v882, 20
  %v1182 = vpop.permute.xlu0 %1181
  %1183 = vrot.lane.b32.xlu0 %v885, 20
  %v1184 = vpop.permute.xlu0 %1183
  %1185 = vrot.lane.b32.xlu0 %v888, 20
  %v1186 = vpop.permute.xlu0 %1185
  %1187 = vrot.lane.b32.xlu0 %v891, 20
  %v1188 = vpop.permute.xlu0 %1187
  %1189 = vrot.lane.b32.xlu0 %v894, 20
  %v1190 = vpop.permute.xlu0 %1189
  %1191 = vrot.lane.b32.xlu0 %v897, 20
  %v1192 = vpop.permute.xlu0 %1191
  %1193 = vrot.lane.b32.xlu0 %v900, 20
  %v1194 = vpop.permute.xlu0 %1193
  %1195 = vrot.lane.b32.xlu0 %v903, 20
  %v1196 = vpop.permute.xlu0 %1195
  %1197 = vrot.lane.b32.xlu0 %v906, 20
  %v1198 = vpop.permute.xlu0 %1197
  %1199 = vrot.lane.b32.xlu0 %v909, 20
  %v1200 = vpop.permute.xlu0 %1199
  %1201 = vrot.lane.b32.xlu0 %v912, 20
  %v1202 = vpop.permute.xlu0 %1201
  %1203 = vrot.lane.b32.xlu0 %v915, 20
  %v1204 = vpop.permute.xlu0 %1203
  %1205 = vrot.lane.b32.xlu0 %v918, 20
  %v1206 = vpop.permute.xlu0 %1205
  %1207 = vrot.lane.b32.xlu0 %v1144, 20
  %v1208 = vpop.permute.xlu0 %1207
  %1211 = vrot.lane.b32.xlu0 %v241, 24
  %v1212 = vpop.permute.xlu0 %1211
  %1213 = vrot.lane.b32.xlu0 %v243, 24
  %v1214 = vpop.permute.xlu0 %1213
  %1215 = vrot.lane.b32.xlu0 %v245, 24
  %v1216 = vpop.permute.xlu0 %1215
  %1217 = vrot.lane.b32.xlu0 %v247, 24
  %v1218 = vpop.permute.xlu0 %1217
  %1219 = vrot.lane.b32.xlu0 %v249, 24
  %v1220 = vpop.permute.xlu0 %1219
  %1221 = vrot.lane.b32.xlu0 %v251, 24
  %v1222 = vpop.permute.xlu0 %1221
  %1223 = vrot.lane.b32.xlu0 %v253, 24
  %v1224 = vpop.permute.xlu0 %1223
  %1225 = vrot.lane.b32.xlu0 %v255, 24
  %v1226 = vpop.permute.xlu0 %1225
  %1227 = vrot.lane.b32.xlu0 %v257, 24
  %v1228 = vpop.permute.xlu0 %1227
  %1229 = vrot.lane.b32.xlu0 %v259, 24
  %v1230 = vpop.permute.xlu0 %1229
  %1231 = vrot.lane.b32.xlu0 %v261, 24
  %v1232 = vpop.permute.xlu0 %1231
  %1233 = vrot.lane.b32.xlu0 %v263, 24
  %v1234 = vpop.permute.xlu0 %1233
  %1235 = vrot.lane.b32.xlu0 %v265, 24
  %v1236 = vpop.permute.xlu0 %1235
  %1237 = vrot.lane.b32.xlu0 %v267, 24
  %v1238 = vpop.permute.xlu0 %1237
  %1239 = vrot.lane.b32.xlu0 %v269, 24
  %v1240 = vpop.permute.xlu0 %1239
  %1241 = vrot.lane.b32.xlu0 %v271, 24
  %v1242 = vpop.permute.xlu0 %1241
  %1243 = vrot.lane.b32.xlu0 %v277, 24
  %v1244 = vpop.permute.xlu0 %1243
  %1245 = vrot.lane.b32.xlu0 %v279, 24
  %v1246 = vpop.permute.xlu0 %1245
  %1247 = vrot.lane.b32.xlu0 %v281, 24
  %v1248 = vpop.permute.xlu0 %1247
  %1249 = vrot.lane.b32.xlu0 %v283, 24
  %v1250 = vpop.permute.xlu0 %1249
  %1251 = vrot.lane.b32.xlu0 %v285, 24
  %v1252 = vpop.permute.xlu0 %1251
  %1253 = vrot.lane.b32.xlu0 %v287, 24
  %v1254 = vpop.permute.xlu0 %1253
  %1255 = vrot.lane.b32.xlu0 %v289, 24
  %v1256 = vpop.permute.xlu0 %1255
  %1257 = vrot.lane.b32.xlu0 %v291, 24
  %v1258 = vpop.permute.xlu0 %1257
  %1259 = vrot.lane.b32.xlu0 %v293, 24
  %v1260 = vpop.permute.xlu0 %1259
  %1261 = vrot.lane.b32.xlu0 %v295, 24
  %v1262 = vpop.permute.xlu0 %1261
  %1263 = vrot.lane.b32.xlu0 %v297, 24
  %v1264 = vpop.permute.xlu0 %1263
  %1265 = vrot.lane.b32.xlu0 %v299, 24
  %v1266 = vpop.permute.xlu0 %1265
  %1267 = vrot.lane.b32.xlu0 %v301, 24
  %v1268 = vpop.permute.xlu0 %1267
  %1269 = vrot.lane.b32.xlu0 %v303, 24
  %v1270 = vpop.permute.xlu0 %1269
  %1271 = vrot.lane.b32.xlu0 %v305, 24
  %v1272 = vpop.permute.xlu0 %1271
  %1273 = vrot.lane.b32.xlu0 %v307, 24
  %v1274 = vpop.permute.xlu0 %1273
  %v1276 = vshrl.u32 %v271, 16
  %v1278 = vshll.u32 %v271, 16
  %v1280 = vrot.slane %v1278, 1
  %v1281 = vor.u32 %v1276, %v1280
  %v1283 = vshll.u32 %v272, 16
  %v1285 = vrot.slane %v1283, 1
  %v1286 = vsel %vm309, %v1281, %v1285
  %v1288 = vshrl.u32 %v307, 16
  %v1290 = vshll.u32 %v307, 16
  %v1292 = vrot.slane %v1290, 1
  %v1293 = vor.u32 %v1288, %v1292
  %v1295 = vshll.u32 %v308, 16
  %v1297 = vrot.slane %v1295, 1
  %v1298 = vsel %vm309, %v1293, %v1297
  %1299 = vrot.lane.b32.xlu0 %v345, 28
  %v1300 = vpop.permute.xlu0 %1299
  %1301 = vrot.lane.b32.xlu0 %v357, 28
  %v1302 = vpop.permute.xlu0 %1301
  %1303 = vrot.lane.b32.xlu0 %v369, 28
  %v1304 = vpop.permute.xlu0 %1303
  %1305 = vrot.lane.b32.xlu0 %v381, 28
  %v1306 = vpop.permute.xlu0 %1305
  %1307 = vrot.lane.b32.xlu0 %v393, 28
  %v1308 = vpop.permute.xlu0 %1307
  %1309 = vrot.lane.b32.xlu0 %v405, 28
  %v1310 = vpop.permute.xlu0 %1309
  %1311 = vrot.lane.b32.xlu0 %v417, 28
  %v1312 = vpop.permute.xlu0 %1311
  %1313 = vrot.lane.b32.xlu0 %v429, 28
  %v1314 = vpop.permute.xlu0 %1313
  %1315 = vrot.lane.b32.xlu0 %v441, 28
  %v1316 = vpop.permute.xlu0 %1315
  %1317 = vrot.lane.b32.xlu0 %v453, 28
  %v1318 = vpop.permute.xlu0 %1317
  %1319 = vrot.lane.b32.xlu0 %v465, 28
  %v1320 = vpop.permute.xlu0 %1319
  %1321 = vrot.lane.b32.xlu0 %v477, 28
  %v1322 = vpop.permute.xlu0 %1321
  %1323 = vrot.lane.b32.xlu0 %v489, 28
  %v1324 = vpop.permute.xlu0 %1323
  %1325 = vrot.lane.b32.xlu0 %v501, 28
  %v1326 = vpop.permute.xlu0 %1325
  %1327 = vrot.lane.b32.xlu0 %v1060, 28
  %v1328 = vpop.permute.xlu0 %1327
  %1329 = vrot.lane.b32.xlu0 %v1286, 28
  %v1330 = vpop.permute.xlu0 %1329
  %1331 = vrot.lane.b32.xlu0 %v537, 28
  %v1332 = vpop.permute.xlu0 %1331
  %1333 = vrot.lane.b32.xlu0 %v549, 28
  %v1334 = vpop.permute.xlu0 %1333
  %1335 = vrot.lane.b32.xlu0 %v561, 28
  %v1336 = vpop.permute.xlu0 %1335
  %1337 = vrot.lane.b32.xlu0 %v573, 28
  %v1338 = vpop.permute.xlu0 %1337
  %1339 = vrot.lane.b32.xlu0 %v585, 28
  %v1340 = vpop.permute.xlu0 %1339
  %1341 = vrot.lane.b32.xlu0 %v597, 28
  %v1342 = vpop.permute.xlu0 %1341
  %1343 = vrot.lane.b32.xlu0 %v609, 28
  %v1344 = vpop.permute.xlu0 %1343
  %1345 = vrot.lane.b32.xlu0 %v621, 28
  %v1346 = vpop.permute.xlu0 %1345
  %1347 = vrot.lane.b32.xlu0 %v633, 28
  %v1348 = vpop.permute.xlu0 %1347
  %1349 = vrot.lane.b32.xlu0 %v645, 28
  %v1350 = vpop.permute.xlu0 %1349
  %1351 = vrot.lane.b32.xlu0 %v657, 28
  %v1352 = vpop.permute.xlu0 %1351
  %1353 = vrot.lane.b32.xlu0 %v669, 28
  %v1354 = vpop.permute.xlu0 %1353
  %1355 = vrot.lane.b32.xlu0 %v681, 28
  %v1356 = vpop.permute.xlu0 %1355
  %1357 = vrot.lane.b32.xlu0 %v693, 28
  %v1358 = vpop.permute.xlu0 %1357
  %1359 = vrot.lane.b32.xlu0 %v1072, 28
  %v1360 = vpop.permute.xlu0 %1359
  %1361 = vrot.lane.b32.xlu0 %v1298, 28
  %v1362 = vpop.permute.xlu0 %1361
  %v1365 = vrot.slane %v271, 1
  %v1366 = vrot.slane %v272, 1
  %v1367 = vsel %vm822, %v1365, %v1366
  %v1368 = vrot.slane %v307, 1
  %v1369 = vrot.slane %v308, 1
  %v1370 = vsel %vm822, %v1368, %v1369
  %1371 = vrot.lane.b32.xlu0 %v831, 32
  %v1372 = vpop.permute.xlu0 %1371
  %1373 = vrot.lane.b32.xlu0 %v834, 32
  %v1374 = vpop.permute.xlu0 %1373
  %1375 = vrot.lane.b32.xlu0 %v837, 32
  %v1376 = vpop.permute.xlu0 %1375
  %1377 = vrot.lane.b32.xlu0 %v840, 32
  %v1378 = vpop.permute.xlu0 %1377
  %1379 = vrot.lane.b32.xlu0 %v843, 32
  %v1380 = vpop.permute.xlu0 %1379
  %1381 = vrot.lane.b32.xlu0 %v846, 32
  %v1382 = vpop.permute.xlu0 %1381
  %1383 = vrot.lane.b32.xlu0 %v849, 32
  %v1384 = vpop.permute.xlu0 %1383
  %1385 = vrot.lane.b32.xlu0 %v852, 32
  %v1386 = vpop.permute.xlu0 %1385
  %1387 = vrot.lane.b32.xlu0 %v855, 32
  %v1388 = vpop.permute.xlu0 %1387
  %1389 = vrot.lane.b32.xlu0 %v858, 32
  %v1390 = vpop.permute.xlu0 %1389
  %1391 = vrot.lane.b32.xlu0 %v861, 32
  %v1392 = vpop.permute.xlu0 %1391
  %1393 = vrot.lane.b32.xlu0 %v864, 32
  %v1394 = vpop.permute.xlu0 %1393
  %1395 = vrot.lane.b32.xlu0 %v867, 32
  %v1396 = vpop.permute.xlu0 %1395
  %1397 = vrot.lane.b32.xlu0 %v870, 32
  %v1398 = vpop.permute.xlu0 %1397
  %1399 = vrot.lane.b32.xlu0 %v1141, 32
  %v1400 = vpop.permute.xlu0 %1399
  %1401 = vrot.lane.b32.xlu0 %v1367, 32
  %v1402 = vpop.permute.xlu0 %1401
  %1403 = vrot.lane.b32.xlu0 %v879, 32
  %v1404 = vpop.permute.xlu0 %1403
  %1405 = vrot.lane.b32.xlu0 %v882, 32
  %v1406 = vpop.permute.xlu0 %1405
  %1407 = vrot.lane.b32.xlu0 %v885, 32
  %v1408 = vpop.permute.xlu0 %1407
  %1409 = vrot.lane.b32.xlu0 %v888, 32
  %v1410 = vpop.permute.xlu0 %1409
  %1411 = vrot.lane.b32.xlu0 %v891, 32
  %v1412 = vpop.permute.xlu0 %1411
  %1413 = vrot.lane.b32.xlu0 %v894, 32
  %v1414 = vpop.permute.xlu0 %1413
  %1415 = vrot.lane.b32.xlu0 %v897, 32
  %v1416 = vpop.permute.xlu0 %1415
  %1417 = vrot.lane.b32.xlu0 %v900, 32
  %v1418 = vpop.permute.xlu0 %1417
  %1419 = vrot.lane.b32.xlu0 %v903, 32
  %v1420 = vpop.permute.xlu0 %1419
  %1421 = vrot.lane.b32.xlu0 %v906, 32
  %v1422 = vpop.permute.xlu0 %1421
  %1423 = vrot.lane.b32.xlu0 %v909, 32
  %v1424 = vpop.permute.xlu0 %1423
  %1425 = vrot.lane.b32.xlu0 %v912, 32
  %v1426 = vpop.permute.xlu0 %1425
  %1427 = vrot.lane.b32.xlu0 %v915, 32
  %v1428 = vpop.permute.xlu0 %1427
  %1429 = vrot.lane.b32.xlu0 %v918, 32
  %v1430 = vpop.permute.xlu0 %1429
  %1431 = vrot.lane.b32.xlu0 %v1144, 32
  %v1432 = vpop.permute.xlu0 %1431
  %1433 = vrot.lane.b32.xlu0 %v1370, 32
  %v1434 = vpop.permute.xlu0 %1433
  %vm1435 = vcmask 31744
  %v1437 = vsel %vm1435, %v237, %v695
  %v1439 = vsel %vm1435, %v239, %v697
  %v1441 = vsel %vm1435, %v241, %v699
  %v1443 = vsel %vm1435, %v243, %v701
  %v1445 = vsel %vm1435, %v245, %v703
  %v1447 = vsel %vm1435, %v247, %v705
  %v1449 = vsel %vm1435, %v249, %v707
  %v1451 = vsel %vm1435, %v251, %v709
  %v1453 = vsel %vm1435, %v253, %v711
  %v1455 = vsel %vm1435, %v255, %v713
  %v1457 = vsel %vm1435, %v257, %v715
  %v1459 = vsel %vm1435, %v259, %v717
  %v1461 = vsel %vm1435, %v261, %v719
  %v1463 = vsel %vm1435, %v263, %v721
  %v1465 = vsel %vm1435, %v265, %v723
  %v1467 = vsel %vm1435, %v267, %v725
  %v1469 = vsel %vm1435, %v273, %v727
  %v1471 = vsel %vm1435, %v275, %v729
  %v1473 = vsel %vm1435, %v277, %v731
  %v1475 = vsel %vm1435, %v279, %v733
  %v1477 = vsel %vm1435, %v281, %v735
  %v1479 = vsel %vm1435, %v283, %v737
  %v1481 = vsel %vm1435, %v285, %v739
  %v1483 = vsel %vm1435, %v287, %v741
  %v1485 = vsel %vm1435, %v289, %v743
  %v1487 = vsel %vm1435, %v291, %v745
  %v1489 = vsel %vm1435, %v293, %v747
  %v1491 = vsel %vm1435, %v295, %v749
  %v1493 = vsel %vm1435, %v297, %v751
  %v1495 = vsel %vm1435, %v299, %v753
  %v1497 = vsel %vm1435, %v301, %v755
  %v1499 = vsel %vm1435, %v303, %v757
  %vm1500 = vcmask 64512
  %v1502 = vsel %vm1500, %v1437, %v920
  %v1504 = vsel %vm1500, %v1439, %v922
  %v1506 = vsel %vm1500, %v1441, %v924
  %v1508 = vsel %vm1500, %v1443, %v926
  %v1510 = vsel %vm1500, %v1445, %v928
  %v1512 = vsel %vm1500, %v1447, %v930
  %v1514 = vsel %vm1500, %v1449, %v932
  %v1516 = vsel %vm1500, %v1451, %v934
  %v1518 = vsel %vm1500, %v1453, %v936
  %v1520 = vsel %vm1500, %v1455, %v938
  %v1522 = vsel %vm1500, %v1457, %v940
  %v1524 = vsel %vm1500, %v1459, %v942
  %v1526 = vsel %vm1500, %v1461, %v944
  %v1528 = vsel %vm1500, %v1463, %v946
  %v1530 = vsel %vm1500, %v1465, %v948
  %v1532 = vsel %vm1500, %v1467, %v950
  %v1534 = vsel %vm1500, %v1469, %v952
  %v1536 = vsel %vm1500, %v1471, %v954
  %v1538 = vsel %vm1500, %v1473, %v956
  %v1540 = vsel %vm1500, %v1475, %v958
  %v1542 = vsel %vm1500, %v1477, %v960
  %v1544 = vsel %vm1500, %v1479, %v962
  %v1546 = vsel %vm1500, %v1481, %v964
  %v1548 = vsel %vm1500, %v1483, %v966
  %v1550 = vsel %vm1500, %v1485, %v968
  %v1552 = vsel %vm1500, %v1487, %v970
  %v1554 = vsel %vm1500, %v1489, %v972
  %v1556 = vsel %vm1500, %v1491, %v974
  %v1558 = vsel %vm1500, %v1493, %v976
  %v1560 = vsel %vm1500, %v1495, %v978
  %v1562 = vsel %vm1500, %v1497, %v980
  %v1564 = vsel %vm1500, %v1499, %v982
  %vm1565 = vcmask 97280
  %v1567 = vsel %vm1565, %v1502, %v986
  %v1569 = vsel %vm1565, %v1504, %v988
  %v1571 = vsel %vm1565, %v1506, %v990
  %v1573 = vsel %vm1565, %v1508, %v992
  %v1575 = vsel %vm1565, %v1510, %v994
  %v1577 = vsel %vm1565, %v1512, %v996
  %v1579 = vsel %vm1565, %v1514, %v998
  %v1581 = vsel %vm1565, %v1516, %v1000
  %v1583 = vsel %vm1565, %v1518, %v1002
  %v1585 = vsel %vm1565, %v1520, %v1004
  %v1587 = vsel %vm1565, %v1522, %v1006
  %v1589 = vsel %vm1565, %v1524, %v1008
  %v1591 = vsel %vm1565, %v1526, %v1010
  %v1593 = vsel %vm1565, %v1528, %v1012
  %v1595 = vsel %vm1565, %v1530, %v1014
  %v1597 = vsel %vm1565, %v1532, %v1016
  %v1599 = vsel %vm1565, %v1534, %v1018
  %v1601 = vsel %vm1565, %v1536, %v1020
  %v1603 = vsel %vm1565, %v1538, %v1022
  %v1605 = vsel %vm1565, %v1540, %v1024
  %v1607 = vsel %vm1565, %v1542, %v1026
  %v1609 = vsel %vm1565, %v1544, %v1028
  %v1611 = vsel %vm1565, %v1546, %v1030
  %v1613 = vsel %vm1565, %v1548, %v1032
  %v1615 = vsel %vm1565, %v1550, %v1034
  %v1617 = vsel %vm1565, %v1552, %v1036
  %v1619 = vsel %vm1565, %v1554, %v1038
  %v1621 = vsel %vm1565, %v1556, %v1040
  %v1623 = vsel %vm1565, %v1558, %v1042
  %v1625 = vsel %vm1565, %v1560, %v1044
  %v1627 = vsel %vm1565, %v1562, %v1046
  %v1629 = vsel %vm1565, %v1564, %v1048
  %vm1630 = vcmask 130048
  %v1632 = vsel %vm1630, %v1567, %v1074
  %v1634 = vsel %vm1630, %v1569, %v1076
  %v1636 = vsel %vm1630, %v1571, %v1078
  %v1638 = vsel %vm1630, %v1573, %v1080
  %v1640 = vsel %vm1630, %v1575, %v1082
  %v1642 = vsel %vm1630, %v1577, %v1084
  %v1644 = vsel %vm1630, %v1579, %v1086
  %v1646 = vsel %vm1630, %v1581, %v1088
  %v1648 = vsel %vm1630, %v1583, %v1090
  %v1650 = vsel %vm1630, %v1585, %v1092
  %v1652 = vsel %vm1630, %v1587, %v1094
  %v1654 = vsel %vm1630, %v1589, %v1096
  %v1656 = vsel %vm1630, %v1591, %v1098
  %v1658 = vsel %vm1630, %v1593, %v1100
  %v1660 = vsel %vm1630, %v1595, %v1102
  %v1662 = vsel %vm1630, %v1597, %v1104
  %v1664 = vsel %vm1630, %v1599, %v1106
  %v1666 = vsel %vm1630, %v1601, %v1108
  %v1668 = vsel %vm1630, %v1603, %v1110
  %v1670 = vsel %vm1630, %v1605, %v1112
  %v1672 = vsel %vm1630, %v1607, %v1114
  %v1674 = vsel %vm1630, %v1609, %v1116
  %v1676 = vsel %vm1630, %v1611, %v1118
  %v1678 = vsel %vm1630, %v1613, %v1120
  %v1680 = vsel %vm1630, %v1615, %v1122
  %v1682 = vsel %vm1630, %v1617, %v1124
  %v1684 = vsel %vm1630, %v1619, %v1126
  %v1686 = vsel %vm1630, %v1621, %v1128
  %v1688 = vsel %vm1630, %v1623, %v1130
  %v1690 = vsel %vm1630, %v1625, %v1132
  %v1692 = vsel %vm1630, %v1627, %v1134
  %v1694 = vsel %vm1630, %v1629, %v1136
  %vm1695 = vcmask 162816
  %v1697 = vsel %vm1695, %v1632, %v1146
  %v1699 = vsel %vm1695, %v1634, %v1148
  %v1701 = vsel %vm1695, %v1636, %v1150
  %v1703 = vsel %vm1695, %v1638, %v1152
  %v1705 = vsel %vm1695, %v1640, %v1154
  %v1707 = vsel %vm1695, %v1642, %v1156
  %v1709 = vsel %vm1695, %v1644, %v1158
  %v1711 = vsel %vm1695, %v1646, %v1160
  %v1713 = vsel %vm1695, %v1648, %v1162
  %v1715 = vsel %vm1695, %v1650, %v1164
  %v1717 = vsel %vm1695, %v1652, %v1166
  %v1719 = vsel %vm1695, %v1654, %v1168
  %v1721 = vsel %vm1695, %v1656, %v1170
  %v1723 = vsel %vm1695, %v1658, %v1172
  %v1725 = vsel %vm1695, %v1660, %v1174
  %v1727 = vsel %vm1695, %v1662, %v1176
  %v1729 = vsel %vm1695, %v1664, %v1178
  %v1731 = vsel %vm1695, %v1666, %v1180
  %v1733 = vsel %vm1695, %v1668, %v1182
  %v1735 = vsel %vm1695, %v1670, %v1184
  %v1737 = vsel %vm1695, %v1672, %v1186
  %v1739 = vsel %vm1695, %v1674, %v1188
  %v1741 = vsel %vm1695, %v1676, %v1190
  %v1743 = vsel %vm1695, %v1678, %v1192
  %v1745 = vsel %vm1695, %v1680, %v1194
  %v1747 = vsel %vm1695, %v1682, %v1196
  %v1749 = vsel %vm1695, %v1684, %v1198
  %v1751 = vsel %vm1695, %v1686, %v1200
  %v1753 = vsel %vm1695, %v1688, %v1202
  %v1755 = vsel %vm1695, %v1690, %v1204
  %v1757 = vsel %vm1695, %v1692, %v1206
  %v1759 = vsel %vm1695, %v1694, %v1208
  %vm1760 = vcmask 195584
  %v1762 = vsel %vm1760, %v1697, %v1212
  %v1764 = vsel %vm1760, %v1699, %v1214
  %v1766 = vsel %vm1760, %v1701, %v1216
  %v1768 = vsel %vm1760, %v1703, %v1218
  %v1770 = vsel %vm1760, %v1705, %v1220
  %v1772 = vsel %vm1760, %v1707, %v1222
  %v1774 = vsel %vm1760, %v1709, %v1224
  %v1776 = vsel %vm1760, %v1711, %v1226
  %v1778 = vsel %vm1760, %v1713, %v1228
  %v1780 = vsel %vm1760, %v1715, %v1230
  %v1782 = vsel %vm1760, %v1717, %v1232
  %v1784 = vsel %vm1760, %v1719, %v1234
  %v1786 = vsel %vm1760, %v1721, %v1236
  %v1788 = vsel %vm1760, %v1723, %v1238
  %v1790 = vsel %vm1760, %v1725, %v1240
  %v1792 = vsel %vm1760, %v1727, %v1242
  %v1794 = vsel %vm1760, %v1729, %v1244
  %v1796 = vsel %vm1760, %v1731, %v1246
  %v1798 = vsel %vm1760, %v1733, %v1248
  %v1800 = vsel %vm1760, %v1735, %v1250
  %v1802 = vsel %vm1760, %v1737, %v1252
  %v1804 = vsel %vm1760, %v1739, %v1254
  %v1806 = vsel %vm1760, %v1741, %v1256
  %v1808 = vsel %vm1760, %v1743, %v1258
  %v1810 = vsel %vm1760, %v1745, %v1260
  %v1812 = vsel %vm1760, %v1747, %v1262
  %v1814 = vsel %vm1760, %v1749, %v1264
  %v1816 = vsel %vm1760, %v1751, %v1266
  %v1818 = vsel %vm1760, %v1753, %v1268
  %v1820 = vsel %vm1760, %v1755, %v1270
  %v1822 = vsel %vm1760, %v1757, %v1272
  %v1824 = vsel %vm1760, %v1759, %v1274
  %vm1825 = vcmask 228352
  %v1827 = vsel %vm1825, %v1762, %v1300
  %v1829 = vsel %vm1825, %v1764, %v1302
  %v1831 = vsel %vm1825, %v1766, %v1304
  %v1833 = vsel %vm1825, %v1768, %v1306
  %v1835 = vsel %vm1825, %v1770, %v1308
  %v1837 = vsel %vm1825, %v1772, %v1310
  %v1839 = vsel %vm1825, %v1774, %v1312
  %v1841 = vsel %vm1825, %v1776, %v1314
  %v1843 = vsel %vm1825, %v1778, %v1316
  %v1845 = vsel %vm1825, %v1780, %v1318
  %v1847 = vsel %vm1825, %v1782, %v1320
  %v1849 = vsel %vm1825, %v1784, %v1322
  %v1851 = vsel %vm1825, %v1786, %v1324
  %v1853 = vsel %vm1825, %v1788, %v1326
  %v1855 = vsel %vm1825, %v1790, %v1328
  %v1857 = vsel %vm1825, %v1792, %v1330
  %v1859 = vsel %vm1825, %v1794, %v1332
  %v1861 = vsel %vm1825, %v1796, %v1334
  %v1863 = vsel %vm1825, %v1798, %v1336
  %v1865 = vsel %vm1825, %v1800, %v1338
  %v1867 = vsel %vm1825, %v1802, %v1340
  %v1869 = vsel %vm1825, %v1804, %v1342
  %v1871 = vsel %vm1825, %v1806, %v1344
  %v1873 = vsel %vm1825, %v1808, %v1346
  %v1875 = vsel %vm1825, %v1810, %v1348
  %v1877 = vsel %vm1825, %v1812, %v1350
  %v1879 = vsel %vm1825, %v1814, %v1352
  %v1881 = vsel %vm1825, %v1816, %v1354
  %v1883 = vsel %vm1825, %v1818, %v1356
  %v1885 = vsel %vm1825, %v1820, %v1358
  %v1887 = vsel %vm1825, %v1822, %v1360
  %v1889 = vsel %vm1825, %v1824, %v1362
  %vm1890 = vcmask 261120
  %v1892 = vsel %vm1890, %v1827, %v1372
  %v1894 = vsel %vm1890, %v1829, %v1374
  %v1896 = vsel %vm1890, %v1831, %v1376
  %v1898 = vsel %vm1890, %v1833, %v1378
  %v1900 = vsel %vm1890, %v1835, %v1380
  %v1902 = vsel %vm1890, %v1837, %v1382
  %v1904 = vsel %vm1890, %v1839, %v1384
  %v1906 = vsel %vm1890, %v1841, %v1386
  %v1908 = vsel %vm1890, %v1843, %v1388
  %v1910 = vsel %vm1890, %v1845, %v1390
  %v1912 = vsel %vm1890, %v1847, %v1392
  %v1914 = vsel %vm1890, %v1849, %v1394
  %v1916 = vsel %vm1890, %v1851, %v1396
  %v1918 = vsel %vm1890, %v1853, %v1398
  %v1920 = vsel %vm1890, %v1855, %v1400
  %v1922 = vsel %vm1890, %v1857, %v1402
  %v1924 = vsel %vm1890, %v1859, %v1404
  %v1926 = vsel %vm1890, %v1861, %v1406
  %v1928 = vsel %vm1890, %v1863, %v1408
  %v1930 = vsel %vm1890, %v1865, %v1410
  %v1932 = vsel %vm1890, %v1867, %v1412
  %v1934 = vsel %vm1890, %v1869, %v1414
  %v1936 = vsel %vm1890, %v1871, %v1416
  %v1938 = vsel %vm1890, %v1873, %v1418
  %v1940 = vsel %vm1890, %v1875, %v1420
  %v1942 = vsel %vm1890, %v1877, %v1422
  %v1944 = vsel %vm1890, %v1879, %v1424
  %v1946 = vsel %vm1890, %v1881, %v1426
  %v1948 = vsel %vm1890, %v1883, %v1428
  %v1950 = vsel %vm1890, %v1885, %v1430
  %v1952 = vsel %vm1890, %v1887, %v1432
  %v1954 = vsel %vm1890, %v1889, %v1434
  %v1955 = vld [vmem:[%s1] sm:$0xf]
  %v1956 = vld [vmem:[%s1 + $0x4] sm:$0xf]
  %v1957 = vld [vmem:[%s1 + $0x8] sm:$0xf]
  %v1958 = vld [vmem:[%s1 + $0xc] sm:$0xf]
  %v1959 = vld [vmem:[%s1 + $0x10] sm:$0x3]
  %v1960 = vld [vmem:[%s2] sm:$0x1]
  %v1962 = vlaneseq
  %v1963 = vshrl.u32 %v1962, 7
  %v1964 = vsub.s32 0, %v1963
  %v1965 = vrot.slane %v1960, %v1964
  %v1972 = vunpack.c.l.b16 %v1955
  %v1973 = vunpack.c.l.b16 %v1956
  %v1974 = vunpack.c.l.b16 %v1957
  %v1975 = vunpack.c.l.b16 %v1958
  %v1976 = vunpack.c.l.b16 %v1959
  %v1977 = vpack.c.b16 %v1973, %v1972
  %v1978 = vpack.c.b16 %v1975, %v1974
  %v1979 = vpack.c.b16 %v1976, %v1976
  %vm1982 = vcmask 293888
  %v1983 = vsel %vm1982, %v1892, 0
  %v1985 = vsel %vm1982, %v1894, 0
  %v1987 = vsel %vm1982, %v1896, 0
  %v1989 = vsel %vm1982, %v1898, 0
  %v1991 = vsel %vm1982, %v1900, 0
  %v1993 = vsel %vm1982, %v1902, 0
  %v1995 = vsel %vm1982, %v1904, 0
  %v1997 = vsel %vm1982, %v1906, 0
  %v1999 = vsel %vm1982, %v1908, 0
  %v2001 = vsel %vm1982, %v1910, 0
  %v2003 = vsel %vm1982, %v1912, 0
  %v2005 = vsel %vm1982, %v1914, 0
  %v2007 = vsel %vm1982, %v1916, 0
  %v2009 = vsel %vm1982, %v1918, 0
  %v2011 = vsel %vm1982, %v1920, 0
  %v2013 = vsel %vm1982, %v1922, 0
  %v2015 = vsel %vm1982, %v1924, 0
  %v2017 = vsel %vm1982, %v1926, 0
  %v2019 = vsel %vm1982, %v1928, 0
  %v2021 = vsel %vm1982, %v1930, 0
  %v2023 = vsel %vm1982, %v1932, 0
  %v2025 = vsel %vm1982, %v1934, 0
  %v2027 = vsel %vm1982, %v1936, 0
  %v2029 = vsel %vm1982, %v1938, 0
  %v2031 = vsel %vm1982, %v1940, 0
  %v2033 = vsel %vm1982, %v1942, 0
  %v2035 = vsel %vm1982, %v1944, 0
  %v2037 = vsel %vm1982, %v1946, 0
  %v2039 = vsel %vm1982, %v1948, 0
  %v2041 = vsel %vm1982, %v1950, 0
  %v2043 = vsel %vm1982, %v1952, 0
  %v2045 = vsel %vm1982, %v1954, 0
  %vm2047 = vcmask 1041408
  %v2049 = vsel %vm2047, %v1979, 0
  %2051 = vmatprep.subr.bf16.mxu0 0
  %2052 = vmatpush1.bf16.msra.mxu0 %v1977
  %2053 = vmatprep.subr.bf16.mxu0 0
  %2054 = vmatpush1.bf16.msra.mxu0 %v1978
  %2055 = vmatprep.subr.bf16.mxu0 0
  %2056 = vmatpush1.bf16.msra.mxu0 %v2049
  %2057 = vmatprep.subr.bf16.mxu0 0
  %2058 = vmatpush1.bf16.msra.mxu0 0
  %2059 = vmatprep.subr.bf16.mxu0 0
  %2060 = vmatpush1.bf16.msra.mxu0 0
  %2061 = vmatprep.subr.bf16.mxu0 0
  %2062 = vmatpush1.bf16.msra.mxu0 0
  %2063 = vmatprep.subr.bf16.mxu0 0
  %2064 = vmatpush1.bf16.msra.mxu0 0
  %2065 = vmatprep.subr.bf16.mxu0 0
  %2066 = vmatpush1.bf16.msra.mxu0 0
  %2067 = vmatprep.subr.bf16.mxu0 0
  %2068 = vmatpush1.bf16.msra.mxu0 0
  %2069 = vmatprep.subr.bf16.mxu0 0
  %2070 = vmatpush1.bf16.msra.mxu0 0
  %2071 = vmatprep.subr.bf16.mxu0 0
  %2072 = vmatpush1.bf16.msra.mxu0 0
  %2073 = vmatprep.subr.bf16.mxu0 0
  %2074 = vmatpush1.bf16.msra.mxu0 0
  %2075 = vmatprep.subr.bf16.mxu0 0
  %2076 = vmatpush1.bf16.msra.mxu0 0
  %2077 = vmatprep.subr.bf16.mxu0 0
  %2078 = vmatpush1.bf16.msra.mxu0 0
  %2079 = vmatprep.subr.bf16.mxu0 0
  %2080 = vmatpush1.bf16.msra.mxu0 0
  %2081 = vmatprep.subr.bf16.mxu0 0
  %2082 = vmatpush1.bf16.msra.mxu0 0
  %2083 = vmatprep.mubr.bf16.mxu0 0
  %2084 = vmatmul.mubr.bf16.gmra.mrb[0].mxu0 %v1983
  %v2085 = vpop.f32.mrb[0].mxu0
  %v2086 = vadd.f32 %v1965, %v2085
  %v2087 = vpop.f32.mrb[0].mxu0
  %v2088 = vpop.f32.mrb[0].mxu0
  %v2089 = vadd.f32 %v1965, %v2088
  %v2090 = vpop.f32.mrb[0].mxu0
  %2091 = vmatprep.mubr.bf16.mxu0 0
  %2092 = vmatmul.mubr.bf16.gmra.mrb[0].mxu0 %v1985
  %v2093 = vpop.f32.mrb[0].mxu0
  %v2094 = vadd.f32 %v1965, %v2093
  %v2095 = vpop.f32.mrb[0].mxu0
  %v2096 = vpop.f32.mrb[0].mxu0
  %v2097 = vadd.f32 %v1965, %v2096
  %v2098 = vpop.f32.mrb[0].mxu0
  %2099 = vmatprep.mubr.bf16.mxu0 0
  %2100 = vmatmul.mubr.bf16.gmra.mrb[0].mxu0 %v1987
  %v2101 = vpop.f32.mrb[0].mxu0
  %v2102 = vadd.f32 %v1965, %v2101
  %v2103 = vpop.f32.mrb[0].mxu0
  %v2104 = vpop.f32.mrb[0].mxu0
  %v2105 = vadd.f32 %v1965, %v2104
  %v2106 = vpop.f32.mrb[0].mxu0
  %2107 = vmatprep.mubr.bf16.mxu0 0
  %2108 = vmatmul.mubr.bf16.gmra.mrb[0].mxu0 %v1989
  %v2109 = vpop.f32.mrb[0].mxu0
  %v2110 = vadd.f32 %v1965, %v2109
  %v2111 = vpop.f32.mrb[0].mxu0
  %v2112 = vpop.f32.mrb[0].mxu0
  %v2113 = vadd.f32 %v1965, %v2112
  %v2114 = vpop.f32.mrb[0].mxu0
  %2115 = vmatprep.mubr.bf16.mxu0 0
  %2116 = vmatmul.mubr.bf16.gmra.mrb[0].mxu0 %v1991
  %v2117 = vpop.f32.mrb[0].mxu0
  %v2118 = vadd.f32 %v1965, %v2117
  %v2119 = vpop.f32.mrb[0].mxu0
  %v2120 = vpop.f32.mrb[0].mxu0
  %v2121 = vadd.f32 %v1965, %v2120
  %v2122 = vpop.f32.mrb[0].mxu0
  %2123 = vmatprep.mubr.bf16.mxu0 0
  %2124 = vmatmul.mubr.bf16.gmra.mrb[0].mxu0 %v1993
  %v2125 = vpop.f32.mrb[0].mxu0
  %v2126 = vadd.f32 %v1965, %v2125
  %v2127 = vpop.f32.mrb[0].mxu0
  %v2128 = vpop.f32.mrb[0].mxu0
  %v2129 = vadd.f32 %v1965, %v2128
  %v2130 = vpop.f32.mrb[0].mxu0
  %2131 = vmatprep.mubr.bf16.mxu0 0
  %2132 = vmatmul.mubr.bf16.gmra.mrb[0].mxu0 %v1995
  %v2133 = vpop.f32.mrb[0].mxu0
  %v2134 = vadd.f32 %v1965, %v2133
  %v2135 = vpop.f32.mrb[0].mxu0
  %v2136 = vpop.f32.mrb[0].mxu0
  %v2137 = vadd.f32 %v1965, %v2136
  %v2138 = vpop.f32.mrb[0].mxu0
  %2139 = vmatprep.mubr.bf16.mxu0 0
  %2140 = vmatmul.mubr.bf16.gmra.mrb[0].mxu0 %v1997
  %v2141 = vpop.f32.mrb[0].mxu0
  %v2142 = vadd.f32 %v1965, %v2141
  %v2143 = vpop.f32.mrb[0].mxu0
  %v2144 = vpop.f32.mrb[0].mxu0
  %v2145 = vadd.f32 %v1965, %v2144
  %v2146 = vpop.f32.mrb[0].mxu0
  %2147 = vmatprep.mubr.bf16.mxu0 0
  %2148 = vmatmul.mubr.bf16.gmra.mrb[0].mxu0 %v1999
  %v2149 = vpop.f32.mrb[0].mxu0
  %v2150 = vadd.f32 %v1965, %v2149
  %v2151 = vpop.f32.mrb[0].mxu0
  %v2152 = vpop.f32.mrb[0].mxu0
  %v2153 = vadd.f32 %v1965, %v2152
  %v2154 = vpop.f32.mrb[0].mxu0
  %2155 = vmatprep.mubr.bf16.mxu0 0
  %2156 = vmatmul.mubr.bf16.gmra.mrb[0].mxu0 %v2001
  %v2157 = vpop.f32.mrb[0].mxu0
  %v2158 = vadd.f32 %v1965, %v2157
  %v2159 = vpop.f32.mrb[0].mxu0
  %v2160 = vpop.f32.mrb[0].mxu0
  %v2161 = vadd.f32 %v1965, %v2160
  %v2162 = vpop.f32.mrb[0].mxu0
  %2163 = vmatprep.mubr.bf16.mxu0 0
  %2164 = vmatmul.mubr.bf16.gmra.mrb[0].mxu0 %v2003
  %v2165 = vpop.f32.mrb[0].mxu0
  %v2166 = vadd.f32 %v1965, %v2165
  %v2167 = vpop.f32.mrb[0].mxu0
  %v2168 = vpop.f32.mrb[0].mxu0
  %v2169 = vadd.f32 %v1965, %v2168
  %v2170 = vpop.f32.mrb[0].mxu0
  %2171 = vmatprep.mubr.bf16.mxu0 0
  %2172 = vmatmul.mubr.bf16.gmra.mrb[0].mxu0 %v2005
  %v2173 = vpop.f32.mrb[0].mxu0
  %v2174 = vadd.f32 %v1965, %v2173
  %v2175 = vpop.f32.mrb[0].mxu0
  %v2176 = vpop.f32.mrb[0].mxu0
  %v2177 = vadd.f32 %v1965, %v2176
  %v2178 = vpop.f32.mrb[0].mxu0
  %2179 = vmatprep.mubr.bf16.mxu0 0
  %2180 = vmatmul.mubr.bf16.gmra.mrb[0].mxu0 %v2007
  %v2181 = vpop.f32.mrb[0].mxu0
  %v2182 = vadd.f32 %v1965, %v2181
  %v2183 = vpop.f32.mrb[0].mxu0
  %v2184 = vpop.f32.mrb[0].mxu0
  %v2185 = vadd.f32 %v1965, %v2184
  %v2186 = vpop.f32.mrb[0].mxu0
  %2187 = vmatprep.mubr.bf16.mxu0 0
  %2188 = vmatmul.mubr.bf16.gmra.mrb[0].mxu0 %v2009
  %v2189 = vpop.f32.mrb[0].mxu0
  %v2190 = vadd.f32 %v1965, %v2189
  %v2191 = vpop.f32.mrb[0].mxu0
  %v2192 = vpop.f32.mrb[0].mxu0
  %v2193 = vadd.f32 %v1965, %v2192
  %v2194 = vpop.f32.mrb[0].mxu0
  %2195 = vmatprep.mubr.bf16.mxu0 0
  %2196 = vmatmul.mubr.bf16.gmra.mrb[0].mxu0 %v2011
  %v2197 = vpop.f32.mrb[0].mxu0
  %v2198 = vadd.f32 %v1965, %v2197
  %v2199 = vpop.f32.mrb[0].mxu0
  %v2200 = vpop.f32.mrb[0].mxu0
  %v2201 = vadd.f32 %v1965, %v2200
  %v2202 = vpop.f32.mrb[0].mxu0
  %2203 = vmatprep.mubr.bf16.mxu0 0
  %2204 = vmatmul.mubr.bf16.gmra.mrb[0].mxu0 %v2013
  %v2205 = vpop.f32.mrb[0].mxu0
  %v2206 = vadd.f32 %v1965, %v2205
  %v2207 = vpop.f32.mrb[0].mxu0
  %v2208 = vpop.f32.mrb[0].mxu0
  %v2209 = vadd.f32 %v1965, %v2208
  %v2210 = vpop.f32.mrb[0].mxu0
  %2211 = vmatprep.mubr.bf16.mxu0 0
  %2212 = vmatmul.mubr.bf16.gmra.mrb[0].mxu0 %v2015
  %v2213 = vpop.f32.mrb[0].mxu0
  %v2214 = vadd.f32 %v1965, %v2213
  %v2215 = vpop.f32.mrb[0].mxu0
  %v2216 = vpop.f32.mrb[0].mxu0
  %v2217 = vadd.f32 %v1965, %v2216
  %v2218 = vpop.f32.mrb[0].mxu0
  %2219 = vmatprep.mubr.bf16.mxu0 0
  %2220 = vmatmul.mubr.bf16.gmra.mrb[0].mxu0 %v2017
  %v2221 = vpop.f32.mrb[0].mxu0
  %v2222 = vadd.f32 %v1965, %v2221
  %v2223 = vpop.f32.mrb[0].mxu0
  %v2224 = vpop.f32.mrb[0].mxu0
  %v2225 = vadd.f32 %v1965, %v2224
  %v2226 = vpop.f32.mrb[0].mxu0
  %2227 = vmatprep.mubr.bf16.mxu0 0
  %2228 = vmatmul.mubr.bf16.gmra.mrb[0].mxu0 %v2019
  %v2229 = vpop.f32.mrb[0].mxu0
  %v2230 = vadd.f32 %v1965, %v2229
  %v2231 = vpop.f32.mrb[0].mxu0
  %v2232 = vpop.f32.mrb[0].mxu0
  %v2233 = vadd.f32 %v1965, %v2232
  %v2234 = vpop.f32.mrb[0].mxu0
  %2235 = vmatprep.mubr.bf16.mxu0 0
  %2236 = vmatmul.mubr.bf16.gmra.mrb[0].mxu0 %v2021
  %v2237 = vpop.f32.mrb[0].mxu0
  %v2238 = vadd.f32 %v1965, %v2237
  %v2239 = vpop.f32.mrb[0].mxu0
  %v2240 = vpop.f32.mrb[0].mxu0
  %v2241 = vadd.f32 %v1965, %v2240
  %v2242 = vpop.f32.mrb[0].mxu0
  %2243 = vmatprep.mubr.bf16.mxu0 0
  %2244 = vmatmul.mubr.bf16.gmra.mrb[0].mxu0 %v2023
  %v2245 = vpop.f32.mrb[0].mxu0
  %v2246 = vadd.f32 %v1965, %v2245
  %v2247 = vpop.f32.mrb[0].mxu0
  %v2248 = vpop.f32.mrb[0].mxu0
  %v2249 = vadd.f32 %v1965, %v2248
  %v2250 = vpop.f32.mrb[0].mxu0
  %2251 = vmatprep.mubr.bf16.mxu0 0
  %2252 = vmatmul.mubr.bf16.gmra.mrb[0].mxu0 %v2025
  %v2253 = vpop.f32.mrb[0].mxu0
  %v2254 = vadd.f32 %v1965, %v2253
  %v2255 = vpop.f32.mrb[0].mxu0
  %v2256 = vpop.f32.mrb[0].mxu0
  %v2257 = vadd.f32 %v1965, %v2256
  %v2258 = vpop.f32.mrb[0].mxu0
  %2259 = vmatprep.mubr.bf16.mxu0 0
  %2260 = vmatmul.mubr.bf16.gmra.mrb[0].mxu0 %v2027
  %v2261 = vpop.f32.mrb[0].mxu0
  %v2262 = vadd.f32 %v1965, %v2261
  %v2263 = vpop.f32.mrb[0].mxu0
  %v2264 = vpop.f32.mrb[0].mxu0
  %v2265 = vadd.f32 %v1965, %v2264
  %v2266 = vpop.f32.mrb[0].mxu0
  %2267 = vmatprep.mubr.bf16.mxu0 0
  %2268 = vmatmul.mubr.bf16.gmra.mrb[0].mxu0 %v2029
  %v2269 = vpop.f32.mrb[0].mxu0
  %v2270 = vadd.f32 %v1965, %v2269
  %v2271 = vpop.f32.mrb[0].mxu0
  %v2272 = vpop.f32.mrb[0].mxu0
  %v2273 = vadd.f32 %v1965, %v2272
  %v2274 = vpop.f32.mrb[0].mxu0
  %2275 = vmatprep.mubr.bf16.mxu0 0
  %2276 = vmatmul.mubr.bf16.gmra.mrb[0].mxu0 %v2031
  %v2277 = vpop.f32.mrb[0].mxu0
  %v2278 = vadd.f32 %v1965, %v2277
  %v2279 = vpop.f32.mrb[0].mxu0
  %v2280 = vpop.f32.mrb[0].mxu0
  %v2281 = vadd.f32 %v1965, %v2280
  %v2282 = vpop.f32.mrb[0].mxu0
  %2283 = vmatprep.mubr.bf16.mxu0 0
  %2284 = vmatmul.mubr.bf16.gmra.mrb[0].mxu0 %v2033
  %v2285 = vpop.f32.mrb[0].mxu0
  %v2286 = vadd.f32 %v1965, %v2285
  %v2287 = vpop.f32.mrb[0].mxu0
  %v2288 = vpop.f32.mrb[0].mxu0
  %v2289 = vadd.f32 %v1965, %v2288
  %v2290 = vpop.f32.mrb[0].mxu0
  %2291 = vmatprep.mubr.bf16.mxu0 0
  %2292 = vmatmul.mubr.bf16.gmra.mrb[0].mxu0 %v2035
  %v2293 = vpop.f32.mrb[0].mxu0
  %v2294 = vadd.f32 %v1965, %v2293
  %v2295 = vpop.f32.mrb[0].mxu0
  %v2296 = vpop.f32.mrb[0].mxu0
  %v2297 = vadd.f32 %v1965, %v2296
  %v2298 = vpop.f32.mrb[0].mxu0
  %2299 = vmatprep.mubr.bf16.mxu0 0
  %2300 = vmatmul.mubr.bf16.gmra.mrb[0].mxu0 %v2037
  %v2301 = vpop.f32.mrb[0].mxu0
  %v2302 = vadd.f32 %v1965, %v2301
  %v2303 = vpop.f32.mrb[0].mxu0
  %v2304 = vpop.f32.mrb[0].mxu0
  %v2305 = vadd.f32 %v1965, %v2304
  %v2306 = vpop.f32.mrb[0].mxu0
  %2307 = vmatprep.mubr.bf16.mxu0 0
  %2308 = vmatmul.mubr.bf16.gmra.mrb[0].mxu0 %v2039
  %v2309 = vpop.f32.mrb[0].mxu0
  %v2310 = vadd.f32 %v1965, %v2309
  %v2311 = vpop.f32.mrb[0].mxu0
  %v2312 = vpop.f32.mrb[0].mxu0
  %v2313 = vadd.f32 %v1965, %v2312
  %v2314 = vpop.f32.mrb[0].mxu0
  %2315 = vmatprep.mubr.bf16.mxu0 0
  %2316 = vmatmul.mubr.bf16.gmra.mrb[0].mxu0 %v2041
  %v2317 = vpop.f32.mrb[0].mxu0
  %v2318 = vadd.f32 %v1965, %v2317
  %v2319 = vpop.f32.mrb[0].mxu0
  %v2320 = vpop.f32.mrb[0].mxu0
  %v2321 = vadd.f32 %v1965, %v2320
  %v2322 = vpop.f32.mrb[0].mxu0
  %2323 = vmatprep.mubr.bf16.mxu0 0
  %2324 = vmatmul.mubr.bf16.gmra.mrb[0].mxu0 %v2043
  %v2325 = vpop.f32.mrb[0].mxu0
  %v2326 = vadd.f32 %v1965, %v2325
  %v2327 = vpop.f32.mrb[0].mxu0
  %v2328 = vpop.f32.mrb[0].mxu0
  %v2329 = vadd.f32 %v1965, %v2328
  %v2330 = vpop.f32.mrb[0].mxu0
  %2331 = vmatprep.mubr.bf16.mxu0 0
  %2332 = vmatmul.mubr.bf16.gmra.mrb[0].mxu0 %v2045
  %v2333 = vpop.f32.mrb[0].mxu0
  %v2334 = vadd.f32 %v1965, %v2333
  %v2335 = vpop.f32.mrb[0].mxu0
  %v2336 = vpop.f32.mrb[0].mxu0
  %v2337 = vadd.f32 %v1965, %v2336
  %v2338 = vpop.f32.mrb[0].mxu0
  %2339 = vdwg.mxu0
  %v2340 = vmax.f32 %v2086, 0.0
  %v2341 = vmax.f32 %v2089, 0.0
  %v2342 = vmax.f32 %v2094, 0.0
  %v2343 = vmax.f32 %v2097, 0.0
  %v2344 = vmax.f32 %v2102, 0.0
  %v2345 = vmax.f32 %v2105, 0.0
  %v2346 = vmax.f32 %v2110, 0.0
  %v2347 = vmax.f32 %v2113, 0.0
  %v2348 = vmax.f32 %v2118, 0.0
  %v2349 = vmax.f32 %v2121, 0.0
  %v2350 = vmax.f32 %v2126, 0.0
  %v2351 = vmax.f32 %v2129, 0.0
  %v2352 = vmax.f32 %v2134, 0.0
  %v2353 = vmax.f32 %v2137, 0.0
  %v2354 = vmax.f32 %v2142, 0.0
  %v2355 = vmax.f32 %v2145, 0.0
  %v2356 = vmax.f32 %v2150, 0.0
  %v2357 = vmax.f32 %v2153, 0.0
  %v2358 = vmax.f32 %v2158, 0.0
  %v2359 = vmax.f32 %v2161, 0.0
  %v2360 = vmax.f32 %v2166, 0.0
  %v2361 = vmax.f32 %v2169, 0.0
  %v2362 = vmax.f32 %v2174, 0.0
  %v2363 = vmax.f32 %v2177, 0.0
  %v2364 = vmax.f32 %v2182, 0.0
  %v2365 = vmax.f32 %v2185, 0.0
  %v2366 = vmax.f32 %v2190, 0.0
  %v2367 = vmax.f32 %v2193, 0.0
  %v2368 = vmax.f32 %v2198, 0.0
  %v2369 = vmax.f32 %v2201, 0.0
  %v2370 = vmax.f32 %v2206, 0.0
  %v2371 = vmax.f32 %v2209, 0.0
  %v2372 = vmax.f32 %v2214, 0.0
  %v2373 = vmax.f32 %v2217, 0.0
  %v2374 = vmax.f32 %v2222, 0.0
  %v2375 = vmax.f32 %v2225, 0.0
  %v2376 = vmax.f32 %v2230, 0.0
  %v2377 = vmax.f32 %v2233, 0.0
  %v2378 = vmax.f32 %v2238, 0.0
  %v2379 = vmax.f32 %v2241, 0.0
  %v2380 = vmax.f32 %v2246, 0.0
  %v2381 = vmax.f32 %v2249, 0.0
  %v2382 = vmax.f32 %v2254, 0.0
  %v2383 = vmax.f32 %v2257, 0.0
  %v2384 = vmax.f32 %v2262, 0.0
  %v2385 = vmax.f32 %v2265, 0.0
  %v2386 = vmax.f32 %v2270, 0.0
  %v2387 = vmax.f32 %v2273, 0.0
  %v2388 = vmax.f32 %v2278, 0.0
  %v2389 = vmax.f32 %v2281, 0.0
  %v2390 = vmax.f32 %v2286, 0.0
  %v2391 = vmax.f32 %v2289, 0.0
  %v2392 = vmax.f32 %v2294, 0.0
  %v2393 = vmax.f32 %v2297, 0.0
  %v2394 = vmax.f32 %v2302, 0.0
  %v2395 = vmax.f32 %v2305, 0.0
  %v2396 = vmax.f32 %v2310, 0.0
  %v2397 = vmax.f32 %v2313, 0.0
  %v2398 = vmax.f32 %v2318, 0.0
  %v2399 = vmax.f32 %v2321, 0.0
  %v2400 = vmax.f32 %v2326, 0.0
  %v2401 = vmax.f32 %v2329, 0.0
  %v2402 = vmax.f32 %v2334, 0.0
  %v2403 = vmax.f32 %v2337, 0.0
  %v2404 = vpack.c.bf16 %v2341, %v2340
  %v2405 = vpack.c.bf16 %v2343, %v2342
  %v2406 = vpack.c.bf16 %v2345, %v2344
  %v2407 = vpack.c.bf16 %v2347, %v2346
  %v2408 = vpack.c.bf16 %v2349, %v2348
  %v2409 = vpack.c.bf16 %v2351, %v2350
  %v2410 = vpack.c.bf16 %v2353, %v2352
  %v2411 = vpack.c.bf16 %v2355, %v2354
  %v2412 = vpack.c.bf16 %v2357, %v2356
  %v2413 = vpack.c.bf16 %v2359, %v2358
  %v2414 = vpack.c.bf16 %v2361, %v2360
  %v2415 = vpack.c.bf16 %v2363, %v2362
  %v2416 = vpack.c.bf16 %v2365, %v2364
  %v2417 = vpack.c.bf16 %v2367, %v2366
  %v2418 = vpack.c.bf16 %v2369, %v2368
  %v2419 = vpack.c.bf16 %v2371, %v2370
  %v2420 = vpack.c.bf16 %v2373, %v2372
  %v2421 = vpack.c.bf16 %v2375, %v2374
  %v2422 = vpack.c.bf16 %v2377, %v2376
  %v2423 = vpack.c.bf16 %v2379, %v2378
  %v2424 = vpack.c.bf16 %v2381, %v2380
  %v2425 = vpack.c.bf16 %v2383, %v2382
  %v2426 = vpack.c.bf16 %v2385, %v2384
  %v2427 = vpack.c.bf16 %v2387, %v2386
  %v2428 = vpack.c.bf16 %v2389, %v2388
  %v2429 = vpack.c.bf16 %v2391, %v2390
  %v2430 = vpack.c.bf16 %v2393, %v2392
  %v2431 = vpack.c.bf16 %v2395, %v2394
  %v2432 = vpack.c.bf16 %v2397, %v2396
  %v2433 = vpack.c.bf16 %v2399, %v2398
  %v2434 = vpack.c.bf16 %v2401, %v2400
  %v2435 = vpack.c.bf16 %v2403, %v2402
  %vm2436 = vcmask 60416
  %2437 = vst.msk [vmem:[#allocation2] sm:$0xf] %vm2436, 0
  %2438 = vst.msk [vmem:[#allocation2 + $0x4] sm:$0xf] %vm2436, 0
  %vm2439 = vcmask 57344
  %2440 = vst.msk [vmem:[#allocation2 + $0x8] sm:$0x1] %vm2439, 0
  %2441 = vst.msk [vmem:[#allocation2 + $0xd8] sm:$0xf] %vm2436, 0
  %2442 = vst.msk [vmem:[#allocation2 + $0xdc] sm:$0xf] %vm2436, 0
  %2443 = vst.msk [vmem:[#allocation2 + $0xe0] sm:$0x1] %vm2439, 0
  %s2444 = scalar_lea.vmem [#allocation2], 204
  %2445 = vst.msk [vmem:[%s2444] sm:$0xf] %vm2436, 0
  %2446 = vst.msk [vmem:[%s2444 + $0x4] sm:$0xf] %vm2436, 0
  %2447 = vst.msk [vmem:[%s2444 + $0x8] sm:$0x1] %vm2439, 0
  %2448 = vst.msk [vmem:[%s2444 + $0xd8] sm:$0xf] %vm2436, 0
  %2449 = vst.msk [vmem:[%s2444 + $0xdc] sm:$0xf] %vm2436, 0
  %2450 = vst.msk [vmem:[%s2444 + $0xe0] sm:$0x1] %vm2439, 0
  %s2451 = scalar_lea.vmem [#allocation2], 12
  %vm2452 = vcmask 57344
  %vm2453 = vsmask.f32 256
  %vm2454 = vmand %vm2452, %vm2453
  %v2455 = vld [vmem:[%s2451] sm:$0x1]
  %v2456 = vsel %vm2454, 0, %v2455
  %2457 = vst [vmem:[%s2451] sm:$0x1] %v2456
  %v2458 = vld [vmem:[%s2451 + $0xc] sm:$0x1]
  %v2459 = vsel %vm2454, 0, %v2458
  %2460 = vst [vmem:[%s2451 + $0xc] sm:$0x1] %v2459
  %v2461 = vld [vmem:[%s2451 + $0x18] sm:$0x1]
  %v2462 = vsel %vm2454, 0, %v2461
  %2463 = vst [vmem:[%s2451 + $0x18] sm:$0x1] %v2462
  %v2464 = vld [vmem:[%s2451 + $0x24] sm:$0x1]
  %v2465 = vsel %vm2454, 0, %v2464
  %2466 = vst [vmem:[%s2451 + $0x24] sm:$0x1] %v2465
  %v2467 = vld [vmem:[%s2451 + $0x30] sm:$0x1]
  %v2468 = vsel %vm2454, 0, %v2467
  %2469 = vst [vmem:[%s2451 + $0x30] sm:$0x1] %v2468
  %v2470 = vld [vmem:[%s2451 + $0x3c] sm:$0x1]
  %v2471 = vsel %vm2454, 0, %v2470
  %2472 = vst [vmem:[%s2451 + $0x3c] sm:$0x1] %v2471
  %v2473 = vld [vmem:[%s2451 + $0x48] sm:$0x1]
  %v2474 = vsel %vm2454, 0, %v2473
  %2475 = vst [vmem:[%s2451 + $0x48] sm:$0x1] %v2474
  %v2476 = vld [vmem:[%s2451 + $0x54] sm:$0x1]
  %v2477 = vsel %vm2454, 0, %v2476
  %2478 = vst [vmem:[%s2451 + $0x54] sm:$0x1] %v2477
  %v2479 = vld [vmem:[%s2451 + $0x60] sm:$0x1]
  %v2480 = vsel %vm2454, 0, %v2479
  %2481 = vst [vmem:[%s2451 + $0x60] sm:$0x1] %v2480
  %v2482 = vld [vmem:[%s2451 + $0x6c] sm:$0x1]
  %v2483 = vsel %vm2454, 0, %v2482
  %2484 = vst [vmem:[%s2451 + $0x6c] sm:$0x1] %v2483
  %v2485 = vld [vmem:[%s2451 + $0x78] sm:$0x1]
  %v2486 = vsel %vm2454, 0, %v2485
  %2487 = vst [vmem:[%s2451 + $0x78] sm:$0x1] %v2486
  %v2488 = vld [vmem:[%s2451 + $0x84] sm:$0x1]
  %v2489 = vsel %vm2454, 0, %v2488
  %2490 = vst [vmem:[%s2451 + $0x84] sm:$0x1] %v2489
  %v2491 = vld [vmem:[%s2451 + $0x90] sm:$0x1]
  %v2492 = vsel %vm2454, 0, %v2491
  %2493 = vst [vmem:[%s2451 + $0x90] sm:$0x1] %v2492
  %v2494 = vld [vmem:[%s2451 + $0x9c] sm:$0x1]
  %v2495 = vsel %vm2454, 0, %v2494
  %2496 = vst [vmem:[%s2451 + $0x9c] sm:$0x1] %v2495
  %v2497 = vld [vmem:[%s2451 + $0xa8] sm:$0x1]
  %v2498 = vsel %vm2454, 0, %v2497
  %2499 = vst [vmem:[%s2451 + $0xa8] sm:$0x1] %v2498
  %v2500 = vld [vmem:[%s2451 + $0xb4] sm:$0x1]
  %v2501 = vsel %vm2454, 0, %v2500
  %2502 = vst [vmem:[%s2451 + $0xb4] sm:$0x1] %v2501
  %v2503 = vld [vmem:[%s2451 + $0xd8] sm:$0x1]
  %v2504 = vsel %vm2454, 0, %v2503
  %2505 = vst [vmem:[%s2451 + $0xd8] sm:$0x1] %v2504
  %v2506 = vld [vmem:[%s2451 + $0xe4] sm:$0x1]
  %v2507 = vsel %vm2454, 0, %v2506
  %2508 = vst [vmem:[%s2451 + $0xe4] sm:$0x1] %v2507
  %v2509 = vld [vmem:[%s2451 + $0xf0] sm:$0x1]
  %v2510 = vsel %vm2454, 0, %v2509
  %2511 = vst [vmem:[%s2451 + $0xf0] sm:$0x1] %v2510
  %v2512 = vld [vmem:[%s2451 + $0xfc] sm:$0x1]
  %v2513 = vsel %vm2454, 0, %v2512
  %2514 = vst [vmem:[%s2451 + $0xfc] sm:$0x1] %v2513
  %v2515 = vld [vmem:[%s2451 + $0x108] sm:$0x1]
  %v2516 = vsel %vm2454, 0, %v2515
  %2517 = vst [vmem:[%s2451 + $0x108] sm:$0x1] %v2516
  %v2518 = vld [vmem:[%s2451 + $0x114] sm:$0x1]
  %v2519 = vsel %vm2454, 0, %v2518
  %2520 = vst [vmem:[%s2451 + $0x114] sm:$0x1] %v2519
  %v2521 = vld [vmem:[%s2451 + $0x120] sm:$0x1]
  %v2522 = vsel %vm2454, 0, %v2521
  %2523 = vst [vmem:[%s2451 + $0x120] sm:$0x1] %v2522
  %v2524 = vld [vmem:[%s2451 + $0x12c] sm:$0x1]
  %v2525 = vsel %vm2454, 0, %v2524
  %2526 = vst [vmem:[%s2451 + $0x12c] sm:$0x1] %v2525
  %v2527 = vld [vmem:[%s2451 + $0x138] sm:$0x1]
  %v2528 = vsel %vm2454, 0, %v2527
  %2529 = vst [vmem:[%s2451 + $0x138] sm:$0x1] %v2528
  %v2530 = vld [vmem:[%s2451 + $0x144] sm:$0x1]
  %v2531 = vsel %vm2454, 0, %v2530
  %2532 = vst [vmem:[%s2451 + $0x144] sm:$0x1] %v2531
  %v2533 = vld [vmem:[%s2451 + $0x150] sm:$0x1]
  %v2534 = vsel %vm2454, 0, %v2533
  %2535 = vst [vmem:[%s2451 + $0x150] sm:$0x1] %v2534
  %v2536 = vld [vmem:[%s2451 + $0x15c] sm:$0x1]
  %v2537 = vsel %vm2454, 0, %v2536
  %2538 = vst [vmem:[%s2451 + $0x15c] sm:$0x1] %v2537
  %v2539 = vld [vmem:[%s2451 + $0x168] sm:$0x1]
  %v2540 = vsel %vm2454, 0, %v2539
  %2541 = vst [vmem:[%s2451 + $0x168] sm:$0x1] %v2540
  %v2542 = vld [vmem:[%s2451 + $0x174] sm:$0x1]
  %v2543 = vsel %vm2454, 0, %v2542
  %2544 = vst [vmem:[%s2451 + $0x174] sm:$0x1] %v2543
  %v2545 = vld [vmem:[%s2451 + $0x180] sm:$0x1]
  %v2546 = vsel %vm2454, 0, %v2545
  %2547 = vst [vmem:[%s2451 + $0x180] sm:$0x1] %v2546
  %v2548 = vld [vmem:[%s2451 + $0x18c] sm:$0x1]
  %v2549 = vsel %vm2454, 0, %v2548
  %2550 = vst [vmem:[%s2451 + $0x18c] sm:$0x1] %v2549
  %vm2551 = vsmask.f32 7938
  %vm2552 = vmand %vm2452, %vm2551
  %v2553 = vld [vmem:[%s2451 + $0x8] sm:$0x1]
  %v2554 = vsel %vm2552, 0, %v2553
  %2555 = vst [vmem:[%s2451 + $0x8] sm:$0x1] %v2554
  %v2556 = vld [vmem:[%s2451 + $0x14] sm:$0x1]
  %v2557 = vsel %vm2552, 0, %v2556
  %2558 = vst [vmem:[%s2451 + $0x14] sm:$0x1] %v2557
  %v2559 = vld [vmem:[%s2451 + $0x20] sm:$0x1]
  %v2560 = vsel %vm2552, 0, %v2559
  %2561 = vst [vmem:[%s2451 + $0x20] sm:$0x1] %v2560
  %v2562 = vld [vmem:[%s2451 + $0x2c] sm:$0x1]
  %v2563 = vsel %vm2552, 0, %v2562
  %2564 = vst [vmem:[%s2451 + $0x2c] sm:$0x1] %v2563
  %v2565 = vld [vmem:[%s2451 + $0x38] sm:$0x1]
  %v2566 = vsel %vm2552, 0, %v2565
  %2567 = vst [vmem:[%s2451 + $0x38] sm:$0x1] %v2566
  %v2568 = vld [vmem:[%s2451 + $0x44] sm:$0x1]
  %v2569 = vsel %vm2552, 0, %v2568
  %2570 = vst [vmem:[%s2451 + $0x44] sm:$0x1] %v2569
  %v2571 = vld [vmem:[%s2451 + $0x50] sm:$0x1]
  %v2572 = vsel %vm2552, 0, %v2571
  %2573 = vst [vmem:[%s2451 + $0x50] sm:$0x1] %v2572
  %v2574 = vld [vmem:[%s2451 + $0x5c] sm:$0x1]
  %v2575 = vsel %vm2552, 0, %v2574
  %2576 = vst [vmem:[%s2451 + $0x5c] sm:$0x1] %v2575
  %v2577 = vld [vmem:[%s2451 + $0x68] sm:$0x1]
  %v2578 = vsel %vm2552, 0, %v2577
  %2579 = vst [vmem:[%s2451 + $0x68] sm:$0x1] %v2578
  %v2580 = vld [vmem:[%s2451 + $0x74] sm:$0x1]
  %v2581 = vsel %vm2552, 0, %v2580
  %2582 = vst [vmem:[%s2451 + $0x74] sm:$0x1] %v2581
  %v2583 = vld [vmem:[%s2451 + $0x80] sm:$0x1]
  %v2584 = vsel %vm2552, 0, %v2583
  %2585 = vst [vmem:[%s2451 + $0x80] sm:$0x1] %v2584
  %v2586 = vld [vmem:[%s2451 + $0x8c] sm:$0x1]
  %v2587 = vsel %vm2552, 0, %v2586
  %2588 = vst [vmem:[%s2451 + $0x8c] sm:$0x1] %v2587
  %v2589 = vld [vmem:[%s2451 + $0x98] sm:$0x1]
  %v2590 = vsel %vm2552, 0, %v2589
  %2591 = vst [vmem:[%s2451 + $0x98] sm:$0x1] %v2590
  %v2592 = vld [vmem:[%s2451 + $0xa4] sm:$0x1]
  %v2593 = vsel %vm2552, 0, %v2592
  %2594 = vst [vmem:[%s2451 + $0xa4] sm:$0x1] %v2593
  %v2595 = vld [vmem:[%s2451 + $0xb0] sm:$0x1]
  %v2596 = vsel %vm2552, 0, %v2595
  %2597 = vst [vmem:[%s2451 + $0xb0] sm:$0x1] %v2596
  %v2598 = vld [vmem:[%s2451 + $0xbc] sm:$0x1]
  %v2599 = vsel %vm2552, 0, %v2598
  %2600 = vst [vmem:[%s2451 + $0xbc] sm:$0x1] %v2599
  %v2601 = vld [vmem:[%s2451 + $0xe0] sm:$0x1]
  %v2602 = vsel %vm2552, 0, %v2601
  %2603 = vst [vmem:[%s2451 + $0xe0] sm:$0x1] %v2602
  %v2604 = vld [vmem:[%s2451 + $0xec] sm:$0x1]
  %v2605 = vsel %vm2552, 0, %v2604
  %2606 = vst [vmem:[%s2451 + $0xec] sm:$0x1] %v2605
  %v2607 = vld [vmem:[%s2451 + $0xf8] sm:$0x1]
  %v2608 = vsel %vm2552, 0, %v2607
  %2609 = vst [vmem:[%s2451 + $0xf8] sm:$0x1] %v2608
  %v2610 = vld [vmem:[%s2451 + $0x104] sm:$0x1]
  %v2611 = vsel %vm2552, 0, %v2610
  %2612 = vst [vmem:[%s2451 + $0x104] sm:$0x1] %v2611
  %v2613 = vld [vmem:[%s2451 + $0x110] sm:$0x1]
  %v2614 = vsel %vm2552, 0, %v2613
  %2615 = vst [vmem:[%s2451 + $0x110] sm:$0x1] %v2614
  %v2616 = vld [vmem:[%s2451 + $0x11c] sm:$0x1]
  %v2617 = vsel %vm2552, 0, %v2616
  %2618 = vst [vmem:[%s2451 + $0x11c] sm:$0x1] %v2617
  %v2619 = vld [vmem:[%s2451 + $0x128] sm:$0x1]
  %v2620 = vsel %vm2552, 0, %v2619
  %2621 = vst [vmem:[%s2451 + $0x128] sm:$0x1] %v2620
  %v2622 = vld [vmem:[%s2451 + $0x134] sm:$0x1]
  %v2623 = vsel %vm2552, 0, %v2622
  %2624 = vst [vmem:[%s2451 + $0x134] sm:$0x1] %v2623
  %v2625 = vld [vmem:[%s2451 + $0x140] sm:$0x1]
  %v2626 = vsel %vm2552, 0, %v2625
  %2627 = vst [vmem:[%s2451 + $0x140] sm:$0x1] %v2626
  %v2628 = vld [vmem:[%s2451 + $0x14c] sm:$0x1]
  %v2629 = vsel %vm2552, 0, %v2628
  %2630 = vst [vmem:[%s2451 + $0x14c] sm:$0x1] %v2629
  %v2631 = vld [vmem:[%s2451 + $0x158] sm:$0x1]
  %v2632 = vsel %vm2552, 0, %v2631
  %2633 = vst [vmem:[%s2451 + $0x158] sm:$0x1] %v2632
  %v2634 = vld [vmem:[%s2451 + $0x164] sm:$0x1]
  %v2635 = vsel %vm2552, 0, %v2634
  %2636 = vst [vmem:[%s2451 + $0x164] sm:$0x1] %v2635
  %v2637 = vld [vmem:[%s2451 + $0x170] sm:$0x1]
  %v2638 = vsel %vm2552, 0, %v2637
  %2639 = vst [vmem:[%s2451 + $0x170] sm:$0x1] %v2638
  %v2640 = vld [vmem:[%s2451 + $0x17c] sm:$0x1]
  %v2641 = vsel %vm2552, 0, %v2640
  %2642 = vst [vmem:[%s2451 + $0x17c] sm:$0x1] %v2641
  %v2643 = vld [vmem:[%s2451 + $0x188] sm:$0x1]
  %v2644 = vsel %vm2552, 0, %v2643
  %2645 = vst [vmem:[%s2451 + $0x188] sm:$0x1] %v2644
  %v2646 = vld [vmem:[%s2451 + $0x194] sm:$0x1]
  %v2647 = vsel %vm2552, 0, %v2646
  %2648 = vst [vmem:[%s2451 + $0x194] sm:$0x1] %v2647
  %v2681 = vunpack.c.l.b16 %v2404
  %v2682 = vunpack.c.h.b16 %v2404
  %v2683 = vunpack.c.l.b16 %v2405
  %v2684 = vunpack.c.h.b16 %v2405
  %v2685 = vunpack.c.l.b16 %v2406
  %v2686 = vunpack.c.h.b16 %v2406
  %v2687 = vunpack.c.l.b16 %v2407
  %v2688 = vunpack.c.h.b16 %v2407
  %v2689 = vunpack.c.l.b16 %v2408
  %v2690 = vunpack.c.h.b16 %v2408
  %v2691 = vunpack.c.l.b16 %v2409
  %v2692 = vunpack.c.h.b16 %v2409
  %v2693 = vunpack.c.l.b16 %v2410
  %v2694 = vunpack.c.h.b16 %v2410
  %v2695 = vunpack.c.l.b16 %v2411
  %v2696 = vunpack.c.h.b16 %v2411
  %v2697 = vunpack.c.l.b16 %v2412
  %v2698 = vunpack.c.h.b16 %v2412
  %v2699 = vunpack.c.l.b16 %v2413
  %v2700 = vunpack.c.h.b16 %v2413
  %v2701 = vunpack.c.l.b16 %v2414
  %v2702 = vunpack.c.h.b16 %v2414
  %v2703 = vunpack.c.l.b16 %v2415
  %v2704 = vunpack.c.h.b16 %v2415
  %v2705 = vunpack.c.l.b16 %v2416
  %v2706 = vunpack.c.h.b16 %v2416
  %v2707 = vunpack.c.l.b16 %v2417
  %v2708 = vunpack.c.h.b16 %v2417
  %v2709 = vunpack.c.l.b16 %v2418
  %v2710 = vunpack.c.h.b16 %v2418
  %v2711 = vunpack.c.l.b16 %v2419
  %v2712 = vunpack.c.h.b16 %v2419
  %v2713 = vunpack.c.l.b16 %v2420
  %v2714 = vunpack.c.h.b16 %v2420
  %v2715 = vunpack.c.l.b16 %v2421
  %v2716 = vunpack.c.h.b16 %v2421
  %v2717 = vunpack.c.l.b16 %v2422
  %v2718 = vunpack.c.h.b16 %v2422
  %v2719 = vunpack.c.l.b16 %v2423
  %v2720 = vunpack.c.h.b16 %v2423
  %v2721 = vunpack.c.l.b16 %v2424
  %v2722 = vunpack.c.h.b16 %v2424
  %v2723 = vunpack.c.l.b16 %v2425
  %v2724 = vunpack.c.h.b16 %v2425
  %v2725 = vunpack.c.l.b16 %v2426
  %v2726 = vunpack.c.h.b16 %v2426
  %v2727 = vunpack.c.l.b16 %v2427
  %v2728 = vunpack.c.h.b16 %v2427
  %v2729 = vunpack.c.l.b16 %v2428
  %v2730 = vunpack.c.h.b16 %v2428
  %v2731 = vunpack.c.l.b16 %v2429
  %v2732 = vunpack.c.h.b16 %v2429
  %v2733 = vunpack.c.l.b16 %v2430
  %v2734 = vunpack.c.h.b16 %v2430
  %v2735 = vunpack.c.l.b16 %v2431
  %v2736 = vunpack.c.h.b16 %v2431
  %v2737 = vunpack.c.l.b16 %v2432
  %v2738 = vunpack.c.h.b16 %v2432
  %v2739 = vunpack.c.l.b16 %v2433
  %v2740 = vunpack.c.h.b16 %v2433
  %v2741 = vunpack.c.l.b16 %v2434
  %v2742 = vunpack.c.h.b16 %v2434
  %v2743 = vunpack.c.l.b16 %v2435
  %v2744 = vunpack.c.h.b16 %v2435
  %v2745 = vpack.c.b16 %v2681, %v2681
  %v2746 = vpack.c.b16 %v2682, %v2682
  %v2747 = vpack.c.b16 %v2683, %v2683
  %v2748 = vpack.c.b16 %v2684, %v2684
  %v2749 = vpack.c.b16 %v2685, %v2685
  %v2750 = vpack.c.b16 %v2686, %v2686
  %v2751 = vpack.c.b16 %v2687, %v2687
  %v2752 = vpack.c.b16 %v2688, %v2688
  %v2753 = vpack.c.b16 %v2689, %v2689
  %v2754 = vpack.c.b16 %v2690, %v2690
  %v2755 = vpack.c.b16 %v2691, %v2691
  %v2756 = vpack.c.b16 %v2692, %v2692
  %v2757 = vpack.c.b16 %v2693, %v2693
  %v2758 = vpack.c.b16 %v2694, %v2694
  %v2759 = vpack.c.b16 %v2695, %v2695
  %v2760 = vpack.c.b16 %v2696, %v2696
  %v2761 = vpack.c.b16 %v2697, %v2697
  %v2762 = vpack.c.b16 %v2698, %v2698
  %v2763 = vpack.c.b16 %v2699, %v2699
  %v2764 = vpack.c.b16 %v2700, %v2700
  %v2765 = vpack.c.b16 %v2701, %v2701
  %v2766 = vpack.c.b16 %v2702, %v2702
  %v2767 = vpack.c.b16 %v2703, %v2703
  %v2768 = vpack.c.b16 %v2704, %v2704
  %v2769 = vpack.c.b16 %v2705, %v2705
  %v2770 = vpack.c.b16 %v2706, %v2706
  %v2771 = vpack.c.b16 %v2707, %v2707
  %v2772 = vpack.c.b16 %v2708, %v2708
  %v2773 = vpack.c.b16 %v2709, %v2709
  %v2774 = vpack.c.b16 %v2710, %v2710
  %v2775 = vpack.c.b16 %v2711, %v2711
  %v2776 = vpack.c.b16 %v2712, %v2712
  %v2777 = vpack.c.b16 %v2713, %v2713
  %v2778 = vpack.c.b16 %v2714, %v2714
  %v2779 = vpack.c.b16 %v2715, %v2715
  %v2780 = vpack.c.b16 %v2716, %v2716
  %v2781 = vpack.c.b16 %v2717, %v2717
  %v2782 = vpack.c.b16 %v2718, %v2718
  %v2783 = vpack.c.b16 %v2719, %v2719
  %v2784 = vpack.c.b16 %v2720, %v2720
  %v2785 = vpack.c.b16 %v2721, %v2721
  %v2786 = vpack.c.b16 %v2722, %v2722
  %v2787 = vpack.c.b16 %v2723, %v2723
  %v2788 = vpack.c.b16 %v2724, %v2724
  %v2789 = vpack.c.b16 %v2725, %v2725
  %v2790 = vpack.c.b16 %v2726, %v2726
  %v2791 = vpack.c.b16 %v2727, %v2727
  %v2792 = vpack.c.b16 %v2728, %v2728
  %v2793 = vpack.c.b16 %v2729, %v2729
  %v2794 = vpack.c.b16 %v2730, %v2730
  %v2795 = vpack.c.b16 %v2731, %v2731
  %v2796 = vpack.c.b16 %v2732, %v2732
  %v2797 = vpack.c.b16 %v2733, %v2733
  %v2798 = vpack.c.b16 %v2734, %v2734
  %v2799 = vpack.c.b16 %v2735, %v2735
  %v2800 = vpack.c.b16 %v2736, %v2736
  %v2801 = vpack.c.b16 %v2737, %v2737
  %v2802 = vpack.c.b16 %v2738, %v2738
  %v2803 = vpack.c.b16 %v2739, %v2739
  %v2804 = vpack.c.b16 %v2740, %v2740
  %v2805 = vpack.c.b16 %v2741, %v2741
  %v2806 = vpack.c.b16 %v2742, %v2742
  %v2807 = vpack.c.b16 %v2743, %v2743
  %v2808 = vpack.c.b16 %v2744, %v2744
  %vm2809 = vsmask.f32 4368
  %vm2810 = vmor %vm2453, %vm2809
  %v2812 = vshrl.u32 %v2745, 16
  %v2814 = vrot.slane %v2812, 7
  %v2815 = vshll.u32 %v2745, 16
  %v2817 = vor.u32 %v2814, %v2815
  %v2818 = vrot.slane %v2814, 4
  %v2820 = vshrl.u32 %v2746, 16
  %v2822 = vrot.slane %v2820, 7
  %v2823 = vshll.u32 %v2746, 16
  %v2825 = vor.u32 %v2822, %v2823
  %v2826 = vsel %vm2810, %v2818, %v2825
  %v2827 = vrot.slane %v2822, 4
  %v2829 = vshrl.u32 %v2747, 16
  %v2831 = vrot.slane %v2829, 7
  %v2832 = vshll.u32 %v2747, 16
  %v2834 = vor.u32 %v2831, %v2832
  %v2835 = vrot.slane %v2831, 4
  %v2837 = vshrl.u32 %v2748, 16
  %v2839 = vrot.slane %v2837, 7
  %v2840 = vshll.u32 %v2748, 16
  %v2842 = vor.u32 %v2839, %v2840
  %v2843 = vsel %vm2810, %v2835, %v2842
  %v2844 = vrot.slane %v2839, 4
  %v2846 = vshrl.u32 %v2749, 16
  %v2848 = vrot.slane %v2846, 7
  %v2849 = vshll.u32 %v2749, 16
  %v2851 = vor.u32 %v2848, %v2849
  %v2852 = vrot.slane %v2848, 4
  %v2854 = vshrl.u32 %v2750, 16
  %v2856 = vrot.slane %v2854, 7
  %v2857 = vshll.u32 %v2750, 16
  %v2859 = vor.u32 %v2856, %v2857
  %v2860 = vsel %vm2810, %v2852, %v2859
  %v2861 = vrot.slane %v2856, 4
  %v2863 = vshrl.u32 %v2751, 16
  %v2865 = vrot.slane %v2863, 7
  %v2866 = vshll.u32 %v2751, 16
  %v2868 = vor.u32 %v2865, %v2866
  %v2869 = vrot.slane %v2865, 4
  %v2871 = vshrl.u32 %v2752, 16
  %v2873 = vrot.slane %v2871, 7
  %v2874 = vshll.u32 %v2752, 16
  %v2876 = vor.u32 %v2873, %v2874
  %v2877 = vsel %vm2810, %v2869, %v2876
  %v2878 = vrot.slane %v2873, 4
  %v2880 = vshrl.u32 %v2753, 16
  %v2882 = vrot.slane %v2880, 7
  %v2883 = vshll.u32 %v2753, 16
  %v2885 = vor.u32 %v2882, %v2883
  %v2886 = vrot.slane %v2882, 4
  %v2888 = vshrl.u32 %v2754, 16
  %v2890 = vrot.slane %v2888, 7
  %v2891 = vshll.u32 %v2754, 16
  %v2893 = vor.u32 %v2890, %v2891
  %v2894 = vsel %vm2810, %v2886, %v2893
  %v2895 = vrot.slane %v2890, 4
  %v2897 = vshrl.u32 %v2755, 16
  %v2899 = vrot.slane %v2897, 7
  %v2900 = vshll.u32 %v2755, 16
  %v2902 = vor.u32 %v2899, %v2900
  %v2903 = vrot.slane %v2899, 4
  %v2905 = vshrl.u32 %v2756, 16
  %v2907 = vrot.slane %v2905, 7
  %v2908 = vshll.u32 %v2756, 16
  %v2910 = vor.u32 %v2907, %v2908
  %v2911 = vsel %vm2810, %v2903, %v2910
  %v2912 = vrot.slane %v2907, 4
  %v2914 = vshrl.u32 %v2757, 16
  %v2916 = vrot.slane %v2914, 7
  %v2917 = vshll.u32 %v2757, 16
  %v2919 = vor.u32 %v2916, %v2917
  %v2920 = vrot.slane %v2916, 4
  %v2922 = vshrl.u32 %v2758, 16
  %v2924 = vrot.slane %v2922, 7
  %v2925 = vshll.u32 %v2758, 16
  %v2927 = vor.u32 %v2924, %v2925
  %v2928 = vsel %vm2810, %v2920, %v2927
  %v2929 = vrot.slane %v2924, 4
  %v2931 = vshrl.u32 %v2759, 16
  %v2933 = vrot.slane %v2931, 7
  %v2934 = vshll.u32 %v2759, 16
  %v2936 = vor.u32 %v2933, %v2934
  %v2937 = vrot.slane %v2933, 4
  %v2939 = vshrl.u32 %v2760, 16
  %v2941 = vrot.slane %v2939, 7
  %v2942 = vshll.u32 %v2760, 16
  %v2944 = vor.u32 %v2941, %v2942
  %v2945 = vsel %vm2810, %v2937, %v2944
  %v2946 = vrot.slane %v2941, 4
  %v2948 = vshrl.u32 %v2761, 16
  %v2950 = vrot.slane %v2948, 7
  %v2951 = vshll.u32 %v2761, 16
  %v2953 = vor.u32 %v2950, %v2951
  %v2954 = vrot.slane %v2950, 4
  %v2956 = vshrl.u32 %v2762, 16
  %v2958 = vrot.slane %v2956, 7
  %v2959 = vshll.u32 %v2762, 16
  %v2961 = vor.u32 %v2958, %v2959
  %v2962 = vsel %vm2810, %v2954, %v2961
  %v2963 = vrot.slane %v2958, 4
  %v2965 = vshrl.u32 %v2763, 16
  %v2967 = vrot.slane %v2965, 7
  %v2968 = vshll.u32 %v2763, 16
  %v2970 = vor.u32 %v2967, %v2968
  %v2971 = vrot.slane %v2967, 4
  %v2973 = vshrl.u32 %v2764, 16
  %v2975 = vrot.slane %v2973, 7
  %v2976 = vshll.u32 %v2764, 16
  %v2978 = vor.u32 %v2975, %v2976
  %v2979 = vsel %vm2810, %v2971, %v2978
  %v2980 = vrot.slane %v2975, 4
  %v2982 = vshrl.u32 %v2765, 16
  %v2984 = vrot.slane %v2982, 7
  %v2985 = vshll.u32 %v2765, 16
  %v2987 = vor.u32 %v2984, %v2985
  %v2988 = vrot.slane %v2984, 4
  %v2990 = vshrl.u32 %v2766, 16
  %v2992 = vrot.slane %v2990, 7
  %v2993 = vshll.u32 %v2766, 16
  %v2995 = vor.u32 %v2992, %v2993
  %v2996 = vsel %vm2810, %v2988, %v2995
  %v2997 = vrot.slane %v2992, 4
  %v2999 = vshrl.u32 %v2767, 16
  %v3001 = vrot.slane %v2999, 7
  %v3002 = vshll.u32 %v2767, 16
  %v3004 = vor.u32 %v3001, %v3002
  %v3005 = vrot.slane %v3001, 4
  %v3007 = vshrl.u32 %v2768, 16
  %v3009 = vrot.slane %v3007, 7
  %v3010 = vshll.u32 %v2768, 16
  %v3012 = vor.u32 %v3009, %v3010
  %v3013 = vsel %vm2810, %v3005, %v3012
  %v3014 = vrot.slane %v3009, 4
  %v3016 = vshrl.u32 %v2769, 16
  %v3018 = vrot.slane %v3016, 7
  %v3019 = vshll.u32 %v2769, 16
  %v3021 = vor.u32 %v3018, %v3019
  %v3022 = vrot.slane %v3018, 4
  %v3024 = vshrl.u32 %v2770, 16
  %v3026 = vrot.slane %v3024, 7
  %v3027 = vshll.u32 %v2770, 16
  %v3029 = vor.u32 %v3026, %v3027
  %v3030 = vsel %vm2810, %v3022, %v3029
  %v3031 = vrot.slane %v3026, 4
  %v3033 = vshrl.u32 %v2771, 16
  %v3035 = vrot.slane %v3033, 7
  %v3036 = vshll.u32 %v2771, 16
  %v3038 = vor.u32 %v3035, %v3036
  %v3039 = vrot.slane %v3035, 4
  %v3041 = vshrl.u32 %v2772, 16
  %v3043 = vrot.slane %v3041, 7
  %v3044 = vshll.u32 %v2772, 16
  %v3046 = vor.u32 %v3043, %v3044
  %v3047 = vsel %vm2810, %v3039, %v3046
  %v3048 = vrot.slane %v3043, 4
  %v3050 = vshrl.u32 %v2773, 16
  %v3052 = vrot.slane %v3050, 7
  %v3053 = vshll.u32 %v2773, 16
  %v3055 = vor.u32 %v3052, %v3053
  %v3056 = vrot.slane %v3052, 4
  %v3058 = vshrl.u32 %v2774, 16
  %v3060 = vrot.slane %v3058, 7
  %v3061 = vshll.u32 %v2774, 16
  %v3063 = vor.u32 %v3060, %v3061
  %v3064 = vsel %vm2810, %v3056, %v3063
  %v3065 = vrot.slane %v3060, 4
  %v3067 = vshrl.u32 %v2775, 16
  %v3069 = vrot.slane %v3067, 7
  %v3070 = vshll.u32 %v2775, 16
  %v3072 = vor.u32 %v3069, %v3070
  %v3073 = vrot.slane %v3069, 4
  %v3075 = vshrl.u32 %v2776, 16
  %v3077 = vrot.slane %v3075, 7
  %v3078 = vshll.u32 %v2776, 16
  %v3080 = vor.u32 %v3077, %v3078
  %v3081 = vsel %vm2810, %v3073, %v3080
  %v3082 = vrot.slane %v3077, 4
  %v3084 = vshrl.u32 %v2777, 16
  %v3086 = vrot.slane %v3084, 7
  %v3087 = vshll.u32 %v2777, 16
  %v3089 = vor.u32 %v3086, %v3087
  %v3090 = vrot.slane %v3086, 4
  %v3092 = vshrl.u32 %v2778, 16
  %v3094 = vrot.slane %v3092, 7
  %v3095 = vshll.u32 %v2778, 16
  %v3097 = vor.u32 %v3094, %v3095
  %v3098 = vsel %vm2810, %v3090, %v3097
  %v3099 = vrot.slane %v3094, 4
  %v3101 = vshrl.u32 %v2779, 16
  %v3103 = vrot.slane %v3101, 7
  %v3104 = vshll.u32 %v2779, 16
  %v3106 = vor.u32 %v3103, %v3104
  %v3107 = vrot.slane %v3103, 4
  %v3109 = vshrl.u32 %v2780, 16
  %v3111 = vrot.slane %v3109, 7
  %v3112 = vshll.u32 %v2780, 16
  %v3114 = vor.u32 %v3111, %v3112
  %v3115 = vsel %vm2810, %v3107, %v3114
  %v3116 = vrot.slane %v3111, 4
  %v3118 = vshrl.u32 %v2781, 16
  %v3120 = vrot.slane %v3118, 7
  %v3121 = vshll.u32 %v2781, 16
  %v3123 = vor.u32 %v3120, %v3121
  %v3124 = vrot.slane %v3120, 4
  %v3126 = vshrl.u32 %v2782, 16
  %v3128 = vrot.slane %v3126, 7
  %v3129 = vshll.u32 %v2782, 16
  %v3131 = vor.u32 %v3128, %v3129
  %v3132 = vsel %vm2810, %v3124, %v3131
  %v3133 = vrot.slane %v3128, 4
  %v3135 = vshrl.u32 %v2783, 16
  %v3137 = vrot.slane %v3135, 7
  %v3138 = vshll.u32 %v2783, 16
  %v3140 = vor.u32 %v3137, %v3138
  %v3141 = vrot.slane %v3137, 4
  %v3143 = vshrl.u32 %v2784, 16
  %v3145 = vrot.slane %v3143, 7
  %v3146 = vshll.u32 %v2784, 16
  %v3148 = vor.u32 %v3145, %v3146
  %v3149 = vsel %vm2810, %v3141, %v3148
  %v3150 = vrot.slane %v3145, 4
  %v3152 = vshrl.u32 %v2785, 16
  %v3154 = vrot.slane %v3152, 7
  %v3155 = vshll.u32 %v2785, 16
  %v3157 = vor.u32 %v3154, %v3155
  %v3158 = vrot.slane %v3154, 4
  %v3160 = vshrl.u32 %v2786, 16
  %v3162 = vrot.slane %v3160, 7
  %v3163 = vshll.u32 %v2786, 16
  %v3165 = vor.u32 %v3162, %v3163
  %v3166 = vsel %vm2810, %v3158, %v3165
  %v3167 = vrot.slane %v3162, 4
  %v3169 = vshrl.u32 %v2787, 16
  %v3171 = vrot.slane %v3169, 7
  %v3172 = vshll.u32 %v2787, 16
  %v3174 = vor.u32 %v3171, %v3172
  %v3175 = vrot.slane %v3171, 4
  %v3177 = vshrl.u32 %v2788, 16
  %v3179 = vrot.slane %v3177, 7
  %v3180 = vshll.u32 %v2788, 16
  %v3182 = vor.u32 %v3179, %v3180
  %v3183 = vsel %vm2810, %v3175, %v3182
  %v3184 = vrot.slane %v3179, 4
  %v3186 = vshrl.u32 %v2789, 16
  %v3188 = vrot.slane %v3186, 7
  %v3189 = vshll.u32 %v2789, 16
  %v3191 = vor.u32 %v3188, %v3189
  %v3192 = vrot.slane %v3188, 4
  %v3194 = vshrl.u32 %v2790, 16
  %v3196 = vrot.slane %v3194, 7
  %v3197 = vshll.u32 %v2790, 16
  %v3199 = vor.u32 %v3196, %v3197
  %v3200 = vsel %vm2810, %v3192, %v3199
  %v3201 = vrot.slane %v3196, 4
  %v3203 = vshrl.u32 %v2791, 16
  %v3205 = vrot.slane %v3203, 7
  %v3206 = vshll.u32 %v2791, 16
  %v3208 = vor.u32 %v3205, %v3206
  %v3209 = vrot.slane %v3205, 4
  %v3211 = vshrl.u32 %v2792, 16
  %v3213 = vrot.slane %v3211, 7
  %v3214 = vshll.u32 %v2792, 16
  %v3216 = vor.u32 %v3213, %v3214
  %v3217 = vsel %vm2810, %v3209, %v3216
  %v3218 = vrot.slane %v3213, 4
  %v3220 = vshrl.u32 %v2793, 16
  %v3222 = vrot.slane %v3220, 7
  %v3223 = vshll.u32 %v2793, 16
  %v3225 = vor.u32 %v3222, %v3223
  %v3226 = vrot.slane %v3222, 4
  %v3228 = vshrl.u32 %v2794, 16
  %v3230 = vrot.slane %v3228, 7
  %v3231 = vshll.u32 %v2794, 16
  %v3233 = vor.u32 %v3230, %v3231
  %v3234 = vsel %vm2810, %v3226, %v3233
  %v3235 = vrot.slane %v3230, 4
  %v3237 = vshrl.u32 %v2795, 16
  %v3239 = vrot.slane %v3237, 7
  %v3240 = vshll.u32 %v2795, 16
  %v3242 = vor.u32 %v3239, %v3240
  %v3243 = vrot.slane %v3239, 4
  %v3245 = vshrl.u32 %v2796, 16
  %v3247 = vrot.slane %v3245, 7
  %v3248 = vshll.u32 %v2796, 16
  %v3250 = vor.u32 %v3247, %v3248
  %v3251 = vsel %vm2810, %v3243, %v3250
  %v3252 = vrot.slane %v3247, 4
  %v3254 = vshrl.u32 %v2797, 16
  %v3256 = vrot.slane %v3254, 7
  %v3257 = vshll.u32 %v2797, 16
  %v3259 = vor.u32 %v3256, %v3257
  %v3260 = vrot.slane %v3256, 4
  %v3262 = vshrl.u32 %v2798, 16
  %v3264 = vrot.slane %v3262, 7
  %v3265 = vshll.u32 %v2798, 16
  %v3267 = vor.u32 %v3264, %v3265
  %v3268 = vsel %vm2810, %v3260, %v3267
  %v3269 = vrot.slane %v3264, 4
  %v3271 = vshrl.u32 %v2799, 16
  %v3273 = vrot.slane %v3271, 7
  %v3274 = vshll.u32 %v2799, 16
  %v3276 = vor.u32 %v3273, %v3274
  %v3277 = vrot.slane %v3273, 4
  %v3279 = vshrl.u32 %v2800, 16
  %v3281 = vrot.slane %v3279, 7
  %v3282 = vshll.u32 %v2800, 16
  %v3284 = vor.u32 %v3281, %v3282
  %v3285 = vsel %vm2810, %v3277, %v3284
  %v3286 = vrot.slane %v3281, 4
  %v3288 = vshrl.u32 %v2801, 16
  %v3290 = vrot.slane %v3288, 7
  %v3291 = vshll.u32 %v2801, 16
  %v3293 = vor.u32 %v3290, %v3291
  %v3294 = vrot.slane %v3290, 4
  %v3296 = vshrl.u32 %v2802, 16
  %v3298 = vrot.slane %v3296, 7
  %v3299 = vshll.u32 %v2802, 16
  %v3301 = vor.u32 %v3298, %v3299
  %v3302 = vsel %vm2810, %v3294, %v3301
  %v3303 = vrot.slane %v3298, 4
  %v3305 = vshrl.u32 %v2803, 16
  %v3307 = vrot.slane %v3305, 7
  %v3308 = vshll.u32 %v2803, 16
  %v3310 = vor.u32 %v3307, %v3308
  %v3311 = vrot.slane %v3307, 4
  %v3313 = vshrl.u32 %v2804, 16
  %v3315 = vrot.slane %v3313, 7
  %v3316 = vshll.u32 %v2804, 16
  %v3318 = vor.u32 %v3315, %v3316
  %v3319 = vsel %vm2810, %v3311, %v3318
  %v3320 = vrot.slane %v3315, 4
  %v3322 = vshrl.u32 %v2805, 16
  %v3324 = vrot.slane %v3322, 7
  %v3325 = vshll.u32 %v2805, 16
  %v3327 = vor.u32 %v3324, %v3325
  %v3328 = vrot.slane %v3324, 4
  %v3330 = vshrl.u32 %v2806, 16
  %v3332 = vrot.slane %v3330, 7
  %v3333 = vshll.u32 %v2806, 16
  %v3335 = vor.u32 %v3332, %v3333
  %v3336 = vsel %vm2810, %v3328, %v3335
  %v3337 = vrot.slane %v3332, 4
  %v3339 = vshrl.u32 %v2807, 16
  %v3341 = vrot.slane %v3339, 7
  %v3342 = vshll.u32 %v2807, 16
  %v3344 = vor.u32 %v3341, %v3342
  %v3345 = vrot.slane %v3341, 4
  %v3347 = vshrl.u32 %v2808, 16
  %v3349 = vrot.slane %v3347, 7
  %v3350 = vshll.u32 %v2808, 16
  %v3352 = vor.u32 %v3349, %v3350
  %v3353 = vsel %vm2810, %v3345, %v3352
  %v3354 = vrot.slane %v3349, 4
  %vm3451 = vcmask 60416
  %vm3452 = vmand %vm3451, %vm2551
  %v3453 = vld [vmem:[%s2451] sm:$0xf]
  %v3454 = vsel %vm3452, %v2817, %v3453
  %3455 = vst [vmem:[%s2451] sm:$0xf] %v3454
  %3456 = vst.msk [vmem:[%s2451 + $0x4] sm:$0xf] %vm2436, %v2826
  %v3457 = vld [vmem:[%s2451 + $0x8] sm:$0x1]
  %v3458 = vsel %vm2454, %v2827, %v3457
  %3459 = vst [vmem:[%s2451 + $0x8] sm:$0x1] %v3458
  %v3460 = vld [vmem:[%s2451 + $0xc] sm:$0xf]
  %v3461 = vsel %vm3452, %v2834, %v3460
  %3462 = vst [vmem:[%s2451 + $0xc] sm:$0xf] %v3461
  %3463 = vst.msk [vmem:[%s2451 + $0x10] sm:$0xf] %vm2436, %v2843
  %v3464 = vld [vmem:[%s2451 + $0x14] sm:$0x1]
  %v3465 = vsel %vm2454, %v2844, %v3464
  %3466 = vst [vmem:[%s2451 + $0x14] sm:$0x1] %v3465
  %v3467 = vld [vmem:[%s2451 + $0x18] sm:$0xf]
  %v3468 = vsel %vm3452, %v2851, %v3467
  %3469 = vst [vmem:[%s2451 + $0x18] sm:$0xf] %v3468
  %3470 = vst.msk [vmem:[%s2451 + $0x1c] sm:$0xf] %vm2436, %v2860
  %v3471 = vld [vmem:[%s2451 + $0x20] sm:$0x1]
  %v3472 = vsel %vm2454, %v2861, %v3471
  %3473 = vst [vmem:[%s2451 + $0x20] sm:$0x1] %v3472
  %v3474 = vld [vmem:[%s2451 + $0x24] sm:$0xf]
  %v3475 = vsel %vm3452, %v2868, %v3474
  %3476 = vst [vmem:[%s2451 + $0x24] sm:$0xf] %v3475
  %3477 = vst.msk [vmem:[%s2451 + $0x28] sm:$0xf] %vm2436, %v2877
  %v3478 = vld [vmem:[%s2451 + $0x2c] sm:$0x1]
  %v3479 = vsel %vm2454, %v2878, %v3478
  %3480 = vst [vmem:[%s2451 + $0x2c] sm:$0x1] %v3479
  %v3481 = vld [vmem:[%s2451 + $0x30] sm:$0xf]
  %v3482 = vsel %vm3452, %v2885, %v3481
  %3483 = vst [vmem:[%s2451 + $0x30] sm:$0xf] %v3482
  %3484 = vst.msk [vmem:[%s2451 + $0x34] sm:$0xf] %vm2436, %v2894
  %v3485 = vld [vmem:[%s2451 + $0x38] sm:$0x1]
  %v3486 = vsel %vm2454, %v2895, %v3485
  %3487 = vst [vmem:[%s2451 + $0x38] sm:$0x1] %v3486
  %v3488 = vld [vmem:[%s2451 + $0x3c] sm:$0xf]
  %v3489 = vsel %vm3452, %v2902, %v3488
  %3490 = vst [vmem:[%s2451 + $0x3c] sm:$0xf] %v3489
  %3491 = vst.msk [vmem:[%s2451 + $0x40] sm:$0xf] %vm2436, %v2911
  %v3492 = vld [vmem:[%s2451 + $0x44] sm:$0x1]
  %v3493 = vsel %vm2454, %v2912, %v3492
  %3494 = vst [vmem:[%s2451 + $0x44] sm:$0x1] %v3493
  %v3495 = vld [vmem:[%s2451 + $0x48] sm:$0xf]
  %v3496 = vsel %vm3452, %v2919, %v3495
  %3497 = vst [vmem:[%s2451 + $0x48] sm:$0xf] %v3496
  %3498 = vst.msk [vmem:[%s2451 + $0x4c] sm:$0xf] %vm2436, %v2928
  %v3499 = vld [vmem:[%s2451 + $0x50] sm:$0x1]
  %v3500 = vsel %vm2454, %v2929, %v3499
  %3501 = vst [vmem:[%s2451 + $0x50] sm:$0x1] %v3500
  %v3502 = vld [vmem:[%s2451 + $0x54] sm:$0xf]
  %v3503 = vsel %vm3452, %v2936, %v3502
  %3504 = vst [vmem:[%s2451 + $0x54] sm:$0xf] %v3503
  %3505 = vst.msk [vmem:[%s2451 + $0x58] sm:$0xf] %vm2436, %v2945
  %v3506 = vld [vmem:[%s2451 + $0x5c] sm:$0x1]
  %v3507 = vsel %vm2454, %v2946, %v3506
  %3508 = vst [vmem:[%s2451 + $0x5c] sm:$0x1] %v3507
  %v3509 = vld [vmem:[%s2451 + $0x60] sm:$0xf]
  %v3510 = vsel %vm3452, %v2953, %v3509
  %3511 = vst [vmem:[%s2451 + $0x60] sm:$0xf] %v3510
  %3512 = vst.msk [vmem:[%s2451 + $0x64] sm:$0xf] %vm2436, %v2962
  %v3513 = vld [vmem:[%s2451 + $0x68] sm:$0x1]
  %v3514 = vsel %vm2454, %v2963, %v3513
  %3515 = vst [vmem:[%s2451 + $0x68] sm:$0x1] %v3514
  %v3516 = vld [vmem:[%s2451 + $0x6c] sm:$0xf]
  %v3517 = vsel %vm3452, %v2970, %v3516
  %3518 = vst [vmem:[%s2451 + $0x6c] sm:$0xf] %v3517
  %3519 = vst.msk [vmem:[%s2451 + $0x70] sm:$0xf] %vm2436, %v2979
  %v3520 = vld [vmem:[%s2451 + $0x74] sm:$0x1]
  %v3521 = vsel %vm2454, %v2980, %v3520
  %3522 = vst [vmem:[%s2451 + $0x74] sm:$0x1] %v3521
  %v3523 = vld [vmem:[%s2451 + $0x78] sm:$0xf]
  %v3524 = vsel %vm3452, %v2987, %v3523
  %3525 = vst [vmem:[%s2451 + $0x78] sm:$0xf] %v3524
  %3526 = vst.msk [vmem:[%s2451 + $0x7c] sm:$0xf] %vm2436, %v2996
  %v3527 = vld [vmem:[%s2451 + $0x80] sm:$0x1]
  %v3528 = vsel %vm2454, %v2997, %v3527
  %3529 = vst [vmem:[%s2451 + $0x80] sm:$0x1] %v3528
  %v3530 = vld [vmem:[%s2451 + $0x84] sm:$0xf]
  %v3531 = vsel %vm3452, %v3004, %v3530
  %3532 = vst [vmem:[%s2451 + $0x84] sm:$0xf] %v3531
  %3533 = vst.msk [vmem:[%s2451 + $0x88] sm:$0xf] %vm2436, %v3013
  %v3534 = vld [vmem:[%s2451 + $0x8c] sm:$0x1]
  %v3535 = vsel %vm2454, %v3014, %v3534
  %3536 = vst [vmem:[%s2451 + $0x8c] sm:$0x1] %v3535
  %v3537 = vld [vmem:[%s2451 + $0x90] sm:$0xf]
  %v3538 = vsel %vm3452, %v3021, %v3537
  %3539 = vst [vmem:[%s2451 + $0x90] sm:$0xf] %v3538
  %3540 = vst.msk [vmem:[%s2451 + $0x94] sm:$0xf] %vm2436, %v3030
  %v3541 = vld [vmem:[%s2451 + $0x98] sm:$0x1]
  %v3542 = vsel %vm2454, %v3031, %v3541
  %3543 = vst [vmem:[%s2451 + $0x98] sm:$0x1] %v3542
  %v3544 = vld [vmem:[%s2451 + $0x9c] sm:$0xf]
  %v3545 = vsel %vm3452, %v3038, %v3544
  %3546 = vst [vmem:[%s2451 + $0x9c] sm:$0xf] %v3545
  %3547 = vst.msk [vmem:[%s2451 + $0xa0] sm:$0xf] %vm2436, %v3047
  %v3548 = vld [vmem:[%s2451 + $0xa4] sm:$0x1]
  %v3549 = vsel %vm2454, %v3048, %v3548
  %3550 = vst [vmem:[%s2451 + $0xa4] sm:$0x1] %v3549
  %v3551 = vld [vmem:[%s2451 + $0xa8] sm:$0xf]
  %v3552 = vsel %vm3452, %v3055, %v3551
  %3553 = vst [vmem:[%s2451 + $0xa8] sm:$0xf] %v3552
  %3554 = vst.msk [vmem:[%s2451 + $0xac] sm:$0xf] %vm2436, %v3064
  %v3555 = vld [vmem:[%s2451 + $0xb0] sm:$0x1]
  %v3556 = vsel %vm2454, %v3065, %v3555
  %3557 = vst [vmem:[%s2451 + $0xb0] sm:$0x1] %v3556
  %v3558 = vld [vmem:[%s2451 + $0xb4] sm:$0xf]
  %v3559 = vsel %vm3452, %v3072, %v3558
  %3560 = vst [vmem:[%s2451 + $0xb4] sm:$0xf] %v3559
  %3561 = vst.msk [vmem:[%s2451 + $0xb8] sm:$0xf] %vm2436, %v3081
  %v3562 = vld [vmem:[%s2451 + $0xbc] sm:$0x1]
  %v3563 = vsel %vm2454, %v3082, %v3562
  %3564 = vst [vmem:[%s2451 + $0xbc] sm:$0x1] %v3563
  %v3565 = vld [vmem:[%s2451 + $0xd8] sm:$0xf]
  %v3566 = vsel %vm3452, %v3089, %v3565
  %3567 = vst [vmem:[%s2451 + $0xd8] sm:$0xf] %v3566
  %3568 = vst.msk [vmem:[%s2451 + $0xdc] sm:$0xf] %vm2436, %v3098
  %v3569 = vld [vmem:[%s2451 + $0xe0] sm:$0x1]
  %v3570 = vsel %vm2454, %v3099, %v3569
  %3571 = vst [vmem:[%s2451 + $0xe0] sm:$0x1] %v3570
  %v3572 = vld [vmem:[%s2451 + $0xe4] sm:$0xf]
  %v3573 = vsel %vm3452, %v3106, %v3572
  %3574 = vst [vmem:[%s2451 + $0xe4] sm:$0xf] %v3573
  %3575 = vst.msk [vmem:[%s2451 + $0xe8] sm:$0xf] %vm2436, %v3115
  %v3576 = vld [vmem:[%s2451 + $0xec] sm:$0x1]
  %v3577 = vsel %vm2454, %v3116, %v3576
  %3578 = vst [vmem:[%s2451 + $0xec] sm:$0x1] %v3577
  %v3579 = vld [vmem:[%s2451 + $0xf0] sm:$0xf]
  %v3580 = vsel %vm3452, %v3123, %v3579
  %3581 = vst [vmem:[%s2451 + $0xf0] sm:$0xf] %v3580
  %3582 = vst.msk [vmem:[%s2451 + $0xf4] sm:$0xf] %vm2436, %v3132
  %v3583 = vld [vmem:[%s2451 + $0xf8] sm:$0x1]
  %v3584 = vsel %vm2454, %v3133, %v3583
  %3585 = vst [vmem:[%s2451 + $0xf8] sm:$0x1] %v3584
  %v3586 = vld [vmem:[%s2451 + $0xfc] sm:$0xf]
  %v3587 = vsel %vm3452, %v3140, %v3586
  %3588 = vst [vmem:[%s2451 + $0xfc] sm:$0xf] %v3587
  %3589 = vst.msk [vmem:[%s2451 + $0x100] sm:$0xf] %vm2436, %v3149
  %v3590 = vld [vmem:[%s2451 + $0x104] sm:$0x1]
  %v3591 = vsel %vm2454, %v3150, %v3590
  %3592 = vst [vmem:[%s2451 + $0x104] sm:$0x1] %v3591
  %v3593 = vld [vmem:[%s2451 + $0x108] sm:$0xf]
  %v3594 = vsel %vm3452, %v3157, %v3593
  %3595 = vst [vmem:[%s2451 + $0x108] sm:$0xf] %v3594
  %3596 = vst.msk [vmem:[%s2451 + $0x10c] sm:$0xf] %vm2436, %v3166
  %v3597 = vld [vmem:[%s2451 + $0x110] sm:$0x1]
  %v3598 = vsel %vm2454, %v3167, %v3597
  %3599 = vst [vmem:[%s2451 + $0x110] sm:$0x1] %v3598
  %v3600 = vld [vmem:[%s2451 + $0x114] sm:$0xf]
  %v3601 = vsel %vm3452, %v3174, %v3600
  %3602 = vst [vmem:[%s2451 + $0x114] sm:$0xf] %v3601
  %3603 = vst.msk [vmem:[%s2451 + $0x118] sm:$0xf] %vm2436, %v3183
  %v3604 = vld [vmem:[%s2451 + $0x11c] sm:$0x1]
  %v3605 = vsel %vm2454, %v3184, %v3604
  %3606 = vst [vmem:[%s2451 + $0x11c] sm:$0x1] %v3605
  %v3607 = vld [vmem:[%s2451 + $0x120] sm:$0xf]
  %v3608 = vsel %vm3452, %v3191, %v3607
  %3609 = vst [vmem:[%s2451 + $0x120] sm:$0xf] %v3608
  %3610 = vst.msk [vmem:[%s2451 + $0x124] sm:$0xf] %vm2436, %v3200
  %v3611 = vld [vmem:[%s2451 + $0x128] sm:$0x1]
  %v3612 = vsel %vm2454, %v3201, %v3611
  %3613 = vst [vmem:[%s2451 + $0x128] sm:$0x1] %v3612
  %v3614 = vld [vmem:[%s2451 + $0x12c] sm:$0xf]
  %v3615 = vsel %vm3452, %v3208, %v3614
  %3616 = vst [vmem:[%s2451 + $0x12c] sm:$0xf] %v3615
  %3617 = vst.msk [vmem:[%s2451 + $0x130] sm:$0xf] %vm2436, %v3217
  %v3618 = vld [vmem:[%s2451 + $0x134] sm:$0x1]
  %v3619 = vsel %vm2454, %v3218, %v3618
  %3620 = vst [vmem:[%s2451 + $0x134] sm:$0x1] %v3619
  %v3621 = vld [vmem:[%s2451 + $0x138] sm:$0xf]
  %v3622 = vsel %vm3452, %v3225, %v3621
  %3623 = vst [vmem:[%s2451 + $0x138] sm:$0xf] %v3622
  %3624 = vst.msk [vmem:[%s2451 + $0x13c] sm:$0xf] %vm2436, %v3234
  %v3625 = vld [vmem:[%s2451 + $0x140] sm:$0x1]
  %v3626 = vsel %vm2454, %v3235, %v3625
  %3627 = vst [vmem:[%s2451 + $0x140] sm:$0x1] %v3626
  %v3628 = vld [vmem:[%s2451 + $0x144] sm:$0xf]
  %v3629 = vsel %vm3452, %v3242, %v3628
  %3630 = vst [vmem:[%s2451 + $0x144] sm:$0xf] %v3629
  %3631 = vst.msk [vmem:[%s2451 + $0x148] sm:$0xf] %vm2436, %v3251
  %v3632 = vld [vmem:[%s2451 + $0x14c] sm:$0x1]
  %v3633 = vsel %vm2454, %v3252, %v3632
  %3634 = vst [vmem:[%s2451 + $0x14c] sm:$0x1] %v3633
  %v3635 = vld [vmem:[%s2451 + $0x150] sm:$0xf]
  %v3636 = vsel %vm3452, %v3259, %v3635
  %3637 = vst [vmem:[%s2451 + $0x150] sm:$0xf] %v3636
  %3638 = vst.msk [vmem:[%s2451 + $0x154] sm:$0xf] %vm2436, %v3268
  %v3639 = vld [vmem:[%s2451 + $0x158] sm:$0x1]
  %v3640 = vsel %vm2454, %v3269, %v3639
  %3641 = vst [vmem:[%s2451 + $0x158] sm:$0x1] %v3640
  %v3642 = vld [vmem:[%s2451 + $0x15c] sm:$0xf]
  %v3643 = vsel %vm3452, %v3276, %v3642
  %3644 = vst [vmem:[%s2451 + $0x15c] sm:$0xf] %v3643
  %3645 = vst.msk [vmem:[%s2451 + $0x160] sm:$0xf] %vm2436, %v3285
  %v3646 = vld [vmem:[%s2451 + $0x164] sm:$0x1]
  %v3647 = vsel %vm2454, %v3286, %v3646
  %3648 = vst [vmem:[%s2451 + $0x164] sm:$0x1] %v3647
  %v3649 = vld [vmem:[%s2451 + $0x168] sm:$0xf]
  %v3650 = vsel %vm3452, %v3293, %v3649
  %3651 = vst [vmem:[%s2451 + $0x168] sm:$0xf] %v3650
  %3652 = vst.msk [vmem:[%s2451 + $0x16c] sm:$0xf] %vm2436, %v3302
  %v3653 = vld [vmem:[%s2451 + $0x170] sm:$0x1]
  %v3654 = vsel %vm2454, %v3303, %v3653
  %3655 = vst [vmem:[%s2451 + $0x170] sm:$0x1] %v3654
  %v3656 = vld [vmem:[%s2451 + $0x174] sm:$0xf]
  %v3657 = vsel %vm3452, %v3310, %v3656
  %3658 = vst [vmem:[%s2451 + $0x174] sm:$0xf] %v3657
  %3659 = vst.msk [vmem:[%s2451 + $0x178] sm:$0xf] %vm2436, %v3319
  %v3660 = vld [vmem:[%s2451 + $0x17c] sm:$0x1]
  %v3661 = vsel %vm2454, %v3320, %v3660
  %3662 = vst [vmem:[%s2451 + $0x17c] sm:$0x1] %v3661
  %v3663 = vld [vmem:[%s2451 + $0x180] sm:$0xf]
  %v3664 = vsel %vm3452, %v3327, %v3663
  %3665 = vst [vmem:[%s2451 + $0x180] sm:$0xf] %v3664
  %3666 = vst.msk [vmem:[%s2451 + $0x184] sm:$0xf] %vm2436, %v3336
  %v3667 = vld [vmem:[%s2451 + $0x188] sm:$0x1]
  %v3668 = vsel %vm2454, %v3337, %v3667
  %3669 = vst [vmem:[%s2451 + $0x188] sm:$0x1] %v3668
  %v3670 = vld [vmem:[%s2451 + $0x18c] sm:$0xf]
  %v3671 = vsel %vm3452, %v3344, %v3670
  %3672 = vst [vmem:[%s2451 + $0x18c] sm:$0xf] %v3671
  %3673 = vst.msk [vmem:[%s2451 + $0x190] sm:$0xf] %vm2436, %v3353
  %v3674 = vld [vmem:[%s2451 + $0x194] sm:$0x1]
  %v3675 = vsel %vm2454, %v3354, %v3674
  %3676 = vst [vmem:[%s2451 + $0x194] sm:$0x1] %v3675
  %v3677 = vld [vmem:[#allocation2] sm:$0xf]
  %v3678 = vld [vmem:[#allocation2 + $0x4] sm:$0xf]
  %v3679 = vld [vmem:[#allocation2 + $0xc] sm:$0xf]
  %v3680 = vld [vmem:[#allocation2 + $0x10] sm:$0xf]
  %v3681 = vld [vmem:[#allocation2 + $0x18] sm:$0xf]
  %v3682 = vld [vmem:[#allocation2 + $0x1c] sm:$0xf]
  %v3683 = vld [vmem:[#allocation2 + $0x24] sm:$0xf]
  %v3684 = vld [vmem:[#allocation2 + $0x28] sm:$0xf]
  %v3685 = vld [vmem:[#allocation2 + $0x30] sm:$0xf]
  %v3686 = vld [vmem:[#allocation2 + $0x34] sm:$0xf]
  %v3687 = vld [vmem:[#allocation2 + $0x3c] sm:$0xf]
  %v3688 = vld [vmem:[#allocation2 + $0x40] sm:$0xf]
  %v3689 = vld [vmem:[#allocation2 + $0x48] sm:$0xf]
  %v3690 = vld [vmem:[#allocation2 + $0x4c] sm:$0xf]
  %v3691 = vld [vmem:[#allocation2 + $0x54] sm:$0xf]
  %v3692 = vld [vmem:[#allocation2 + $0x58] sm:$0xf]
  %v3693 = vld [vmem:[#allocation2 + $0x60] sm:$0xf]
  %v3694 = vld [vmem:[#allocation2 + $0x64] sm:$0xf]
  %v3695 = vld [vmem:[#allocation2 + $0x6c] sm:$0xf]
  %v3696 = vld [vmem:[#allocation2 + $0x70] sm:$0xf]
  %v3697 = vld [vmem:[#allocation2 + $0x78] sm:$0xf]
  %v3698 = vld [vmem:[#allocation2 + $0x7c] sm:$0xf]
  %v3699 = vld [vmem:[#allocation2 + $0x84] sm:$0xf]
  %v3700 = vld [vmem:[#allocation2 + $0x88] sm:$0xf]
  %v3701 = vld [vmem:[#allocation2 + $0x90] sm:$0xf]
  %v3702 = vld [vmem:[#allocation2 + $0x94] sm:$0xf]
  %v3703 = vld [vmem:[#allocation2 + $0x9c] sm:$0xf]
  %v3704 = vld [vmem:[#allocation2 + $0xa0] sm:$0xf]
  %v3705 = vld [vmem:[#allocation2 + $0xa8] sm:$0xf]
  %v3706 = vld [vmem:[#allocation2 + $0xac] sm:$0xf]
  %v3707 = vld [vmem:[#allocation2 + $0xb4] sm:$0xf]
  %v3708 = vld [vmem:[#allocation2 + $0xb8] sm:$0xf]
  %v3709 = vld [vmem:[#allocation2 + $0xd8] sm:$0xf]
  %v3710 = vld [vmem:[#allocation2 + $0xdc] sm:$0xf]
  %v3711 = vld [vmem:[#allocation2 + $0xe4] sm:$0xf]
  %v3712 = vld [vmem:[#allocation2 + $0xe8] sm:$0xf]
  %v3713 = vld [vmem:[#allocation2 + $0xf0] sm:$0xf]
  %v3714 = vld [vmem:[#allocation2 + $0xf4] sm:$0xf]
  %v3715 = vld [vmem:[#allocation2 + $0xfc] sm:$0xf]
  %v3716 = vld [vmem:[#allocation2 + $0x100] sm:$0xf]
  %v3717 = vld [vmem:[#allocation2 + $0x108] sm:$0xf]
  %v3718 = vld [vmem:[#allocation2 + $0x10c] sm:$0xf]
  %v3719 = vld [vmem:[#allocation2 + $0x114] sm:$0xf]
  %v3720 = vld [vmem:[#allocation2 + $0x118] sm:$0xf]
  %v3721 = vld [vmem:[#allocation2 + $0x120] sm:$0xf]
  %v3722 = vld [vmem:[#allocation2 + $0x124] sm:$0xf]
  %v3723 = vld [vmem:[#allocation2 + $0x12c] sm:$0xf]
  %v3724 = vld [vmem:[#allocation2 + $0x130] sm:$0xf]
  %v3725 = vld [vmem:[#allocation2 + $0x138] sm:$0xf]
  %v3726 = vld [vmem:[#allocation2 + $0x13c] sm:$0xf]
  %v3727 = vld [vmem:[#allocation2 + $0x144] sm:$0xf]
  %v3728 = vld [vmem:[#allocation2 + $0x148] sm:$0xf]
  %v3729 = vld [vmem:[#allocation2 + $0x150] sm:$0xf]
  %v3730 = vld [vmem:[#allocation2 + $0x154] sm:$0xf]
  %v3731 = vld [vmem:[#allocation2 + $0x15c] sm:$0xf]
  %v3732 = vld [vmem:[#allocation2 + $0x160] sm:$0xf]
  %v3733 = vld [vmem:[#allocation2 + $0x168] sm:$0xf]
  %v3734 = vld [vmem:[#allocation2 + $0x16c] sm:$0xf]
  %v3735 = vld [vmem:[#allocation2 + $0x174] sm:$0xf]
  %v3736 = vld [vmem:[#allocation2 + $0x178] sm:$0xf]
  %v3737 = vld [vmem:[#allocation2 + $0x180] sm:$0xf]
  %v3738 = vld [vmem:[#allocation2 + $0x184] sm:$0xf]
  %v3739 = vld [vmem:[#allocation2 + $0x18c] sm:$0xf]
  %v3740 = vld [vmem:[#allocation2 + $0x190] sm:$0xf]
  %v3741 = vld [vmem:[#allocation2 + $0x8] sm:$0x1]
  %v3742 = vld [vmem:[#allocation2 + $0x14] sm:$0x1]
  %v3743 = vld [vmem:[#allocation2 + $0x20] sm:$0x1]
  %v3744 = vld [vmem:[#allocation2 + $0x2c] sm:$0x1]
  %v3745 = vld [vmem:[#allocation2 + $0x38] sm:$0x1]
  %v3746 = vld [vmem:[#allocation2 + $0x44] sm:$0x1]
  %v3747 = vld [vmem:[#allocation2 + $0x50] sm:$0x1]
  %v3748 = vld [vmem:[#allocation2 + $0x5c] sm:$0x1]
  %v3749 = vld [vmem:[#allocation2 + $0x68] sm:$0x1]
  %v3750 = vld [vmem:[#allocation2 + $0x74] sm:$0x1]
  %v3751 = vld [vmem:[#allocation2 + $0x80] sm:$0x1]
  %v3752 = vld [vmem:[#allocation2 + $0x8c] sm:$0x1]
  %v3753 = vld [vmem:[#allocation2 + $0x98] sm:$0x1]
  %v3754 = vld [vmem:[#allocation2 + $0xa4] sm:$0x1]
  %v3755 = vld [vmem:[#allocation2 + $0xb0] sm:$0x1]
  %v3756 = vld [vmem:[#allocation2 + $0xbc] sm:$0x1]
  %v3757 = vld [vmem:[#allocation2 + $0xe0] sm:$0x1]
  %v3758 = vld [vmem:[#allocation2 + $0xec] sm:$0x1]
  %v3759 = vld [vmem:[#allocation2 + $0xf8] sm:$0x1]
  %v3760 = vld [vmem:[#allocation2 + $0x104] sm:$0x1]
  %v3761 = vld [vmem:[#allocation2 + $0x110] sm:$0x1]
  %v3762 = vld [vmem:[#allocation2 + $0x11c] sm:$0x1]
  %v3763 = vld [vmem:[#allocation2 + $0x128] sm:$0x1]
  %v3764 = vld [vmem:[#allocation2 + $0x134] sm:$0x1]
  %v3765 = vld [vmem:[#allocation2 + $0x140] sm:$0x1]
  %v3766 = vld [vmem:[#allocation2 + $0x14c] sm:$0x1]
  %v3767 = vld [vmem:[#allocation2 + $0x158] sm:$0x1]
  %v3768 = vld [vmem:[#allocation2 + $0x164] sm:$0x1]
  %v3769 = vld [vmem:[#allocation2 + $0x170] sm:$0x1]
  %v3770 = vld [vmem:[#allocation2 + $0x17c] sm:$0x1]
  %v3771 = vld [vmem:[#allocation2 + $0x188] sm:$0x1]
  %v3772 = vld [vmem:[#allocation2 + $0x194] sm:$0x1]
  %v3773 = vld [vmem:[#allocation2] sm:$0xe]
  %v3774 = vld [vmem:[#allocation2 + $0xc] sm:$0xe]
  %v3775 = vld [vmem:[#allocation2 + $0x18] sm:$0xe]
  %v3776 = vld [vmem:[#allocation2 + $0x24] sm:$0xe]
  %v3777 = vld [vmem:[#allocation2 + $0x30] sm:$0xe]
  %v3778 = vld [vmem:[#allocation2 + $0x3c] sm:$0xe]
  %v3779 = vld [vmem:[#allocation2 + $0x48] sm:$0xe]
  %v3780 = vld [vmem:[#allocation2 + $0x54] sm:$0xe]
  %v3781 = vld [vmem:[#allocation2 + $0x60] sm:$0xe]
  %v3782 = vld [vmem:[#allocation2 + $0x6c] sm:$0xe]
  %v3783 = vld [vmem:[#allocation2 + $0x78] sm:$0xe]
  %v3784 = vld [vmem:[#allocation2 + $0x84] sm:$0xe]
  %v3785 = vld [vmem:[#allocation2 + $0x90] sm:$0xe]
  %v3786 = vld [vmem:[#allocation2 + $0x9c] sm:$0xe]
  %v3787 = vld [vmem:[#allocation2 + $0xa8] sm:$0xe]
  %v3788 = vld [vmem:[#allocation2 + $0xb4] sm:$0xe]
  %v3789 = vld [vmem:[#allocation2 + $0xd8] sm:$0xe]
  %v3790 = vld [vmem:[#allocation2 + $0xe4] sm:$0xe]
  %v3791 = vld [vmem:[#allocation2 + $0xf0] sm:$0xe]
  %v3792 = vld [vmem:[#allocation2 + $0xfc] sm:$0xe]
  %v3793 = vld [vmem:[#allocation2 + $0x108] sm:$0xe]
  %v3794 = vld [vmem:[#allocation2 + $0x114] sm:$0xe]
  %v3795 = vld [vmem:[#allocation2 + $0x120] sm:$0xe]
  %v3796 = vld [vmem:[#allocation2 + $0x12c] sm:$0xe]
  %v3797 = vld [vmem:[#allocation2 + $0x138] sm:$0xe]
  %v3798 = vld [vmem:[#allocation2 + $0x144] sm:$0xe]
  %v3799 = vld [vmem:[#allocation2 + $0x150] sm:$0xe]
  %v3800 = vld [vmem:[#allocation2 + $0x15c] sm:$0xe]
  %v3801 = vld [vmem:[#allocation2 + $0x168] sm:$0xe]
  %v3802 = vld [vmem:[#allocation2 + $0x174] sm:$0xe]
  %v3803 = vld [vmem:[#allocation2 + $0x180] sm:$0xe]
  %v3804 = vld [vmem:[#allocation2 + $0x18c] sm:$0xe]
  %v3805 = vld [vmem:[%s2451] sm:$0xf]
  %v3806 = vld [vmem:[%s2451 + $0x4] sm:$0xf]
  %v3807 = vld [vmem:[%s2451 + $0xc] sm:$0xf]
  %v3808 = vld [vmem:[%s2451 + $0x10] sm:$0xf]
  %v3809 = vld [vmem:[%s2451 + $0x18] sm:$0xf]
  %v3810 = vld [vmem:[%s2451 + $0x1c] sm:$0xf]
  %v3811 = vld [vmem:[%s2451 + $0x24] sm:$0xf]
  %v3812 = vld [vmem:[%s2451 + $0x28] sm:$0xf]
  %v3813 = vld [vmem:[%s2451 + $0x30] sm:$0xf]
  %v3814 = vld [vmem:[%s2451 + $0x34] sm:$0xf]
  %v3815 = vld [vmem:[%s2451 + $0x3c] sm:$0xf]
  %v3816 = vld [vmem:[%s2451 + $0x40] sm:$0xf]
  %v3817 = vld [vmem:[%s2451 + $0x48] sm:$0xf]
  %v3818 = vld [vmem:[%s2451 + $0x4c] sm:$0xf]
  %v3819 = vld [vmem:[%s2451 + $0x54] sm:$0xf]
  %v3820 = vld [vmem:[%s2451 + $0x58] sm:$0xf]
  %v3821 = vld [vmem:[%s2451 + $0x60] sm:$0xf]
  %v3822 = vld [vmem:[%s2451 + $0x64] sm:$0xf]
  %v3823 = vld [vmem:[%s2451 + $0x6c] sm:$0xf]
  %v3824 = vld [vmem:[%s2451 + $0x70] sm:$0xf]
  %v3825 = vld [vmem:[%s2451 + $0x78] sm:$0xf]
  %v3826 = vld [vmem:[%s2451 + $0x7c] sm:$0xf]
  %v3827 = vld [vmem:[%s2451 + $0x84] sm:$0xf]
  %v3828 = vld [vmem:[%s2451 + $0x88] sm:$0xf]
  %v3829 = vld [vmem:[%s2451 + $0x90] sm:$0xf]
  %v3830 = vld [vmem:[%s2451 + $0x94] sm:$0xf]
  %v3831 = vld [vmem:[%s2451 + $0x9c] sm:$0xf]
  %v3832 = vld [vmem:[%s2451 + $0xa0] sm:$0xf]
  %v3833 = vld [vmem:[%s2451 + $0xa8] sm:$0xf]
  %v3834 = vld [vmem:[%s2451 + $0xac] sm:$0xf]
  %v3835 = vld [vmem:[%s2451 + $0xb4] sm:$0xf]
  %v3836 = vld [vmem:[%s2451 + $0xb8] sm:$0xf]
  %v3837 = vld [vmem:[%s2451 + $0xd8] sm:$0xf]
  %v3838 = vld [vmem:[%s2451 + $0xdc] sm:$0xf]
  %v3839 = vld [vmem:[%s2451 + $0xe4] sm:$0xf]
  %v3840 = vld [vmem:[%s2451 + $0xe8] sm:$0xf]
  %v3841 = vld [vmem:[%s2451 + $0xf0] sm:$0xf]
  %v3842 = vld [vmem:[%s2451 + $0xf4] sm:$0xf]
  %v3843 = vld [vmem:[%s2451 + $0xfc] sm:$0xf]
  %v3844 = vld [vmem:[%s2451 + $0x100] sm:$0xf]
  %v3845 = vld [vmem:[%s2451 + $0x108] sm:$0xf]
  %v3846 = vld [vmem:[%s2451 + $0x10c] sm:$0xf]
  %v3847 = vld [vmem:[%s2451 + $0x114] sm:$0xf]
  %v3848 = vld [vmem:[%s2451 + $0x118] sm:$0xf]
  %v3849 = vld [vmem:[%s2451 + $0x120] sm:$0xf]
  %v3850 = vld [vmem:[%s2451 + $0x124] sm:$0xf]
  %v3851 = vld [vmem:[%s2451 + $0x12c] sm:$0xf]
  %v3852 = vld [vmem:[%s2451 + $0x130] sm:$0xf]
  %v3853 = vld [vmem:[%s2451 + $0x138] sm:$0xf]
  %v3854 = vld [vmem:[%s2451 + $0x13c] sm:$0xf]
  %v3855 = vld [vmem:[%s2451 + $0x144] sm:$0xf]
  %v3856 = vld [vmem:[%s2451 + $0x148] sm:$0xf]
  %v3857 = vld [vmem:[%s2451 + $0x150] sm:$0xf]
  %v3858 = vld [vmem:[%s2451 + $0x154] sm:$0xf]
  %v3859 = vld [vmem:[%s2451 + $0x15c] sm:$0xf]
  %v3860 = vld [vmem:[%s2451 + $0x160] sm:$0xf]
  %v3861 = vld [vmem:[%s2451 + $0x168] sm:$0xf]
  %v3862 = vld [vmem:[%s2451 + $0x16c] sm:$0xf]
  %v3863 = vld [vmem:[%s2451 + $0x174] sm:$0xf]
  %v3864 = vld [vmem:[%s2451 + $0x178] sm:$0xf]
  %v3865 = vld [vmem:[%s2451 + $0x180] sm:$0xf]
  %v3866 = vld [vmem:[%s2451 + $0x184] sm:$0xf]
  %v3867 = vld [vmem:[%s2451 + $0x18c] sm:$0xf]
  %v3868 = vld [vmem:[%s2451 + $0x190] sm:$0xf]
  %v3869 = vld [vmem:[%s2451 + $0x8] sm:$0x1]
  %v3870 = vld [vmem:[%s2451 + $0x14] sm:$0x1]
  %v3871 = vld [vmem:[%s2451 + $0x20] sm:$0x1]
  %v3872 = vld [vmem:[%s2451 + $0x2c] sm:$0x1]
  %v3873 = vld [vmem:[%s2451 + $0x38] sm:$0x1]
  %v3874 = vld [vmem:[%s2451 + $0x44] sm:$0x1]
  %v3875 = vld [vmem:[%s2451 + $0x50] sm:$0x1]
  %v3876 = vld [vmem:[%s2451 + $0x5c] sm:$0x1]
  %v3877 = vld [vmem:[%s2451 + $0x68] sm:$0x1]
  %v3878 = vld [vmem:[%s2451 + $0x74] sm:$0x1]
  %v3879 = vld [vmem:[%s2451 + $0x80] sm:$0x1]
  %v3880 = vld [vmem:[%s2451 + $0x8c] sm:$0x1]
  %v3881 = vld [vmem:[%s2451 + $0x98] sm:$0x1]
  %v3882 = vld [vmem:[%s2451 + $0xa4] sm:$0x1]
  %v3883 = vld [vmem:[%s2451 + $0xb0] sm:$0x1]
  %v3884 = vld [vmem:[%s2451 + $0xbc] sm:$0x1]
  %v3885 = vld [vmem:[%s2451 + $0xe0] sm:$0x1]
  %v3886 = vld [vmem:[%s2451 + $0xec] sm:$0x1]
  %v3887 = vld [vmem:[%s2451 + $0xf8] sm:$0x1]
  %v3888 = vld [vmem:[%s2451 + $0x104] sm:$0x1]
  %v3889 = vld [vmem:[%s2451 + $0x110] sm:$0x1]
  %v3890 = vld [vmem:[%s2451 + $0x11c] sm:$0x1]
  %v3891 = vld [vmem:[%s2451 + $0x128] sm:$0x1]
  %v3892 = vld [vmem:[%s2451 + $0x134] sm:$0x1]
  %v3893 = vld [vmem:[%s2451 + $0x140] sm:$0x1]
  %v3894 = vld [vmem:[%s2451 + $0x14c] sm:$0x1]
  %v3895 = vld [vmem:[%s2451 + $0x158] sm:$0x1]
  %v3896 = vld [vmem:[%s2451 + $0x164] sm:$0x1]
  %v3897 = vld [vmem:[%s2451 + $0x170] sm:$0x1]
  %v3898 = vld [vmem:[%s2451 + $0x17c] sm:$0x1]
  %v3899 = vld [vmem:[%s2451 + $0x188] sm:$0x1]
  %v3900 = vld [vmem:[%s2451 + $0x194] sm:$0x1]
  %v3901 = vld [vmem:[%s2451] sm:$0xe]
  %v3902 = vld [vmem:[%s2451 + $0xc] sm:$0xe]
  %v3903 = vld [vmem:[%s2451 + $0x18] sm:$0xe]
  %v3904 = vld [vmem:[%s2451 + $0x24] sm:$0xe]
  %v3905 = vld [vmem:[%s2451 + $0x30] sm:$0xe]
  %v3906 = vld [vmem:[%s2451 + $0x3c] sm:$0xe]
  %v3907 = vld [vmem:[%s2451 + $0x48] sm:$0xe]
  %v3908 = vld [vmem:[%s2451 + $0x54] sm:$0xe]
  %v3909 = vld [vmem:[%s2451 + $0x60] sm:$0xe]
  %v3910 = vld [vmem:[%s2451 + $0x6c] sm:$0xe]
  %v3911 = vld [vmem:[%s2451 + $0x78] sm:$0xe]
  %v3912 = vld [vmem:[%s2451 + $0x84] sm:$0xe]
  %v3913 = vld [vmem:[%s2451 + $0x90] sm:$0xe]
  %v3914 = vld [vmem:[%s2451 + $0x9c] sm:$0xe]
  %v3915 = vld [vmem:[%s2451 + $0xa8] sm:$0xe]
  %v3916 = vld [vmem:[%s2451 + $0xb4] sm:$0xe]
  %v3917 = vld [vmem:[%s2451 + $0xd8] sm:$0xe]
  %v3918 = vld [vmem:[%s2451 + $0xe4] sm:$0xe]
  %v3919 = vld [vmem:[%s2451 + $0xf0] sm:$0xe]
  %v3920 = vld [vmem:[%s2451 + $0xfc] sm:$0xe]
  %v3921 = vld [vmem:[%s2451 + $0x108] sm:$0xe]
  %v3922 = vld [vmem:[%s2451 + $0x114] sm:$0xe]
  %v3923 = vld [vmem:[%s2451 + $0x120] sm:$0xe]
  %v3924 = vld [vmem:[%s2451 + $0x12c] sm:$0xe]
  %v3925 = vld [vmem:[%s2451 + $0x138] sm:$0xe]
  %v3926 = vld [vmem:[%s2451 + $0x144] sm:$0xe]
  %v3927 = vld [vmem:[%s2451 + $0x150] sm:$0xe]
  %v3928 = vld [vmem:[%s2451 + $0x15c] sm:$0xe]
  %v3929 = vld [vmem:[%s2451 + $0x168] sm:$0xe]
  %v3930 = vld [vmem:[%s2451 + $0x174] sm:$0xe]
  %v3931 = vld [vmem:[%s2451 + $0x180] sm:$0xe]
  %v3932 = vld [vmem:[%s2451 + $0x18c] sm:$0xe]
  %s3933 = scalar_lea.vmem [#allocation2], 24
  %v3934 = vld [vmem:[%s3933] sm:$0xf]
  %v3935 = vld [vmem:[%s3933 + $0x4] sm:$0xf]
  %v3936 = vld [vmem:[%s3933 + $0xc] sm:$0xf]
  %v3937 = vld [vmem:[%s3933 + $0x10] sm:$0xf]
  %v3938 = vld [vmem:[%s3933 + $0x18] sm:$0xf]
  %v3939 = vld [vmem:[%s3933 + $0x1c] sm:$0xf]
  %v3940 = vld [vmem:[%s3933 + $0x24] sm:$0xf]
  %v3941 = vld [vmem:[%s3933 + $0x28] sm:$0xf]
  %v3942 = vld [vmem:[%s3933 + $0x30] sm:$0xf]
  %v3943 = vld [vmem:[%s3933 + $0x34] sm:$0xf]
  %v3944 = vld [vmem:[%s3933 + $0x3c] sm:$0xf]
  %v3945 = vld [vmem:[%s3933 + $0x40] sm:$0xf]
  %v3946 = vld [vmem:[%s3933 + $0x48] sm:$0xf]
  %v3947 = vld [vmem:[%s3933 + $0x4c] sm:$0xf]
  %v3948 = vld [vmem:[%s3933 + $0x54] sm:$0xf]
  %v3949 = vld [vmem:[%s3933 + $0x58] sm:$0xf]
  %v3950 = vld [vmem:[%s3933 + $0x60] sm:$0xf]
  %v3951 = vld [vmem:[%s3933 + $0x64] sm:$0xf]
  %v3952 = vld [vmem:[%s3933 + $0x6c] sm:$0xf]
  %v3953 = vld [vmem:[%s3933 + $0x70] sm:$0xf]
  %v3954 = vld [vmem:[%s3933 + $0x78] sm:$0xf]
  %v3955 = vld [vmem:[%s3933 + $0x7c] sm:$0xf]
  %v3956 = vld [vmem:[%s3933 + $0x84] sm:$0xf]
  %v3957 = vld [vmem:[%s3933 + $0x88] sm:$0xf]
  %v3958 = vld [vmem:[%s3933 + $0x90] sm:$0xf]
  %v3959 = vld [vmem:[%s3933 + $0x94] sm:$0xf]
  %v3960 = vld [vmem:[%s3933 + $0x9c] sm:$0xf]
  %v3961 = vld [vmem:[%s3933 + $0xa0] sm:$0xf]
  %v3962 = vld [vmem:[%s3933 + $0xa8] sm:$0xf]
  %v3963 = vld [vmem:[%s3933 + $0xac] sm:$0xf]
  %v3964 = vld [vmem:[%s3933 + $0xb4] sm:$0xf]
  %v3965 = vld [vmem:[%s3933 + $0xb8] sm:$0xf]
  %v3966 = vld [vmem:[%s3933 + $0xd8] sm:$0xf]
  %v3967 = vld [vmem:[%s3933 + $0xdc] sm:$0xf]
  %v3968 = vld [vmem:[%s3933 + $0xe4] sm:$0xf]
  %v3969 = vld [vmem:[%s3933 + $0xe8] sm:$0xf]
  %v3970 = vld [vmem:[%s3933 + $0xf0] sm:$0xf]
  %v3971 = vld [vmem:[%s3933 + $0xf4] sm:$0xf]
  %v3972 = vld [vmem:[%s3933 + $0xfc] sm:$0xf]
  %v3973 = vld [vmem:[%s3933 + $0x100] sm:$0xf]
  %v3974 = vld [vmem:[%s3933 + $0x108] sm:$0xf]
  %v3975 = vld [vmem:[%s3933 + $0x10c] sm:$0xf]
  %v3976 = vld [vmem:[%s3933 + $0x114] sm:$0xf]
  %v3977 = vld [vmem:[%s3933 + $0x118] sm:$0xf]
  %v3978 = vld [vmem:[%s3933 + $0x120] sm:$0xf]
  %v3979 = vld [vmem:[%s3933 + $0x124] sm:$0xf]
  %v3980 = vld [vmem:[%s3933 + $0x12c] sm:$0xf]
  %v3981 = vld [vmem:[%s3933 + $0x130] sm:$0xf]
  %v3982 = vld [vmem:[%s3933 + $0x138] sm:$0xf]
  %v3983 = vld [vmem:[%s3933 + $0x13c] sm:$0xf]
  %v3984 = vld [vmem:[%s3933 + $0x144] sm:$0xf]
  %v3985 = vld [vmem:[%s3933 + $0x148] sm:$0xf]
  %v3986 = vld [vmem:[%s3933 + $0x150] sm:$0xf]
  %v3987 = vld [vmem:[%s3933 + $0x154] sm:$0xf]
  %v3988 = vld [vmem:[%s3933 + $0x15c] sm:$0xf]
  %v3989 = vld [vmem:[%s3933 + $0x160] sm:$0xf]
  %v3990 = vld [vmem:[%s3933 + $0x168] sm:$0xf]
  %v3991 = vld [vmem:[%s3933 + $0x16c] sm:$0xf]
  %v3992 = vld [vmem:[%s3933 + $0x174] sm:$0xf]
  %v3993 = vld [vmem:[%s3933 + $0x178] sm:$0xf]
  %v3994 = vld [vmem:[%s3933 + $0x180] sm:$0xf]
  %v3995 = vld [vmem:[%s3933 + $0x184] sm:$0xf]
  %v3996 = vld [vmem:[%s3933 + $0x18c] sm:$0xf]
  %v3997 = vld [vmem:[%s3933 + $0x190] sm:$0xf]
  %v3998 = vld [vmem:[%s3933 + $0x8] sm:$0x1]
  %v3999 = vld [vmem:[%s3933 + $0x14] sm:$0x1]
  %v4000 = vld [vmem:[%s3933 + $0x20] sm:$0x1]
  %v4001 = vld [vmem:[%s3933 + $0x2c] sm:$0x1]
  %v4002 = vld [vmem:[%s3933 + $0x38] sm:$0x1]
  %v4003 = vld [vmem:[%s3933 + $0x44] sm:$0x1]
  %v4004 = vld [vmem:[%s3933 + $0x50] sm:$0x1]
  %v4005 = vld [vmem:[%s3933 + $0x5c] sm:$0x1]
  %v4006 = vld [vmem:[%s3933 + $0x68] sm:$0x1]
  %v4007 = vld [vmem:[%s3933 + $0x74] sm:$0x1]
  %v4008 = vld [vmem:[%s3933 + $0x80] sm:$0x1]
  %v4009 = vld [vmem:[%s3933 + $0x8c] sm:$0x1]
  %v4010 = vld [vmem:[%s3933 + $0x98] sm:$0x1]
  %v4011 = vld [vmem:[%s3933 + $0xa4] sm:$0x1]
  %v4012 = vld [vmem:[%s3933 + $0xb0] sm:$0x1]
  %v4013 = vld [vmem:[%s3933 + $0xbc] sm:$0x1]
  %v4014 = vld [vmem:[%s3933 + $0xe0] sm:$0x1]
  %v4015 = vld [vmem:[%s3933 + $0xec] sm:$0x1]
  %v4016 = vld [vmem:[%s3933 + $0xf8] sm:$0x1]
  %v4017 = vld [vmem:[%s3933 + $0x104] sm:$0x1]
  %v4018 = vld [vmem:[%s3933 + $0x110] sm:$0x1]
  %v4019 = vld [vmem:[%s3933 + $0x11c] sm:$0x1]
  %v4020 = vld [vmem:[%s3933 + $0x128] sm:$0x1]
  %v4021 = vld [vmem:[%s3933 + $0x134] sm:$0x1]
  %v4022 = vld [vmem:[%s3933 + $0x140] sm:$0x1]
  %v4023 = vld [vmem:[%s3933 + $0x14c] sm:$0x1]
  %v4024 = vld [vmem:[%s3933 + $0x158] sm:$0x1]
  %v4025 = vld [vmem:[%s3933 + $0x164] sm:$0x1]
  %v4026 = vld [vmem:[%s3933 + $0x170] sm:$0x1]
  %v4027 = vld [vmem:[%s3933 + $0x17c] sm:$0x1]
  %v4028 = vld [vmem:[%s3933 + $0x188] sm:$0x1]
  %v4029 = vld [vmem:[%s3933 + $0x194] sm:$0x1]
  %v4030 = vld [vmem:[%s3933] sm:$0xe]
  %v4031 = vld [vmem:[%s3933 + $0xc] sm:$0xe]
  %v4032 = vld [vmem:[%s3933 + $0x18] sm:$0xe]
  %v4033 = vld [vmem:[%s3933 + $0x24] sm:$0xe]
  %v4034 = vld [vmem:[%s3933 + $0x30] sm:$0xe]
  %v4035 = vld [vmem:[%s3933 + $0x3c] sm:$0xe]
  %v4036 = vld [vmem:[%s3933 + $0x48] sm:$0xe]
  %v4037 = vld [vmem:[%s3933 + $0x54] sm:$0xe]
  %v4038 = vld [vmem:[%s3933 + $0x60] sm:$0xe]
  %v4039 = vld [vmem:[%s3933 + $0x6c] sm:$0xe]
  %v4040 = vld [vmem:[%s3933 + $0x78] sm:$0xe]
  %v4041 = vld [vmem:[%s3933 + $0x84] sm:$0xe]
  %v4042 = vld [vmem:[%s3933 + $0x90] sm:$0xe]
  %v4043 = vld [vmem:[%s3933 + $0x9c] sm:$0xe]
  %v4044 = vld [vmem:[%s3933 + $0xa8] sm:$0xe]
  %v4045 = vld [vmem:[%s3933 + $0xb4] sm:$0xe]
  %v4046 = vld [vmem:[%s3933 + $0xd8] sm:$0xe]
  %v4047 = vld [vmem:[%s3933 + $0xe4] sm:$0xe]
  %v4048 = vld [vmem:[%s3933 + $0xf0] sm:$0xe]
  %v4049 = vld [vmem:[%s3933 + $0xfc] sm:$0xe]
  %v4050 = vld [vmem:[%s3933 + $0x108] sm:$0xe]
  %v4051 = vld [vmem:[%s3933 + $0x114] sm:$0xe]
  %v4052 = vld [vmem:[%s3933 + $0x120] sm:$0xe]
  %v4053 = vld [vmem:[%s3933 + $0x12c] sm:$0xe]
  %v4054 = vld [vmem:[%s3933 + $0x138] sm:$0xe]
  %v4055 = vld [vmem:[%s3933 + $0x144] sm:$0xe]
  %v4056 = vld [vmem:[%s3933 + $0x150] sm:$0xe]
  %v4057 = vld [vmem:[%s3933 + $0x15c] sm:$0xe]
  %v4058 = vld [vmem:[%s3933 + $0x168] sm:$0xe]
  %v4059 = vld [vmem:[%s3933 + $0x174] sm:$0xe]
  %v4060 = vld [vmem:[%s3933 + $0x180] sm:$0xe]
  %v4061 = vld [vmem:[%s3933 + $0x18c] sm:$0xe]
  %v4126 = vunpack.c.l.b16 %v3677
  %v4127 = vunpack.c.l.b16 %v3678
  %v4128 = vunpack.c.l.b16 %v3679
  %v4129 = vunpack.c.l.b16 %v3680
  %v4130 = vunpack.c.l.b16 %v3681
  %v4131 = vunpack.c.l.b16 %v3682
  %v4132 = vunpack.c.l.b16 %v3683
  %v4133 = vunpack.c.l.b16 %v3684
  %v4134 = vunpack.c.l.b16 %v3685
  %v4135 = vunpack.c.l.b16 %v3686
  %v4136 = vunpack.c.l.b16 %v3687
  %v4137 = vunpack.c.l.b16 %v3688
  %v4138 = vunpack.c.l.b16 %v3689
  %v4139 = vunpack.c.l.b16 %v3690
  %v4140 = vunpack.c.l.b16 %v3691
  %v4141 = vunpack.c.l.b16 %v3692
  %v4142 = vunpack.c.l.b16 %v3693
  %v4143 = vunpack.c.l.b16 %v3694
  %v4144 = vunpack.c.l.b16 %v3695
  %v4145 = vunpack.c.l.b16 %v3696
  %v4146 = vunpack.c.l.b16 %v3697
  %v4147 = vunpack.c.l.b16 %v3698
  %v4148 = vunpack.c.l.b16 %v3699
  %v4149 = vunpack.c.l.b16 %v3700
  %v4150 = vunpack.c.l.b16 %v3701
  %v4151 = vunpack.c.l.b16 %v3702
  %v4152 = vunpack.c.l.b16 %v3703
  %v4153 = vunpack.c.l.b16 %v3704
  %v4154 = vunpack.c.l.b16 %v3705
  %v4155 = vunpack.c.l.b16 %v3706
  %v4156 = vunpack.c.l.b16 %v3707
  %v4157 = vunpack.c.l.b16 %v3708
  %v4158 = vunpack.c.l.b16 %v3709
  %v4159 = vunpack.c.l.b16 %v3710
  %v4160 = vunpack.c.l.b16 %v3711
  %v4161 = vunpack.c.l.b16 %v3712
  %v4162 = vunpack.c.l.b16 %v3713
  %v4163 = vunpack.c.l.b16 %v3714
  %v4164 = vunpack.c.l.b16 %v3715
  %v4165 = vunpack.c.l.b16 %v3716
  %v4166 = vunpack.c.l.b16 %v3717
  %v4167 = vunpack.c.l.b16 %v3718
  %v4168 = vunpack.c.l.b16 %v3719
  %v4169 = vunpack.c.l.b16 %v3720
  %v4170 = vunpack.c.l.b16 %v3721
  %v4171 = vunpack.c.l.b16 %v3722
  %v4172 = vunpack.c.l.b16 %v3723
  %v4173 = vunpack.c.l.b16 %v3724
  %v4174 = vunpack.c.l.b16 %v3725
  %v4175 = vunpack.c.l.b16 %v3726
  %v4176 = vunpack.c.l.b16 %v3727
  %v4177 = vunpack.c.l.b16 %v3728
  %v4178 = vunpack.c.l.b16 %v3729
  %v4179 = vunpack.c.l.b16 %v3730
  %v4180 = vunpack.c.l.b16 %v3731
  %v4181 = vunpack.c.l.b16 %v3732
  %v4182 = vunpack.c.l.b16 %v3733
  %v4183 = vunpack.c.l.b16 %v3734
  %v4184 = vunpack.c.l.b16 %v3735
  %v4185 = vunpack.c.l.b16 %v3736
  %v4186 = vunpack.c.l.b16 %v3737
  %v4187 = vunpack.c.l.b16 %v3738
  %v4188 = vunpack.c.l.b16 %v3739
  %v4189 = vunpack.c.l.b16 %v3740
  %v4190 = vpack.c.b16 %v4127, %v4126
  %v4191 = vpack.c.b16 %v4129, %v4128
  %v4192 = vpack.c.b16 %v4131, %v4130
  %v4193 = vpack.c.b16 %v4133, %v4132
  %v4194 = vpack.c.b16 %v4135, %v4134
  %v4195 = vpack.c.b16 %v4137, %v4136
  %v4196 = vpack.c.b16 %v4139, %v4138
  %v4197 = vpack.c.b16 %v4141, %v4140
  %v4198 = vpack.c.b16 %v4143, %v4142
  %v4199 = vpack.c.b16 %v4145, %v4144
  %v4200 = vpack.c.b16 %v4147, %v4146
  %v4201 = vpack.c.b16 %v4149, %v4148
  %v4202 = vpack.c.b16 %v4151, %v4150
  %v4203 = vpack.c.b16 %v4153, %v4152
  %v4204 = vpack.c.b16 %v4155, %v4154
  %v4205 = vpack.c.b16 %v4157, %v4156
  %v4206 = vpack.c.b16 %v4159, %v4158
  %v4207 = vpack.c.b16 %v4161, %v4160
  %v4208 = vpack.c.b16 %v4163, %v4162
  %v4209 = vpack.c.b16 %v4165, %v4164
  %v4210 = vpack.c.b16 %v4167, %v4166
  %v4211 = vpack.c.b16 %v4169, %v4168
  %v4212 = vpack.c.b16 %v4171, %v4170
  %v4213 = vpack.c.b16 %v4173, %v4172
  %v4214 = vpack.c.b16 %v4175, %v4174
  %v4215 = vpack.c.b16 %v4177, %v4176
  %v4216 = vpack.c.b16 %v4179, %v4178
  %v4217 = vpack.c.b16 %v4181, %v4180
  %v4218 = vpack.c.b16 %v4183, %v4182
  %v4219 = vpack.c.b16 %v4185, %v4184
  %v4220 = vpack.c.b16 %v4187, %v4186
  %v4221 = vpack.c.b16 %v4189, %v4188
  %v4254 = vunpack.c.l.b16 %v3741
  %v4255 = vunpack.c.l.b16 %v3742
  %v4256 = vunpack.c.l.b16 %v3743
  %v4257 = vunpack.c.l.b16 %v3744
  %v4258 = vunpack.c.l.b16 %v3745
  %v4259 = vunpack.c.l.b16 %v3746
  %v4260 = vunpack.c.l.b16 %v3747
  %v4261 = vunpack.c.l.b16 %v3748
  %v4262 = vunpack.c.l.b16 %v3749
  %v4263 = vunpack.c.l.b16 %v3750
  %v4264 = vunpack.c.l.b16 %v3751
  %v4265 = vunpack.c.l.b16 %v3752
  %v4266 = vunpack.c.l.b16 %v3753
  %v4267 = vunpack.c.l.b16 %v3754
  %v4268 = vunpack.c.l.b16 %v3755
  %v4269 = vunpack.c.l.b16 %v3756
  %v4270 = vunpack.c.l.b16 %v3757
  %v4271 = vunpack.c.l.b16 %v3758
  %v4272 = vunpack.c.l.b16 %v3759
  %v4273 = vunpack.c.l.b16 %v3760
  %v4274 = vunpack.c.l.b16 %v3761
  %v4275 = vunpack.c.l.b16 %v3762
  %v4276 = vunpack.c.l.b16 %v3763
  %v4277 = vunpack.c.l.b16 %v3764
  %v4278 = vunpack.c.l.b16 %v3765
  %v4279 = vunpack.c.l.b16 %v3766
  %v4280 = vunpack.c.l.b16 %v3767
  %v4281 = vunpack.c.l.b16 %v3768
  %v4282 = vunpack.c.l.b16 %v3769
  %v4283 = vunpack.c.l.b16 %v3770
  %v4284 = vunpack.c.l.b16 %v3771
  %v4285 = vunpack.c.l.b16 %v3772
  %v4286 = vpack.c.b16 %v4254, %v4254
  %v4287 = vpack.c.b16 %v4255, %v4255
  %v4288 = vpack.c.b16 %v4256, %v4256
  %v4289 = vpack.c.b16 %v4257, %v4257
  %v4290 = vpack.c.b16 %v4258, %v4258
  %v4291 = vpack.c.b16 %v4259, %v4259
  %v4292 = vpack.c.b16 %v4260, %v4260
  %v4293 = vpack.c.b16 %v4261, %v4261
  %v4294 = vpack.c.b16 %v4262, %v4262
  %v4295 = vpack.c.b16 %v4263, %v4263
  %v4296 = vpack.c.b16 %v4264, %v4264
  %v4297 = vpack.c.b16 %v4265, %v4265
  %v4298 = vpack.c.b16 %v4266, %v4266
  %v4299 = vpack.c.b16 %v4267, %v4267
  %v4300 = vpack.c.b16 %v4268, %v4268
  %v4301 = vpack.c.b16 %v4269, %v4269
  %v4302 = vpack.c.b16 %v4270, %v4270
  %v4303 = vpack.c.b16 %v4271, %v4271
  %v4304 = vpack.c.b16 %v4272, %v4272
  %v4305 = vpack.c.b16 %v4273, %v4273
  %v4306 = vpack.c.b16 %v4274, %v4274
  %v4307 = vpack.c.b16 %v4275, %v4275
  %v4308 = vpack.c.b16 %v4276, %v4276
  %v4309 = vpack.c.b16 %v4277, %v4277
  %v4310 = vpack.c.b16 %v4278, %v4278
  %v4311 = vpack.c.b16 %v4279, %v4279
  %v4312 = vpack.c.b16 %v4280, %v4280
  %v4313 = vpack.c.b16 %v4281, %v4281
  %v4314 = vpack.c.b16 %v4282, %v4282
  %v4315 = vpack.c.b16 %v4283, %v4283
  %v4316 = vpack.c.b16 %v4284, %v4284
  %v4317 = vpack.c.b16 %v4285, %v4285
  %v4319 = vshrl.u32 %v4190, 16
  %v4321 = vshll.u32 %v4190, 16
  %v4323 = vrot.slane %v4321, 1
  %v4324 = vor.u32 %v4319, %v4323
  %v4326 = vshll.u32 %v4286, 16
  %v4328 = vrot.slane %v4326, 1
  %v4329 = vsel %vm309, %v4324, %v4328
  %v4331 = vshrl.u32 %v4191, 16
  %v4333 = vshll.u32 %v4191, 16
  %v4335 = vrot.slane %v4333, 1
  %v4336 = vor.u32 %v4331, %v4335
  %v4338 = vshll.u32 %v4287, 16
  %v4340 = vrot.slane %v4338, 1
  %v4341 = vsel %vm309, %v4336, %v4340
  %v4343 = vshrl.u32 %v4192, 16
  %v4345 = vshll.u32 %v4192, 16
  %v4347 = vrot.slane %v4345, 1
  %v4348 = vor.u32 %v4343, %v4347
  %v4350 = vshll.u32 %v4288, 16
  %v4352 = vrot.slane %v4350, 1
  %v4353 = vsel %vm309, %v4348, %v4352
  %v4355 = vshrl.u32 %v4193, 16
  %v4357 = vshll.u32 %v4193, 16
  %v4359 = vrot.slane %v4357, 1
  %v4360 = vor.u32 %v4355, %v4359
  %v4362 = vshll.u32 %v4289, 16
  %v4364 = vrot.slane %v4362, 1
  %v4365 = vsel %vm309, %v4360, %v4364
  %v4367 = vshrl.u32 %v4194, 16
  %v4369 = vshll.u32 %v4194, 16
  %v4371 = vrot.slane %v4369, 1
  %v4372 = vor.u32 %v4367, %v4371
  %v4374 = vshll.u32 %v4290, 16
  %v4376 = vrot.slane %v4374, 1
  %v4377 = vsel %vm309, %v4372, %v4376
  %v4379 = vshrl.u32 %v4195, 16
  %v4381 = vshll.u32 %v4195, 16
  %v4383 = vrot.slane %v4381, 1
  %v4384 = vor.u32 %v4379, %v4383
  %v4386 = vshll.u32 %v4291, 16
  %v4388 = vrot.slane %v4386, 1
  %v4389 = vsel %vm309, %v4384, %v4388
  %v4391 = vshrl.u32 %v4196, 16
  %v4393 = vshll.u32 %v4196, 16
  %v4395 = vrot.slane %v4393, 1
  %v4396 = vor.u32 %v4391, %v4395
  %v4398 = vshll.u32 %v4292, 16
  %v4400 = vrot.slane %v4398, 1
  %v4401 = vsel %vm309, %v4396, %v4400
  %v4403 = vshrl.u32 %v4197, 16
  %v4405 = vshll.u32 %v4197, 16
  %v4407 = vrot.slane %v4405, 1
  %v4408 = vor.u32 %v4403, %v4407
  %v4410 = vshll.u32 %v4293, 16
  %v4412 = vrot.slane %v4410, 1
  %v4413 = vsel %vm309, %v4408, %v4412
  %v4415 = vshrl.u32 %v4198, 16
  %v4417 = vshll.u32 %v4198, 16
  %v4419 = vrot.slane %v4417, 1
  %v4420 = vor.u32 %v4415, %v4419
  %v4422 = vshll.u32 %v4294, 16
  %v4424 = vrot.slane %v4422, 1
  %v4425 = vsel %vm309, %v4420, %v4424
  %v4427 = vshrl.u32 %v4199, 16
  %v4429 = vshll.u32 %v4199, 16
  %v4431 = vrot.slane %v4429, 1
  %v4432 = vor.u32 %v4427, %v4431
  %v4434 = vshll.u32 %v4295, 16
  %v4436 = vrot.slane %v4434, 1
  %v4437 = vsel %vm309, %v4432, %v4436
  %v4439 = vshrl.u32 %v4200, 16
  %v4441 = vshll.u32 %v4200, 16
  %v4443 = vrot.slane %v4441, 1
  %v4444 = vor.u32 %v4439, %v4443
  %v4446 = vshll.u32 %v4296, 16
  %v4448 = vrot.slane %v4446, 1
  %v4449 = vsel %vm309, %v4444, %v4448
  %v4451 = vshrl.u32 %v4201, 16
  %v4453 = vshll.u32 %v4201, 16
  %v4455 = vrot.slane %v4453, 1
  %v4456 = vor.u32 %v4451, %v4455
  %v4458 = vshll.u32 %v4297, 16
  %v4460 = vrot.slane %v4458, 1
  %v4461 = vsel %vm309, %v4456, %v4460
  %v4463 = vshrl.u32 %v4202, 16
  %v4465 = vshll.u32 %v4202, 16
  %v4467 = vrot.slane %v4465, 1
  %v4468 = vor.u32 %v4463, %v4467
  %v4470 = vshll.u32 %v4298, 16
  %v4472 = vrot.slane %v4470, 1
  %v4473 = vsel %vm309, %v4468, %v4472
  %v4475 = vshrl.u32 %v4203, 16
  %v4477 = vshll.u32 %v4203, 16
  %v4479 = vrot.slane %v4477, 1
  %v4480 = vor.u32 %v4475, %v4479
  %v4482 = vshll.u32 %v4299, 16
  %v4484 = vrot.slane %v4482, 1
  %v4485 = vsel %vm309, %v4480, %v4484
  %v4487 = vshrl.u32 %v4204, 16
  %v4489 = vshll.u32 %v4204, 16
  %v4491 = vrot.slane %v4489, 1
  %v4492 = vor.u32 %v4487, %v4491
  %v4494 = vshll.u32 %v4300, 16
  %v4496 = vrot.slane %v4494, 1
  %v4497 = vsel %vm309, %v4492, %v4496
  %v4499 = vshrl.u32 %v4205, 16
  %v4501 = vshll.u32 %v4205, 16
  %v4503 = vrot.slane %v4501, 1
  %v4504 = vor.u32 %v4499, %v4503
  %v4506 = vshll.u32 %v4301, 16
  %v4508 = vrot.slane %v4506, 1
  %v4509 = vsel %vm309, %v4504, %v4508
  %v4511 = vshrl.u32 %v4206, 16
  %v4513 = vshll.u32 %v4206, 16
  %v4515 = vrot.slane %v4513, 1
  %v4516 = vor.u32 %v4511, %v4515
  %v4518 = vshll.u32 %v4302, 16
  %v4520 = vrot.slane %v4518, 1
  %v4521 = vsel %vm309, %v4516, %v4520
  %v4523 = vshrl.u32 %v4207, 16
  %v4525 = vshll.u32 %v4207, 16
  %v4527 = vrot.slane %v4525, 1
  %v4528 = vor.u32 %v4523, %v4527
  %v4530 = vshll.u32 %v4303, 16
  %v4532 = vrot.slane %v4530, 1
  %v4533 = vsel %vm309, %v4528, %v4532
  %v4535 = vshrl.u32 %v4208, 16
  %v4537 = vshll.u32 %v4208, 16
  %v4539 = vrot.slane %v4537, 1
  %v4540 = vor.u32 %v4535, %v4539
  %v4542 = vshll.u32 %v4304, 16
  %v4544 = vrot.slane %v4542, 1
  %v4545 = vsel %vm309, %v4540, %v4544
  %v4547 = vshrl.u32 %v4209, 16
  %v4549 = vshll.u32 %v4209, 16
  %v4551 = vrot.slane %v4549, 1
  %v4552 = vor.u32 %v4547, %v4551
  %v4554 = vshll.u32 %v4305, 16
  %v4556 = vrot.slane %v4554, 1
  %v4557 = vsel %vm309, %v4552, %v4556
  %v4559 = vshrl.u32 %v4210, 16
  %v4561 = vshll.u32 %v4210, 16
  %v4563 = vrot.slane %v4561, 1
  %v4564 = vor.u32 %v4559, %v4563
  %v4566 = vshll.u32 %v4306, 16
  %v4568 = vrot.slane %v4566, 1
  %v4569 = vsel %vm309, %v4564, %v4568
  %v4571 = vshrl.u32 %v4211, 16
  %v4573 = vshll.u32 %v4211, 16
  %v4575 = vrot.slane %v4573, 1
  %v4576 = vor.u32 %v4571, %v4575
  %v4578 = vshll.u32 %v4307, 16
  %v4580 = vrot.slane %v4578, 1
  %v4581 = vsel %vm309, %v4576, %v4580
  %v4583 = vshrl.u32 %v4212, 16
  %v4585 = vshll.u32 %v4212, 16
  %v4587 = vrot.slane %v4585, 1
  %v4588 = vor.u32 %v4583, %v4587
  %v4590 = vshll.u32 %v4308, 16
  %v4592 = vrot.slane %v4590, 1
  %v4593 = vsel %vm309, %v4588, %v4592
  %v4595 = vshrl.u32 %v4213, 16
  %v4597 = vshll.u32 %v4213, 16
  %v4599 = vrot.slane %v4597, 1
  %v4600 = vor.u32 %v4595, %v4599
  %v4602 = vshll.u32 %v4309, 16
  %v4604 = vrot.slane %v4602, 1
  %v4605 = vsel %vm309, %v4600, %v4604
  %v4607 = vshrl.u32 %v4214, 16
  %v4609 = vshll.u32 %v4214, 16
  %v4611 = vrot.slane %v4609, 1
  %v4612 = vor.u32 %v4607, %v4611
  %v4614 = vshll.u32 %v4310, 16
  %v4616 = vrot.slane %v4614, 1
  %v4617 = vsel %vm309, %v4612, %v4616
  %v4619 = vshrl.u32 %v4215, 16
  %v4621 = vshll.u32 %v4215, 16
  %v4623 = vrot.slane %v4621, 1
  %v4624 = vor.u32 %v4619, %v4623
  %v4626 = vshll.u32 %v4311, 16
  %v4628 = vrot.slane %v4626, 1
  %v4629 = vsel %vm309, %v4624, %v4628
  %v4631 = vshrl.u32 %v4216, 16
  %v4633 = vshll.u32 %v4216, 16
  %v4635 = vrot.slane %v4633, 1
  %v4636 = vor.u32 %v4631, %v4635
  %v4638 = vshll.u32 %v4312, 16
  %v4640 = vrot.slane %v4638, 1
  %v4641 = vsel %vm309, %v4636, %v4640
  %v4643 = vshrl.u32 %v4217, 16
  %v4645 = vshll.u32 %v4217, 16
  %v4647 = vrot.slane %v4645, 1
  %v4648 = vor.u32 %v4643, %v4647
  %v4650 = vshll.u32 %v4313, 16
  %v4652 = vrot.slane %v4650, 1
  %v4653 = vsel %vm309, %v4648, %v4652
  %v4655 = vshrl.u32 %v4218, 16
  %v4657 = vshll.u32 %v4218, 16
  %v4659 = vrot.slane %v4657, 1
  %v4660 = vor.u32 %v4655, %v4659
  %v4662 = vshll.u32 %v4314, 16
  %v4664 = vrot.slane %v4662, 1
  %v4665 = vsel %vm309, %v4660, %v4664
  %v4667 = vshrl.u32 %v4219, 16
  %v4669 = vshll.u32 %v4219, 16
  %v4671 = vrot.slane %v4669, 1
  %v4672 = vor.u32 %v4667, %v4671
  %v4674 = vshll.u32 %v4315, 16
  %v4676 = vrot.slane %v4674, 1
  %v4677 = vsel %vm309, %v4672, %v4676
  %v4679 = vshrl.u32 %v4220, 16
  %v4681 = vshll.u32 %v4220, 16
  %v4683 = vrot.slane %v4681, 1
  %v4684 = vor.u32 %v4679, %v4683
  %v4686 = vshll.u32 %v4316, 16
  %v4688 = vrot.slane %v4686, 1
  %v4689 = vsel %vm309, %v4684, %v4688
  %v4691 = vshrl.u32 %v4221, 16
  %v4693 = vshll.u32 %v4221, 16
  %v4695 = vrot.slane %v4693, 1
  %v4696 = vor.u32 %v4691, %v4695
  %v4698 = vshll.u32 %v4317, 16
  %v4700 = vrot.slane %v4698, 1
  %v4701 = vsel %vm309, %v4696, %v4700
  %4702 = vrot.lane.b32.xlu0 %v4329, 8
  %v4703 = vpop.permute.xlu0 %4702
  %4704 = vrot.lane.b32.xlu0 %v4341, 8
  %v4705 = vpop.permute.xlu0 %4704
  %4706 = vrot.lane.b32.xlu0 %v4353, 8
  %v4707 = vpop.permute.xlu0 %4706
  %4708 = vrot.lane.b32.xlu0 %v4365, 8
  %v4709 = vpop.permute.xlu0 %4708
  %4710 = vrot.lane.b32.xlu0 %v4377, 8
  %v4711 = vpop.permute.xlu0 %4710
  %4712 = vrot.lane.b32.xlu0 %v4389, 8
  %v4713 = vpop.permute.xlu0 %4712
  %4714 = vrot.lane.b32.xlu0 %v4401, 8
  %v4715 = vpop.permute.xlu0 %4714
  %4716 = vrot.lane.b32.xlu0 %v4413, 8
  %v4717 = vpop.permute.xlu0 %4716
  %4718 = vrot.lane.b32.xlu0 %v4425, 8
  %v4719 = vpop.permute.xlu0 %4718
  %4720 = vrot.lane.b32.xlu0 %v4437, 8
  %v4721 = vpop.permute.xlu0 %4720
  %4722 = vrot.lane.b32.xlu0 %v4449, 8
  %v4723 = vpop.permute.xlu0 %4722
  %4724 = vrot.lane.b32.xlu0 %v4461, 8
  %v4725 = vpop.permute.xlu0 %4724
  %4726 = vrot.lane.b32.xlu0 %v4473, 8
  %v4727 = vpop.permute.xlu0 %4726
  %4728 = vrot.lane.b32.xlu0 %v4485, 8
  %v4729 = vpop.permute.xlu0 %4728
  %4730 = vrot.lane.b32.xlu0 %v4497, 8
  %v4731 = vpop.permute.xlu0 %4730
  %4732 = vrot.lane.b32.xlu0 %v4509, 8
  %v4733 = vpop.permute.xlu0 %4732
  %4734 = vrot.lane.b32.xlu0 %v4521, 8
  %v4735 = vpop.permute.xlu0 %4734
  %4736 = vrot.lane.b32.xlu0 %v4533, 8
  %v4737 = vpop.permute.xlu0 %4736
  %4738 = vrot.lane.b32.xlu0 %v4545, 8
  %v4739 = vpop.permute.xlu0 %4738
  %4740 = vrot.lane.b32.xlu0 %v4557, 8
  %v4741 = vpop.permute.xlu0 %4740
  %4742 = vrot.lane.b32.xlu0 %v4569, 8
  %v4743 = vpop.permute.xlu0 %4742
  %4744 = vrot.lane.b32.xlu0 %v4581, 8
  %v4745 = vpop.permute.xlu0 %4744
  %4746 = vrot.lane.b32.xlu0 %v4593, 8
  %v4747 = vpop.permute.xlu0 %4746
  %4748 = vrot.lane.b32.xlu0 %v4605, 8
  %v4749 = vpop.permute.xlu0 %4748
  %4750 = vrot.lane.b32.xlu0 %v4617, 8
  %v4751 = vpop.permute.xlu0 %4750
  %4752 = vrot.lane.b32.xlu0 %v4629, 8
  %v4753 = vpop.permute.xlu0 %4752
  %4754 = vrot.lane.b32.xlu0 %v4641, 8
  %v4755 = vpop.permute.xlu0 %4754
  %4756 = vrot.lane.b32.xlu0 %v4653, 8
  %v4757 = vpop.permute.xlu0 %4756
  %4758 = vrot.lane.b32.xlu0 %v4665, 8
  %v4759 = vpop.permute.xlu0 %4758
  %4760 = vrot.lane.b32.xlu0 %v4677, 8
  %v4761 = vpop.permute.xlu0 %4760
  %4762 = vrot.lane.b32.xlu0 %v4689, 8
  %v4763 = vpop.permute.xlu0 %4762
  %4764 = vrot.lane.b32.xlu0 %v4701, 8
  %v4765 = vpop.permute.xlu0 %4764
  %v4798 = vunpack.c.l.b16 %v3773
  %v4799 = vunpack.c.l.b16 %v3774
  %v4800 = vunpack.c.l.b16 %v3775
  %v4801 = vunpack.c.l.b16 %v3776
  %v4802 = vunpack.c.l.b16 %v3777
  %v4803 = vunpack.c.l.b16 %v3778
  %v4804 = vunpack.c.l.b16 %v3779
  %v4805 = vunpack.c.l.b16 %v3780
  %v4806 = vunpack.c.l.b16 %v3781
  %v4807 = vunpack.c.l.b16 %v3782
  %v4808 = vunpack.c.l.b16 %v3783
  %v4809 = vunpack.c.l.b16 %v3784
  %v4810 = vunpack.c.l.b16 %v3785
  %v4811 = vunpack.c.l.b16 %v3786
  %v4812 = vunpack.c.l.b16 %v3787
  %v4813 = vunpack.c.l.b16 %v3788
  %v4814 = vunpack.c.l.b16 %v3789
  %v4815 = vunpack.c.l.b16 %v3790
  %v4816 = vunpack.c.l.b16 %v3791
  %v4817 = vunpack.c.l.b16 %v3792
  %v4818 = vunpack.c.l.b16 %v3793
  %v4819 = vunpack.c.l.b16 %v3794
  %v4820 = vunpack.c.l.b16 %v3795
  %v4821 = vunpack.c.l.b16 %v3796
  %v4822 = vunpack.c.l.b16 %v3797
  %v4823 = vunpack.c.l.b16 %v3798
  %v4824 = vunpack.c.l.b16 %v3799
  %v4825 = vunpack.c.l.b16 %v3800
  %v4826 = vunpack.c.l.b16 %v3801
  %v4827 = vunpack.c.l.b16 %v3802
  %v4828 = vunpack.c.l.b16 %v3803
  %v4829 = vunpack.c.l.b16 %v3804
  %v4830 = vpack.c.b16 %v4127, %v4798
  %v4831 = vpack.c.b16 %v4129, %v4799
  %v4832 = vpack.c.b16 %v4131, %v4800
  %v4833 = vpack.c.b16 %v4133, %v4801
  %v4834 = vpack.c.b16 %v4135, %v4802
  %v4835 = vpack.c.b16 %v4137, %v4803
  %v4836 = vpack.c.b16 %v4139, %v4804
  %v4837 = vpack.c.b16 %v4141, %v4805
  %v4838 = vpack.c.b16 %v4143, %v4806
  %v4839 = vpack.c.b16 %v4145, %v4807
  %v4840 = vpack.c.b16 %v4147, %v4808
  %v4841 = vpack.c.b16 %v4149, %v4809
  %v4842 = vpack.c.b16 %v4151, %v4810
  %v4843 = vpack.c.b16 %v4153, %v4811
  %v4844 = vpack.c.b16 %v4155, %v4812
  %v4845 = vpack.c.b16 %v4157, %v4813
  %v4846 = vpack.c.b16 %v4159, %v4814
  %v4847 = vpack.c.b16 %v4161, %v4815
  %v4848 = vpack.c.b16 %v4163, %v4816
  %v4849 = vpack.c.b16 %v4165, %v4817
  %v4850 = vpack.c.b16 %v4167, %v4818
  %v4851 = vpack.c.b16 %v4169, %v4819
  %v4852 = vpack.c.b16 %v4171, %v4820
  %v4853 = vpack.c.b16 %v4173, %v4821
  %v4854 = vpack.c.b16 %v4175, %v4822
  %v4855 = vpack.c.b16 %v4177, %v4823
  %v4856 = vpack.c.b16 %v4179, %v4824
  %v4857 = vpack.c.b16 %v4181, %v4825
  %v4858 = vpack.c.b16 %v4183, %v4826
  %v4859 = vpack.c.b16 %v4185, %v4827
  %v4860 = vpack.c.b16 %v4187, %v4828
  %v4861 = vpack.c.b16 %v4189, %v4829
  %v4862 = vrot.slane %v4830, 1
  %v4863 = vrot.slane %v4286, 1
  %v4864 = vsel %vm822, %v4862, %v4863
  %v4865 = vrot.slane %v4831, 1
  %v4866 = vrot.slane %v4287, 1
  %v4867 = vsel %vm822, %v4865, %v4866
  %v4868 = vrot.slane %v4832, 1
  %v4869 = vrot.slane %v4288, 1
  %v4870 = vsel %vm822, %v4868, %v4869
  %v4871 = vrot.slane %v4833, 1
  %v4872 = vrot.slane %v4289, 1
  %v4873 = vsel %vm822, %v4871, %v4872
  %v4874 = vrot.slane %v4834, 1
  %v4875 = vrot.slane %v4290, 1
  %v4876 = vsel %vm822, %v4874, %v4875
  %v4877 = vrot.slane %v4835, 1
  %v4878 = vrot.slane %v4291, 1
  %v4879 = vsel %vm822, %v4877, %v4878
  %v4880 = vrot.slane %v4836, 1
  %v4881 = vrot.slane %v4292, 1
  %v4882 = vsel %vm822, %v4880, %v4881
  %v4883 = vrot.slane %v4837, 1
  %v4884 = vrot.slane %v4293, 1
  %v4885 = vsel %vm822, %v4883, %v4884
  %v4886 = vrot.slane %v4838, 1
  %v4887 = vrot.slane %v4294, 1
  %v4888 = vsel %vm822, %v4886, %v4887
  %v4889 = vrot.slane %v4839, 1
  %v4890 = vrot.slane %v4295, 1
  %v4891 = vsel %vm822, %v4889, %v4890
  %v4892 = vrot.slane %v4840, 1
  %v4893 = vrot.slane %v4296, 1
  %v4894 = vsel %vm822, %v4892, %v4893
  %v4895 = vrot.slane %v4841, 1
  %v4896 = vrot.slane %v4297, 1
  %v4897 = vsel %vm822, %v4895, %v4896
  %v4898 = vrot.slane %v4842, 1
  %v4899 = vrot.slane %v4298, 1
  %v4900 = vsel %vm822, %v4898, %v4899
  %v4901 = vrot.slane %v4843, 1
  %v4902 = vrot.slane %v4299, 1
  %v4903 = vsel %vm822, %v4901, %v4902
  %v4904 = vrot.slane %v4844, 1
  %v4905 = vrot.slane %v4300, 1
  %v4906 = vsel %vm822, %v4904, %v4905
  %v4907 = vrot.slane %v4845, 1
  %v4908 = vrot.slane %v4301, 1
  %v4909 = vsel %vm822, %v4907, %v4908
  %v4910 = vrot.slane %v4846, 1
  %v4911 = vrot.slane %v4302, 1
  %v4912 = vsel %vm822, %v4910, %v4911
  %v4913 = vrot.slane %v4847, 1
  %v4914 = vrot.slane %v4303, 1
  %v4915 = vsel %vm822, %v4913, %v4914
  %v4916 = vrot.slane %v4848, 1
  %v4917 = vrot.slane %v4304, 1
  %v4918 = vsel %vm822, %v4916, %v4917
  %v4919 = vrot.slane %v4849, 1
  %v4920 = vrot.slane %v4305, 1
  %v4921 = vsel %vm822, %v4919, %v4920
  %v4922 = vrot.slane %v4850, 1
  %v4923 = vrot.slane %v4306, 1
  %v4924 = vsel %vm822, %v4922, %v4923
  %v4925 = vrot.slane %v4851, 1
  %v4926 = vrot.slane %v4307, 1
  %v4927 = vsel %vm822, %v4925, %v4926
  %v4928 = vrot.slane %v4852, 1
  %v4929 = vrot.slane %v4308, 1
  %v4930 = vsel %vm822, %v4928, %v4929
  %v4931 = vrot.slane %v4853, 1
  %v4932 = vrot.slane %v4309, 1
  %v4933 = vsel %vm822, %v4931, %v4932
  %v4934 = vrot.slane %v4854, 1
  %v4935 = vrot.slane %v4310, 1
  %v4936 = vsel %vm822, %v4934, %v4935
  %v4937 = vrot.slane %v4855, 1
  %v4938 = vrot.slane %v4311, 1
  %v4939 = vsel %vm822, %v4937, %v4938
  %v4940 = vrot.slane %v4856, 1
  %v4941 = vrot.slane %v4312, 1
  %v4942 = vsel %vm822, %v4940, %v4941
  %v4943 = vrot.slane %v4857, 1
  %v4944 = vrot.slane %v4313, 1
  %v4945 = vsel %vm822, %v4943, %v4944
  %v4946 = vrot.slane %v4858, 1
  %v4947 = vrot.slane %v4314, 1
  %v4948 = vsel %vm822, %v4946, %v4947
  %v4949 = vrot.slane %v4859, 1
  %v4950 = vrot.slane %v4315, 1
  %v4951 = vsel %vm822, %v4949, %v4950
  %v4952 = vrot.slane %v4860, 1
  %v4953 = vrot.slane %v4316, 1
  %v4954 = vsel %vm822, %v4952, %v4953
  %v4955 = vrot.slane %v4861, 1
  %v4956 = vrot.slane %v4317, 1
  %v4957 = vsel %vm822, %v4955, %v4956
  %4958 = vrot.lane.b32.xlu0 %v4864, 16
  %v4959 = vpop.permute.xlu0 %4958
  %4960 = vrot.lane.b32.xlu0 %v4867, 16
  %v4961 = vpop.permute.xlu0 %4960
  %4962 = vrot.lane.b32.xlu0 %v4870, 16
  %v4963 = vpop.permute.xlu0 %4962
  %4964 = vrot.lane.b32.xlu0 %v4873, 16
  %v4965 = vpop.permute.xlu0 %4964
  %4966 = vrot.lane.b32.xlu0 %v4876, 16
  %v4967 = vpop.permute.xlu0 %4966
  %4968 = vrot.lane.b32.xlu0 %v4879, 16
  %v4969 = vpop.permute.xlu0 %4968
  %4970 = vrot.lane.b32.xlu0 %v4882, 16
  %v4971 = vpop.permute.xlu0 %4970
  %4972 = vrot.lane.b32.xlu0 %v4885, 16
  %v4973 = vpop.permute.xlu0 %4972
  %4974 = vrot.lane.b32.xlu0 %v4888, 16
  %v4975 = vpop.permute.xlu0 %4974
  %4976 = vrot.lane.b32.xlu0 %v4891, 16
  %v4977 = vpop.permute.xlu0 %4976
  %4978 = vrot.lane.b32.xlu0 %v4894, 16
  %v4979 = vpop.permute.xlu0 %4978
  %4980 = vrot.lane.b32.xlu0 %v4897, 16
  %v4981 = vpop.permute.xlu0 %4980
  %4982 = vrot.lane.b32.xlu0 %v4900, 16
  %v4983 = vpop.permute.xlu0 %4982
  %4984 = vrot.lane.b32.xlu0 %v4903, 16
  %v4985 = vpop.permute.xlu0 %4984
  %4986 = vrot.lane.b32.xlu0 %v4906, 16
  %v4987 = vpop.permute.xlu0 %4986
  %4988 = vrot.lane.b32.xlu0 %v4909, 16
  %v4989 = vpop.permute.xlu0 %4988
  %4990 = vrot.lane.b32.xlu0 %v4912, 16
  %v4991 = vpop.permute.xlu0 %4990
  %4992 = vrot.lane.b32.xlu0 %v4915, 16
  %v4993 = vpop.permute.xlu0 %4992
  %4994 = vrot.lane.b32.xlu0 %v4918, 16
  %v4995 = vpop.permute.xlu0 %4994
  %4996 = vrot.lane.b32.xlu0 %v4921, 16
  %v4997 = vpop.permute.xlu0 %4996
  %4998 = vrot.lane.b32.xlu0 %v4924, 16
  %v4999 = vpop.permute.xlu0 %4998
  %5000 = vrot.lane.b32.xlu0 %v4927, 16
  %v5001 = vpop.permute.xlu0 %5000
  %5002 = vrot.lane.b32.xlu0 %v4930, 16
  %v5003 = vpop.permute.xlu0 %5002
  %5004 = vrot.lane.b32.xlu0 %v4933, 16
  %v5005 = vpop.permute.xlu0 %5004
  %5006 = vrot.lane.b32.xlu0 %v4936, 16
  %v5007 = vpop.permute.xlu0 %5006
  %5008 = vrot.lane.b32.xlu0 %v4939, 16
  %v5009 = vpop.permute.xlu0 %5008
  %5010 = vrot.lane.b32.xlu0 %v4942, 16
  %v5011 = vpop.permute.xlu0 %5010
  %5012 = vrot.lane.b32.xlu0 %v4945, 16
  %v5013 = vpop.permute.xlu0 %5012
  %5014 = vrot.lane.b32.xlu0 %v4948, 16
  %v5015 = vpop.permute.xlu0 %5014
  %5016 = vrot.lane.b32.xlu0 %v4951, 16
  %v5017 = vpop.permute.xlu0 %5016
  %5018 = vrot.lane.b32.xlu0 %v4954, 16
  %v5019 = vpop.permute.xlu0 %5018
  %5020 = vrot.lane.b32.xlu0 %v4957, 16
  %v5021 = vpop.permute.xlu0 %5020
  %v5086 = vunpack.c.l.b16 %v3805
  %v5087 = vunpack.c.l.b16 %v3806
  %v5088 = vunpack.c.l.b16 %v3807
  %v5089 = vunpack.c.l.b16 %v3808
  %v5090 = vunpack.c.l.b16 %v3809
  %v5091 = vunpack.c.l.b16 %v3810
  %v5092 = vunpack.c.l.b16 %v3811
  %v5093 = vunpack.c.l.b16 %v3812
  %v5094 = vunpack.c.l.b16 %v3813
  %v5095 = vunpack.c.l.b16 %v3814
  %v5096 = vunpack.c.l.b16 %v3815
  %v5097 = vunpack.c.l.b16 %v3816
  %v5098 = vunpack.c.l.b16 %v3817
  %v5099 = vunpack.c.l.b16 %v3818
  %v5100 = vunpack.c.l.b16 %v3819
  %v5101 = vunpack.c.l.b16 %v3820
  %v5102 = vunpack.c.l.b16 %v3821
  %v5103 = vunpack.c.l.b16 %v3822
  %v5104 = vunpack.c.l.b16 %v3823
  %v5105 = vunpack.c.l.b16 %v3824
  %v5106 = vunpack.c.l.b16 %v3825
  %v5107 = vunpack.c.l.b16 %v3826
  %v5108 = vunpack.c.l.b16 %v3827
  %v5109 = vunpack.c.l.b16 %v3828
  %v5110 = vunpack.c.l.b16 %v3829
  %v5111 = vunpack.c.l.b16 %v3830
  %v5112 = vunpack.c.l.b16 %v3831
  %v5113 = vunpack.c.l.b16 %v3832
  %v5114 = vunpack.c.l.b16 %v3833
  %v5115 = vunpack.c.l.b16 %v3834
  %v5116 = vunpack.c.l.b16 %v3835
  %v5117 = vunpack.c.l.b16 %v3836
  %v5118 = vunpack.c.l.b16 %v3837
  %v5119 = vunpack.c.l.b16 %v3838
  %v5120 = vunpack.c.l.b16 %v3839
  %v5121 = vunpack.c.l.b16 %v3840
  %v5122 = vunpack.c.l.b16 %v3841
  %v5123 = vunpack.c.l.b16 %v3842
  %v5124 = vunpack.c.l.b16 %v3843
  %v5125 = vunpack.c.l.b16 %v3844
  %v5126 = vunpack.c.l.b16 %v3845
  %v5127 = vunpack.c.l.b16 %v3846
  %v5128 = vunpack.c.l.b16 %v3847
  %v5129 = vunpack.c.l.b16 %v3848
  %v5130 = vunpack.c.l.b16 %v3849
  %v5131 = vunpack.c.l.b16 %v3850
  %v5132 = vunpack.c.l.b16 %v3851
  %v5133 = vunpack.c.l.b16 %v3852
  %v5134 = vunpack.c.l.b16 %v3853
  %v5135 = vunpack.c.l.b16 %v3854
  %v5136 = vunpack.c.l.b16 %v3855
  %v5137 = vunpack.c.l.b16 %v3856
  %v5138 = vunpack.c.l.b16 %v3857
  %v5139 = vunpack.c.l.b16 %v3858
  %v5140 = vunpack.c.l.b16 %v3859
  %v5141 = vunpack.c.l.b16 %v3860
  %v5142 = vunpack.c.l.b16 %v3861
  %v5143 = vunpack.c.l.b16 %v3862
  %v5144 = vunpack.c.l.b16 %v3863
  %v5145 = vunpack.c.l.b16 %v3864
  %v5146 = vunpack.c.l.b16 %v3865
  %v5147 = vunpack.c.l.b16 %v3866
  %v5148 = vunpack.c.l.b16 %v3867
  %v5149 = vunpack.c.l.b16 %v3868
  %v5150 = vpack.c.b16 %v5087, %v5086
  %v5151 = vpack.c.b16 %v5089, %v5088
  %v5152 = vpack.c.b16 %v5091, %v5090
  %v5153 = vpack.c.b16 %v5093, %v5092
  %v5154 = vpack.c.b16 %v5095, %v5094
  %v5155 = vpack.c.b16 %v5097, %v5096
  %v5156 = vpack.c.b16 %v5099, %v5098
  %v5157 = vpack.c.b16 %v5101, %v5100
  %v5158 = vpack.c.b16 %v5103, %v5102
  %v5159 = vpack.c.b16 %v5105, %v5104
  %v5160 = vpack.c.b16 %v5107, %v5106
  %v5161 = vpack.c.b16 %v5109, %v5108
  %v5162 = vpack.c.b16 %v5111, %v5110
  %v5163 = vpack.c.b16 %v5113, %v5112
  %v5164 = vpack.c.b16 %v5115, %v5114
  %v5165 = vpack.c.b16 %v5117, %v5116
  %v5166 = vpack.c.b16 %v5119, %v5118
  %v5167 = vpack.c.b16 %v5121, %v5120
  %v5168 = vpack.c.b16 %v5123, %v5122
  %v5169 = vpack.c.b16 %v5125, %v5124
  %v5170 = vpack.c.b16 %v5127, %v5126
  %v5171 = vpack.c.b16 %v5129, %v5128
  %v5172 = vpack.c.b16 %v5131, %v5130
  %v5173 = vpack.c.b16 %v5133, %v5132
  %v5174 = vpack.c.b16 %v5135, %v5134
  %v5175 = vpack.c.b16 %v5137, %v5136
  %v5176 = vpack.c.b16 %v5139, %v5138
  %v5177 = vpack.c.b16 %v5141, %v5140
  %v5178 = vpack.c.b16 %v5143, %v5142
  %v5179 = vpack.c.b16 %v5145, %v5144
  %v5180 = vpack.c.b16 %v5147, %v5146
  %v5181 = vpack.c.b16 %v5149, %v5148
  %5182 = vrot.lane.b32.xlu0 %v5150, 24
  %v5183 = vpop.permute.xlu0 %5182
  %5184 = vrot.lane.b32.xlu0 %v5151, 24
  %v5185 = vpop.permute.xlu0 %5184
  %5186 = vrot.lane.b32.xlu0 %v5152, 24
  %v5187 = vpop.permute.xlu0 %5186
  %5188 = vrot.lane.b32.xlu0 %v5153, 24
  %v5189 = vpop.permute.xlu0 %5188
  %5190 = vrot.lane.b32.xlu0 %v5154, 24
  %v5191 = vpop.permute.xlu0 %5190
  %5192 = vrot.lane.b32.xlu0 %v5155, 24
  %v5193 = vpop.permute.xlu0 %5192
  %5194 = vrot.lane.b32.xlu0 %v5156, 24
  %v5195 = vpop.permute.xlu0 %5194
  %5196 = vrot.lane.b32.xlu0 %v5157, 24
  %v5197 = vpop.permute.xlu0 %5196
  %5198 = vrot.lane.b32.xlu0 %v5158, 24
  %v5199 = vpop.permute.xlu0 %5198
  %5200 = vrot.lane.b32.xlu0 %v5159, 24
  %v5201 = vpop.permute.xlu0 %5200
  %5202 = vrot.lane.b32.xlu0 %v5160, 24
  %v5203 = vpop.permute.xlu0 %5202
  %5204 = vrot.lane.b32.xlu0 %v5161, 24
  %v5205 = vpop.permute.xlu0 %5204
  %5206 = vrot.lane.b32.xlu0 %v5162, 24
  %v5207 = vpop.permute.xlu0 %5206
  %5208 = vrot.lane.b32.xlu0 %v5163, 24
  %v5209 = vpop.permute.xlu0 %5208
  %5210 = vrot.lane.b32.xlu0 %v5164, 24
  %v5211 = vpop.permute.xlu0 %5210
  %5212 = vrot.lane.b32.xlu0 %v5165, 24
  %v5213 = vpop.permute.xlu0 %5212
  %5214 = vrot.lane.b32.xlu0 %v5166, 24
  %v5215 = vpop.permute.xlu0 %5214
  %5216 = vrot.lane.b32.xlu0 %v5167, 24
  %v5217 = vpop.permute.xlu0 %5216
  %5218 = vrot.lane.b32.xlu0 %v5168, 24
  %v5219 = vpop.permute.xlu0 %5218
  %5220 = vrot.lane.b32.xlu0 %v5169, 24
  %v5221 = vpop.permute.xlu0 %5220
  %5222 = vrot.lane.b32.xlu0 %v5170, 24
  %v5223 = vpop.permute.xlu0 %5222
  %5224 = vrot.lane.b32.xlu0 %v5171, 24
  %v5225 = vpop.permute.xlu0 %5224
  %5226 = vrot.lane.b32.xlu0 %v5172, 24
  %v5227 = vpop.permute.xlu0 %5226
  %5228 = vrot.lane.b32.xlu0 %v5173, 24
  %v5229 = vpop.permute.xlu0 %5228
  %5230 = vrot.lane.b32.xlu0 %v5174, 24
  %v5231 = vpop.permute.xlu0 %5230
  %5232 = vrot.lane.b32.xlu0 %v5175, 24
  %v5233 = vpop.permute.xlu0 %5232
  %5234 = vrot.lane.b32.xlu0 %v5176, 24
  %v5235 = vpop.permute.xlu0 %5234
  %5236 = vrot.lane.b32.xlu0 %v5177, 24
  %v5237 = vpop.permute.xlu0 %5236
  %5238 = vrot.lane.b32.xlu0 %v5178, 24
  %v5239 = vpop.permute.xlu0 %5238
  %5240 = vrot.lane.b32.xlu0 %v5179, 24
  %v5241 = vpop.permute.xlu0 %5240
  %5242 = vrot.lane.b32.xlu0 %v5180, 24
  %v5243 = vpop.permute.xlu0 %5242
  %5244 = vrot.lane.b32.xlu0 %v5181, 24
  %v5245 = vpop.permute.xlu0 %5244
  %v5278 = vunpack.c.l.b16 %v3869
  %v5279 = vunpack.c.l.b16 %v3870
  %v5280 = vunpack.c.l.b16 %v3871
  %v5281 = vunpack.c.l.b16 %v3872
  %v5282 = vunpack.c.l.b16 %v3873
  %v5283 = vunpack.c.l.b16 %v3874
  %v5284 = vunpack.c.l.b16 %v3875
  %v5285 = vunpack.c.l.b16 %v3876
  %v5286 = vunpack.c.l.b16 %v3877
  %v5287 = vunpack.c.l.b16 %v3878
  %v5288 = vunpack.c.l.b16 %v3879
  %v5289 = vunpack.c.l.b16 %v3880
  %v5290 = vunpack.c.l.b16 %v3881
  %v5291 = vunpack.c.l.b16 %v3882
  %v5292 = vunpack.c.l.b16 %v3883
  %v5293 = vunpack.c.l.b16 %v3884
  %v5294 = vunpack.c.l.b16 %v3885
  %v5295 = vunpack.c.l.b16 %v3886
  %v5296 = vunpack.c.l.b16 %v3887
  %v5297 = vunpack.c.l.b16 %v3888
  %v5298 = vunpack.c.l.b16 %v3889
  %v5299 = vunpack.c.l.b16 %v3890
  %v5300 = vunpack.c.l.b16 %v3891
  %v5301 = vunpack.c.l.b16 %v3892
  %v5302 = vunpack.c.l.b16 %v3893
  %v5303 = vunpack.c.l.b16 %v3894
  %v5304 = vunpack.c.l.b16 %v3895
  %v5305 = vunpack.c.l.b16 %v3896
  %v5306 = vunpack.c.l.b16 %v3897
  %v5307 = vunpack.c.l.b16 %v3898
  %v5308 = vunpack.c.l.b16 %v3899
  %v5309 = vunpack.c.l.b16 %v3900
  %v5310 = vpack.c.b16 %v5278, %v5278
  %v5311 = vpack.c.b16 %v5279, %v5279
  %v5312 = vpack.c.b16 %v5280, %v5280
  %v5313 = vpack.c.b16 %v5281, %v5281
  %v5314 = vpack.c.b16 %v5282, %v5282
  %v5315 = vpack.c.b16 %v5283, %v5283
  %v5316 = vpack.c.b16 %v5284, %v5284
  %v5317 = vpack.c.b16 %v5285, %v5285
  %v5318 = vpack.c.b16 %v5286, %v5286
  %v5319 = vpack.c.b16 %v5287, %v5287
  %v5320 = vpack.c.b16 %v5288, %v5288
  %v5321 = vpack.c.b16 %v5289, %v5289
  %v5322 = vpack.c.b16 %v5290, %v5290
  %v5323 = vpack.c.b16 %v5291, %v5291
  %v5324 = vpack.c.b16 %v5292, %v5292
  %v5325 = vpack.c.b16 %v5293, %v5293
  %v5326 = vpack.c.b16 %v5294, %v5294
  %v5327 = vpack.c.b16 %v5295, %v5295
  %v5328 = vpack.c.b16 %v5296, %v5296
  %v5329 = vpack.c.b16 %v5297, %v5297
  %v5330 = vpack.c.b16 %v5298, %v5298
  %v5331 = vpack.c.b16 %v5299, %v5299
  %v5332 = vpack.c.b16 %v5300, %v5300
  %v5333 = vpack.c.b16 %v5301, %v5301
  %v5334 = vpack.c.b16 %v5302, %v5302
  %v5335 = vpack.c.b16 %v5303, %v5303
  %v5336 = vpack.c.b16 %v5304, %v5304
  %v5337 = vpack.c.b16 %v5305, %v5305
  %v5338 = vpack.c.b16 %v5306, %v5306
  %v5339 = vpack.c.b16 %v5307, %v5307
  %v5340 = vpack.c.b16 %v5308, %v5308
  %v5341 = vpack.c.b16 %v5309, %v5309
  %v5343 = vshrl.u32 %v5150, 16
  %v5345 = vshll.u32 %v5150, 16
  %v5347 = vrot.slane %v5345, 1
  %v5348 = vor.u32 %v5343, %v5347
  %v5350 = vshll.u32 %v5310, 16
  %v5352 = vrot.slane %v5350, 1
  %v5353 = vsel %vm309, %v5348, %v5352
  %v5355 = vshrl.u32 %v5151, 16
  %v5357 = vshll.u32 %v5151, 16
  %v5359 = vrot.slane %v5357, 1
  %v5360 = vor.u32 %v5355, %v5359
  %v5362 = vshll.u32 %v5311, 16
  %v5364 = vrot.slane %v5362, 1
  %v5365 = vsel %vm309, %v5360, %v5364
  %v5367 = vshrl.u32 %v5152, 16
  %v5369 = vshll.u32 %v5152, 16
  %v5371 = vrot.slane %v5369, 1
  %v5372 = vor.u32 %v5367, %v5371
  %v5374 = vshll.u32 %v5312, 16
  %v5376 = vrot.slane %v5374, 1
  %v5377 = vsel %vm309, %v5372, %v5376
  %v5379 = vshrl.u32 %v5153, 16
  %v5381 = vshll.u32 %v5153, 16
  %v5383 = vrot.slane %v5381, 1
  %v5384 = vor.u32 %v5379, %v5383
  %v5386 = vshll.u32 %v5313, 16
  %v5388 = vrot.slane %v5386, 1
  %v5389 = vsel %vm309, %v5384, %v5388
  %v5391 = vshrl.u32 %v5154, 16
  %v5393 = vshll.u32 %v5154, 16
  %v5395 = vrot.slane %v5393, 1
  %v5396 = vor.u32 %v5391, %v5395
  %v5398 = vshll.u32 %v5314, 16
  %v5400 = vrot.slane %v5398, 1
  %v5401 = vsel %vm309, %v5396, %v5400
  %v5403 = vshrl.u32 %v5155, 16
  %v5405 = vshll.u32 %v5155, 16
  %v5407 = vrot.slane %v5405, 1
  %v5408 = vor.u32 %v5403, %v5407
  %v5410 = vshll.u32 %v5315, 16
  %v5412 = vrot.slane %v5410, 1
  %v5413 = vsel %vm309, %v5408, %v5412
  %v5415 = vshrl.u32 %v5156, 16
  %v5417 = vshll.u32 %v5156, 16
  %v5419 = vrot.slane %v5417, 1
  %v5420 = vor.u32 %v5415, %v5419
  %v5422 = vshll.u32 %v5316, 16
  %v5424 = vrot.slane %v5422, 1
  %v5425 = vsel %vm309, %v5420, %v5424
  %v5427 = vshrl.u32 %v5157, 16
  %v5429 = vshll.u32 %v5157, 16
  %v5431 = vrot.slane %v5429, 1
  %v5432 = vor.u32 %v5427, %v5431
  %v5434 = vshll.u32 %v5317, 16
  %v5436 = vrot.slane %v5434, 1
  %v5437 = vsel %vm309, %v5432, %v5436
  %v5439 = vshrl.u32 %v5158, 16
  %v5441 = vshll.u32 %v5158, 16
  %v5443 = vrot.slane %v5441, 1
  %v5444 = vor.u32 %v5439, %v5443
  %v5446 = vshll.u32 %v5318, 16
  %v5448 = vrot.slane %v5446, 1
  %v5449 = vsel %vm309, %v5444, %v5448
  %v5451 = vshrl.u32 %v5159, 16
  %v5453 = vshll.u32 %v5159, 16
  %v5455 = vrot.slane %v5453, 1
  %v5456 = vor.u32 %v5451, %v5455
  %v5458 = vshll.u32 %v5319, 16
  %v5460 = vrot.slane %v5458, 1
  %v5461 = vsel %vm309, %v5456, %v5460
  %v5463 = vshrl.u32 %v5160, 16
  %v5465 = vshll.u32 %v5160, 16
  %v5467 = vrot.slane %v5465, 1
  %v5468 = vor.u32 %v5463, %v5467
  %v5470 = vshll.u32 %v5320, 16
  %v5472 = vrot.slane %v5470, 1
  %v5473 = vsel %vm309, %v5468, %v5472
  %v5475 = vshrl.u32 %v5161, 16
  %v5477 = vshll.u32 %v5161, 16
  %v5479 = vrot.slane %v5477, 1
  %v5480 = vor.u32 %v5475, %v5479
  %v5482 = vshll.u32 %v5321, 16
  %v5484 = vrot.slane %v5482, 1
  %v5485 = vsel %vm309, %v5480, %v5484
  %v5487 = vshrl.u32 %v5162, 16
  %v5489 = vshll.u32 %v5162, 16
  %v5491 = vrot.slane %v5489, 1
  %v5492 = vor.u32 %v5487, %v5491
  %v5494 = vshll.u32 %v5322, 16
  %v5496 = vrot.slane %v5494, 1
  %v5497 = vsel %vm309, %v5492, %v5496
  %v5499 = vshrl.u32 %v5163, 16
  %v5501 = vshll.u32 %v5163, 16
  %v5503 = vrot.slane %v5501, 1
  %v5504 = vor.u32 %v5499, %v5503
  %v5506 = vshll.u32 %v5323, 16
  %v5508 = vrot.slane %v5506, 1
  %v5509 = vsel %vm309, %v5504, %v5508
  %v5511 = vshrl.u32 %v5164, 16
  %v5513 = vshll.u32 %v5164, 16
  %v5515 = vrot.slane %v5513, 1
  %v5516 = vor.u32 %v5511, %v5515
  %v5518 = vshll.u32 %v5324, 16
  %v5520 = vrot.slane %v5518, 1
  %v5521 = vsel %vm309, %v5516, %v5520
  %v5523 = vshrl.u32 %v5165, 16
  %v5525 = vshll.u32 %v5165, 16
  %v5527 = vrot.slane %v5525, 1
  %v5528 = vor.u32 %v5523, %v5527
  %v5530 = vshll.u32 %v5325, 16
  %v5532 = vrot.slane %v5530, 1
  %v5533 = vsel %vm309, %v5528, %v5532
  %v5535 = vshrl.u32 %v5166, 16
  %v5537 = vshll.u32 %v5166, 16
  %v5539 = vrot.slane %v5537, 1
  %v5540 = vor.u32 %v5535, %v5539
  %v5542 = vshll.u32 %v5326, 16
  %v5544 = vrot.slane %v5542, 1
  %v5545 = vsel %vm309, %v5540, %v5544
  %v5547 = vshrl.u32 %v5167, 16
  %v5549 = vshll.u32 %v5167, 16
  %v5551 = vrot.slane %v5549, 1
  %v5552 = vor.u32 %v5547, %v5551
  %v5554 = vshll.u32 %v5327, 16
  %v5556 = vrot.slane %v5554, 1
  %v5557 = vsel %vm309, %v5552, %v5556
  %v5559 = vshrl.u32 %v5168, 16
  %v5561 = vshll.u32 %v5168, 16
  %v5563 = vrot.slane %v5561, 1
  %v5564 = vor.u32 %v5559, %v5563
  %v5566 = vshll.u32 %v5328, 16
  %v5568 = vrot.slane %v5566, 1
  %v5569 = vsel %vm309, %v5564, %v5568
  %v5571 = vshrl.u32 %v5169, 16
  %v5573 = vshll.u32 %v5169, 16
  %v5575 = vrot.slane %v5573, 1
  %v5576 = vor.u32 %v5571, %v5575
  %v5578 = vshll.u32 %v5329, 16
  %v5580 = vrot.slane %v5578, 1
  %v5581 = vsel %vm309, %v5576, %v5580
  %v5583 = vshrl.u32 %v5170, 16
  %v5585 = vshll.u32 %v5170, 16
  %v5587 = vrot.slane %v5585, 1
  %v5588 = vor.u32 %v5583, %v5587
  %v5590 = vshll.u32 %v5330, 16
  %v5592 = vrot.slane %v5590, 1
  %v5593 = vsel %vm309, %v5588, %v5592
  %v5595 = vshrl.u32 %v5171, 16
  %v5597 = vshll.u32 %v5171, 16
  %v5599 = vrot.slane %v5597, 1
  %v5600 = vor.u32 %v5595, %v5599
  %v5602 = vshll.u32 %v5331, 16
  %v5604 = vrot.slane %v5602, 1
  %v5605 = vsel %vm309, %v5600, %v5604
  %v5607 = vshrl.u32 %v5172, 16
  %v5609 = vshll.u32 %v5172, 16
  %v5611 = vrot.slane %v5609, 1
  %v5612 = vor.u32 %v5607, %v5611
  %v5614 = vshll.u32 %v5332, 16
  %v5616 = vrot.slane %v5614, 1
  %v5617 = vsel %vm309, %v5612, %v5616
  %v5619 = vshrl.u32 %v5173, 16
  %v5621 = vshll.u32 %v5173, 16
  %v5623 = vrot.slane %v5621, 1
  %v5624 = vor.u32 %v5619, %v5623
  %v5626 = vshll.u32 %v5333, 16
  %v5628 = vrot.slane %v5626, 1
  %v5629 = vsel %vm309, %v5624, %v5628
  %v5631 = vshrl.u32 %v5174, 16
  %v5633 = vshll.u32 %v5174, 16
  %v5635 = vrot.slane %v5633, 1
  %v5636 = vor.u32 %v5631, %v5635
  %v5638 = vshll.u32 %v5334, 16
  %v5640 = vrot.slane %v5638, 1
  %v5641 = vsel %vm309, %v5636, %v5640
  %v5643 = vshrl.u32 %v5175, 16
  %v5645 = vshll.u32 %v5175, 16
  %v5647 = vrot.slane %v5645, 1
  %v5648 = vor.u32 %v5643, %v5647
  %v5650 = vshll.u32 %v5335, 16
  %v5652 = vrot.slane %v5650, 1
  %v5653 = vsel %vm309, %v5648, %v5652
  %v5655 = vshrl.u32 %v5176, 16
  %v5657 = vshll.u32 %v5176, 16
  %v5659 = vrot.slane %v5657, 1
  %v5660 = vor.u32 %v5655, %v5659
  %v5662 = vshll.u32 %v5336, 16
  %v5664 = vrot.slane %v5662, 1
  %v5665 = vsel %vm309, %v5660, %v5664
  %v5667 = vshrl.u32 %v5177, 16
  %v5669 = vshll.u32 %v5177, 16
  %v5671 = vrot.slane %v5669, 1
  %v5672 = vor.u32 %v5667, %v5671
  %v5674 = vshll.u32 %v5337, 16
  %v5676 = vrot.slane %v5674, 1
  %v5677 = vsel %vm309, %v5672, %v5676
  %v5679 = vshrl.u32 %v5178, 16
  %v5681 = vshll.u32 %v5178, 16
  %v5683 = vrot.slane %v5681, 1
  %v5684 = vor.u32 %v5679, %v5683
  %v5686 = vshll.u32 %v5338, 16
  %v5688 = vrot.slane %v5686, 1
  %v5689 = vsel %vm309, %v5684, %v5688
  %v5691 = vshrl.u32 %v5179, 16
  %v5693 = vshll.u32 %v5179, 16
  %v5695 = vrot.slane %v5693, 1
  %v5696 = vor.u32 %v5691, %v5695
  %v5698 = vshll.u32 %v5339, 16
  %v5700 = vrot.slane %v5698, 1
  %v5701 = vsel %vm309, %v5696, %v5700
  %v5703 = vshrl.u32 %v5180, 16
  %v5705 = vshll.u32 %v5180, 16
  %v5707 = vrot.slane %v5705, 1
  %v5708 = vor.u32 %v5703, %v5707
  %v5710 = vshll.u32 %v5340, 16
  %v5712 = vrot.slane %v5710, 1
  %v5713 = vsel %vm309, %v5708, %v5712
  %v5715 = vshrl.u32 %v5181, 16
  %v5717 = vshll.u32 %v5181, 16
  %v5719 = vrot.slane %v5717, 1
  %v5720 = vor.u32 %v5715, %v5719
  %v5722 = vshll.u32 %v5341, 16
  %v5724 = vrot.slane %v5722, 1
  %v5725 = vsel %vm309, %v5720, %v5724
  %5726 = vrot.lane.b32.xlu0 %v5353, 32
  %v5727 = vpop.permute.xlu0 %5726
  %5728 = vrot.lane.b32.xlu0 %v5365, 32
  %v5729 = vpop.permute.xlu0 %5728
  %5730 = vrot.lane.b32.xlu0 %v5377, 32
  %v5731 = vpop.permute.xlu0 %5730
  %5732 = vrot.lane.b32.xlu0 %v5389, 32
  %v5733 = vpop.permute.xlu0 %5732
  %5734 = vrot.lane.b32.xlu0 %v5401, 32
  %v5735 = vpop.permute.xlu0 %5734
  %5736 = vrot.lane.b32.xlu0 %v5413, 32
  %v5737 = vpop.permute.xlu0 %5736
  %5738 = vrot.lane.b32.xlu0 %v5425, 32
  %v5739 = vpop.permute.xlu0 %5738
  %5740 = vrot.lane.b32.xlu0 %v5437, 32
  %v5741 = vpop.permute.xlu0 %5740
  %5742 = vrot.lane.b32.xlu0 %v5449, 32
  %v5743 = vpop.permute.xlu0 %5742
  %5744 = vrot.lane.b32.xlu0 %v5461, 32
  %v5745 = vpop.permute.xlu0 %5744
  %5746 = vrot.lane.b32.xlu0 %v5473, 32
  %v5747 = vpop.permute.xlu0 %5746
  %5748 = vrot.lane.b32.xlu0 %v5485, 32
  %v5749 = vpop.permute.xlu0 %5748
  %5750 = vrot.lane.b32.xlu0 %v5497, 32
  %v5751 = vpop.permute.xlu0 %5750
  %5752 = vrot.lane.b32.xlu0 %v5509, 32
  %v5753 = vpop.permute.xlu0 %5752
  %5754 = vrot.lane.b32.xlu0 %v5521, 32
  %v5755 = vpop.permute.xlu0 %5754
  %5756 = vrot.lane.b32.xlu0 %v5533, 32
  %v5757 = vpop.permute.xlu0 %5756
  %5758 = vrot.lane.b32.xlu0 %v5545, 32
  %v5759 = vpop.permute.xlu0 %5758
  %5760 = vrot.lane.b32.xlu0 %v5557, 32
  %v5761 = vpop.permute.xlu0 %5760
  %5762 = vrot.lane.b32.xlu0 %v5569, 32
  %v5763 = vpop.permute.xlu0 %5762
  %5764 = vrot.lane.b32.xlu0 %v5581, 32
  %v5765 = vpop.permute.xlu0 %5764
  %5766 = vrot.lane.b32.xlu0 %v5593, 32
  %v5767 = vpop.permute.xlu0 %5766
  %5768 = vrot.lane.b32.xlu0 %v5605, 32
  %v5769 = vpop.permute.xlu0 %5768
  %5770 = vrot.lane.b32.xlu0 %v5617, 32
  %v5771 = vpop.permute.xlu0 %5770
  %5772 = vrot.lane.b32.xlu0 %v5629, 32
  %v5773 = vpop.permute.xlu0 %5772
  %5774 = vrot.lane.b32.xlu0 %v5641, 32
  %v5775 = vpop.permute.xlu0 %5774
  %5776 = vrot.lane.b32.xlu0 %v5653, 32
  %v5777 = vpop.permute.xlu0 %5776
  %5778 = vrot.lane.b32.xlu0 %v5665, 32
  %v5779 = vpop.permute.xlu0 %5778
  %5780 = vrot.lane.b32.xlu0 %v5677, 32
  %v5781 = vpop.permute.xlu0 %5780
  %5782 = vrot.lane.b32.xlu0 %v5689, 32
  %v5783 = vpop.permute.xlu0 %5782
  %5784 = vrot.lane.b32.xlu0 %v5701, 32
  %v5785 = vpop.permute.xlu0 %5784
  %5786 = vrot.lane.b32.xlu0 %v5713, 32
  %v5787 = vpop.permute.xlu0 %5786
  %5788 = vrot.lane.b32.xlu0 %v5725, 32
  %v5789 = vpop.permute.xlu0 %5788
  %v5822 = vunpack.c.l.b16 %v3901
  %v5823 = vunpack.c.l.b16 %v3902
  %v5824 = vunpack.c.l.b16 %v3903
  %v5825 = vunpack.c.l.b16 %v3904
  %v5826 = vunpack.c.l.b16 %v3905
  %v5827 = vunpack.c.l.b16 %v3906
  %v5828 = vunpack.c.l.b16 %v3907
  %v5829 = vunpack.c.l.b16 %v3908
  %v5830 = vunpack.c.l.b16 %v3909
  %v5831 = vunpack.c.l.b16 %v3910
  %v5832 = vunpack.c.l.b16 %v3911
  %v5833 = vunpack.c.l.b16 %v3912
  %v5834 = vunpack.c.l.b16 %v3913
  %v5835 = vunpack.c.l.b16 %v3914
  %v5836 = vunpack.c.l.b16 %v3915
  %v5837 = vunpack.c.l.b16 %v3916
  %v5838 = vunpack.c.l.b16 %v3917
  %v5839 = vunpack.c.l.b16 %v3918
  %v5840 = vunpack.c.l.b16 %v3919
  %v5841 = vunpack.c.l.b16 %v3920
  %v5842 = vunpack.c.l.b16 %v3921
  %v5843 = vunpack.c.l.b16 %v3922
  %v5844 = vunpack.c.l.b16 %v3923
  %v5845 = vunpack.c.l.b16 %v3924
  %v5846 = vunpack.c.l.b16 %v3925
  %v5847 = vunpack.c.l.b16 %v3926
  %v5848 = vunpack.c.l.b16 %v3927
  %v5849 = vunpack.c.l.b16 %v3928
  %v5850 = vunpack.c.l.b16 %v3929
  %v5851 = vunpack.c.l.b16 %v3930
  %v5852 = vunpack.c.l.b16 %v3931
  %v5853 = vunpack.c.l.b16 %v3932
  %v5854 = vpack.c.b16 %v5087, %v5822
  %v5855 = vpack.c.b16 %v5089, %v5823
  %v5856 = vpack.c.b16 %v5091, %v5824
  %v5857 = vpack.c.b16 %v5093, %v5825
  %v5858 = vpack.c.b16 %v5095, %v5826
  %v5859 = vpack.c.b16 %v5097, %v5827
  %v5860 = vpack.c.b16 %v5099, %v5828
  %v5861 = vpack.c.b16 %v5101, %v5829
  %v5862 = vpack.c.b16 %v5103, %v5830
  %v5863 = vpack.c.b16 %v5105, %v5831
  %v5864 = vpack.c.b16 %v5107, %v5832
  %v5865 = vpack.c.b16 %v5109, %v5833
  %v5866 = vpack.c.b16 %v5111, %v5834
  %v5867 = vpack.c.b16 %v5113, %v5835
  %v5868 = vpack.c.b16 %v5115, %v5836
  %v5869 = vpack.c.b16 %v5117, %v5837
  %v5870 = vpack.c.b16 %v5119, %v5838
  %v5871 = vpack.c.b16 %v5121, %v5839
  %v5872 = vpack.c.b16 %v5123, %v5840
  %v5873 = vpack.c.b16 %v5125, %v5841
  %v5874 = vpack.c.b16 %v5127, %v5842
  %v5875 = vpack.c.b16 %v5129, %v5843
  %v5876 = vpack.c.b16 %v5131, %v5844
  %v5877 = vpack.c.b16 %v5133, %v5845
  %v5878 = vpack.c.b16 %v5135, %v5846
  %v5879 = vpack.c.b16 %v5137, %v5847
  %v5880 = vpack.c.b16 %v5139, %v5848
  %v5881 = vpack.c.b16 %v5141, %v5849
  %v5882 = vpack.c.b16 %v5143, %v5850
  %v5883 = vpack.c.b16 %v5145, %v5851
  %v5884 = vpack.c.b16 %v5147, %v5852
  %v5885 = vpack.c.b16 %v5149, %v5853
  %v5886 = vrot.slane %v5854, 1
  %v5887 = vrot.slane %v5310, 1
  %v5888 = vsel %vm822, %v5886, %v5887
  %v5889 = vrot.slane %v5855, 1
  %v5890 = vrot.slane %v5311, 1
  %v5891 = vsel %vm822, %v5889, %v5890
  %v5892 = vrot.slane %v5856, 1
  %v5893 = vrot.slane %v5312, 1
  %v5894 = vsel %vm822, %v5892, %v5893
  %v5895 = vrot.slane %v5857, 1
  %v5896 = vrot.slane %v5313, 1
  %v5897 = vsel %vm822, %v5895, %v5896
  %v5898 = vrot.slane %v5858, 1
  %v5899 = vrot.slane %v5314, 1
  %v5900 = vsel %vm822, %v5898, %v5899
  %v5901 = vrot.slane %v5859, 1
  %v5902 = vrot.slane %v5315, 1
  %v5903 = vsel %vm822, %v5901, %v5902
  %v5904 = vrot.slane %v5860, 1
  %v5905 = vrot.slane %v5316, 1
  %v5906 = vsel %vm822, %v5904, %v5905
  %v5907 = vrot.slane %v5861, 1
  %v5908 = vrot.slane %v5317, 1
  %v5909 = vsel %vm822, %v5907, %v5908
  %v5910 = vrot.slane %v5862, 1
  %v5911 = vrot.slane %v5318, 1
  %v5912 = vsel %vm822, %v5910, %v5911
  %v5913 = vrot.slane %v5863, 1
  %v5914 = vrot.slane %v5319, 1
  %v5915 = vsel %vm822, %v5913, %v5914
  %v5916 = vrot.slane %v5864, 1
  %v5917 = vrot.slane %v5320, 1
  %v5918 = vsel %vm822, %v5916, %v5917
  %v5919 = vrot.slane %v5865, 1
  %v5920 = vrot.slane %v5321, 1
  %v5921 = vsel %vm822, %v5919, %v5920
  %v5922 = vrot.slane %v5866, 1
  %v5923 = vrot.slane %v5322, 1
  %v5924 = vsel %vm822, %v5922, %v5923
  %v5925 = vrot.slane %v5867, 1
  %v5926 = vrot.slane %v5323, 1
  %v5927 = vsel %vm822, %v5925, %v5926
  %v5928 = vrot.slane %v5868, 1
  %v5929 = vrot.slane %v5324, 1
  %v5930 = vsel %vm822, %v5928, %v5929
  %v5931 = vrot.slane %v5869, 1
  %v5932 = vrot.slane %v5325, 1
  %v5933 = vsel %vm822, %v5931, %v5932
  %v5934 = vrot.slane %v5870, 1
  %v5935 = vrot.slane %v5326, 1
  %v5936 = vsel %vm822, %v5934, %v5935
  %v5937 = vrot.slane %v5871, 1
  %v5938 = vrot.slane %v5327, 1
  %v5939 = vsel %vm822, %v5937, %v5938
  %v5940 = vrot.slane %v5872, 1
  %v5941 = vrot.slane %v5328, 1
  %v5942 = vsel %vm822, %v5940, %v5941
  %v5943 = vrot.slane %v5873, 1
  %v5944 = vrot.slane %v5329, 1
  %v5945 = vsel %vm822, %v5943, %v5944
  %v5946 = vrot.slane %v5874, 1
  %v5947 = vrot.slane %v5330, 1
  %v5948 = vsel %vm822, %v5946, %v5947
  %v5949 = vrot.slane %v5875, 1
  %v5950 = vrot.slane %v5331, 1
  %v5951 = vsel %vm822, %v5949, %v5950
  %v5952 = vrot.slane %v5876, 1
  %v5953 = vrot.slane %v5332, 1
  %v5954 = vsel %vm822, %v5952, %v5953
  %v5955 = vrot.slane %v5877, 1
  %v5956 = vrot.slane %v5333, 1
  %v5957 = vsel %vm822, %v5955, %v5956
  %v5958 = vrot.slane %v5878, 1
  %v5959 = vrot.slane %v5334, 1
  %v5960 = vsel %vm822, %v5958, %v5959
  %v5961 = vrot.slane %v5879, 1
  %v5962 = vrot.slane %v5335, 1
  %v5963 = vsel %vm822, %v5961, %v5962
  %v5964 = vrot.slane %v5880, 1
  %v5965 = vrot.slane %v5336, 1
  %v5966 = vsel %vm822, %v5964, %v5965
  %v5967 = vrot.slane %v5881, 1
  %v5968 = vrot.slane %v5337, 1
  %v5969 = vsel %vm822, %v5967, %v5968
  %v5970 = vrot.slane %v5882, 1
  %v5971 = vrot.slane %v5338, 1
  %v5972 = vsel %vm822, %v5970, %v5971
  %v5973 = vrot.slane %v5883, 1
  %v5974 = vrot.slane %v5339, 1
  %v5975 = vsel %vm822, %v5973, %v5974
  %v5976 = vrot.slane %v5884, 1
  %v5977 = vrot.slane %v5340, 1
  %v5978 = vsel %vm822, %v5976, %v5977
  %v5979 = vrot.slane %v5885, 1
  %v5980 = vrot.slane %v5341, 1
  %v5981 = vsel %vm822, %v5979, %v5980
  %5982 = vrot.lane.b32.xlu0 %v5888, 40
  %v5983 = vpop.permute.xlu0 %5982
  %5984 = vrot.lane.b32.xlu0 %v5891, 40
  %v5985 = vpop.permute.xlu0 %5984
  %5986 = vrot.lane.b32.xlu0 %v5894, 40
  %v5987 = vpop.permute.xlu0 %5986
  %5988 = vrot.lane.b32.xlu0 %v5897, 40
  %v5989 = vpop.permute.xlu0 %5988
  %5990 = vrot.lane.b32.xlu0 %v5900, 40
  %v5991 = vpop.permute.xlu0 %5990
  %5992 = vrot.lane.b32.xlu0 %v5903, 40
  %v5993 = vpop.permute.xlu0 %5992
  %5994 = vrot.lane.b32.xlu0 %v5906, 40
  %v5995 = vpop.permute.xlu0 %5994
  %5996 = vrot.lane.b32.xlu0 %v5909, 40
  %v5997 = vpop.permute.xlu0 %5996
  %5998 = vrot.lane.b32.xlu0 %v5912, 40
  %v5999 = vpop.permute.xlu0 %5998
  %6000 = vrot.lane.b32.xlu0 %v5915, 40
  %v6001 = vpop.permute.xlu0 %6000
  %6002 = vrot.lane.b32.xlu0 %v5918, 40
  %v6003 = vpop.permute.xlu0 %6002
  %6004 = vrot.lane.b32.xlu0 %v5921, 40
  %v6005 = vpop.permute.xlu0 %6004
  %6006 = vrot.lane.b32.xlu0 %v5924, 40
  %v6007 = vpop.permute.xlu0 %6006
  %6008 = vrot.lane.b32.xlu0 %v5927, 40
  %v6009 = vpop.permute.xlu0 %6008
  %6010 = vrot.lane.b32.xlu0 %v5930, 40
  %v6011 = vpop.permute.xlu0 %6010
  %6012 = vrot.lane.b32.xlu0 %v5933, 40
  %v6013 = vpop.permute.xlu0 %6012
  %6014 = vrot.lane.b32.xlu0 %v5936, 40
  %v6015 = vpop.permute.xlu0 %6014
  %6016 = vrot.lane.b32.xlu0 %v5939, 40
  %v6017 = vpop.permute.xlu0 %6016
  %6018 = vrot.lane.b32.xlu0 %v5942, 40
  %v6019 = vpop.permute.xlu0 %6018
  %6020 = vrot.lane.b32.xlu0 %v5945, 40
  %v6021 = vpop.permute.xlu0 %6020
  %6022 = vrot.lane.b32.xlu0 %v5948, 40
  %v6023 = vpop.permute.xlu0 %6022
  %6024 = vrot.lane.b32.xlu0 %v5951, 40
  %v6025 = vpop.permute.xlu0 %6024
  %6026 = vrot.lane.b32.xlu0 %v5954, 40
  %v6027 = vpop.permute.xlu0 %6026
  %6028 = vrot.lane.b32.xlu0 %v5957, 40
  %v6029 = vpop.permute.xlu0 %6028
  %6030 = vrot.lane.b32.xlu0 %v5960, 40
  %v6031 = vpop.permute.xlu0 %6030
  %6032 = vrot.lane.b32.xlu0 %v5963, 40
  %v6033 = vpop.permute.xlu0 %6032
  %6034 = vrot.lane.b32.xlu0 %v5966, 40
  %v6035 = vpop.permute.xlu0 %6034
  %6036 = vrot.lane.b32.xlu0 %v5969, 40
  %v6037 = vpop.permute.xlu0 %6036
  %6038 = vrot.lane.b32.xlu0 %v5972, 40
  %v6039 = vpop.permute.xlu0 %6038
  %6040 = vrot.lane.b32.xlu0 %v5975, 40
  %v6041 = vpop.permute.xlu0 %6040
  %6042 = vrot.lane.b32.xlu0 %v5978, 40
  %v6043 = vpop.permute.xlu0 %6042
  %6044 = vrot.lane.b32.xlu0 %v5981, 40
  %v6045 = vpop.permute.xlu0 %6044
  %v6110 = vunpack.c.l.b16 %v3934
  %v6111 = vunpack.c.l.b16 %v3935
  %v6112 = vunpack.c.l.b16 %v3936
  %v6113 = vunpack.c.l.b16 %v3937
  %v6114 = vunpack.c.l.b16 %v3938
  %v6115 = vunpack.c.l.b16 %v3939
  %v6116 = vunpack.c.l.b16 %v3940
  %v6117 = vunpack.c.l.b16 %v3941
  %v6118 = vunpack.c.l.b16 %v3942
  %v6119 = vunpack.c.l.b16 %v3943
  %v6120 = vunpack.c.l.b16 %v3944
  %v6121 = vunpack.c.l.b16 %v3945
  %v6122 = vunpack.c.l.b16 %v3946
  %v6123 = vunpack.c.l.b16 %v3947
  %v6124 = vunpack.c.l.b16 %v3948
  %v6125 = vunpack.c.l.b16 %v3949
  %v6126 = vunpack.c.l.b16 %v3950
  %v6127 = vunpack.c.l.b16 %v3951
  %v6128 = vunpack.c.l.b16 %v3952
  %v6129 = vunpack.c.l.b16 %v3953
  %v6130 = vunpack.c.l.b16 %v3954
  %v6131 = vunpack.c.l.b16 %v3955
  %v6132 = vunpack.c.l.b16 %v3956
  %v6133 = vunpack.c.l.b16 %v3957
  %v6134 = vunpack.c.l.b16 %v3958
  %v6135 = vunpack.c.l.b16 %v3959
  %v6136 = vunpack.c.l.b16 %v3960
  %v6137 = vunpack.c.l.b16 %v3961
  %v6138 = vunpack.c.l.b16 %v3962
  %v6139 = vunpack.c.l.b16 %v3963
  %v6140 = vunpack.c.l.b16 %v3964
  %v6141 = vunpack.c.l.b16 %v3965
  %v6142 = vunpack.c.l.b16 %v3966
  %v6143 = vunpack.c.l.b16 %v3967
  %v6144 = vunpack.c.l.b16 %v3968
  %v6145 = vunpack.c.l.b16 %v3969
  %v6146 = vunpack.c.l.b16 %v3970
  %v6147 = vunpack.c.l.b16 %v3971
  %v6148 = vunpack.c.l.b16 %v3972
  %v6149 = vunpack.c.l.b16 %v3973
  %v6150 = vunpack.c.l.b16 %v3974
  %v6151 = vunpack.c.l.b16 %v3975
  %v6152 = vunpack.c.l.b16 %v3976
  %v6153 = vunpack.c.l.b16 %v3977
  %v6154 = vunpack.c.l.b16 %v3978
  %v6155 = vunpack.c.l.b16 %v3979
  %v6156 = vunpack.c.l.b16 %v3980
  %v6157 = vunpack.c.l.b16 %v3981
  %v6158 = vunpack.c.l.b16 %v3982
  %v6159 = vunpack.c.l.b16 %v3983
  %v6160 = vunpack.c.l.b16 %v3984
  %v6161 = vunpack.c.l.b16 %v3985
  %v6162 = vunpack.c.l.b16 %v3986
  %v6163 = vunpack.c.l.b16 %v3987
  %v6164 = vunpack.c.l.b16 %v3988
  %v6165 = vunpack.c.l.b16 %v3989
  %v6166 = vunpack.c.l.b16 %v3990
  %v6167 = vunpack.c.l.b16 %v3991
  %v6168 = vunpack.c.l.b16 %v3992
  %v6169 = vunpack.c.l.b16 %v3993
  %v6170 = vunpack.c.l.b16 %v3994
  %v6171 = vunpack.c.l.b16 %v3995
  %v6172 = vunpack.c.l.b16 %v3996
  %v6173 = vunpack.c.l.b16 %v3997
  %v6174 = vpack.c.b16 %v6111, %v6110
  %v6175 = vpack.c.b16 %v6113, %v6112
  %v6176 = vpack.c.b16 %v6115, %v6114
  %v6177 = vpack.c.b16 %v6117, %v6116
  %v6178 = vpack.c.b16 %v6119, %v6118
  %v6179 = vpack.c.b16 %v6121, %v6120
  %v6180 = vpack.c.b16 %v6123, %v6122
  %v6181 = vpack.c.b16 %v6125, %v6124
  %v6182 = vpack.c.b16 %v6127, %v6126
  %v6183 = vpack.c.b16 %v6129, %v6128
  %v6184 = vpack.c.b16 %v6131, %v6130
  %v6185 = vpack.c.b16 %v6133, %v6132
  %v6186 = vpack.c.b16 %v6135, %v6134
  %v6187 = vpack.c.b16 %v6137, %v6136
  %v6188 = vpack.c.b16 %v6139, %v6138
  %v6189 = vpack.c.b16 %v6141, %v6140
  %v6190 = vpack.c.b16 %v6143, %v6142
  %v6191 = vpack.c.b16 %v6145, %v6144
  %v6192 = vpack.c.b16 %v6147, %v6146
  %v6193 = vpack.c.b16 %v6149, %v6148
  %v6194 = vpack.c.b16 %v6151, %v6150
  %v6195 = vpack.c.b16 %v6153, %v6152
  %v6196 = vpack.c.b16 %v6155, %v6154
  %v6197 = vpack.c.b16 %v6157, %v6156
  %v6198 = vpack.c.b16 %v6159, %v6158
  %v6199 = vpack.c.b16 %v6161, %v6160
  %v6200 = vpack.c.b16 %v6163, %v6162
  %v6201 = vpack.c.b16 %v6165, %v6164
  %v6202 = vpack.c.b16 %v6167, %v6166
  %v6203 = vpack.c.b16 %v6169, %v6168
  %v6204 = vpack.c.b16 %v6171, %v6170
  %v6205 = vpack.c.b16 %v6173, %v6172
  %6206 = vrot.lane.b32.xlu0 %v6174, 48
  %v6207 = vpop.permute.xlu0 %6206
  %6208 = vrot.lane.b32.xlu0 %v6175, 48
  %v6209 = vpop.permute.xlu0 %6208
  %6210 = vrot.lane.b32.xlu0 %v6176, 48
  %v6211 = vpop.permute.xlu0 %6210
  %6212 = vrot.lane.b32.xlu0 %v6177, 48
  %v6213 = vpop.permute.xlu0 %6212
  %6214 = vrot.lane.b32.xlu0 %v6178, 48
  %v6215 = vpop.permute.xlu0 %6214
  %6216 = vrot.lane.b32.xlu0 %v6179, 48
  %v6217 = vpop.permute.xlu0 %6216
  %6218 = vrot.lane.b32.xlu0 %v6180, 48
  %v6219 = vpop.permute.xlu0 %6218
  %6220 = vrot.lane.b32.xlu0 %v6181, 48
  %v6221 = vpop.permute.xlu0 %6220
  %6222 = vrot.lane.b32.xlu0 %v6182, 48
  %v6223 = vpop.permute.xlu0 %6222
  %6224 = vrot.lane.b32.xlu0 %v6183, 48
  %v6225 = vpop.permute.xlu0 %6224
  %6226 = vrot.lane.b32.xlu0 %v6184, 48
  %v6227 = vpop.permute.xlu0 %6226
  %6228 = vrot.lane.b32.xlu0 %v6185, 48
  %v6229 = vpop.permute.xlu0 %6228
  %6230 = vrot.lane.b32.xlu0 %v6186, 48
  %v6231 = vpop.permute.xlu0 %6230
  %6232 = vrot.lane.b32.xlu0 %v6187, 48
  %v6233 = vpop.permute.xlu0 %6232
  %6234 = vrot.lane.b32.xlu0 %v6188, 48
  %v6235 = vpop.permute.xlu0 %6234
  %6236 = vrot.lane.b32.xlu0 %v6189, 48
  %v6237 = vpop.permute.xlu0 %6236
  %6238 = vrot.lane.b32.xlu0 %v6190, 48
  %v6239 = vpop.permute.xlu0 %6238
  %6240 = vrot.lane.b32.xlu0 %v6191, 48
  %v6241 = vpop.permute.xlu0 %6240
  %6242 = vrot.lane.b32.xlu0 %v6192, 48
  %v6243 = vpop.permute.xlu0 %6242
  %6244 = vrot.lane.b32.xlu0 %v6193, 48
  %v6245 = vpop.permute.xlu0 %6244
  %6246 = vrot.lane.b32.xlu0 %v6194, 48
  %v6247 = vpop.permute.xlu0 %6246
  %6248 = vrot.lane.b32.xlu0 %v6195, 48
  %v6249 = vpop.permute.xlu0 %6248
  %6250 = vrot.lane.b32.xlu0 %v6196, 48
  %v6251 = vpop.permute.xlu0 %6250
  %6252 = vrot.lane.b32.xlu0 %v6197, 48
  %v6253 = vpop.permute.xlu0 %6252
  %6254 = vrot.lane.b32.xlu0 %v6198, 48
  %v6255 = vpop.permute.xlu0 %6254
  %6256 = vrot.lane.b32.xlu0 %v6199, 48
  %v6257 = vpop.permute.xlu0 %6256
  %6258 = vrot.lane.b32.xlu0 %v6200, 48
  %v6259 = vpop.permute.xlu0 %6258
  %6260 = vrot.lane.b32.xlu0 %v6201, 48
  %v6261 = vpop.permute.xlu0 %6260
  %6262 = vrot.lane.b32.xlu0 %v6202, 48
  %v6263 = vpop.permute.xlu0 %6262
  %6264 = vrot.lane.b32.xlu0 %v6203, 48
  %v6265 = vpop.permute.xlu0 %6264
  %6266 = vrot.lane.b32.xlu0 %v6204, 48
  %v6267 = vpop.permute.xlu0 %6266
  %6268 = vrot.lane.b32.xlu0 %v6205, 48
  %v6269 = vpop.permute.xlu0 %6268
  %v6302 = vunpack.c.l.b16 %v3998
  %v6303 = vunpack.c.l.b16 %v3999
  %v6304 = vunpack.c.l.b16 %v4000
  %v6305 = vunpack.c.l.b16 %v4001
  %v6306 = vunpack.c.l.b16 %v4002
  %v6307 = vunpack.c.l.b16 %v4003
  %v6308 = vunpack.c.l.b16 %v4004
  %v6309 = vunpack.c.l.b16 %v4005
  %v6310 = vunpack.c.l.b16 %v4006
  %v6311 = vunpack.c.l.b16 %v4007
  %v6312 = vunpack.c.l.b16 %v4008
  %v6313 = vunpack.c.l.b16 %v4009
  %v6314 = vunpack.c.l.b16 %v4010
  %v6315 = vunpack.c.l.b16 %v4011
  %v6316 = vunpack.c.l.b16 %v4012
  %v6317 = vunpack.c.l.b16 %v4013
  %v6318 = vunpack.c.l.b16 %v4014
  %v6319 = vunpack.c.l.b16 %v4015
  %v6320 = vunpack.c.l.b16 %v4016
  %v6321 = vunpack.c.l.b16 %v4017
  %v6322 = vunpack.c.l.b16 %v4018
  %v6323 = vunpack.c.l.b16 %v4019
  %v6324 = vunpack.c.l.b16 %v4020
  %v6325 = vunpack.c.l.b16 %v4021
  %v6326 = vunpack.c.l.b16 %v4022
  %v6327 = vunpack.c.l.b16 %v4023
  %v6328 = vunpack.c.l.b16 %v4024
  %v6329 = vunpack.c.l.b16 %v4025
  %v6330 = vunpack.c.l.b16 %v4026
  %v6331 = vunpack.c.l.b16 %v4027
  %v6332 = vunpack.c.l.b16 %v4028
  %v6333 = vunpack.c.l.b16 %v4029
  %v6334 = vpack.c.b16 %v6302, %v6302
  %v6335 = vpack.c.b16 %v6303, %v6303
  %v6336 = vpack.c.b16 %v6304, %v6304
  %v6337 = vpack.c.b16 %v6305, %v6305
  %v6338 = vpack.c.b16 %v6306, %v6306
  %v6339 = vpack.c.b16 %v6307, %v6307
  %v6340 = vpack.c.b16 %v6308, %v6308
  %v6341 = vpack.c.b16 %v6309, %v6309
  %v6342 = vpack.c.b16 %v6310, %v6310
  %v6343 = vpack.c.b16 %v6311, %v6311
  %v6344 = vpack.c.b16 %v6312, %v6312
  %v6345 = vpack.c.b16 %v6313, %v6313
  %v6346 = vpack.c.b16 %v6314, %v6314
  %v6347 = vpack.c.b16 %v6315, %v6315
  %v6348 = vpack.c.b16 %v6316, %v6316
  %v6349 = vpack.c.b16 %v6317, %v6317
  %v6350 = vpack.c.b16 %v6318, %v6318
  %v6351 = vpack.c.b16 %v6319, %v6319
  %v6352 = vpack.c.b16 %v6320, %v6320
  %v6353 = vpack.c.b16 %v6321, %v6321
  %v6354 = vpack.c.b16 %v6322, %v6322
  %v6355 = vpack.c.b16 %v6323, %v6323
  %v6356 = vpack.c.b16 %v6324, %v6324
  %v6357 = vpack.c.b16 %v6325, %v6325
  %v6358 = vpack.c.b16 %v6326, %v6326
  %v6359 = vpack.c.b16 %v6327, %v6327
  %v6360 = vpack.c.b16 %v6328, %v6328
  %v6361 = vpack.c.b16 %v6329, %v6329
  %v6362 = vpack.c.b16 %v6330, %v6330
  %v6363 = vpack.c.b16 %v6331, %v6331
  %v6364 = vpack.c.b16 %v6332, %v6332
  %v6365 = vpack.c.b16 %v6333, %v6333
  %v6367 = vshrl.u32 %v6174, 16
  %v6369 = vshll.u32 %v6174, 16
  %v6371 = vrot.slane %v6369, 1
  %v6372 = vor.u32 %v6367, %v6371
  %v6374 = vshll.u32 %v6334, 16
  %v6376 = vrot.slane %v6374, 1
  %v6377 = vsel %vm309, %v6372, %v6376
  %v6379 = vshrl.u32 %v6175, 16
  %v6381 = vshll.u32 %v6175, 16
  %v6383 = vrot.slane %v6381, 1
  %v6384 = vor.u32 %v6379, %v6383
  %v6386 = vshll.u32 %v6335, 16
  %v6388 = vrot.slane %v6386, 1
  %v6389 = vsel %vm309, %v6384, %v6388
  %v6391 = vshrl.u32 %v6176, 16
  %v6393 = vshll.u32 %v6176, 16
  %v6395 = vrot.slane %v6393, 1
  %v6396 = vor.u32 %v6391, %v6395
  %v6398 = vshll.u32 %v6336, 16
  %v6400 = vrot.slane %v6398, 1
  %v6401 = vsel %vm309, %v6396, %v6400
  %v6403 = vshrl.u32 %v6177, 16
  %v6405 = vshll.u32 %v6177, 16
  %v6407 = vrot.slane %v6405, 1
  %v6408 = vor.u32 %v6403, %v6407
  %v6410 = vshll.u32 %v6337, 16
  %v6412 = vrot.slane %v6410, 1
  %v6413 = vsel %vm309, %v6408, %v6412
  %v6415 = vshrl.u32 %v6178, 16
  %v6417 = vshll.u32 %v6178, 16
  %v6419 = vrot.slane %v6417, 1
  %v6420 = vor.u32 %v6415, %v6419
  %v6422 = vshll.u32 %v6338, 16
  %v6424 = vrot.slane %v6422, 1
  %v6425 = vsel %vm309, %v6420, %v6424
  %v6427 = vshrl.u32 %v6179, 16
  %v6429 = vshll.u32 %v6179, 16
  %v6431 = vrot.slane %v6429, 1
  %v6432 = vor.u32 %v6427, %v6431
  %v6434 = vshll.u32 %v6339, 16
  %v6436 = vrot.slane %v6434, 1
  %v6437 = vsel %vm309, %v6432, %v6436
  %v6439 = vshrl.u32 %v6180, 16
  %v6441 = vshll.u32 %v6180, 16
  %v6443 = vrot.slane %v6441, 1
  %v6444 = vor.u32 %v6439, %v6443
  %v6446 = vshll.u32 %v6340, 16
  %v6448 = vrot.slane %v6446, 1
  %v6449 = vsel %vm309, %v6444, %v6448
  %v6451 = vshrl.u32 %v6181, 16
  %v6453 = vshll.u32 %v6181, 16
  %v6455 = vrot.slane %v6453, 1
  %v6456 = vor.u32 %v6451, %v6455
  %v6458 = vshll.u32 %v6341, 16
  %v6460 = vrot.slane %v6458, 1
  %v6461 = vsel %vm309, %v6456, %v6460
  %v6463 = vshrl.u32 %v6182, 16
  %v6465 = vshll.u32 %v6182, 16
  %v6467 = vrot.slane %v6465, 1
  %v6468 = vor.u32 %v6463, %v6467
  %v6470 = vshll.u32 %v6342, 16
  %v6472 = vrot.slane %v6470, 1
  %v6473 = vsel %vm309, %v6468, %v6472
  %v6475 = vshrl.u32 %v6183, 16
  %v6477 = vshll.u32 %v6183, 16
  %v6479 = vrot.slane %v6477, 1
  %v6480 = vor.u32 %v6475, %v6479
  %v6482 = vshll.u32 %v6343, 16
  %v6484 = vrot.slane %v6482, 1
  %v6485 = vsel %vm309, %v6480, %v6484
  %v6487 = vshrl.u32 %v6184, 16
  %v6489 = vshll.u32 %v6184, 16
  %v6491 = vrot.slane %v6489, 1
  %v6492 = vor.u32 %v6487, %v6491
  %v6494 = vshll.u32 %v6344, 16
  %v6496 = vrot.slane %v6494, 1
  %v6497 = vsel %vm309, %v6492, %v6496
  %v6499 = vshrl.u32 %v6185, 16
  %v6501 = vshll.u32 %v6185, 16
  %v6503 = vrot.slane %v6501, 1
  %v6504 = vor.u32 %v6499, %v6503
  %v6506 = vshll.u32 %v6345, 16
  %v6508 = vrot.slane %v6506, 1
  %v6509 = vsel %vm309, %v6504, %v6508
  %v6511 = vshrl.u32 %v6186, 16
  %v6513 = vshll.u32 %v6186, 16
  %v6515 = vrot.slane %v6513, 1
  %v6516 = vor.u32 %v6511, %v6515
  %v6518 = vshll.u32 %v6346, 16
  %v6520 = vrot.slane %v6518, 1
  %v6521 = vsel %vm309, %v6516, %v6520
  %v6523 = vshrl.u32 %v6187, 16
  %v6525 = vshll.u32 %v6187, 16
  %v6527 = vrot.slane %v6525, 1
  %v6528 = vor.u32 %v6523, %v6527
  %v6530 = vshll.u32 %v6347, 16
  %v6532 = vrot.slane %v6530, 1
  %v6533 = vsel %vm309, %v6528, %v6532
  %v6535 = vshrl.u32 %v6188, 16
  %v6537 = vshll.u32 %v6188, 16
  %v6539 = vrot.slane %v6537, 1
  %v6540 = vor.u32 %v6535, %v6539
  %v6542 = vshll.u32 %v6348, 16
  %v6544 = vrot.slane %v6542, 1
  %v6545 = vsel %vm309, %v6540, %v6544
  %v6547 = vshrl.u32 %v6189, 16
  %v6549 = vshll.u32 %v6189, 16
  %v6551 = vrot.slane %v6549, 1
  %v6552 = vor.u32 %v6547, %v6551
  %v6554 = vshll.u32 %v6349, 16
  %v6556 = vrot.slane %v6554, 1
  %v6557 = vsel %vm309, %v6552, %v6556
  %v6559 = vshrl.u32 %v6190, 16
  %v6561 = vshll.u32 %v6190, 16
  %v6563 = vrot.slane %v6561, 1
  %v6564 = vor.u32 %v6559, %v6563
  %v6566 = vshll.u32 %v6350, 16
  %v6568 = vrot.slane %v6566, 1
  %v6569 = vsel %vm309, %v6564, %v6568
  %v6571 = vshrl.u32 %v6191, 16
  %v6573 = vshll.u32 %v6191, 16
  %v6575 = vrot.slane %v6573, 1
  %v6576 = vor.u32 %v6571, %v6575
  %v6578 = vshll.u32 %v6351, 16
  %v6580 = vrot.slane %v6578, 1
  %v6581 = vsel %vm309, %v6576, %v6580
  %v6583 = vshrl.u32 %v6192, 16
  %v6585 = vshll.u32 %v6192, 16
  %v6587 = vrot.slane %v6585, 1
  %v6588 = vor.u32 %v6583, %v6587
  %v6590 = vshll.u32 %v6352, 16
  %v6592 = vrot.slane %v6590, 1
  %v6593 = vsel %vm309, %v6588, %v6592
  %v6595 = vshrl.u32 %v6193, 16
  %v6597 = vshll.u32 %v6193, 16
  %v6599 = vrot.slane %v6597, 1
  %v6600 = vor.u32 %v6595, %v6599
  %v6602 = vshll.u32 %v6353, 16
  %v6604 = vrot.slane %v6602, 1
  %v6605 = vsel %vm309, %v6600, %v6604
  %v6607 = vshrl.u32 %v6194, 16
  %v6609 = vshll.u32 %v6194, 16
  %v6611 = vrot.slane %v6609, 1
  %v6612 = vor.u32 %v6607, %v6611
  %v6614 = vshll.u32 %v6354, 16
  %v6616 = vrot.slane %v6614, 1
  %v6617 = vsel %vm309, %v6612, %v6616
  %v6619 = vshrl.u32 %v6195, 16
  %v6621 = vshll.u32 %v6195, 16
  %v6623 = vrot.slane %v6621, 1
  %v6624 = vor.u32 %v6619, %v6623
  %v6626 = vshll.u32 %v6355, 16
  %v6628 = vrot.slane %v6626, 1
  %v6629 = vsel %vm309, %v6624, %v6628
  %v6631 = vshrl.u32 %v6196, 16
  %v6633 = vshll.u32 %v6196, 16
  %v6635 = vrot.slane %v6633, 1
  %v6636 = vor.u32 %v6631, %v6635
  %v6638 = vshll.u32 %v6356, 16
  %v6640 = vrot.slane %v6638, 1
  %v6641 = vsel %vm309, %v6636, %v6640
  %v6643 = vshrl.u32 %v6197, 16
  %v6645 = vshll.u32 %v6197, 16
  %v6647 = vrot.slane %v6645, 1
  %v6648 = vor.u32 %v6643, %v6647
  %v6650 = vshll.u32 %v6357, 16
  %v6652 = vrot.slane %v6650, 1
  %v6653 = vsel %vm309, %v6648, %v6652
  %v6655 = vshrl.u32 %v6198, 16
  %v6657 = vshll.u32 %v6198, 16
  %v6659 = vrot.slane %v6657, 1
  %v6660 = vor.u32 %v6655, %v6659
  %v6662 = vshll.u32 %v6358, 16
  %v6664 = vrot.slane %v6662, 1
  %v6665 = vsel %vm309, %v6660, %v6664
  %v6667 = vshrl.u32 %v6199, 16
  %v6669 = vshll.u32 %v6199, 16
  %v6671 = vrot.slane %v6669, 1
  %v6672 = vor.u32 %v6667, %v6671
  %v6674 = vshll.u32 %v6359, 16
  %v6676 = vrot.slane %v6674, 1
  %v6677 = vsel %vm309, %v6672, %v6676
  %v6679 = vshrl.u32 %v6200, 16
  %v6681 = vshll.u32 %v6200, 16
  %v6683 = vrot.slane %v6681, 1
  %v6684 = vor.u32 %v6679, %v6683
  %v6686 = vshll.u32 %v6360, 16
  %v6688 = vrot.slane %v6686, 1
  %v6689 = vsel %vm309, %v6684, %v6688
  %v6691 = vshrl.u32 %v6201, 16
  %v6693 = vshll.u32 %v6201, 16
  %v6695 = vrot.slane %v6693, 1
  %v6696 = vor.u32 %v6691, %v6695
  %v6698 = vshll.u32 %v6361, 16
  %v6700 = vrot.slane %v6698, 1
  %v6701 = vsel %vm309, %v6696, %v6700
  %v6703 = vshrl.u32 %v6202, 16
  %v6705 = vshll.u32 %v6202, 16
  %v6707 = vrot.slane %v6705, 1
  %v6708 = vor.u32 %v6703, %v6707
  %v6710 = vshll.u32 %v6362, 16
  %v6712 = vrot.slane %v6710, 1
  %v6713 = vsel %vm309, %v6708, %v6712
  %v6715 = vshrl.u32 %v6203, 16
  %v6717 = vshll.u32 %v6203, 16
  %v6719 = vrot.slane %v6717, 1
  %v6720 = vor.u32 %v6715, %v6719
  %v6722 = vshll.u32 %v6363, 16
  %v6724 = vrot.slane %v6722, 1
  %v6725 = vsel %vm309, %v6720, %v6724
  %v6727 = vshrl.u32 %v6204, 16
  %v6729 = vshll.u32 %v6204, 16
  %v6731 = vrot.slane %v6729, 1
  %v6732 = vor.u32 %v6727, %v6731
  %v6734 = vshll.u32 %v6364, 16
  %v6736 = vrot.slane %v6734, 1
  %v6737 = vsel %vm309, %v6732, %v6736
  %v6739 = vshrl.u32 %v6205, 16
  %v6741 = vshll.u32 %v6205, 16
  %v6743 = vrot.slane %v6741, 1
  %v6744 = vor.u32 %v6739, %v6743
  %v6746 = vshll.u32 %v6365, 16
  %v6748 = vrot.slane %v6746, 1
  %v6749 = vsel %vm309, %v6744, %v6748
  %6750 = vrot.lane.b32.xlu0 %v6377, 56
  %v6751 = vpop.permute.xlu0 %6750
  %6752 = vrot.lane.b32.xlu0 %v6389, 56
  %v6753 = vpop.permute.xlu0 %6752
  %6754 = vrot.lane.b32.xlu0 %v6401, 56
  %v6755 = vpop.permute.xlu0 %6754
  %6756 = vrot.lane.b32.xlu0 %v6413, 56
  %v6757 = vpop.permute.xlu0 %6756
  %6758 = vrot.lane.b32.xlu0 %v6425, 56
  %v6759 = vpop.permute.xlu0 %6758
  %6760 = vrot.lane.b32.xlu0 %v6437, 56
  %v6761 = vpop.permute.xlu0 %6760
  %6762 = vrot.lane.b32.xlu0 %v6449, 56
  %v6763 = vpop.permute.xlu0 %6762
  %6764 = vrot.lane.b32.xlu0 %v6461, 56
  %v6765 = vpop.permute.xlu0 %6764
  %6766 = vrot.lane.b32.xlu0 %v6473, 56
  %v6767 = vpop.permute.xlu0 %6766
  %6768 = vrot.lane.b32.xlu0 %v6485, 56
  %v6769 = vpop.permute.xlu0 %6768
  %6770 = vrot.lane.b32.xlu0 %v6497, 56
  %v6771 = vpop.permute.xlu0 %6770
  %6772 = vrot.lane.b32.xlu0 %v6509, 56
  %v6773 = vpop.permute.xlu0 %6772
  %6774 = vrot.lane.b32.xlu0 %v6521, 56
  %v6775 = vpop.permute.xlu0 %6774
  %6776 = vrot.lane.b32.xlu0 %v6533, 56
  %v6777 = vpop.permute.xlu0 %6776
  %6778 = vrot.lane.b32.xlu0 %v6545, 56
  %v6779 = vpop.permute.xlu0 %6778
  %6780 = vrot.lane.b32.xlu0 %v6557, 56
  %v6781 = vpop.permute.xlu0 %6780
  %6782 = vrot.lane.b32.xlu0 %v6569, 56
  %v6783 = vpop.permute.xlu0 %6782
  %6784 = vrot.lane.b32.xlu0 %v6581, 56
  %v6785 = vpop.permute.xlu0 %6784
  %6786 = vrot.lane.b32.xlu0 %v6593, 56
  %v6787 = vpop.permute.xlu0 %6786
  %6788 = vrot.lane.b32.xlu0 %v6605, 56
  %v6789 = vpop.permute.xlu0 %6788
  %6790 = vrot.lane.b32.xlu0 %v6617, 56
  %v6791 = vpop.permute.xlu0 %6790
  %6792 = vrot.lane.b32.xlu0 %v6629, 56
  %v6793 = vpop.permute.xlu0 %6792
  %6794 = vrot.lane.b32.xlu0 %v6641, 56
  %v6795 = vpop.permute.xlu0 %6794
  %6796 = vrot.lane.b32.xlu0 %v6653, 56
  %v6797 = vpop.permute.xlu0 %6796
  %6798 = vrot.lane.b32.xlu0 %v6665, 56
  %v6799 = vpop.permute.xlu0 %6798
  %6800 = vrot.lane.b32.xlu0 %v6677, 56
  %v6801 = vpop.permute.xlu0 %6800
  %6802 = vrot.lane.b32.xlu0 %v6689, 56
  %v6803 = vpop.permute.xlu0 %6802
  %6804 = vrot.lane.b32.xlu0 %v6701, 56
  %v6805 = vpop.permute.xlu0 %6804
  %6806 = vrot.lane.b32.xlu0 %v6713, 56
  %v6807 = vpop.permute.xlu0 %6806
  %6808 = vrot.lane.b32.xlu0 %v6725, 56
  %v6809 = vpop.permute.xlu0 %6808
  %6810 = vrot.lane.b32.xlu0 %v6737, 56
  %v6811 = vpop.permute.xlu0 %6810
  %6812 = vrot.lane.b32.xlu0 %v6749, 56
  %v6813 = vpop.permute.xlu0 %6812
  %v6846 = vunpack.c.l.b16 %v4030
  %v6847 = vunpack.c.l.b16 %v4031
  %v6848 = vunpack.c.l.b16 %v4032
  %v6849 = vunpack.c.l.b16 %v4033
  %v6850 = vunpack.c.l.b16 %v4034
  %v6851 = vunpack.c.l.b16 %v4035
  %v6852 = vunpack.c.l.b16 %v4036
  %v6853 = vunpack.c.l.b16 %v4037
  %v6854 = vunpack.c.l.b16 %v4038
  %v6855 = vunpack.c.l.b16 %v4039
  %v6856 = vunpack.c.l.b16 %v4040
  %v6857 = vunpack.c.l.b16 %v4041
  %v6858 = vunpack.c.l.b16 %v4042
  %v6859 = vunpack.c.l.b16 %v4043
  %v6860 = vunpack.c.l.b16 %v4044
  %v6861 = vunpack.c.l.b16 %v4045
  %v6862 = vunpack.c.l.b16 %v4046
  %v6863 = vunpack.c.l.b16 %v4047
  %v6864 = vunpack.c.l.b16 %v4048
  %v6865 = vunpack.c.l.b16 %v4049
  %v6866 = vunpack.c.l.b16 %v4050
  %v6867 = vunpack.c.l.b16 %v4051
  %v6868 = vunpack.c.l.b16 %v4052
  %v6869 = vunpack.c.l.b16 %v4053
  %v6870 = vunpack.c.l.b16 %v4054
  %v6871 = vunpack.c.l.b16 %v4055
  %v6872 = vunpack.c.l.b16 %v4056
  %v6873 = vunpack.c.l.b16 %v4057
  %v6874 = vunpack.c.l.b16 %v4058
  %v6875 = vunpack.c.l.b16 %v4059
  %v6876 = vunpack.c.l.b16 %v4060
  %v6877 = vunpack.c.l.b16 %v4061
  %v6878 = vpack.c.b16 %v6111, %v6846
  %v6879 = vpack.c.b16 %v6113, %v6847
  %v6880 = vpack.c.b16 %v6115, %v6848
  %v6881 = vpack.c.b16 %v6117, %v6849
  %v6882 = vpack.c.b16 %v6119, %v6850
  %v6883 = vpack.c.b16 %v6121, %v6851
  %v6884 = vpack.c.b16 %v6123, %v6852
  %v6885 = vpack.c.b16 %v6125, %v6853
  %v6886 = vpack.c.b16 %v6127, %v6854
  %v6887 = vpack.c.b16 %v6129, %v6855
  %v6888 = vpack.c.b16 %v6131, %v6856
  %v6889 = vpack.c.b16 %v6133, %v6857
  %v6890 = vpack.c.b16 %v6135, %v6858
  %v6891 = vpack.c.b16 %v6137, %v6859
  %v6892 = vpack.c.b16 %v6139, %v6860
  %v6893 = vpack.c.b16 %v6141, %v6861
  %v6894 = vpack.c.b16 %v6143, %v6862
  %v6895 = vpack.c.b16 %v6145, %v6863
  %v6896 = vpack.c.b16 %v6147, %v6864
  %v6897 = vpack.c.b16 %v6149, %v6865
  %v6898 = vpack.c.b16 %v6151, %v6866
  %v6899 = vpack.c.b16 %v6153, %v6867
  %v6900 = vpack.c.b16 %v6155, %v6868
  %v6901 = vpack.c.b16 %v6157, %v6869
  %v6902 = vpack.c.b16 %v6159, %v6870
  %v6903 = vpack.c.b16 %v6161, %v6871
  %v6904 = vpack.c.b16 %v6163, %v6872
  %v6905 = vpack.c.b16 %v6165, %v6873
  %v6906 = vpack.c.b16 %v6167, %v6874
  %v6907 = vpack.c.b16 %v6169, %v6875
  %v6908 = vpack.c.b16 %v6171, %v6876
  %v6909 = vpack.c.b16 %v6173, %v6877
  %v6910 = vrot.slane %v6878, 1
  %v6911 = vrot.slane %v6334, 1
  %v6912 = vsel %vm822, %v6910, %v6911
  %v6913 = vrot.slane %v6879, 1
  %v6914 = vrot.slane %v6335, 1
  %v6915 = vsel %vm822, %v6913, %v6914
  %v6916 = vrot.slane %v6880, 1
  %v6917 = vrot.slane %v6336, 1
  %v6918 = vsel %vm822, %v6916, %v6917
  %v6919 = vrot.slane %v6881, 1
  %v6920 = vrot.slane %v6337, 1
  %v6921 = vsel %vm822, %v6919, %v6920
  %v6922 = vrot.slane %v6882, 1
  %v6923 = vrot.slane %v6338, 1
  %v6924 = vsel %vm822, %v6922, %v6923
  %v6925 = vrot.slane %v6883, 1
  %v6926 = vrot.slane %v6339, 1
  %v6927 = vsel %vm822, %v6925, %v6926
  %v6928 = vrot.slane %v6884, 1
  %v6929 = vrot.slane %v6340, 1
  %v6930 = vsel %vm822, %v6928, %v6929
  %v6931 = vrot.slane %v6885, 1
  %v6932 = vrot.slane %v6341, 1
  %v6933 = vsel %vm822, %v6931, %v6932
  %v6934 = vrot.slane %v6886, 1
  %v6935 = vrot.slane %v6342, 1
  %v6936 = vsel %vm822, %v6934, %v6935
  %v6937 = vrot.slane %v6887, 1
  %v6938 = vrot.slane %v6343, 1
  %v6939 = vsel %vm822, %v6937, %v6938
  %v6940 = vrot.slane %v6888, 1
  %v6941 = vrot.slane %v6344, 1
  %v6942 = vsel %vm822, %v6940, %v6941
  %v6943 = vrot.slane %v6889, 1
  %v6944 = vrot.slane %v6345, 1
  %v6945 = vsel %vm822, %v6943, %v6944
  %v6946 = vrot.slane %v6890, 1
  %v6947 = vrot.slane %v6346, 1
  %v6948 = vsel %vm822, %v6946, %v6947
  %v6949 = vrot.slane %v6891, 1
  %v6950 = vrot.slane %v6347, 1
  %v6951 = vsel %vm822, %v6949, %v6950
  %v6952 = vrot.slane %v6892, 1
  %v6953 = vrot.slane %v6348, 1
  %v6954 = vsel %vm822, %v6952, %v6953
  %v6955 = vrot.slane %v6893, 1
  %v6956 = vrot.slane %v6349, 1
  %v6957 = vsel %vm822, %v6955, %v6956
  %v6958 = vrot.slane %v6894, 1
  %v6959 = vrot.slane %v6350, 1
  %v6960 = vsel %vm822, %v6958, %v6959
  %v6961 = vrot.slane %v6895, 1
  %v6962 = vrot.slane %v6351, 1
  %v6963 = vsel %vm822, %v6961, %v6962
  %v6964 = vrot.slane %v6896, 1
  %v6965 = vrot.slane %v6352, 1
  %v6966 = vsel %vm822, %v6964, %v6965
  %v6967 = vrot.slane %v6897, 1
  %v6968 = vrot.slane %v6353, 1
  %v6969 = vsel %vm822, %v6967, %v6968
  %v6970 = vrot.slane %v6898, 1
  %v6971 = vrot.slane %v6354, 1
  %v6972 = vsel %vm822, %v6970, %v6971
  %v6973 = vrot.slane %v6899, 1
  %v6974 = vrot.slane %v6355, 1
  %v6975 = vsel %vm822, %v6973, %v6974
  %v6976 = vrot.slane %v6900, 1
  %v6977 = vrot.slane %v6356, 1
  %v6978 = vsel %vm822, %v6976, %v6977
  %v6979 = vrot.slane %v6901, 1
  %v6980 = vrot.slane %v6357, 1
  %v6981 = vsel %vm822, %v6979, %v6980
  %v6982 = vrot.slane %v6902, 1
  %v6983 = vrot.slane %v6358, 1
  %v6984 = vsel %vm822, %v6982, %v6983
  %v6985 = vrot.slane %v6903, 1
  %v6986 = vrot.slane %v6359, 1
  %v6987 = vsel %vm822, %v6985, %v6986
  %v6988 = vrot.slane %v6904, 1
  %v6989 = vrot.slane %v6360, 1
  %v6990 = vsel %vm822, %v6988, %v6989
  %v6991 = vrot.slane %v6905, 1
  %v6992 = vrot.slane %v6361, 1
  %v6993 = vsel %vm822, %v6991, %v6992
  %v6994 = vrot.slane %v6906, 1
  %v6995 = vrot.slane %v6362, 1
  %v6996 = vsel %vm822, %v6994, %v6995
  %v6997 = vrot.slane %v6907, 1
  %v6998 = vrot.slane %v6363, 1
  %v6999 = vsel %vm822, %v6997, %v6998
  %v7000 = vrot.slane %v6908, 1
  %v7001 = vrot.slane %v6364, 1
  %v7002 = vsel %vm822, %v7000, %v7001
  %v7003 = vrot.slane %v6909, 1
  %v7004 = vrot.slane %v6365, 1
  %v7005 = vsel %vm822, %v7003, %v7004
  %7006 = vrot.lane.b32.xlu0 %v6912, 64
  %v7007 = vpop.permute.xlu0 %7006
  %7008 = vrot.lane.b32.xlu0 %v6915, 64
  %v7009 = vpop.permute.xlu0 %7008
  %7010 = vrot.lane.b32.xlu0 %v6918, 64
  %v7011 = vpop.permute.xlu0 %7010
  %7012 = vrot.lane.b32.xlu0 %v6921, 64
  %v7013 = vpop.permute.xlu0 %7012
  %7014 = vrot.lane.b32.xlu0 %v6924, 64
  %v7015 = vpop.permute.xlu0 %7014
  %7016 = vrot.lane.b32.xlu0 %v6927, 64
  %v7017 = vpop.permute.xlu0 %7016
  %7018 = vrot.lane.b32.xlu0 %v6930, 64
  %v7019 = vpop.permute.xlu0 %7018
  %7020 = vrot.lane.b32.xlu0 %v6933, 64
  %v7021 = vpop.permute.xlu0 %7020
  %7022 = vrot.lane.b32.xlu0 %v6936, 64
  %v7023 = vpop.permute.xlu0 %7022
  %7024 = vrot.lane.b32.xlu0 %v6939, 64
  %v7025 = vpop.permute.xlu0 %7024
  %7026 = vrot.lane.b32.xlu0 %v6942, 64
  %v7027 = vpop.permute.xlu0 %7026
  %7028 = vrot.lane.b32.xlu0 %v6945, 64
  %v7029 = vpop.permute.xlu0 %7028
  %7030 = vrot.lane.b32.xlu0 %v6948, 64
  %v7031 = vpop.permute.xlu0 %7030
  %7032 = vrot.lane.b32.xlu0 %v6951, 64
  %v7033 = vpop.permute.xlu0 %7032
  %7034 = vrot.lane.b32.xlu0 %v6954, 64
  %v7035 = vpop.permute.xlu0 %7034
  %7036 = vrot.lane.b32.xlu0 %v6957, 64
  %v7037 = vpop.permute.xlu0 %7036
  %7038 = vrot.lane.b32.xlu0 %v6960, 64
  %v7039 = vpop.permute.xlu0 %7038
  %7040 = vrot.lane.b32.xlu0 %v6963, 64
  %v7041 = vpop.permute.xlu0 %7040
  %7042 = vrot.lane.b32.xlu0 %v6966, 64
  %v7043 = vpop.permute.xlu0 %7042
  %7044 = vrot.lane.b32.xlu0 %v6969, 64
  %v7045 = vpop.permute.xlu0 %7044
  %7046 = vrot.lane.b32.xlu0 %v6972, 64
  %v7047 = vpop.permute.xlu0 %7046
  %7048 = vrot.lane.b32.xlu0 %v6975, 64
  %v7049 = vpop.permute.xlu0 %7048
  %7050 = vrot.lane.b32.xlu0 %v6978, 64
  %v7051 = vpop.permute.xlu0 %7050
  %7052 = vrot.lane.b32.xlu0 %v6981, 64
  %v7053 = vpop.permute.xlu0 %7052
  %7054 = vrot.lane.b32.xlu0 %v6984, 64
  %v7055 = vpop.permute.xlu0 %7054
  %7056 = vrot.lane.b32.xlu0 %v6987, 64
  %v7057 = vpop.permute.xlu0 %7056
  %7058 = vrot.lane.b32.xlu0 %v6990, 64
  %v7059 = vpop.permute.xlu0 %7058
  %7060 = vrot.lane.b32.xlu0 %v6993, 64
  %v7061 = vpop.permute.xlu0 %7060
  %7062 = vrot.lane.b32.xlu0 %v6996, 64
  %v7063 = vpop.permute.xlu0 %7062
  %7064 = vrot.lane.b32.xlu0 %v6999, 64
  %v7065 = vpop.permute.xlu0 %7064
  %7066 = vrot.lane.b32.xlu0 %v7002, 64
  %v7067 = vpop.permute.xlu0 %7066
  %7068 = vrot.lane.b32.xlu0 %v7005, 64
  %v7069 = vpop.permute.xlu0 %7068
  %v7071 = vsel %vm1500, %v4190, %v4703
  %v7073 = vsel %vm1500, %v4191, %v4705
  %v7075 = vsel %vm1500, %v4192, %v4707
  %v7077 = vsel %vm1500, %v4193, %v4709
  %v7079 = vsel %vm1500, %v4194, %v4711
  %v7081 = vsel %vm1500, %v4195, %v4713
  %v7083 = vsel %vm1500, %v4196, %v4715
  %v7085 = vsel %vm1500, %v4197, %v4717
  %v7087 = vsel %vm1500, %v4198, %v4719
  %v7089 = vsel %vm1500, %v4199, %v4721
  %v7091 = vsel %vm1500, %v4200, %v4723
  %v7093 = vsel %vm1500, %v4201, %v4725
  %v7095 = vsel %vm1500, %v4202, %v4727
  %v7097 = vsel %vm1500, %v4203, %v4729
  %v7099 = vsel %vm1500, %v4204, %v4731
  %v7101 = vsel %vm1500, %v4205, %v4733
  %v7103 = vsel %vm1500, %v4206, %v4735
  %v7105 = vsel %vm1500, %v4207, %v4737
  %v7107 = vsel %vm1500, %v4208, %v4739
  %v7109 = vsel %vm1500, %v4209, %v4741
  %v7111 = vsel %vm1500, %v4210, %v4743
  %v7113 = vsel %vm1500, %v4211, %v4745
  %v7115 = vsel %vm1500, %v4212, %v4747
  %v7117 = vsel %vm1500, %v4213, %v4749
  %v7119 = vsel %vm1500, %v4214, %v4751
  %v7121 = vsel %vm1500, %v4215, %v4753
  %v7123 = vsel %vm1500, %v4216, %v4755
  %v7125 = vsel %vm1500, %v4217, %v4757
  %v7127 = vsel %vm1500, %v4218, %v4759
  %v7129 = vsel %vm1500, %v4219, %v4761
  %v7131 = vsel %vm1500, %v4220, %v4763
  %v7133 = vsel %vm1500, %v4221, %v4765
  %v7135 = vsel %vm1630, %v7071, %v4959
  %v7137 = vsel %vm1630, %v7073, %v4961
  %v7139 = vsel %vm1630, %v7075, %v4963
  %v7141 = vsel %vm1630, %v7077, %v4965
  %v7143 = vsel %vm1630, %v7079, %v4967
  %v7145 = vsel %vm1630, %v7081, %v4969
  %v7147 = vsel %vm1630, %v7083, %v4971
  %v7149 = vsel %vm1630, %v7085, %v4973
  %v7151 = vsel %vm1630, %v7087, %v4975
  %v7153 = vsel %vm1630, %v7089, %v4977
  %v7155 = vsel %vm1630, %v7091, %v4979
  %v7157 = vsel %vm1630, %v7093, %v4981
  %v7159 = vsel %vm1630, %v7095, %v4983
  %v7161 = vsel %vm1630, %v7097, %v4985
  %v7163 = vsel %vm1630, %v7099, %v4987
  %v7165 = vsel %vm1630, %v7101, %v4989
  %v7167 = vsel %vm1630, %v7103, %v4991
  %v7169 = vsel %vm1630, %v7105, %v4993
  %v7171 = vsel %vm1630, %v7107, %v4995
  %v7173 = vsel %vm1630, %v7109, %v4997
  %v7175 = vsel %vm1630, %v7111, %v4999
  %v7177 = vsel %vm1630, %v7113, %v5001
  %v7179 = vsel %vm1630, %v7115, %v5003
  %v7181 = vsel %vm1630, %v7117, %v5005
  %v7183 = vsel %vm1630, %v7119, %v5007
  %v7185 = vsel %vm1630, %v7121, %v5009
  %v7187 = vsel %vm1630, %v7123, %v5011
  %v7189 = vsel %vm1630, %v7125, %v5013
  %v7191 = vsel %vm1630, %v7127, %v5015
  %v7193 = vsel %vm1630, %v7129, %v5017
  %v7195 = vsel %vm1630, %v7131, %v5019
  %v7197 = vsel %vm1630, %v7133, %v5021
  %v7199 = vsel %vm1760, %v7135, %v5183
  %v7201 = vsel %vm1760, %v7137, %v5185
  %v7203 = vsel %vm1760, %v7139, %v5187
  %v7205 = vsel %vm1760, %v7141, %v5189
  %v7207 = vsel %vm1760, %v7143, %v5191
  %v7209 = vsel %vm1760, %v7145, %v5193
  %v7211 = vsel %vm1760, %v7147, %v5195
  %v7213 = vsel %vm1760, %v7149, %v5197
  %v7215 = vsel %vm1760, %v7151, %v5199
  %v7217 = vsel %vm1760, %v7153, %v5201
  %v7219 = vsel %vm1760, %v7155, %v5203
  %v7221 = vsel %vm1760, %v7157, %v5205
  %v7223 = vsel %vm1760, %v7159, %v5207
  %v7225 = vsel %vm1760, %v7161, %v5209
  %v7227 = vsel %vm1760, %v7163, %v5211
  %v7229 = vsel %vm1760, %v7165, %v5213
  %v7231 = vsel %vm1760, %v7167, %v5215
  %v7233 = vsel %vm1760, %v7169, %v5217
  %v7235 = vsel %vm1760, %v7171, %v5219
  %v7237 = vsel %vm1760, %v7173, %v5221
  %v7239 = vsel %vm1760, %v7175, %v5223
  %v7241 = vsel %vm1760, %v7177, %v5225
  %v7243 = vsel %vm1760, %v7179, %v5227
  %v7245 = vsel %vm1760, %v7181, %v5229
  %v7247 = vsel %vm1760, %v7183, %v5231
  %v7249 = vsel %vm1760, %v7185, %v5233
  %v7251 = vsel %vm1760, %v7187, %v5235
  %v7253 = vsel %vm1760, %v7189, %v5237
  %v7255 = vsel %vm1760, %v7191, %v5239
  %v7257 = vsel %vm1760, %v7193, %v5241
  %v7259 = vsel %vm1760, %v7195, %v5243
  %v7261 = vsel %vm1760, %v7197, %v5245
  %v7263 = vsel %vm1890, %v7199, %v5727
  %v7265 = vsel %vm1890, %v7201, %v5729
  %v7267 = vsel %vm1890, %v7203, %v5731
  %v7269 = vsel %vm1890, %v7205, %v5733
  %v7271 = vsel %vm1890, %v7207, %v5735
  %v7273 = vsel %vm1890, %v7209, %v5737
  %v7275 = vsel %vm1890, %v7211, %v5739
  %v7277 = vsel %vm1890, %v7213, %v5741
  %v7279 = vsel %vm1890, %v7215, %v5743
  %v7281 = vsel %vm1890, %v7217, %v5745
  %v7283 = vsel %vm1890, %v7219, %v5747
  %v7285 = vsel %vm1890, %v7221, %v5749
  %v7287 = vsel %vm1890, %v7223, %v5751
  %v7289 = vsel %vm1890, %v7225, %v5753
  %v7291 = vsel %vm1890, %v7227, %v5755
  %v7293 = vsel %vm1890, %v7229, %v5757
  %v7295 = vsel %vm1890, %v7231, %v5759
  %v7297 = vsel %vm1890, %v7233, %v5761
  %v7299 = vsel %vm1890, %v7235, %v5763
  %v7301 = vsel %vm1890, %v7237, %v5765
  %v7303 = vsel %vm1890, %v7239, %v5767
  %v7305 = vsel %vm1890, %v7241, %v5769
  %v7307 = vsel %vm1890, %v7243, %v5771
  %v7309 = vsel %vm1890, %v7245, %v5773
  %v7311 = vsel %vm1890, %v7247, %v5775
  %v7313 = vsel %vm1890, %v7249, %v5777
  %v7315 = vsel %vm1890, %v7251, %v5779
  %v7317 = vsel %vm1890, %v7253, %v5781
  %v7319 = vsel %vm1890, %v7255, %v5783
  %v7321 = vsel %vm1890, %v7257, %v5785
  %v7323 = vsel %vm1890, %v7259, %v5787
  %v7325 = vsel %vm1890, %v7261, %v5789
  %vm7326 = vcmask 326656
  %v7328 = vsel %vm7326, %v7263, %v5983
  %v7330 = vsel %vm7326, %v7265, %v5985
  %v7332 = vsel %vm7326, %v7267, %v5987
  %v7334 = vsel %vm7326, %v7269, %v5989
  %v7336 = vsel %vm7326, %v7271, %v5991
  %v7338 = vsel %vm7326, %v7273, %v5993
  %v7340 = vsel %vm7326, %v7275, %v5995
  %v7342 = vsel %vm7326, %v7277, %v5997
  %v7344 = vsel %vm7326, %v7279, %v5999
  %v7346 = vsel %vm7326, %v7281, %v6001
  %v7348 = vsel %vm7326, %v7283, %v6003
  %v7350 = vsel %vm7326, %v7285, %v6005
  %v7352 = vsel %vm7326, %v7287, %v6007
  %v7354 = vsel %vm7326, %v7289, %v6009
  %v7356 = vsel %vm7326, %v7291, %v6011
  %v7358 = vsel %vm7326, %v7293, %v6013
  %v7360 = vsel %vm7326, %v7295, %v6015
  %v7362 = vsel %vm7326, %v7297, %v6017
  %v7364 = vsel %vm7326, %v7299, %v6019
  %v7366 = vsel %vm7326, %v7301, %v6021
  %v7368 = vsel %vm7326, %v7303, %v6023
  %v7370 = vsel %vm7326, %v7305, %v6025
  %v7372 = vsel %vm7326, %v7307, %v6027
  %v7374 = vsel %vm7326, %v7309, %v6029
  %v7376 = vsel %vm7326, %v7311, %v6031
  %v7378 = vsel %vm7326, %v7313, %v6033
  %v7380 = vsel %vm7326, %v7315, %v6035
  %v7382 = vsel %vm7326, %v7317, %v6037
  %v7384 = vsel %vm7326, %v7319, %v6039
  %v7386 = vsel %vm7326, %v7321, %v6041
  %v7388 = vsel %vm7326, %v7323, %v6043
  %v7390 = vsel %vm7326, %v7325, %v6045
  %vm7391 = vcmask 392192
  %v7393 = vsel %vm7391, %v7328, %v6207
  %v7395 = vsel %vm7391, %v7330, %v6209
  %v7397 = vsel %vm7391, %v7332, %v6211
  %v7399 = vsel %vm7391, %v7334, %v6213
  %v7401 = vsel %vm7391, %v7336, %v6215
  %v7403 = vsel %vm7391, %v7338, %v6217
  %v7405 = vsel %vm7391, %v7340, %v6219
  %v7407 = vsel %vm7391, %v7342, %v6221
  %v7409 = vsel %vm7391, %v7344, %v6223
  %v7411 = vsel %vm7391, %v7346, %v6225
  %v7413 = vsel %vm7391, %v7348, %v6227
  %v7415 = vsel %vm7391, %v7350, %v6229
  %v7417 = vsel %vm7391, %v7352, %v6231
  %v7419 = vsel %vm7391, %v7354, %v6233
  %v7421 = vsel %vm7391, %v7356, %v6235
  %v7423 = vsel %vm7391, %v7358, %v6237
  %v7425 = vsel %vm7391, %v7360, %v6239
  %v7427 = vsel %vm7391, %v7362, %v6241
  %v7429 = vsel %vm7391, %v7364, %v6243
  %v7431 = vsel %vm7391, %v7366, %v6245
  %v7433 = vsel %vm7391, %v7368, %v6247
  %v7435 = vsel %vm7391, %v7370, %v6249
  %v7437 = vsel %vm7391, %v7372, %v6251
  %v7439 = vsel %vm7391, %v7374, %v6253
  %v7441 = vsel %vm7391, %v7376, %v6255
  %v7443 = vsel %vm7391, %v7378, %v6257
  %v7445 = vsel %vm7391, %v7380, %v6259
  %v7447 = vsel %vm7391, %v7382, %v6261
  %v7449 = vsel %vm7391, %v7384, %v6263
  %v7451 = vsel %vm7391, %v7386, %v6265
  %v7453 = vsel %vm7391, %v7388, %v6267
  %v7455 = vsel %vm7391, %v7390, %v6269
  %vm7456 = vcmask 457728
  %v7458 = vsel %vm7456, %v7393, %v6751
  %v7460 = vsel %vm7456, %v7395, %v6753
  %v7462 = vsel %vm7456, %v7397, %v6755
  %v7464 = vsel %vm7456, %v7399, %v6757
  %v7466 = vsel %vm7456, %v7401, %v6759
  %v7468 = vsel %vm7456, %v7403, %v6761
  %v7470 = vsel %vm7456, %v7405, %v6763
  %v7472 = vsel %vm7456, %v7407, %v6765
  %v7474 = vsel %vm7456, %v7409, %v6767
  %v7476 = vsel %vm7456, %v7411, %v6769
  %v7478 = vsel %vm7456, %v7413, %v6771
  %v7480 = vsel %vm7456, %v7415, %v6773
  %v7482 = vsel %vm7456, %v7417, %v6775
  %v7484 = vsel %vm7456, %v7419, %v6777
  %v7486 = vsel %vm7456, %v7421, %v6779
  %v7488 = vsel %vm7456, %v7423, %v6781
  %v7490 = vsel %vm7456, %v7425, %v6783
  %v7492 = vsel %vm7456, %v7427, %v6785
  %v7494 = vsel %vm7456, %v7429, %v6787
  %v7496 = vsel %vm7456, %v7431, %v6789
  %v7498 = vsel %vm7456, %v7433, %v6791
  %v7500 = vsel %vm7456, %v7435, %v6793
  %v7502 = vsel %vm7456, %v7437, %v6795
  %v7504 = vsel %vm7456, %v7439, %v6797
  %v7506 = vsel %vm7456, %v7441, %v6799
  %v7508 = vsel %vm7456, %v7443, %v6801
  %v7510 = vsel %vm7456, %v7445, %v6803
  %v7512 = vsel %vm7456, %v7447, %v6805
  %v7514 = vsel %vm7456, %v7449, %v6807
  %v7516 = vsel %vm7456, %v7451, %v6809
  %v7518 = vsel %vm7456, %v7453, %v6811
  %v7520 = vsel %vm7456, %v7455, %v6813
  %vm7521 = vcmask 523264
  %v7523 = vsel %vm7521, %v7458, %v7007
  %v7525 = vsel %vm7521, %v7460, %v7009
  %v7527 = vsel %vm7521, %v7462, %v7011
  %v7529 = vsel %vm7521, %v7464, %v7013
  %v7531 = vsel %vm7521, %v7466, %v7015
  %v7533 = vsel %vm7521, %v7468, %v7017
  %v7535 = vsel %vm7521, %v7470, %v7019
  %v7537 = vsel %vm7521, %v7472, %v7021
  %v7539 = vsel %vm7521, %v7474, %v7023
  %v7541 = vsel %vm7521, %v7476, %v7025
  %v7543 = vsel %vm7521, %v7478, %v7027
  %v7545 = vsel %vm7521, %v7480, %v7029
  %v7547 = vsel %vm7521, %v7482, %v7031
  %v7549 = vsel %vm7521, %v7484, %v7033
  %v7551 = vsel %vm7521, %v7486, %v7035
  %v7553 = vsel %vm7521, %v7488, %v7037
  %v7555 = vsel %vm7521, %v7490, %v7039
  %v7557 = vsel %vm7521, %v7492, %v7041
  %v7559 = vsel %vm7521, %v7494, %v7043
  %v7561 = vsel %vm7521, %v7496, %v7045
  %v7563 = vsel %vm7521, %v7498, %v7047
  %v7565 = vsel %vm7521, %v7500, %v7049
  %v7567 = vsel %vm7521, %v7502, %v7051
  %v7569 = vsel %vm7521, %v7504, %v7053
  %v7571 = vsel %vm7521, %v7506, %v7055
  %v7573 = vsel %vm7521, %v7508, %v7057
  %v7575 = vsel %vm7521, %v7510, %v7059
  %v7577 = vsel %vm7521, %v7512, %v7061
  %v7579 = vsel %vm7521, %v7514, %v7063
  %v7581 = vsel %vm7521, %v7516, %v7065
  %v7583 = vsel %vm7521, %v7518, %v7067
  %v7585 = vsel %vm7521, %v7520, %v7069
  %v7586 = vld [vmem:[%s3] sm:$0xf]
  %v7587 = vld [vmem:[%s3 + $0x4] sm:$0xf]
  %v7588 = vld [vmem:[%s3 + $0x8] sm:$0xf]
  %v7589 = vld [vmem:[%s3 + $0xc] sm:$0xf]
  %v7590 = vld [vmem:[%s3 + $0x10] sm:$0xf]
  %v7591 = vld [vmem:[%s3 + $0x14] sm:$0xf]
  %v7592 = vld [vmem:[%s3 + $0x18] sm:$0xf]
  %v7593 = vld [vmem:[%s3 + $0x1c] sm:$0xf]
  %v7594 = vld [vmem:[%s3 + $0x20] sm:$0xf]
  %v7595 = vld [vmem:[%s4] sm:$0x1]
  %v7597 = vlaneseq
  %v7598 = vshrl.u32 %v7597, 7
  %v7599 = vsub.s32 0, %v7598
  %v7600 = vrot.slane %v7595, %v7599
  %v7611 = vunpack.c.l.b16 %v7586
  %v7612 = vunpack.c.l.b16 %v7587
  %v7613 = vunpack.c.l.b16 %v7588
  %v7614 = vunpack.c.l.b16 %v7589
  %v7615 = vunpack.c.l.b16 %v7590
  %v7616 = vunpack.c.l.b16 %v7591
  %v7617 = vunpack.c.l.b16 %v7592
  %v7618 = vunpack.c.l.b16 %v7593
  %v7619 = vunpack.c.l.b16 %v7594
  %v7620 = vpack.c.b16 %v7612, %v7611
  %v7621 = vpack.c.b16 %v7614, %v7613
  %v7622 = vpack.c.b16 %v7616, %v7615
  %v7623 = vpack.c.b16 %v7618, %v7617
  %v7624 = vpack.c.b16 %v7619, %v7619
  %vm7629 = vcmask 588800
  %v7630 = vsel %vm7629, %v7523, 0
  %v7632 = vsel %vm7629, %v7525, 0
  %v7634 = vsel %vm7629, %v7527, 0
  %v7636 = vsel %vm7629, %v7529, 0
  %v7638 = vsel %vm7629, %v7531, 0
  %v7640 = vsel %vm7629, %v7533, 0
  %v7642 = vsel %vm7629, %v7535, 0
  %v7644 = vsel %vm7629, %v7537, 0
  %v7646 = vsel %vm7629, %v7539, 0
  %v7648 = vsel %vm7629, %v7541, 0
  %v7650 = vsel %vm7629, %v7543, 0
  %v7652 = vsel %vm7629, %v7545, 0
  %v7654 = vsel %vm7629, %v7547, 0
  %v7656 = vsel %vm7629, %v7549, 0
  %v7658 = vsel %vm7629, %v7551, 0
  %v7660 = vsel %vm7629, %v7553, 0
  %v7662 = vsel %vm7629, %v7555, 0
  %v7664 = vsel %vm7629, %v7557, 0
  %v7666 = vsel %vm7629, %v7559, 0
  %v7668 = vsel %vm7629, %v7561, 0
  %v7670 = vsel %vm7629, %v7563, 0
  %v7672 = vsel %vm7629, %v7565, 0
  %v7674 = vsel %vm7629, %v7567, 0
  %v7676 = vsel %vm7629, %v7569, 0
  %v7678 = vsel %vm7629, %v7571, 0
  %v7680 = vsel %vm7629, %v7573, 0
  %v7682 = vsel %vm7629, %v7575, 0
  %v7684 = vsel %vm7629, %v7577, 0
  %v7686 = vsel %vm7629, %v7579, 0
  %v7688 = vsel %vm7629, %v7581, 0
  %v7690 = vsel %vm7629, %v7583, 0
  %v7692 = vsel %vm7629, %v7585, 0
  %vm7694 = vcmask 1043456
  %v7696 = vsel %vm7694, %v7624, 0
  %7698 = vmatprep.subr.bf16.mxu0 0
  %7699 = vmatpush1.bf16.msra.mxu0 %v7620
  %7700 = vmatprep.subr.bf16.mxu0 0
  %7701 = vmatpush1.bf16.msra.mxu0 %v7621
  %7702 = vmatprep.subr.bf16.mxu0 0
  %7703 = vmatpush1.bf16.msra.mxu0 %v7622
  %7704 = vmatprep.subr.bf16.mxu0 0
  %7705 = vmatpush1.bf16.msra.mxu0 %v7623
  %7706 = vmatprep.subr.bf16.mxu0 0
  %7707 = vmatpush1.bf16.msra.mxu0 %v7696
  %7708 = vmatprep.subr.bf16.mxu0 0
  %7709 = vmatpush1.bf16.msra.mxu0 0
  %7710 = vmatprep.subr.bf16.mxu0 0
  %7711 = vmatpush1.bf16.msra.mxu0 0
  %7712 = vmatprep.subr.bf16.mxu0 0
  %7713 = vmatpush1.bf16.msra.mxu0 0
  %7714 = vmatprep.subr.bf16.mxu0 0
  %7715 = vmatpush1.bf16.msra.mxu0 0
  %7716 = vmatprep.subr.bf16.mxu0 0
  %7717 = vmatpush1.bf16.msra.mxu0 0
  %7718 = vmatprep.subr.bf16.mxu0 0
  %7719 = vmatpush1.bf16.msra.mxu0 0
  %7720 = vmatprep.subr.bf16.mxu0 0
  %7721 = vmatpush1.bf16.msra.mxu0 0
  %7722 = vmatprep.subr.bf16.mxu0 0
  %7723 = vmatpush1.bf16.msra.mxu0 0
  %7724 = vmatprep.subr.bf16.mxu0 0
  %7725 = vmatpush1.bf16.msra.mxu0 0
  %7726 = vmatprep.subr.bf16.mxu0 0
  %7727 = vmatpush1.bf16.msra.mxu0 0
  %7728 = vmatprep.subr.bf16.mxu0 0
  %7729 = vmatpush1.bf16.msra.mxu0 0
  %7730 = vmatprep.mubr.bf16.mxu0 0
  %7731 = vmatmul.mubr.bf16.gmra.mrb[0].mxu0 %v7630
  %v7732 = vpop.f32.mrb[0].mxu0
  %v7733 = vadd.f32 %v7600, %v7732
  %v7734 = vpop.f32.mrb[0].mxu0
  %v7735 = vpop.f32.mrb[0].mxu0
  %v7736 = vadd.f32 %v7600, %v7735
  %v7737 = vpop.f32.mrb[0].mxu0
  %7738 = vmatprep.mubr.bf16.mxu0 0
  %7739 = vmatmul.mubr.bf16.gmra.mrb[0].mxu0 %v7632
  %v7740 = vpop.f32.mrb[0].mxu0
  %v7741 = vadd.f32 %v7600, %v7740
  %v7742 = vpop.f32.mrb[0].mxu0
  %v7743 = vpop.f32.mrb[0].mxu0
  %v7744 = vadd.f32 %v7600, %v7743
  %v7745 = vpop.f32.mrb[0].mxu0
  %7746 = vmatprep.mubr.bf16.mxu0 0
  %7747 = vmatmul.mubr.bf16.gmra.mrb[0].mxu0 %v7634
  %v7748 = vpop.f32.mrb[0].mxu0
  %v7749 = vadd.f32 %v7600, %v7748
  %v7750 = vpop.f32.mrb[0].mxu0
  %v7751 = vpop.f32.mrb[0].mxu0
  %v7752 = vadd.f32 %v7600, %v7751
  %v7753 = vpop.f32.mrb[0].mxu0
  %7754 = vmatprep.mubr.bf16.mxu0 0
  %7755 = vmatmul.mubr.bf16.gmra.mrb[0].mxu0 %v7636
  %v7756 = vpop.f32.mrb[0].mxu0
  %v7757 = vadd.f32 %v7600, %v7756
  %v7758 = vpop.f32.mrb[0].mxu0
  %v7759 = vpop.f32.mrb[0].mxu0
  %v7760 = vadd.f32 %v7600, %v7759
  %v7761 = vpop.f32.mrb[0].mxu0
  %7762 = vmatprep.mubr.bf16.mxu0 0
  %7763 = vmatmul.mubr.bf16.gmra.mrb[0].mxu0 %v7638
  %v7764 = vpop.f32.mrb[0].mxu0
  %v7765 = vadd.f32 %v7600, %v7764
  %v7766 = vpop.f32.mrb[0].mxu0
  %v7767 = vpop.f32.mrb[0].mxu0
  %v7768 = vadd.f32 %v7600, %v7767
  %v7769 = vpop.f32.mrb[0].mxu0
  %7770 = vmatprep.mubr.bf16.mxu0 0
  %7771 = vmatmul.mubr.bf16.gmra.mrb[0].mxu0 %v7640
  %v7772 = vpop.f32.mrb[0].mxu0
  %v7773 = vadd.f32 %v7600, %v7772
  %v7774 = vpop.f32.mrb[0].mxu0
  %v7775 = vpop.f32.mrb[0].mxu0
  %v7776 = vadd.f32 %v7600, %v7775
  %v7777 = vpop.f32.mrb[0].mxu0
  %7778 = vmatprep.mubr.bf16.mxu0 0
  %7779 = vmatmul.mubr.bf16.gmra.mrb[0].mxu0 %v7642
  %v7780 = vpop.f32.mrb[0].mxu0
  %v7781 = vadd.f32 %v7600, %v7780
  %v7782 = vpop.f32.mrb[0].mxu0
  %v7783 = vpop.f32.mrb[0].mxu0
  %v7784 = vadd.f32 %v7600, %v7783
  %v7785 = vpop.f32.mrb[0].mxu0
  %7786 = vmatprep.mubr.bf16.mxu0 0
  %7787 = vmatmul.mubr.bf16.gmra.mrb[0].mxu0 %v7644
  %v7788 = vpop.f32.mrb[0].mxu0
  %v7789 = vadd.f32 %v7600, %v7788
  %v7790 = vpop.f32.mrb[0].mxu0
  %v7791 = vpop.f32.mrb[0].mxu0
  %v7792 = vadd.f32 %v7600, %v7791
  %v7793 = vpop.f32.mrb[0].mxu0
  %7794 = vmatprep.mubr.bf16.mxu0 0
  %7795 = vmatmul.mubr.bf16.gmra.mrb[0].mxu0 %v7646
  %v7796 = vpop.f32.mrb[0].mxu0
  %v7797 = vadd.f32 %v7600, %v7796
  %v7798 = vpop.f32.mrb[0].mxu0
  %v7799 = vpop.f32.mrb[0].mxu0
  %v7800 = vadd.f32 %v7600, %v7799
  %v7801 = vpop.f32.mrb[0].mxu0
  %7802 = vmatprep.mubr.bf16.mxu0 0
  %7803 = vmatmul.mubr.bf16.gmra.mrb[0].mxu0 %v7648
  %v7804 = vpop.f32.mrb[0].mxu0
  %v7805 = vadd.f32 %v7600, %v7804
  %v7806 = vpop.f32.mrb[0].mxu0
  %v7807 = vpop.f32.mrb[0].mxu0
  %v7808 = vadd.f32 %v7600, %v7807
  %v7809 = vpop.f32.mrb[0].mxu0
  %7810 = vmatprep.mubr.bf16.mxu0 0
  %7811 = vmatmul.mubr.bf16.gmra.mrb[0].mxu0 %v7650
  %v7812 = vpop.f32.mrb[0].mxu0
  %v7813 = vadd.f32 %v7600, %v7812
  %v7814 = vpop.f32.mrb[0].mxu0
  %v7815 = vpop.f32.mrb[0].mxu0
  %v7816 = vadd.f32 %v7600, %v7815
  %v7817 = vpop.f32.mrb[0].mxu0
  %7818 = vmatprep.mubr.bf16.mxu0 0
  %7819 = vmatmul.mubr.bf16.gmra.mrb[0].mxu0 %v7652
  %v7820 = vpop.f32.mrb[0].mxu0
  %v7821 = vadd.f32 %v7600, %v7820
  %v7822 = vpop.f32.mrb[0].mxu0
  %v7823 = vpop.f32.mrb[0].mxu0
  %v7824 = vadd.f32 %v7600, %v7823
  %v7825 = vpop.f32.mrb[0].mxu0
  %7826 = vmatprep.mubr.bf16.mxu0 0
  %7827 = vmatmul.mubr.bf16.gmra.mrb[0].mxu0 %v7654
  %v7828 = vpop.f32.mrb[0].mxu0
  %v7829 = vadd.f32 %v7600, %v7828
  %v7830 = vpop.f32.mrb[0].mxu0
  %v7831 = vpop.f32.mrb[0].mxu0
  %v7832 = vadd.f32 %v7600, %v7831
  %v7833 = vpop.f32.mrb[0].mxu0
  %7834 = vmatprep.mubr.bf16.mxu0 0
  %7835 = vmatmul.mubr.bf16.gmra.mrb[0].mxu0 %v7656
  %v7836 = vpop.f32.mrb[0].mxu0
  %v7837 = vadd.f32 %v7600, %v7836
  %v7838 = vpop.f32.mrb[0].mxu0
  %v7839 = vpop.f32.mrb[0].mxu0
  %v7840 = vadd.f32 %v7600, %v7839
  %v7841 = vpop.f32.mrb[0].mxu0
  %7842 = vmatprep.mubr.bf16.mxu0 0
  %7843 = vmatmul.mubr.bf16.gmra.mrb[0].mxu0 %v7658
  %v7844 = vpop.f32.mrb[0].mxu0
  %v7845 = vadd.f32 %v7600, %v7844
  %v7846 = vpop.f32.mrb[0].mxu0
  %v7847 = vpop.f32.mrb[0].mxu0
  %v7848 = vadd.f32 %v7600, %v7847
  %v7849 = vpop.f32.mrb[0].mxu0
  %7850 = vmatprep.mubr.bf16.mxu0 0
  %7851 = vmatmul.mubr.bf16.gmra.mrb[0].mxu0 %v7660
  %v7852 = vpop.f32.mrb[0].mxu0
  %v7853 = vadd.f32 %v7600, %v7852
  %v7854 = vpop.f32.mrb[0].mxu0
  %v7855 = vpop.f32.mrb[0].mxu0
  %v7856 = vadd.f32 %v7600, %v7855
  %v7857 = vpop.f32.mrb[0].mxu0
  %7858 = vmatprep.mubr.bf16.mxu0 0
  %7859 = vmatmul.mubr.bf16.gmra.mrb[0].mxu0 %v7662
  %v7860 = vpop.f32.mrb[0].mxu0
  %v7861 = vadd.f32 %v7600, %v7860
  %v7862 = vpop.f32.mrb[0].mxu0
  %v7863 = vpop.f32.mrb[0].mxu0
  %v7864 = vadd.f32 %v7600, %v7863
  %v7865 = vpop.f32.mrb[0].mxu0
  %7866 = vmatprep.mubr.bf16.mxu0 0
  %7867 = vmatmul.mubr.bf16.gmra.mrb[0].mxu0 %v7664
  %v7868 = vpop.f32.mrb[0].mxu0
  %v7869 = vadd.f32 %v7600, %v7868
  %v7870 = vpop.f32.mrb[0].mxu0
  %v7871 = vpop.f32.mrb[0].mxu0
  %v7872 = vadd.f32 %v7600, %v7871
  %v7873 = vpop.f32.mrb[0].mxu0
  %7874 = vmatprep.mubr.bf16.mxu0 0
  %7875 = vmatmul.mubr.bf16.gmra.mrb[0].mxu0 %v7666
  %v7876 = vpop.f32.mrb[0].mxu0
  %v7877 = vadd.f32 %v7600, %v7876
  %v7878 = vpop.f32.mrb[0].mxu0
  %v7879 = vpop.f32.mrb[0].mxu0
  %v7880 = vadd.f32 %v7600, %v7879
  %v7881 = vpop.f32.mrb[0].mxu0
  %7882 = vmatprep.mubr.bf16.mxu0 0
  %7883 = vmatmul.mubr.bf16.gmra.mrb[0].mxu0 %v7668
  %v7884 = vpop.f32.mrb[0].mxu0
  %v7885 = vadd.f32 %v7600, %v7884
  %v7886 = vpop.f32.mrb[0].mxu0
  %v7887 = vpop.f32.mrb[0].mxu0
  %v7888 = vadd.f32 %v7600, %v7887
  %v7889 = vpop.f32.mrb[0].mxu0
  %7890 = vmatprep.mubr.bf16.mxu0 0
  %7891 = vmatmul.mubr.bf16.gmra.mrb[0].mxu0 %v7670
  %v7892 = vpop.f32.mrb[0].mxu0
  %v7893 = vadd.f32 %v7600, %v7892
  %v7894 = vpop.f32.mrb[0].mxu0
  %v7895 = vpop.f32.mrb[0].mxu0
  %v7896 = vadd.f32 %v7600, %v7895
  %v7897 = vpop.f32.mrb[0].mxu0
  %7898 = vmatprep.mubr.bf16.mxu0 0
  %7899 = vmatmul.mubr.bf16.gmra.mrb[0].mxu0 %v7672
  %v7900 = vpop.f32.mrb[0].mxu0
  %v7901 = vadd.f32 %v7600, %v7900
  %v7902 = vpop.f32.mrb[0].mxu0
  %v7903 = vpop.f32.mrb[0].mxu0
  %v7904 = vadd.f32 %v7600, %v7903
  %v7905 = vpop.f32.mrb[0].mxu0
  %7906 = vmatprep.mubr.bf16.mxu0 0
  %7907 = vmatmul.mubr.bf16.gmra.mrb[0].mxu0 %v7674
  %v7908 = vpop.f32.mrb[0].mxu0
  %v7909 = vadd.f32 %v7600, %v7908
  %v7910 = vpop.f32.mrb[0].mxu0
  %v7911 = vpop.f32.mrb[0].mxu0
  %v7912 = vadd.f32 %v7600, %v7911
  %v7913 = vpop.f32.mrb[0].mxu0
  %7914 = vmatprep.mubr.bf16.mxu0 0
  %7915 = vmatmul.mubr.bf16.gmra.mrb[0].mxu0 %v7676
  %v7916 = vpop.f32.mrb[0].mxu0
  %v7917 = vadd.f32 %v7600, %v7916
  %v7918 = vpop.f32.mrb[0].mxu0
  %v7919 = vpop.f32.mrb[0].mxu0
  %v7920 = vadd.f32 %v7600, %v7919
  %v7921 = vpop.f32.mrb[0].mxu0
  %7922 = vmatprep.mubr.bf16.mxu0 0
  %7923 = vmatmul.mubr.bf16.gmra.mrb[0].mxu0 %v7678
  %v7924 = vpop.f32.mrb[0].mxu0
  %v7925 = vadd.f32 %v7600, %v7924
  %v7926 = vpop.f32.mrb[0].mxu0
  %v7927 = vpop.f32.mrb[0].mxu0
  %v7928 = vadd.f32 %v7600, %v7927
  %v7929 = vpop.f32.mrb[0].mxu0
  %7930 = vmatprep.mubr.bf16.mxu0 0
  %7931 = vmatmul.mubr.bf16.gmra.mrb[0].mxu0 %v7680
  %v7932 = vpop.f32.mrb[0].mxu0
  %v7933 = vadd.f32 %v7600, %v7932
  %v7934 = vpop.f32.mrb[0].mxu0
  %v7935 = vpop.f32.mrb[0].mxu0
  %v7936 = vadd.f32 %v7600, %v7935
  %v7937 = vpop.f32.mrb[0].mxu0
  %7938 = vmatprep.mubr.bf16.mxu0 0
  %7939 = vmatmul.mubr.bf16.gmra.mrb[0].mxu0 %v7682
  %v7940 = vpop.f32.mrb[0].mxu0
  %v7941 = vadd.f32 %v7600, %v7940
  %v7942 = vpop.f32.mrb[0].mxu0
  %v7943 = vpop.f32.mrb[0].mxu0
  %v7944 = vadd.f32 %v7600, %v7943
  %v7945 = vpop.f32.mrb[0].mxu0
  %7946 = vmatprep.mubr.bf16.mxu0 0
  %7947 = vmatmul.mubr.bf16.gmra.mrb[0].mxu0 %v7684
  %v7948 = vpop.f32.mrb[0].mxu0
  %v7949 = vadd.f32 %v7600, %v7948
  %v7950 = vpop.f32.mrb[0].mxu0
  %v7951 = vpop.f32.mrb[0].mxu0
  %v7952 = vadd.f32 %v7600, %v7951
  %v7953 = vpop.f32.mrb[0].mxu0
  %7954 = vmatprep.mubr.bf16.mxu0 0
  %7955 = vmatmul.mubr.bf16.gmra.mrb[0].mxu0 %v7686
  %v7956 = vpop.f32.mrb[0].mxu0
  %v7957 = vadd.f32 %v7600, %v7956
  %v7958 = vpop.f32.mrb[0].mxu0
  %v7959 = vpop.f32.mrb[0].mxu0
  %v7960 = vadd.f32 %v7600, %v7959
  %v7961 = vpop.f32.mrb[0].mxu0
  %7962 = vmatprep.mubr.bf16.mxu0 0
  %7963 = vmatmul.mubr.bf16.gmra.mrb[0].mxu0 %v7688
  %v7964 = vpop.f32.mrb[0].mxu0
  %v7965 = vadd.f32 %v7600, %v7964
  %v7966 = vpop.f32.mrb[0].mxu0
  %v7967 = vpop.f32.mrb[0].mxu0
  %v7968 = vadd.f32 %v7600, %v7967
  %v7969 = vpop.f32.mrb[0].mxu0
  %7970 = vmatprep.mubr.bf16.mxu0 0
  %7971 = vmatmul.mubr.bf16.gmra.mrb[0].mxu0 %v7690
  %v7972 = vpop.f32.mrb[0].mxu0
  %v7973 = vadd.f32 %v7600, %v7972
  %v7974 = vpop.f32.mrb[0].mxu0
  %v7975 = vpop.f32.mrb[0].mxu0
  %v7976 = vadd.f32 %v7600, %v7975
  %v7977 = vpop.f32.mrb[0].mxu0
  %7978 = vmatprep.mubr.bf16.mxu0 0
  %7979 = vmatmul.mubr.bf16.gmra.mrb[0].mxu0 %v7692
  %v7980 = vpop.f32.mrb[0].mxu0
  %v7981 = vadd.f32 %v7600, %v7980
  %v7982 = vpop.f32.mrb[0].mxu0
  %v7983 = vpop.f32.mrb[0].mxu0
  %v7984 = vadd.f32 %v7600, %v7983
  %v7985 = vpop.f32.mrb[0].mxu0
  %7986 = vdwg.mxu0
  %vm8083 = vcmask 1046528
  %v8084 = vrot.slane %v24, 1
  %v8085 = vrot.slane %v25, 1
  %v8086 = vsel %vm8083, %v8084, %v8085
  %v8087 = vrot.slane %v26, 1
  %v8088 = vsel %vm8083, %v8085, %v8087
  %v8089 = vrot.slane %v27, 1
  %v8090 = vrot.slane %v28, 1
  %v8091 = vsel %vm8083, %v8089, %v8090
  %v8092 = vrot.slane %v29, 1
  %v8093 = vsel %vm8083, %v8090, %v8092
  %v8094 = vrot.slane %v30, 1
  %v8095 = vrot.slane %v31, 1
  %v8096 = vsel %vm8083, %v8094, %v8095
  %v8097 = vrot.slane %v32, 1
  %v8098 = vsel %vm8083, %v8095, %v8097
  %v8099 = vrot.slane %v33, 1
  %v8100 = vrot.slane %v34, 1
  %v8101 = vsel %vm8083, %v8099, %v8100
  %v8102 = vrot.slane %v35, 1
  %v8103 = vsel %vm8083, %v8100, %v8102
  %v8104 = vrot.slane %v36, 1
  %v8105 = vrot.slane %v37, 1
  %v8106 = vsel %vm8083, %v8104, %v8105
  %v8107 = vrot.slane %v38, 1
  %v8108 = vsel %vm8083, %v8105, %v8107
  %v8109 = vrot.slane %v39, 1
  %v8110 = vrot.slane %v40, 1
  %v8111 = vsel %vm8083, %v8109, %v8110
  %v8112 = vrot.slane %v41, 1
  %v8113 = vsel %vm8083, %v8110, %v8112
  %v8114 = vrot.slane %v42, 1
  %v8115 = vrot.slane %v43, 1
  %v8116 = vsel %vm8083, %v8114, %v8115
  %v8117 = vrot.slane %v44, 1
  %v8118 = vsel %vm8083, %v8115, %v8117
  %v8119 = vrot.slane %v45, 1
  %v8120 = vrot.slane %v46, 1
  %v8121 = vsel %vm8083, %v8119, %v8120
  %v8122 = vrot.slane %v47, 1
  %v8123 = vsel %vm8083, %v8120, %v8122
  %v8124 = vrot.slane %v48, 1
  %v8125 = vrot.slane %v49, 1
  %v8126 = vsel %vm8083, %v8124, %v8125
  %v8127 = vrot.slane %v50, 1
  %v8128 = vsel %vm8083, %v8125, %v8127
  %v8129 = vrot.slane %v51, 1
  %v8130 = vrot.slane %v52, 1
  %v8131 = vsel %vm8083, %v8129, %v8130
  %v8132 = vrot.slane %v53, 1
  %v8133 = vsel %vm8083, %v8130, %v8132
  %v8134 = vrot.slane %v54, 1
  %v8135 = vrot.slane %v55, 1
  %v8136 = vsel %vm8083, %v8134, %v8135
  %v8137 = vrot.slane %v56, 1
  %v8138 = vsel %vm8083, %v8135, %v8137
  %v8139 = vrot.slane %v57, 1
  %v8140 = vrot.slane %v58, 1
  %v8141 = vsel %vm8083, %v8139, %v8140
  %v8142 = vrot.slane %v59, 1
  %v8143 = vsel %vm8083, %v8140, %v8142
  %v8144 = vrot.slane %v60, 1
  %v8145 = vrot.slane %v61, 1
  %v8146 = vsel %vm8083, %v8144, %v8145
  %v8147 = vrot.slane %v62, 1
  %v8148 = vsel %vm8083, %v8145, %v8147
  %v8149 = vrot.slane %v63, 1
  %v8150 = vrot.slane %v64, 1
  %v8151 = vsel %vm8083, %v8149, %v8150
  %v8152 = vrot.slane %v65, 1
  %v8153 = vsel %vm8083, %v8150, %v8152
  %v8154 = vrot.slane %v66, 1
  %v8155 = vrot.slane %v67, 1
  %v8156 = vsel %vm8083, %v8154, %v8155
  %v8157 = vrot.slane %v68, 1
  %v8158 = vsel %vm8083, %v8155, %v8157
  %v8159 = vrot.slane %v69, 1
  %v8160 = vrot.slane %v70, 1
  %v8161 = vsel %vm8083, %v8159, %v8160
  %v8162 = vrot.slane %v71, 1
  %v8163 = vsel %vm8083, %v8160, %v8162
  %v8164 = vrot.slane %v78, 1
  %v8165 = vrot.slane %v79, 1
  %v8166 = vsel %vm8083, %v8164, %v8165
  %v8167 = vrot.slane %v80, 1
  %v8168 = vsel %vm8083, %v8165, %v8167
  %v8169 = vrot.slane %v81, 1
  %v8170 = vrot.slane %v82, 1
  %v8171 = vsel %vm8083, %v8169, %v8170
  %v8172 = vrot.slane %v83, 1
  %v8173 = vsel %vm8083, %v8170, %v8172
  %v8174 = vrot.slane %v84, 1
  %v8175 = vrot.slane %v85, 1
  %v8176 = vsel %vm8083, %v8174, %v8175
  %v8177 = vrot.slane %v86, 1
  %v8178 = vsel %vm8083, %v8175, %v8177
  %v8179 = vrot.slane %v87, 1
  %v8180 = vrot.slane %v88, 1
  %v8181 = vsel %vm8083, %v8179, %v8180
  %v8182 = vrot.slane %v89, 1
  %v8183 = vsel %vm8083, %v8180, %v8182
  %v8184 = vrot.slane %v90, 1
  %v8185 = vrot.slane %v91, 1
  %v8186 = vsel %vm8083, %v8184, %v8185
  %v8187 = vrot.slane %v92, 1
  %v8188 = vsel %vm8083, %v8185, %v8187
  %v8189 = vrot.slane %v93, 1
  %v8190 = vrot.slane %v94, 1
  %v8191 = vsel %vm8083, %v8189, %v8190
  %v8192 = vrot.slane %v95, 1
  %v8193 = vsel %vm8083, %v8190, %v8192
  %v8194 = vrot.slane %v96, 1
  %v8195 = vrot.slane %v97, 1
  %v8196 = vsel %vm8083, %v8194, %v8195
  %v8197 = vrot.slane %v98, 1
  %v8198 = vsel %vm8083, %v8195, %v8197
  %v8199 = vrot.slane %v99, 1
  %v8200 = vrot.slane %v100, 1
  %v8201 = vsel %vm8083, %v8199, %v8200
  %v8202 = vrot.slane %v101, 1
  %v8203 = vsel %vm8083, %v8200, %v8202
  %v8204 = vrot.slane %v102, 1
  %v8205 = vrot.slane %v103, 1
  %v8206 = vsel %vm8083, %v8204, %v8205
  %v8207 = vrot.slane %v104, 1
  %v8208 = vsel %vm8083, %v8205, %v8207
  %v8209 = vrot.slane %v105, 1
  %v8210 = vrot.slane %v106, 1
  %v8211 = vsel %vm8083, %v8209, %v8210
  %v8212 = vrot.slane %v107, 1
  %v8213 = vsel %vm8083, %v8210, %v8212
  %v8214 = vrot.slane %v108, 1
  %v8215 = vrot.slane %v109, 1
  %v8216 = vsel %vm8083, %v8214, %v8215
  %v8217 = vrot.slane %v110, 1
  %v8218 = vsel %vm8083, %v8215, %v8217
  %v8219 = vrot.slane %v111, 1
  %v8220 = vrot.slane %v112, 1
  %v8221 = vsel %vm8083, %v8219, %v8220
  %v8222 = vrot.slane %v113, 1
  %v8223 = vsel %vm8083, %v8220, %v8222
  %v8224 = vrot.slane %v114, 1
  %v8225 = vrot.slane %v115, 1
  %v8226 = vsel %vm8083, %v8224, %v8225
  %v8227 = vrot.slane %v116, 1
  %v8228 = vsel %vm8083, %v8225, %v8227
  %v8229 = vrot.slane %v117, 1
  %v8230 = vrot.slane %v118, 1
  %v8231 = vsel %vm8083, %v8229, %v8230
  %v8232 = vrot.slane %v119, 1
  %v8233 = vsel %vm8083, %v8230, %v8232
  %v8234 = vrot.slane %v120, 1
  %v8235 = vrot.slane %v121, 1
  %v8236 = vsel %vm8083, %v8234, %v8235
  %v8237 = vrot.slane %v122, 1
  %v8238 = vsel %vm8083, %v8235, %v8237
  %v8239 = vrot.slane %v123, 1
  %v8240 = vrot.slane %v124, 1
  %v8241 = vsel %vm8083, %v8239, %v8240
  %v8242 = vrot.slane %v125, 1
  %v8243 = vsel %vm8083, %v8240, %v8242
  %v8308 = vadd.f32 %v7733, %v8086
  %v8309 = vadd.f32 %v7736, %v8088
  %v8310 = vadd.f32 %v7741, %v8091
  %v8311 = vadd.f32 %v7744, %v8093
  %v8312 = vadd.f32 %v7749, %v8096
  %v8313 = vadd.f32 %v7752, %v8098
  %v8314 = vadd.f32 %v7757, %v8101
  %v8315 = vadd.f32 %v7760, %v8103
  %v8316 = vadd.f32 %v7765, %v8106
  %v8317 = vadd.f32 %v7768, %v8108
  %v8318 = vadd.f32 %v7773, %v8111
  %v8319 = vadd.f32 %v7776, %v8113
  %v8320 = vadd.f32 %v7781, %v8116
  %v8321 = vadd.f32 %v7784, %v8118
  %v8322 = vadd.f32 %v7789, %v8121
  %v8323 = vadd.f32 %v7792, %v8123
  %v8324 = vadd.f32 %v7797, %v8126
  %v8325 = vadd.f32 %v7800, %v8128
  %v8326 = vadd.f32 %v7805, %v8131
  %v8327 = vadd.f32 %v7808, %v8133
  %v8328 = vadd.f32 %v7813, %v8136
  %v8329 = vadd.f32 %v7816, %v8138
  %v8330 = vadd.f32 %v7821, %v8141
  %v8331 = vadd.f32 %v7824, %v8143
  %v8332 = vadd.f32 %v7829, %v8146
  %v8333 = vadd.f32 %v7832, %v8148
  %v8334 = vadd.f32 %v7837, %v8151
  %v8335 = vadd.f32 %v7840, %v8153
  %v8336 = vadd.f32 %v7845, %v8156
  %v8337 = vadd.f32 %v7848, %v8158
  %v8338 = vadd.f32 %v7853, %v8161
  %v8339 = vadd.f32 %v7856, %v8163
  %v8340 = vadd.f32 %v7861, %v8166
  %v8341 = vadd.f32 %v7864, %v8168
  %v8342 = vadd.f32 %v7869, %v8171
  %v8343 = vadd.f32 %v7872, %v8173
  %v8344 = vadd.f32 %v7877, %v8176
  %v8345 = vadd.f32 %v7880, %v8178
  %v8346 = vadd.f32 %v7885, %v8181
  %v8347 = vadd.f32 %v7888, %v8183
  %v8348 = vadd.f32 %v7893, %v8186
  %v8349 = vadd.f32 %v7896, %v8188
  %v8350 = vadd.f32 %v7901, %v8191
  %v8351 = vadd.f32 %v7904, %v8193
  %v8352 = vadd.f32 %v7909, %v8196
  %v8353 = vadd.f32 %v7912, %v8198
  %v8354 = vadd.f32 %v7917, %v8201
  %v8355 = vadd.f32 %v7920, %v8203
  %v8356 = vadd.f32 %v7925, %v8206
  %v8357 = vadd.f32 %v7928, %v8208
  %v8358 = vadd.f32 %v7933, %v8211
  %v8359 = vadd.f32 %v7936, %v8213
  %v8360 = vadd.f32 %v7941, %v8216
  %v8361 = vadd.f32 %v7944, %v8218
  %v8362 = vadd.f32 %v7949, %v8221
  %v8363 = vadd.f32 %v7952, %v8223
  %v8364 = vadd.f32 %v7957, %v8226
  %v8365 = vadd.f32 %v7960, %v8228
  %v8366 = vadd.f32 %v7965, %v8231
  %v8367 = vadd.f32 %v7968, %v8233
  %v8368 = vadd.f32 %v7973, %v8236
  %v8369 = vadd.f32 %v7976, %v8238
  %v8370 = vadd.f32 %v7981, %v8241
  %v8371 = vadd.f32 %v7984, %v8243
  %8372 = vst.msk [vmem:[%s5] sm:$0xff] %vm1435, %v8308
  %8373 = vst.msk [vmem:[%s5 + $0x8] sm:$0xff] %vm1435, %v8309
  %8374 = vst.msk [vmem:[%s5 + $0x10] sm:$0xff] %vm1435, %v8310
  %8375 = vst.msk [vmem:[%s5 + $0x18] sm:$0xff] %vm1435, %v8311
  %8376 = vst.msk [vmem:[%s5 + $0x20] sm:$0xff] %vm1435, %v8312
  %8377 = vst.msk [vmem:[%s5 + $0x28] sm:$0xff] %vm1435, %v8313
  %8378 = vst.msk [vmem:[%s5 + $0x30] sm:$0xff] %vm1435, %v8314
  %8379 = vst.msk [vmem:[%s5 + $0x38] sm:$0xff] %vm1435, %v8315
  %8380 = vst.msk [vmem:[%s5 + $0x40] sm:$0xff] %vm1435, %v8316
  %8381 = vst.msk [vmem:[%s5 + $0x48] sm:$0xff] %vm1435, %v8317
  %8382 = vst.msk [vmem:[%s5 + $0x50] sm:$0xff] %vm1435, %v8318
  %8383 = vst.msk [vmem:[%s5 + $0x58] sm:$0xff] %vm1435, %v8319
  %8384 = vst.msk [vmem:[%s5 + $0x60] sm:$0xff] %vm1435, %v8320
  %8385 = vst.msk [vmem:[%s5 + $0x68] sm:$0xff] %vm1435, %v8321
  %8386 = vst.msk [vmem:[%s5 + $0x70] sm:$0xff] %vm1435, %v8322
  %8387 = vst.msk [vmem:[%s5 + $0x78] sm:$0xff] %vm1435, %v8323
  %8388 = vst.msk [vmem:[%s5 + $0x80] sm:$0xff] %vm1435, %v8324
  %8389 = vst.msk [vmem:[%s5 + $0x88] sm:$0xff] %vm1435, %v8325
  %8390 = vst.msk [vmem:[%s5 + $0x90] sm:$0xff] %vm1435, %v8326
  %8391 = vst.msk [vmem:[%s5 + $0x98] sm:$0xff] %vm1435, %v8327
  %8392 = vst.msk [vmem:[%s5 + $0xa0] sm:$0xff] %vm1435, %v8328
  %8393 = vst.msk [vmem:[%s5 + $0xa8] sm:$0xff] %vm1435, %v8329
  %8394 = vst.msk [vmem:[%s5 + $0xb0] sm:$0xff] %vm1435, %v8330
  %8395 = vst.msk [vmem:[%s5 + $0xb8] sm:$0xff] %vm1435, %v8331
  %8396 = vst.msk [vmem:[%s5 + $0xc0] sm:$0xff] %vm1435, %v8332
  %8397 = vst.msk [vmem:[%s5 + $0xc8] sm:$0xff] %vm1435, %v8333
  %8398 = vst.msk [vmem:[%s5 + $0xd0] sm:$0xff] %vm1435, %v8334
  %8399 = vst.msk [vmem:[%s5 + $0xd8] sm:$0xff] %vm1435, %v8335
  %8400 = vst.msk [vmem:[%s5 + $0xe0] sm:$0xff] %vm1435, %v8336
  %8401 = vst.msk [vmem:[%s5 + $0xe8] sm:$0xff] %vm1435, %v8337
  %8402 = vst.msk [vmem:[%s5 + $0xf0] sm:$0xff] %vm1435, %v8338
  %8403 = vst.msk [vmem:[%s5 + $0xf8] sm:$0xff] %vm1435, %v8339
  %8404 = vst.msk [vmem:[%s5 + $0x100] sm:$0xff] %vm1435, %v8340
  %8405 = vst.msk [vmem:[%s5 + $0x108] sm:$0xff] %vm1435, %v8341
  %8406 = vst.msk [vmem:[%s5 + $0x110] sm:$0xff] %vm1435, %v8342
  %8407 = vst.msk [vmem:[%s5 + $0x118] sm:$0xff] %vm1435, %v8343
  %8408 = vst.msk [vmem:[%s5 + $0x120] sm:$0xff] %vm1435, %v8344
  %8409 = vst.msk [vmem:[%s5 + $0x128] sm:$0xff] %vm1435, %v8345
  %8410 = vst.msk [vmem:[%s5 + $0x130] sm:$0xff] %vm1435, %v8346
  %8411 = vst.msk [vmem:[%s5 + $0x138] sm:$0xff] %vm1435, %v8347
  %8412 = vst.msk [vmem:[%s5 + $0x140] sm:$0xff] %vm1435, %v8348
  %8413 = vst.msk [vmem:[%s5 + $0x148] sm:$0xff] %vm1435, %v8349
  %8414 = vst.msk [vmem:[%s5 + $0x150] sm:$0xff] %vm1435, %v8350
  %8415 = vst.msk [vmem:[%s5 + $0x158] sm:$0xff] %vm1435, %v8351
  %8416 = vst.msk [vmem:[%s5 + $0x160] sm:$0xff] %vm1435, %v8352
  %8417 = vst.msk [vmem:[%s5 + $0x168] sm:$0xff] %vm1435, %v8353
  %8418 = vst.msk [vmem:[%s5 + $0x170] sm:$0xff] %vm1435, %v8354
  %8419 = vst.msk [vmem:[%s5 + $0x178] sm:$0xff] %vm1435, %v8355
  %8420 = vst.msk [vmem:[%s5 + $0x180] sm:$0xff] %vm1435, %v8356
  %8421 = vst.msk [vmem:[%s5 + $0x188] sm:$0xff] %vm1435, %v8357
  %8422 = vst.msk [vmem:[%s5 + $0x190] sm:$0xff] %vm1435, %v8358
  %8423 = vst.msk [vmem:[%s5 + $0x198] sm:$0xff] %vm1435, %v8359
  %8424 = vst.msk [vmem:[%s5 + $0x1a0] sm:$0xff] %vm1435, %v8360
  %8425 = vst.msk [vmem:[%s5 + $0x1a8] sm:$0xff] %vm1435, %v8361
  %8426 = vst.msk [vmem:[%s5 + $0x1b0] sm:$0xff] %vm1435, %v8362
  %8427 = vst.msk [vmem:[%s5 + $0x1b8] sm:$0xff] %vm1435, %v8363
  %8428 = vst.msk [vmem:[%s5 + $0x1c0] sm:$0xff] %vm1435, %v8364
  %8429 = vst.msk [vmem:[%s5 + $0x1c8] sm:$0xff] %vm1435, %v8365
  %8430 = vst.msk [vmem:[%s5 + $0x1d0] sm:$0xff] %vm1435, %v8366
  %8431 = vst.msk [vmem:[%s5 + $0x1d8] sm:$0xff] %vm1435, %v8367
  %8432 = vst.msk [vmem:[%s5 + $0x1e0] sm:$0xff] %vm1435, %v8368
  %8433 = vst.msk [vmem:[%s5 + $0x1e8] sm:$0xff] %vm1435, %v8369
  %8434 = vst.msk [vmem:[%s5 + $0x1f0] sm:$0xff] %vm1435, %v8370
  %8435 = vst.msk [vmem:[%s5 + $0x1f8] sm:$0xff] %vm1435, %v8371
  // Predicated region
  $region22: #{tpu_custom_call.1} parent=0 // pred_check
    _
  $region23: #{tpu_custom_call.1} parent=0 // pred_check_branch
    %8437 = sbr.rel (0) target = $region25
  $region24: #{tpu_custom_call.1} parent=0 // pred_region
    _
  $region25: #{tpu_custom_call.1} parent=0 // pred_fallthru
    _
  // Predicated region
  $region26: #{tpu_custom_call.1} parent=0 // pred_check
    _
  $region27: #{tpu_custom_call.1} parent=0 // pred_check_branch
    %8439 = sbr.rel (0) target = $region29
  $region28: #{tpu_custom_call.1} parent=0 // pred_region
    _
  $region29: #{tpu_custom_call.1} parent=0 // pred_fallthru
    _

</llo_original>
